<compile_context>
chip_gen: v5e
topology: v5e:2x2
jax: 0.10.0
libtpu: 0.0.40
codegen_flags: <defaults>
</compile_context>

<pallas_src>
import jax
import jax.numpy as jnp
from jax.experimental import pallas as pl
from jax.experimental.pallas import tpu as pltpu

H1_LOGICAL = 1000
H1_PADDED = 1024   # lane-dense padding of the first hidden dim
H2 = 512
H3 = 128
ALIGN = 16         # batch-tile sublane alignment (bf16 packs 16 rows / vreg)


def _round_up(x, m):
    return ((x + m - 1) // m) * m


def mlp_kernel(x_ref,
               w1_ref, b1_ref,
               w2_ref, b2_ref,
               w3_ref, b3_ref,
               w4_ref, b4_ref,
               o_ref):
    # Layer 1: (TB, Fp) bf16 @ (Fp, 1024) bf16 -> f32 acc, +b1, sigmoid (f32).
    h1 = jnp.dot(x_ref[...], w1_ref[...], preferred_element_type=jnp.float32)
    h1 = jax.nn.sigmoid(h1 + b1_ref[...])

    # Layer 2: (TB, 1024) @ (1024, 512).  Padded w2 rows are zero, so the
    # sigmoid(0)=0.5 values in the 24 padded h1 lanes contribute nothing.
    h2 = jnp.dot(h1.astype(jnp.bfloat16), w2_ref[...],
                 preferred_element_type=jnp.float32)
    h2 = jax.nn.sigmoid(h2 + b2_ref[...])

    # Layer 3: (TB, 512) @ (512, 128).
    h3 = jnp.dot(h2.astype(jnp.bfloat16), w3_ref[...],
                 preferred_element_type=jnp.float32)
    h3 = jax.nn.sigmoid(h3 + b3_ref[...])

    # Head (Linear(128, 1)): N=1 -> VPU multiply + lane reduction instead of a
    # nearly-empty MXU pass.  w4 is stored as a (1, 128) f32 row.
    out = jnp.sum(h3 * w4_ref[...], axis=-1, keepdims=True) + b4_ref[...]
    o_ref[...] = out.astype(o_ref.dtype)


def _build_call(TB, F_pad, B_pad, weight_args, single_buffer_weights):
    num_blocks = B_pad // TB

    def const2d(i):            # weights/biases: same block every grid step
        return (0, 0)          # -> DMA'd once, VMEM-resident

    if single_buffer_weights:
        # Constant index_map => the block is never re-fetched, so one buffer
        # suffices.  Frees ~17 MiB for w1 alone at the real input_size.
        weight_specs = [pl.BlockSpec(w.shape, const2d,
                                     pipeline_mode=pl.Buffered(1))
                        for w in weight_args]
    else:
        weight_specs = [pl.BlockSpec(w.shape, const2d) for w in weight_args]

    return pl.pallas_call(
        mlp_kernel,
        grid=(num_blocks,),
        in_specs=[pl.BlockSpec((TB, F_pad), lambda i: (i, 0))] + weight_specs,
        out_specs=pl.BlockSpec((TB, 1), lambda i: (i, 0)),
        out_shape=jax.ShapeDtypeStruct((B_pad, 1), jnp.float32),
        compiler_params=pltpu.CompilerParams(
            dimension_semantics=("parallel",),          # v7x: shard over 2 TCs
            vmem_limit_bytes=48 * 1024 * 1024),         # headroom on 64 MiB v7x
    )


def protein_mlp_forward(x, params, *, block_batch=512):
    """x: (B, input_size) float32.  params: dict from init_params()."""
    B, F = x.shape
    F_pad = params["w1"].shape[0]          # multiple of 128 (zero rows past F)
    assert F <= F_pad

    # Batch tile: 16-aligned, no larger than the padded batch; if the whole
    # batch would fit one tile, split into (at least) 2 so both v7x TCs work.
    TB = min(_round_up(block_batch, ALIGN), _round_up(B, ALIGN))
    if _round_up(B, TB) // TB < 2 and TB > ALIGN:
        TB = _round_up(pl.cdiv(_round_up(B, ALIGN), 2), ALIGN)
    B_pad = _round_up(B, TB)

    # Stream x as bf16 (matmul consumes bf16 anyway); zero-pad batch rows and
    # feature columns (zero w1 rows make the feature padding exact).
    x = jnp.pad(x.astype(jnp.bfloat16), ((0, B_pad - B), (0, F_pad - F)))

    weight_args = (params["w1"], params["b1"],
                   params["w2"], params["b2"],
                   params["w3"], params["b3"],
                   params["w4"], params["b4"])

    try:
        out = _build_call(TB, F_pad, B_pad, weight_args, True)(x, *weight_args)
    except Exception:
        # TODO(synk): pl.Buffered(1) unsupported in this JAX build; fall back to
        # default double-buffered weight residency (correct, just more VMEM).
        out = _build_call(TB, F_pad, B_pad, weight_args, False)(x, *weight_args)

    return out[:B]


def init_params(key, input_size):
    """Deterministic synthetic parameters (shapes from ProteinMLP.__init__).

    Weights are stored as (in_features, out_features) = transpose of PyTorch's
    nn.Linear layout, bf16 for the three large layers.  Feature dim is padded
    to a multiple of 128 (zero w1 rows); first hidden dim is padded 1000->1024
    (zero b1 tail + zero w2 rows -> exact).  The (128 -> 1) head weight is a
    (1, 128) f32 row for the in-kernel VPU reduction.
    """
    F_pad = _round_up(input_size, 128)
    params = {}

    def uniform(k, shape, fan_in):
        bound = 1.0 / jnp.sqrt(fan_in)
        return jax.random.uniform(k, shape, jnp.float32, -bound, bound)

    key, kw1, kb1, kw2, kb2, kw3, kb3, kw4, kb4 = jax.random.split(key, 9)

    # Layer 1: input_size -> 1000, padded to (F_pad, 1024).
    w1 = uniform(kw1, (input_size, H1_LOGICAL), input_size)
    b1 = uniform(kb1, (1, H1_LOGICAL), input_size)
    params["w1"] = jnp.pad(
        w1, ((0, F_pad - input_size), (0, H1_PADDED - H1_LOGICAL))
    ).astype(jnp.bfloat16)
    params["b1"] = jnp.pad(b1, ((0, 0), (0, H1_PADDED - H1_LOGICAL)))   # f32

    # Layer 2: 1000 -> 512, padded to 1024 input rows (zero rows kill pad lanes).
    w2 = uniform(kw2, (H1_LOGICAL, H2), H1_LOGICAL)
    params["w2"] = jnp.pad(w2, ((0, H1_PADDED - H1_LOGICAL), (0, 0))).astype(jnp.bfloat16)
    params["b2"] = uniform(kb2, (1, H2), H1_LOGICAL)                    # f32

    # Layer 3: 512 -> 128.
    params["w3"] = uniform(kw3, (H2, H3), H2).astype(jnp.bfloat16)
    params["b3"] = uniform(kb3, (1, H3), H2)                             # f32

    # Head: 128 -> 1, kept f32, stored as a (1, 128) row.
    params["w4"] = uniform(kw4, (1, H3), H3)                             # f32
    params["b4"] = uniform(kb4, (1, 1), H3)                              # f32
    return params


def reference_forward(x, params):
    """Pure-JAX f32 reference using the same (bf16-stored) parameters."""
    F = x.shape[1]
    w1 = params["w1"][:F].astype(jnp.float32)     # drop the zero pad rows
    w2 = params["w2"].astype(jnp.float32)
    w3 = params["w3"].astype(jnp.float32)
    h = jax.nn.sigmoid(x @ w1 + params["b1"])
    h = jax.nn.sigmoid(h @ w2 + params["b2"])
    h = jax.nn.sigmoid(h @ w3 + params["b3"])
    return jnp.sum(h * params["w4"], axis=-1, keepdims=True) + params["b4"]


if __name__ == "__main__":
    key = jax.random.PRNGKey(0)
    key, kx = jax.random.split(key)

    batch = 48
    input_size = 500   # small stand-in for the default 8798 (it's a ctor arg);
                       # exercises the F -> 512 feature padding path

    x = jax.random.normal(kx, (batch, input_size), dtype=jnp.float32)
    params = init_params(key, input_size)

    # batch=48 -> tile split into 2 blocks of 32 (exercises pipelining, weight
    # residency, and the >=2-block grid rule for v7x megacore).
    out = protein_mlp_forward(x, params, block_batch=512)
    out = jax.block_until_ready(out)

    ref = reference_forward(x, params)
    assert out.shape == (batch, 1)
    # Tolerance loosened vs. pure-f32 because matmul operands are bf16 on the MXU.
    assert jnp.allclose(out, ref, atol=2e-2, rtol=2e-2), "mismatch vs JAX reference"

    print("KERNEL_OK")
</pallas_src>

<mosaic_0001>
module attributes {stable_mosaic.version = 11 : i64} {
  func.func @mlp_kernel(%arg0: i32, %arg1: memref<32x512xbf16, #tpu.memory_space<vmem>>, %arg2: memref<512x1024xbf16, #tpu.memory_space<vmem>>, %arg3: memref<1x1024xf32, #tpu.memory_space<vmem>>, %arg4: memref<1024x512xbf16, #tpu.memory_space<vmem>>, %arg5: memref<1x512xf32, #tpu.memory_space<vmem>>, %arg6: memref<512x128xbf16, #tpu.memory_space<vmem>>, %arg7: memref<1x128xf32, #tpu.memory_space<vmem>>, %arg8: memref<1x128xf32, #tpu.memory_space<vmem>>, %arg9: memref<1x1xf32, #tpu.memory_space<vmem>>, %arg10: memref<32x1xf32, #tpu.memory_space<vmem>>) attributes {dimension_semantics = [#tpu.dimension_semantics<parallel>], iteration_bounds = array<i64: 2>, scalar_prefetch = 0 : i64, scratch_operands = 0 : i64, tpu.core_type = #tpu.core_type<tc>, window_params = [{transform_indices = @transform_0, window_bounds = array<i64: 32, 512>}, {pipeline_mode = #tpu.pipeline_mode<synchronous>, transform_indices = @transform_1, window_bounds = array<i64: 512, 1024>}, {pipeline_mode = #tpu.pipeline_mode<synchronous>, transform_indices = @transform_2, window_bounds = array<i64: 1, 1024>}, {pipeline_mode = #tpu.pipeline_mode<synchronous>, transform_indices = @transform_3, window_bounds = array<i64: 1024, 512>}, {pipeline_mode = #tpu.pipeline_mode<synchronous>, transform_indices = @transform_4, window_bounds = array<i64: 1, 512>}, {pipeline_mode = #tpu.pipeline_mode<synchronous>, transform_indices = @transform_5, window_bounds = array<i64: 512, 128>}, {pipeline_mode = #tpu.pipeline_mode<synchronous>, transform_indices = @transform_6, window_bounds = array<i64: 1, 128>}, {pipeline_mode = #tpu.pipeline_mode<synchronous>, transform_indices = @transform_7, window_bounds = array<i64: 1, 128>}, {pipeline_mode = #tpu.pipeline_mode<synchronous>, transform_indices = @transform_8, window_bounds = array<i64: 1, 1>}, {transform_indices = @transform_9, window_bounds = array<i64: 32, 1>}]} {
    %c0 = arith.constant 0 : index
    %c0_0 = arith.constant 0 : index
    %0 = vector.load %arg1[%c0, %c0_0] : memref<32x512xbf16, #tpu.memory_space<vmem>>, vector<32x512xbf16>
    %c0_1 = arith.constant 0 : index
    %c0_2 = arith.constant 0 : index
    %1 = vector.load %arg2[%c0_1, %c0_2] : memref<512x1024xbf16, #tpu.memory_space<vmem>>, vector<512x1024xbf16>
    %cst = arith.constant dense<0.000000e+00> : vector<32x1024xf32>
    %2 = tpu.matmul %0, %1, %cst {dimension_numbers = #tpu.dot_dimension_numbers<[1], [0], [0], [1], [0, 0, 1, 1], [], []>} : vector<32x512xbf16>, vector<512x1024xbf16>, vector<32x1024xf32> -> vector<32x1024xf32>
    %c0_3 = arith.constant 0 : index
    %c0_4 = arith.constant 0 : index
    %3 = vector.load %arg3[%c0_3, %c0_4] : memref<1x1024xf32, #tpu.memory_space<vmem>>, vector<1x1024xf32>
    %4 = vector.broadcast %3 : vector<1x1024xf32> to vector<32x1024xf32>
    %5 = arith.addf %2, %4 : vector<32x1024xf32>
    %6 = arith.negf %5 : vector<32x1024xf32>
    %7 = math.exp %6 : vector<32x1024xf32>
    %cst_5 = arith.constant 1.000000e+00 : f32
    %8 = vector.broadcast %cst_5 : f32 to vector<32x1024xf32>
    %9 = arith.addf %8, %7 : vector<32x1024xf32>
    %10 = arith.divf %8, %9 : vector<32x1024xf32>
    %11 = arith.truncf %10 : vector<32x1024xf32> to vector<32x1024xbf16>
    %c0_6 = arith.constant 0 : index
    %c0_7 = arith.constant 0 : index
    %12 = vector.load %arg4[%c0_6, %c0_7] : memref<1024x512xbf16, #tpu.memory_space<vmem>>, vector<1024x512xbf16>
    %cst_8 = arith.constant dense<0.000000e+00> : vector<32x512xf32>
    %13 = tpu.matmul %11, %12, %cst_8 {dimension_numbers = #tpu.dot_dimension_numbers<[1], [0], [0], [1], [0, 0, 1, 1], [], []>} : vector<32x1024xbf16>, vector<1024x512xbf16>, vector<32x512xf32> -> vector<32x512xf32>
    %c0_9 = arith.constant 0 : index
    %c0_10 = arith.constant 0 : index
    %14 = vector.load %arg5[%c0_9, %c0_10] : memref<1x512xf32, #tpu.memory_space<vmem>>, vector<1x512xf32>
    %15 = vector.broadcast %14 : vector<1x512xf32> to vector<32x512xf32>
    %16 = arith.addf %13, %15 : vector<32x512xf32>
    %17 = arith.negf %16 : vector<32x512xf32>
    %18 = math.exp %17 : vector<32x512xf32>
    %cst_11 = arith.constant 1.000000e+00 : f32
    %19 = vector.broadcast %cst_11 : f32 to vector<32x512xf32>
    %20 = arith.addf %19, %18 : vector<32x512xf32>
    %21 = arith.divf %19, %20 : vector<32x512xf32>
    %22 = arith.truncf %21 : vector<32x512xf32> to vector<32x512xbf16>
    %c0_12 = arith.constant 0 : index
    %c0_13 = arith.constant 0 : index
    %23 = vector.load %arg6[%c0_12, %c0_13] : memref<512x128xbf16, #tpu.memory_space<vmem>>, vector<512x128xbf16>
    %cst_14 = arith.constant dense<0.000000e+00> : vector<32x128xf32>
    %24 = tpu.matmul %22, %23, %cst_14 {dimension_numbers = #tpu.dot_dimension_numbers<[1], [0], [0], [1], [0, 0, 1, 1], [], []>} : vector<32x512xbf16>, vector<512x128xbf16>, vector<32x128xf32> -> vector<32x128xf32>
    %c0_15 = arith.constant 0 : index
    %c0_16 = arith.constant 0 : index
    %25 = vector.load %arg7[%c0_15, %c0_16] : memref<1x128xf32, #tpu.memory_space<vmem>>, vector<1x128xf32>
    %26 = vector.broadcast %25 : vector<1x128xf32> to vector<32x128xf32>
    %27 = arith.addf %24, %26 : vector<32x128xf32>
    %28 = arith.negf %27 : vector<32x128xf32>
    %29 = math.exp %28 : vector<32x128xf32>
    %cst_17 = arith.constant 1.000000e+00 : f32
    %30 = vector.broadcast %cst_17 : f32 to vector<32x128xf32>
    %31 = arith.addf %30, %29 : vector<32x128xf32>
    %32 = arith.divf %30, %31 : vector<32x128xf32>
    %c0_18 = arith.constant 0 : index
    %c0_19 = arith.constant 0 : index
    %33 = vector.load %arg8[%c0_18, %c0_19] : memref<1x128xf32, #tpu.memory_space<vmem>>, vector<1x128xf32>
    %34 = vector.broadcast %33 : vector<1x128xf32> to vector<32x128xf32>
    %35 = arith.mulf %32, %34 : vector<32x128xf32>
    %cst_20 = arith.constant dense<0.000000e+00> : vector<32xf32>
    %36 = vector.multi_reduction <add>, %35, %cst_20 [1] : vector<32x128xf32> to vector<32xf32>
    %37 = vector.shape_cast %36 : vector<32xf32> to vector<32x1xf32>
    %c0_21 = arith.constant 0 : index
    %c0_22 = arith.constant 0 : index
    %38 = vector.load %arg9[%c0_21, %c0_22] : memref<1x1xf32, #tpu.memory_space<vmem>>, vector<1x1xf32>
    %39 = vector.broadcast %38 : vector<1x1xf32> to vector<32x1xf32>
    %40 = arith.addf %37, %39 : vector<32x1xf32>
    %c0_23 = arith.constant 0 : index
    %c0_24 = arith.constant 0 : index
    %41 = vector.load %arg10[%c0_23, %c0_24] : memref<32x1xf32, #tpu.memory_space<vmem>>, vector<32x1xf32>
    tpu.vector_store %arg10[%c0_23, %c0_24], %40 {strides = array<i32>} : memref<32x1xf32, #tpu.memory_space<vmem>>, vector<32x1xf32>,
    return
  }
  func.func @transform_0(%arg0: i32) -> (i32, i32) {
    %c0_i32 = arith.constant 0 : i32
    %c0_i32_0 = arith.constant 0 : i32
    return %arg0, %c0_i32 : i32, i32
  }
  func.func @transform_1(%arg0: i32) -> (i32, i32) {
    %c0_i32 = arith.constant 0 : i32
    %c0_i32_0 = arith.constant 0 : i32
    %c0_i32_1 = arith.constant 0 : i32
    return %c0_i32, %c0_i32_0 : i32, i32
  }
  func.func @transform_2(%arg0: i32) -> (i32, i32) {
    %c0_i32 = arith.constant 0 : i32
    %c0_i32_0 = arith.constant 0 : i32
    %c0_i32_1 = arith.constant 0 : i32
    return %c0_i32, %c0_i32_0 : i32, i32
  }
  func.func @transform_3(%arg0: i32) -> (i32, i32) {
    %c0_i32 = arith.constant 0 : i32
    %c0_i32_0 = arith.constant 0 : i32
    %c0_i32_1 = arith.constant 0 : i32
    return %c0_i32, %c0_i32_0 : i32, i32
  }
  func.func @transform_4(%arg0: i32) -> (i32, i32) {
    %c0_i32 = arith.constant 0 : i32
    %c0_i32_0 = arith.constant 0 : i32
    %c0_i32_1 = arith.constant 0 : i32
    return %c0_i32, %c0_i32_0 : i32, i32
  }
  func.func @transform_5(%arg0: i32) -> (i32, i32) {
    %c0_i32 = arith.constant 0 : i32
    %c0_i32_0 = arith.constant 0 : i32
    %c0_i32_1 = arith.constant 0 : i32
    return %c0_i32, %c0_i32_0 : i32, i32
  }
  func.func @transform_6(%arg0: i32) -> (i32, i32) {
    %c0_i32 = arith.constant 0 : i32
    %c0_i32_0 = arith.constant 0 : i32
    %c0_i32_1 = arith.constant 0 : i32
    return %c0_i32, %c0_i32_0 : i32, i32
  }
  func.func @transform_7(%arg0: i32) -> (i32, i32) {
    %c0_i32 = arith.constant 0 : i32
    %c0_i32_0 = arith.constant 0 : i32
    %c0_i32_1 = arith.constant 0 : i32
    return %c0_i32, %c0_i32_0 : i32, i32
  }
  func.func @transform_8(%arg0: i32) -> (i32, i32) {
    %c0_i32 = arith.constant 0 : i32
    %c0_i32_0 = arith.constant 0 : i32
    %c0_i32_1 = arith.constant 0 : i32
    return %c0_i32, %c0_i32_0 : i32, i32
  }
  func.func @transform_9(%arg0: i32) -> (i32, i32) {
    %c0_i32 = arith.constant 0 : i32
    %c0_i32_0 = arith.constant 0 : i32
    return %arg0, %c0_i32 : i32, i32
  }
}

module attributes {stable_mosaic.version = 11 : i64} {
  func.func @mlp_kernel(%arg0: i32, %arg1: memref<32x512xbf16, #tpu.memory_space<vmem>>, %arg2: memref<512x1024xbf16, #tpu.memory_space<vmem>>, %arg3: memref<1x1024xf32, #tpu.memory_space<vmem>>, %arg4: memref<1024x512xbf16, #tpu.memory_space<vmem>>, %arg5: memref<1x512xf32, #tpu.memory_space<vmem>>, %arg6: memref<512x128xbf16, #tpu.memory_space<vmem>>, %arg7: memref<1x128xf32, #tpu.memory_space<vmem>>, %arg8: memref<1x128xf32, #tpu.memory_space<vmem>>, %arg9: memref<1x1xf32, #tpu.memory_space<vmem>>, %arg10: memref<32x1xf32, #tpu.memory_space<vmem>>) attributes {dimension_semantics = [#tpu.dimension_semantics<parallel>], iteration_bounds = array<i64: 2>, scalar_prefetch = 0 : i64, scratch_operands = 0 : i64, tpu.core_type = #tpu.core_type<tc>, window_params = [{transform_indices = @transform_0, window_bounds = array<i64: 32, 512>}, {pipeline_mode = #tpu.pipeline_mode<synchronous>, transform_indices = @transform_1, window_bounds = array<i64: 512, 1024>}, {pipeline_mode = #tpu.pipeline_mode<synchronous>, transform_indices = @transform_2, window_bounds = array<i64: 1, 1024>}, {pipeline_mode = #tpu.pipeline_mode<synchronous>, transform_indices = @transform_3, window_bounds = array<i64: 1024, 512>}, {pipeline_mode = #tpu.pipeline_mode<synchronous>, transform_indices = @transform_4, window_bounds = array<i64: 1, 512>}, {pipeline_mode = #tpu.pipeline_mode<synchronous>, transform_indices = @transform_5, window_bounds = array<i64: 512, 128>}, {pipeline_mode = #tpu.pipeline_mode<synchronous>, transform_indices = @transform_6, window_bounds = array<i64: 1, 128>}, {pipeline_mode = #tpu.pipeline_mode<synchronous>, transform_indices = @transform_7, window_bounds = array<i64: 1, 128>}, {pipeline_mode = #tpu.pipeline_mode<synchronous>, transform_indices = @transform_8, window_bounds = array<i64: 1, 1>}, {transform_indices = @transform_9, window_bounds = array<i64: 32, 1>}]} {
    %c0 = arith.constant 0 : index
    %c0_0 = arith.constant 0 : index
    %0 = vector.load %arg1[%c0, %c0_0] : memref<32x512xbf16, #tpu.memory_space<vmem>>, vector<32x512xbf16>
    %c0_1 = arith.constant 0 : index
    %c0_2 = arith.constant 0 : index
    %1 = vector.load %arg2[%c0_1, %c0_2] : memref<512x1024xbf16, #tpu.memory_space<vmem>>, vector<512x1024xbf16>
    %cst = arith.constant dense<0.000000e+00> : vector<32x1024xf32>
    %2 = tpu.matmul %0, %1, %cst {dimension_numbers = #tpu.dot_dimension_numbers<[1], [0], [0], [1], [0, 0, 1, 1], [], []>} : vector<32x512xbf16>, vector<512x1024xbf16>, vector<32x1024xf32> -> vector<32x1024xf32>
    %c0_3 = arith.constant 0 : index
    %c0_4 = arith.constant 0 : index
    %3 = vector.load %arg3[%c0_3, %c0_4] : memref<1x1024xf32, #tpu.memory_space<vmem>>, vector<1x1024xf32>
    %4 = vector.broadcast %3 : vector<1x1024xf32> to vector<32x1024xf32>
    %5 = arith.addf %2, %4 : vector<32x1024xf32>
    %6 = arith.negf %5 : vector<32x1024xf32>
    %7 = math.exp %6 : vector<32x1024xf32>
    %cst_5 = arith.constant 1.000000e+00 : f32
    %8 = vector.broadcast %cst_5 : f32 to vector<32x1024xf32>
    %9 = arith.addf %8, %7 : vector<32x1024xf32>
    %10 = arith.divf %8, %9 : vector<32x1024xf32>
    %11 = arith.truncf %10 : vector<32x1024xf32> to vector<32x1024xbf16>
    %c0_6 = arith.constant 0 : index
    %c0_7 = arith.constant 0 : index
    %12 = vector.load %arg4[%c0_6, %c0_7] : memref<1024x512xbf16, #tpu.memory_space<vmem>>, vector<1024x512xbf16>
    %cst_8 = arith.constant dense<0.000000e+00> : vector<32x512xf32>
    %13 = tpu.matmul %11, %12, %cst_8 {dimension_numbers = #tpu.dot_dimension_numbers<[1], [0], [0], [1], [0, 0, 1, 1], [], []>} : vector<32x1024xbf16>, vector<1024x512xbf16>, vector<32x512xf32> -> vector<32x512xf32>
    %c0_9 = arith.constant 0 : index
    %c0_10 = arith.constant 0 : index
    %14 = vector.load %arg5[%c0_9, %c0_10] : memref<1x512xf32, #tpu.memory_space<vmem>>, vector<1x512xf32>
    %15 = vector.broadcast %14 : vector<1x512xf32> to vector<32x512xf32>
    %16 = arith.addf %13, %15 : vector<32x512xf32>
    %17 = arith.negf %16 : vector<32x512xf32>
    %18 = math.exp %17 : vector<32x512xf32>
    %cst_11 = arith.constant 1.000000e+00 : f32
    %19 = vector.broadcast %cst_11 : f32 to vector<32x512xf32>
    %20 = arith.addf %19, %18 : vector<32x512xf32>
    %21 = arith.divf %19, %20 : vector<32x512xf32>
    %22 = arith.truncf %21 : vector<32x512xf32> to vector<32x512xbf16>
    %c0_12 = arith.constant 0 : index
    %c0_13 = arith.constant 0 : index
    %23 = vector.load %arg6[%c0_12, %c0_13] : memref<512x128xbf16, #tpu.memory_space<vmem>>, vector<512x128xbf16>
    %cst_14 = arith.constant dense<0.000000e+00> : vector<32x128xf32>
    %24 = tpu.matmul %22, %23, %cst_14 {dimension_numbers = #tpu.dot_dimension_numbers<[1], [0], [0], [1], [0, 0, 1, 1], [], []>} : vector<32x512xbf16>, vector<512x128xbf16>, vector<32x128xf32> -> vector<32x128xf32>
    %c0_15 = arith.constant 0 : index
    %c0_16 = arith.constant 0 : index
    %25 = vector.load %arg7[%c0_15, %c0_16] : memref<1x128xf32, #tpu.memory_space<vmem>>, vector<1x128xf32>
    %26 = vector.broadcast %25 : vector<1x128xf32> to vector<32x128xf32>
    %27 = arith.addf %24, %26 : vector<32x128xf32>
    %28 = arith.negf %27 : vector<32x128xf32>
    %29 = math.exp %28 : vector<32x128xf32>
    %cst_17 = arith.constant 1.000000e+00 : f32
    %30 = vector.broadcast %cst_17 : f32 to vector<32x128xf32>
    %31 = arith.addf %30, %29 : vector<32x128xf32>
    %32 = arith.divf %30, %31 : vector<32x128xf32>
    %c0_18 = arith.constant 0 : index
    %c0_19 = arith.constant 0 : index
    %33 = vector.load %arg8[%c0_18, %c0_19] : memref<1x128xf32, #tpu.memory_space<vmem>>, vector<1x128xf32>
    %34 = vector.broadcast %33 : vector<1x128xf32> to vector<32x128xf32>
    %35 = arith.mulf %32, %34 : vector<32x128xf32>
    %cst_20 = arith.constant dense<0.000000e+00> : vector<32xf32>
    %36 = vector.multi_reduction <add>, %35, %cst_20 [1] : vector<32x128xf32> to vector<32xf32>
    %37 = vector.shape_cast %36 : vector<32xf32> to vector<32x1xf32>
    %c0_21 = arith.constant 0 : index
    %c0_22 = arith.constant 0 : index
    %38 = vector.load %arg9[%c0_21, %c0_22] : memref<1x1xf32, #tpu.memory_space<vmem>>, vector<1x1xf32>
    %39 = vector.broadcast %38 : vector<1x1xf32> to vector<32x1xf32>
    %40 = arith.addf %37, %39 : vector<32x1xf32>
    %c0_23 = arith.constant 0 : index
    %c0_24 = arith.constant 0 : index
    %41 = vector.load %arg10[%c0_23, %c0_24] : memref<32x1xf32, #tpu.memory_space<vmem>>, vector<32x1xf32>
    tpu.vector_store %arg10[%c0_23, %c0_24], %40 {strides = array<i32>} : memref<32x1xf32, #tpu.memory_space<vmem>>, vector<32x1xf32>,
    return
  }
  func.func @transform_0(%arg0: i32) -> (i32, i32) {
    %c0_i32 = arith.constant 0 : i32
    %c0_i32_0 = arith.constant 0 : i32
    return %arg0, %c0_i32 : i32, i32
  }
  func.func @transform_1(%arg0: i32) -> (i32, i32) {
    %c0_i32 = arith.constant 0 : i32
    %c0_i32_0 = arith.constant 0 : i32
    %c0_i32_1 = arith.constant 0 : i32
    return %c0_i32, %c0_i32_0 : i32, i32
  }
  func.func @transform_2(%arg0: i32) -> (i32, i32) {
    %c0_i32 = arith.constant 0 : i32
    %c0_i32_0 = arith.constant 0 : i32
    %c0_i32_1 = arith.constant 0 : i32
    return %c0_i32, %c0_i32_0 : i32, i32
  }
  func.func @transform_3(%arg0: i32) -> (i32, i32) {
    %c0_i32 = arith.constant 0 : i32
    %c0_i32_0 = arith.constant 0 : i32
    %c0_i32_1 = arith.constant 0 : i32
    return %c0_i32, %c0_i32_0 : i32, i32
  }
  func.func @transform_4(%arg0: i32) -> (i32, i32) {
    %c0_i32 = arith.constant 0 : i32
    %c0_i32_0 = arith.constant 0 : i32
    %c0_i32_1 = arith.constant 0 : i32
    return %c0_i32, %c0_i32_0 : i32, i32
  }
  func.func @transform_5(%arg0: i32) -> (i32, i32) {
    %c0_i32 = arith.constant 0 : i32
    %c0_i32_0 = arith.constant 0 : i32
    %c0_i32_1 = arith.constant 0 : i32
    return %c0_i32, %c0_i32_0 : i32, i32
  }
  func.func @transform_6(%arg0: i32) -> (i32, i32) {
    %c0_i32 = arith.constant 0 : i32
    %c0_i32_0 = arith.constant 0 : i32
    %c0_i32_1 = arith.constant 0 : i32
    return %c0_i32, %c0_i32_0 : i32, i32
  }
  func.func @transform_7(%arg0: i32) -> (i32, i32) {
    %c0_i32 = arith.constant 0 : i32
    %c0_i32_0 = arith.constant 0 : i32
    %c0_i32_1 = arith.constant 0 : i32
    return %c0_i32, %c0_i32_0 : i32, i32
  }
  func.func @transform_8(%arg0: i32) -> (i32, i32) {
    %c0_i32 = arith.constant 0 : i32
    %c0_i32_0 = arith.constant 0 : i32
    %c0_i32_1 = arith.constant 0 : i32
    return %c0_i32, %c0_i32_0 : i32, i32
  }
  func.func @transform_9(%arg0: i32) -> (i32, i32) {
    %c0_i32 = arith.constant 0 : i32
    %c0_i32_0 = arith.constant 0 : i32
    return %arg0, %c0_i32 : i32, i32
  }
}

</mosaic_0001>

<llo_original>
// kernel: tpu_custom_call.1
$region0: #{tpu_custom_call.1}
  #allocation0 [shape = 'u32[]', space=smem, size = 0x4, offset = 0x4, fixed_abs, tag = 'smem constant byte address 0x4 - core index']
  #allocation1 [shape = 'u32[72,128]{1,0:T(1,128)}', space=vmem, size = 0x9000, scoped, tag = 'internal scratch']
  #allocation2 [shape = 'f32[1,1]{1,0:T(1,128)S(1)}', space=vmem, size = 0x200, scoped, tag = 'scoped memory for tpu_custom_call.1']
  %s0 = inlined_call_operand.hbm [shape: bf16[64,512], index: 0, kind: input, shape index: {}]
  %s1 = inlined_call_operand.hbm [shape: bf16[512,1024], index: 1, kind: input, shape index: {}]
  %s2 = inlined_call_operand.hbm [shape: f32[1,1024], index: 2, kind: input, shape index: {}]
  %s3 = inlined_call_operand.hbm [shape: bf16[1024,512], index: 3, kind: input, shape index: {}]
  %s4 = inlined_call_operand.vmem [shape: f32[1,512], index: 4, kind: input, shape index: {}]
  %s5 = inlined_call_operand.hbm [shape: bf16[512,128], index: 5, kind: input, shape index: {}]
  %s6 = inlined_call_operand.vmem [shape: f32[1,128], index: 6, kind: input, shape index: {}]
  %s7 = inlined_call_operand.vmem [shape: f32[1,128], index: 7, kind: input, shape index: {}]
  %s8 = inlined_call_operand.<no memory space> [shape: f32[1,1], index: 8, kind: input, shape index: {}]
  %s9 = inlined_call_operand.vmem [shape: f32[64,1], index: 9, kind: output, shape index: {}]
  %s10 = sld [smem:[#allocation0]]
  $region89: #{tpu_custom_call.1} parent=0
    _
  %s12 = ssub.s32 1, %s10
  %s13 = scalar_select 0, %s12, %s10
  %v14 = vstv %s8
  %15 = vst [vmem:[#allocation2] sm:$0x1] %v14
  $region1: #{tpu_custom_call.1} parent=0
    #allocation3 [shape = 'u8[65536]{0}', space=vmem, size = 0x10000, scoped, tag = 'input window, operand 0']
    #allocation4 [shape = 's32[2]{0}', space=sflag, size = 0x8, scoped, tag = 'scoped memory for tpu_custom_call.1']
    #allocation5 [shape = 'u8[1048576]{0}', space=vmem, size = 0x100000, scoped, tag = 'input window, operand 1, single buffered']
    #allocation6 [shape = 's32[1]{0}', space=sflag, size = 0x4, scoped, tag = 'scoped memory for tpu_custom_call.1']
    #allocation7 [shape = 'u8[4096]{0}', space=vmem, size = 0x1000, scoped, tag = 'input window, operand 2, single buffered']
    #allocation8 [shape = 'u8[1048576]{0}', space=vmem, size = 0x100000, scoped, tag = 'input window, operand 3, single buffered']
    #allocation9 [shape = 's32[1]{0}', space=sflag, size = 0x4, scoped, tag = 'scoped memory for tpu_custom_call.1']
    #allocation10 [shape = 'u8[131072]{0}', space=vmem, size = 0x20000, scoped, tag = 'input window, operand 5, single buffered']
    %16 = vsyncpa [#allocation4], 0
    %s17 = scalar_lea.sflag [#allocation4], 1
    %18 = vsyncpa %s17, 0
    %19 = vsyncpa [#allocation6], 0
    %20 = vsyncpa [#allocation9], 0
    loop: start=0, step=1, limit=4
    $region2: #{tpu_custom_call.1} parent=1 // loop_pre_header
      _
    $region3: #{tpu_custom_call.1} parent=1 // loop_header
      %s22 = sphi 0, %s26
      %p23 = scmp.ge.s32.totalorder %s22, 4
      %s32 = sphi 0, %s34
      %s35 = sphi 0, %s32
      %s36 = sphi 0, %s35
      %s52 = sphi 0, %s36
      %s56 = sphi 0, %s56
      %s58 = sphi 0, %s56
      %s59 = sphi 0, %s58
      %s73 = sphi 0, %s59
      %s77 = sphi 0, %s77
      %s79 = sphi 0, %s77
      %s80 = sphi 0, %s79
      %s94 = sphi 0, %s80
      %s98 = sphi 0, %s98
      %s100 = sphi 0, %s98
      %s101 = sphi 0, %s100
      %s115 = sphi 0, %s101
      %s119 = sphi 0, %s119
      %s121 = sphi 0, %s119
      %s122 = sphi 0, %s121
      %s136 = sphi 0, %s122
      %s140 = sphi 0, %s140
      %s142 = sphi 0, %s140
      %s143 = sphi 0, %s142
      %s157 = sphi 0, %s143
      %s161 = sphi 0, %s161
      %s163 = sphi 0, %s161
      %s164 = sphi 0, %s163
      %s178 = sphi 0, %s164
      %s182 = sphi 0, %s182
      %s184 = sphi 0, %s182
      %s185 = sphi 0, %s184
      %s199 = sphi 0, %s185
      %s203 = sphi 0, %s203
      %s205 = sphi 0, %s203
      %s206 = sphi 0, %s205
      %s220 = sphi 0, %s206
      %s226 = sphi 0, %s228
      %s229 = sphi 0, %s226
      %s230 = sphi 0, %s229
      %s246 = sphi 0, %s230
    $region4: #{tpu_custom_call.1} parent=1 // loop_header_branch
      %25 = sbr.rel (%p23) target = $region8
    $region5: #{tpu_custom_call.1} parent=1 // loop_body
      %s27 = ssub.s32 %s22, 1
      %s28 = ssub.s32 %s22, 2
      %s29 = sadd.s32 %s22, 1
      %s30 = ssub.s32 %s22, %s29
      %p31 = scmp.eq.s32.totalorder %s30, 0
      %s33 = sadd.s32 %s32, 1
      %s34 = scalar_select %p31, %s32, %s33
      %p37 = pneg %p31
      %p38 = scmp.eq.s32.totalorder %s22, 1
      %p39 = por %p37, %p38
      %p40 = scmp.ne.s32.totalorder %s32, %s35
      %p41 = scmp.eq.s32.totalorder %s22, 0
      %p42 = por %p40, %p41
      %p43 = scmp.ne.s32.totalorder %s32, %s35
      %p44 = scmp.eq.s32.totalorder %s27, 1
      %p45 = por %p43, %p44
      %p46 = scmp.ne.s32.totalorder %s35, %s36
      %p47 = scmp.eq.s32.totalorder %s27, 0
      %p48 = por %p46, %p47
      %p49 = scmp.ne.s32.totalorder %s35, %s36
      %p50 = scmp.eq.s32.totalorder %s28, 1
      %p51 = por %p49, %p50
      %p53 = scmp.ne.s32.totalorder %s36, %s52
      %p54 = scmp.eq.s32.totalorder %s28, 0
      %p55 = por %p53, %p54
      %s57 = sadd.s32 %s56, 1
      %p60 = scmp.eq.s32.totalorder %s22, 1
      %p61 = scmp.ne.s32.totalorder %s56, %s58
      %p62 = scmp.eq.s32.totalorder %s22, 0
      %p63 = por %p61, %p62
      %p64 = scmp.ne.s32.totalorder %s56, %s58
      %p65 = scmp.eq.s32.totalorder %s27, 1
      %p66 = por %p64, %p65
      %p67 = scmp.ne.s32.totalorder %s58, %s59
      %p68 = scmp.eq.s32.totalorder %s27, 0
      %p69 = por %p67, %p68
      %p70 = scmp.ne.s32.totalorder %s58, %s59
      %p71 = scmp.eq.s32.totalorder %s28, 1
      %p72 = por %p70, %p71
      %p74 = scmp.ne.s32.totalorder %s59, %s73
      %p75 = scmp.eq.s32.totalorder %s28, 0
      %p76 = por %p74, %p75
      %s78 = sadd.s32 %s77, 1
      %p81 = scmp.eq.s32.totalorder %s22, 1
      %p82 = scmp.ne.s32.totalorder %s77, %s79
      %p83 = scmp.eq.s32.totalorder %s22, 0
      %p84 = por %p82, %p83
      %p85 = scmp.ne.s32.totalorder %s77, %s79
      %p86 = scmp.eq.s32.totalorder %s27, 1
      %p87 = por %p85, %p86
      %p88 = scmp.ne.s32.totalorder %s79, %s80
      %p89 = scmp.eq.s32.totalorder %s27, 0
      %p90 = por %p88, %p89
      %p91 = scmp.ne.s32.totalorder %s79, %s80
      %p92 = scmp.eq.s32.totalorder %s28, 1
      %p93 = por %p91, %p92
      %p95 = scmp.ne.s32.totalorder %s80, %s94
      %p96 = scmp.eq.s32.totalorder %s28, 0
      %p97 = por %p95, %p96
      %s99 = sadd.s32 %s98, 1
      %p102 = scmp.eq.s32.totalorder %s22, 1
      %p103 = scmp.ne.s32.totalorder %s98, %s100
      %p104 = scmp.eq.s32.totalorder %s22, 0
      %p105 = por %p103, %p104
      %p106 = scmp.ne.s32.totalorder %s98, %s100
      %p107 = scmp.eq.s32.totalorder %s27, 1
      %p108 = por %p106, %p107
      %p109 = scmp.ne.s32.totalorder %s100, %s101
      %p110 = scmp.eq.s32.totalorder %s27, 0
      %p111 = por %p109, %p110
      %p112 = scmp.ne.s32.totalorder %s100, %s101
      %p113 = scmp.eq.s32.totalorder %s28, 1
      %p114 = por %p112, %p113
      %p116 = scmp.ne.s32.totalorder %s101, %s115
      %p117 = scmp.eq.s32.totalorder %s28, 0
      %p118 = por %p116, %p117
      %s120 = sadd.s32 %s119, 1
      %p123 = scmp.eq.s32.totalorder %s22, 1
      %p124 = scmp.ne.s32.totalorder %s119, %s121
      %p125 = scmp.eq.s32.totalorder %s22, 0
      %p126 = por %p124, %p125
      %p127 = scmp.ne.s32.totalorder %s119, %s121
      %p128 = scmp.eq.s32.totalorder %s27, 1
      %p129 = por %p127, %p128
      %p130 = scmp.ne.s32.totalorder %s121, %s122
      %p131 = scmp.eq.s32.totalorder %s27, 0
      %p132 = por %p130, %p131
      %p133 = scmp.ne.s32.totalorder %s121, %s122
      %p134 = scmp.eq.s32.totalorder %s28, 1
      %p135 = por %p133, %p134
      %p137 = scmp.ne.s32.totalorder %s122, %s136
      %p138 = scmp.eq.s32.totalorder %s28, 0
      %p139 = por %p137, %p138
      %s141 = sadd.s32 %s140, 1
      %p144 = scmp.eq.s32.totalorder %s22, 1
      %p145 = scmp.ne.s32.totalorder %s140, %s142
      %p146 = scmp.eq.s32.totalorder %s22, 0
      %p147 = por %p145, %p146
      %p148 = scmp.ne.s32.totalorder %s140, %s142
      %p149 = scmp.eq.s32.totalorder %s27, 1
      %p150 = por %p148, %p149
      %p151 = scmp.ne.s32.totalorder %s142, %s143
      %p152 = scmp.eq.s32.totalorder %s27, 0
      %p153 = por %p151, %p152
      %p154 = scmp.ne.s32.totalorder %s142, %s143
      %p155 = scmp.eq.s32.totalorder %s28, 1
      %p156 = por %p154, %p155
      %p158 = scmp.ne.s32.totalorder %s143, %s157
      %p159 = scmp.eq.s32.totalorder %s28, 0
      %p160 = por %p158, %p159
      %s162 = sadd.s32 %s161, 1
      %p165 = scmp.eq.s32.totalorder %s22, 1
      %p166 = scmp.ne.s32.totalorder %s161, %s163
      %p167 = scmp.eq.s32.totalorder %s22, 0
      %p168 = por %p166, %p167
      %p169 = scmp.ne.s32.totalorder %s161, %s163
      %p170 = scmp.eq.s32.totalorder %s27, 1
      %p171 = por %p169, %p170
      %p172 = scmp.ne.s32.totalorder %s163, %s164
      %p173 = scmp.eq.s32.totalorder %s27, 0
      %p174 = por %p172, %p173
      %p175 = scmp.ne.s32.totalorder %s163, %s164
      %p176 = scmp.eq.s32.totalorder %s28, 1
      %p177 = por %p175, %p176
      %p179 = scmp.ne.s32.totalorder %s164, %s178
      %p180 = scmp.eq.s32.totalorder %s28, 0
      %p181 = por %p179, %p180
      %s183 = sadd.s32 %s182, 1
      %p186 = scmp.eq.s32.totalorder %s22, 1
      %p187 = scmp.ne.s32.totalorder %s182, %s184
      %p188 = scmp.eq.s32.totalorder %s22, 0
      %p189 = por %p187, %p188
      %p190 = scmp.ne.s32.totalorder %s182, %s184
      %p191 = scmp.eq.s32.totalorder %s27, 1
      %p192 = por %p190, %p191
      %p193 = scmp.ne.s32.totalorder %s184, %s185
      %p194 = scmp.eq.s32.totalorder %s27, 0
      %p195 = por %p193, %p194
      %p196 = scmp.ne.s32.totalorder %s184, %s185
      %p197 = scmp.eq.s32.totalorder %s28, 1
      %p198 = por %p196, %p197
      %p200 = scmp.ne.s32.totalorder %s185, %s199
      %p201 = scmp.eq.s32.totalorder %s28, 0
      %p202 = por %p200, %p201
      %s204 = sadd.s32 %s203, 1
      %p207 = scmp.eq.s32.totalorder %s22, 1
      %p208 = scmp.ne.s32.totalorder %s203, %s205
      %p209 = scmp.eq.s32.totalorder %s22, 0
      %p210 = por %p208, %p209
      %p211 = scmp.ne.s32.totalorder %s203, %s205
      %p212 = scmp.eq.s32.totalorder %s27, 1
      %p213 = por %p211, %p212
      %p214 = scmp.ne.s32.totalorder %s205, %s206
      %p215 = scmp.eq.s32.totalorder %s27, 0
      %p216 = por %p214, %p215
      %p217 = scmp.ne.s32.totalorder %s205, %s206
      %p218 = scmp.eq.s32.totalorder %s28, 1
      %p219 = por %p217, %p218
      %p221 = scmp.ne.s32.totalorder %s206, %s220
      %p222 = scmp.eq.s32.totalorder %s28, 0
      %p223 = por %p221, %p222
      %s224 = ssub.s32 %s22, %s29
      %p225 = scmp.eq.s32.totalorder %s224, 0
      %s227 = sadd.s32 %s226, 1
      %s228 = scalar_select %p225, %s226, %s227
      %p231 = pneg %p225
      %p232 = scmp.eq.s32.totalorder %s22, 1
      %p233 = por %p231, %p232
      %p234 = scmp.ne.s32.totalorder %s226, %s229
      %p235 = scmp.eq.s32.totalorder %s22, 0
      %p236 = por %p234, %p235
      %p237 = scmp.ne.s32.totalorder %s226, %s229
      %p238 = scmp.eq.s32.totalorder %s27, 1
      %p239 = por %p237, %p238
      %p240 = scmp.ne.s32.totalorder %s229, %s230
      %p241 = scmp.eq.s32.totalorder %s27, 0
      %p242 = por %p240, %p241
      %p243 = scmp.ne.s32.totalorder %s229, %s230
      %p244 = scmp.eq.s32.totalorder %s28, 1
      %p245 = por %p243, %p244
      %p247 = scmp.ne.s32.totalorder %s230, %s246
      %p248 = scmp.eq.s32.totalorder %s28, 0
      %p249 = por %p247, %p248
      %p250 = scmp.le.s32.totalorder 1, %s22
      %p251 = scmp.lt.s32.totalorder %s22, 3
      %p252 = pnand %p250, %p251
      %p253 = pneg %p252
      // Predicated region
      $region9: #{tpu_custom_call.1} parent=5 // pred_check
        _
      $region10: #{tpu_custom_call.1} parent=5 // pred_check_branch
        %255 = sbr.rel (%p252) target = $region12
      $region11: #{tpu_custom_call.1} parent=5 // pred_region
        %s256 = ssub.s32 %s22, 1
        // Predicated region
        $region13: #{tpu_custom_call.1} parent=11 // pred_check
          %p257 = pneg %p69
        $region14: #{tpu_custom_call.1} parent=11 // pred_check_branch
          %259 = sbr.rel (%p257) target = $region16
        $region15: #{tpu_custom_call.1} parent=11 // pred_region
          %261 = vsyncadd [#allocation6], 0
          %s262 = sshll.u32 %s1, 4
          %s263 = int_to_ptr.hbm [resolvable:$true] %s262
          %s264 = sshll.u32 [#allocation5], 4
          %s265 = int_to_ptr.vmem [resolvable:$true] %s264
          %270 = dma.hbm_to_vmem [thread:$0]  %s263, 32768, %s265, [#allocation6], 512, 512, 32
        $region16: #{tpu_custom_call.1} parent=11 // pred_fallthru
          _
        // Predicated region
        $region17: #{tpu_custom_call.1} parent=11 // pred_check
          %p271 = pneg %p90
        $region18: #{tpu_custom_call.1} parent=11 // pred_check_branch
          %273 = sbr.rel (%p271) target = $region20
        $region19: #{tpu_custom_call.1} parent=11 // pred_region
          %275 = vsyncadd [#allocation6], 0
          %s277 = sshll.u32 %s2, 4
          %s278 = int_to_ptr.hbm [resolvable:$true] %s277
          %s279 = sshll.u32 [#allocation7], 4
          %s280 = int_to_ptr.vmem [resolvable:$true] %s279
          %282 = dma.hbm_to_vmem [thread:$0]  %s278, 128, %s280, [#allocation6]
        $region20: #{tpu_custom_call.1} parent=11 // pred_fallthru
          _
        // Predicated region
        $region21: #{tpu_custom_call.1} parent=11 // pred_check
          %p283 = pneg %p111
        $region22: #{tpu_custom_call.1} parent=11 // pred_check_branch
          %285 = sbr.rel (%p283) target = $region24
        $region23: #{tpu_custom_call.1} parent=11 // pred_region
          %287 = vsyncadd [#allocation9], 0
          %s288 = sshll.u32 %s3, 4
          %s289 = int_to_ptr.hbm [resolvable:$true] %s288
          %s290 = sshll.u32 [#allocation8], 4
          %s291 = int_to_ptr.vmem [resolvable:$true] %s290
          %296 = dma.hbm_to_vmem [thread:$0]  %s289, 32768, %s291, [#allocation9], 256, 256, 16
        $region24: #{tpu_custom_call.1} parent=11 // pred_fallthru
          _
        // Predicated region
        $region25: #{tpu_custom_call.1} parent=11 // pred_check
          %p297 = pneg %p132
        $region26: #{tpu_custom_call.1} parent=11 // pred_check_branch
          %299 = sbr.rel (%p297) target = $region28
        $region27: #{tpu_custom_call.1} parent=11 // pred_region
          _
        $region28: #{tpu_custom_call.1} parent=11 // pred_fallthru
          _
        // Predicated region
        $region29: #{tpu_custom_call.1} parent=11 // pred_check
          %p300 = pneg %p153
        $region30: #{tpu_custom_call.1} parent=11 // pred_check_branch
          %302 = sbr.rel (%p300) target = $region32
        $region31: #{tpu_custom_call.1} parent=11 // pred_region
          %304 = vsyncadd [#allocation9], 0
          %s305 = sshll.u32 %s5, 4
          %s306 = int_to_ptr.hbm [resolvable:$true] %s305
          %s307 = sshll.u32 [#allocation10], 4
          %s308 = int_to_ptr.vmem [resolvable:$true] %s307
          %313 = dma.hbm_to_vmem [thread:$0]  %s306, 4096, %s308, [#allocation9], 64, 64, 4
        $region32: #{tpu_custom_call.1} parent=11 // pred_fallthru
          _
        // Predicated region
        $region33: #{tpu_custom_call.1} parent=11 // pred_check
          %p314 = pneg %p174
        $region34: #{tpu_custom_call.1} parent=11 // pred_check_branch
          %316 = sbr.rel (%p314) target = $region36
        $region35: #{tpu_custom_call.1} parent=11 // pred_region
          _
        $region36: #{tpu_custom_call.1} parent=11 // pred_fallthru
          _
        // Predicated region
        $region37: #{tpu_custom_call.1} parent=11 // pred_check
          %p317 = pneg %p195
        $region38: #{tpu_custom_call.1} parent=11 // pred_check_branch
          %319 = sbr.rel (%p317) target = $region40
        $region39: #{tpu_custom_call.1} parent=11 // pred_region
          _
        $region40: #{tpu_custom_call.1} parent=11 // pred_fallthru
          _
        // Predicated region
        $region41: #{tpu_custom_call.1} parent=11 // pred_check
          %p320 = pneg %p216
        $region42: #{tpu_custom_call.1} parent=11 // pred_check_branch
          %322 = sbr.rel (%p320) target = $region44
        $region43: #{tpu_custom_call.1} parent=11 // pred_region
          _
        $region44: #{tpu_custom_call.1} parent=11 // pred_fallthru
          _
      $region12: #{tpu_custom_call.1} parent=5 // pred_fallthru
        _
      %p323 = scmp.lt.s32.totalorder %s22, 2
      // Predicated region
      $region45: #{tpu_custom_call.1} parent=5 // pred_check
        %p324 = pneg %p323
      $region46: #{tpu_custom_call.1} parent=5 // pred_check_branch
        %326 = sbr.rel (%p324) target = $region48
      $region47: #{tpu_custom_call.1} parent=5 // pred_region
        // Predicated region
        $region49: #{tpu_custom_call.1} parent=47 // pred_check
          %p327 = pneg %p42
        $region50: #{tpu_custom_call.1} parent=47 // pred_check_branch
          %329 = sbr.rel (%p327) target = $region52
        $region51: #{tpu_custom_call.1} parent=47 // pred_region
          %s330 = sand.u32 %s32, 1
          %s331 = scalar_lea.sflag [#allocation4], %s330
          %s332 = sand.u32 %s32, 1
          %s333 = smul.addr %s332, 64
          %s334 = scalar_lea.vmem [#allocation3], %s333
          %s335 = smul.u32 4, %s22
          %337 = vsyncadd %s331, 0
          %s338 = smul.addr %s335, 4
          %s339 = smul.addr %s338, 4
          %s340 = scalar_lea.hbm %s0, %s339
          %s341 = sshll.u32 %s340, 4
          %s342 = int_to_ptr.hbm [resolvable:$true] %s341
          %s343 = sshll.u32 %s334, 4
          %s344 = int_to_ptr.vmem [resolvable:$true] %s343
          %349 = dma.hbm_to_vmem [thread:$0]  %s342, 1024, %s344, %s331, 256, 256, 16
        $region52: #{tpu_custom_call.1} parent=47 // pred_fallthru
          _
      $region48: #{tpu_custom_call.1} parent=5 // pred_fallthru
        _
      %p350 = scmp.le.s32.totalorder 1, %s22
      %p351 = scmp.lt.s32.totalorder %s22, 3
      %p352 = pnand %p350, %p351
      %p353 = pneg %p352
      // Predicated region
      $region53: #{tpu_custom_call.1} parent=5 // pred_check
        _
      $region54: #{tpu_custom_call.1} parent=5 // pred_check_branch
        %355 = sbr.rel (%p352) target = $region56
      $region55: #{tpu_custom_call.1} parent=5 // pred_region
        %s356 = ssub.s32 %s22, 1
        %s357 = sand.u32 %s35, 1
        %s358 = scalar_lea.sflag [#allocation4], %s357
        %s359 = sand.u32 %s35, 1
        %s360 = smul.addr %s359, 64
        %s361 = scalar_lea.vmem [#allocation3], %s360
        // Predicated region
        $region57: #{tpu_custom_call.1} parent=55 // pred_check
          %p362 = pneg %p48
        $region58: #{tpu_custom_call.1} parent=55 // pred_check_branch
          %364 = sbr.rel (%p362) target = $region60
        $region59: #{tpu_custom_call.1} parent=55 // pred_region
          %366 = dma.done %s358, 1024
        $region60: #{tpu_custom_call.1} parent=55 // pred_fallthru
          _
        // Predicated region
        $region61: #{tpu_custom_call.1} parent=55 // pred_check
          %p367 = pneg %p69
        $region62: #{tpu_custom_call.1} parent=55 // pred_check_branch
          %369 = sbr.rel (%p367) target = $region64
        $region63: #{tpu_custom_call.1} parent=55 // pred_region
          %371 = dma.done [#allocation6], 32768
        $region64: #{tpu_custom_call.1} parent=55 // pred_fallthru
          _
        // Predicated region
        $region65: #{tpu_custom_call.1} parent=55 // pred_check
          %p372 = pneg %p90
        $region66: #{tpu_custom_call.1} parent=55 // pred_check_branch
          %374 = sbr.rel (%p372) target = $region68
        $region67: #{tpu_custom_call.1} parent=55 // pred_region
          %376 = dma.done [#allocation6], 128
        $region68: #{tpu_custom_call.1} parent=55 // pred_fallthru
          _
        // Predicated region
        $region69: #{tpu_custom_call.1} parent=55 // pred_check
          %p377 = pneg %p111
        $region70: #{tpu_custom_call.1} parent=55 // pred_check_branch
          %379 = sbr.rel (%p377) target = $region72
        $region71: #{tpu_custom_call.1} parent=55 // pred_region
          %381 = dma.done [#allocation9], 32768
        $region72: #{tpu_custom_call.1} parent=55 // pred_fallthru
          _
        // Predicated region
        $region73: #{tpu_custom_call.1} parent=55 // pred_check
          %p382 = pneg %p153
        $region74: #{tpu_custom_call.1} parent=55 // pred_check_branch
          %384 = sbr.rel (%p382) target = $region76
        $region75: #{tpu_custom_call.1} parent=55 // pred_region
          %386 = dma.done [#allocation9], 4096
        $region76: #{tpu_custom_call.1} parent=55 // pred_fallthru
          _
        %s387 = sand.u32 %s35, 1
        %s388 = scalar_lea.sflag [#allocation4], %s387
        %s389 = sand.u32 %s35, 1
        %s390 = smul.addr %s389, 64
        %s391 = scalar_lea.vmem [#allocation3], %s390
        %p392 = pneg %p48
        %p393 = pneg %p45
        %p394 = pneg %p69
        %p395 = pneg %p66
        %p396 = pneg %p90
        %p397 = pneg %p87
        %p398 = pneg %p111
        %p399 = pneg %p108
        %p400 = pneg %p132
        %p401 = pneg %p129
        %p402 = pneg %p153
        %p403 = pneg %p150
        %p404 = pneg %p174
        %p405 = pneg %p171
        %p406 = pneg %p195
        %p407 = pneg %p192
        %p408 = pneg %p216
        %p409 = pneg %p213
        %p410 = pneg %p242
        %p411 = pneg %p239
        %s412 = smul.u32 4, %s27
        %p413 = scmp.lt.s32.totalorder %s412, 7
        %s414 = scalar_select %p413, %s412, 7
        %s415 = smul.addr %s414, 8
        %s416 = scalar_lea.vmem %s9, %s415
        %s417 = smul.u32 4, %s27
        %s418 = smul.u32 4, %s27
        %p419 = scmp.lt.s32.totalorder %s418, 7
        %s420 = scalar_select %p419, %s418, 7
        %s421 = smul.addr %s420, 8
        %s422 = scalar_lea.vmem %s9, %s421
        %s423 = smul.u32 4, %s27
        %v424 = vld [vmem:[%s361] sm:$0xff]
        %v425 = vld [vmem:[%s361 + $0x8] sm:$0xff]
        %v426 = vld [vmem:[%s361 + $0x10] sm:$0xff]
        %v427 = vld [vmem:[%s361 + $0x18] sm:$0xff]
        %v428 = vld [vmem:[%s361 + $0x20] sm:$0xff]
        %v429 = vld [vmem:[%s361 + $0x28] sm:$0xff]
        %v430 = vld [vmem:[%s361 + $0x30] sm:$0xff]
        %v431 = vld [vmem:[%s361 + $0x38] sm:$0xff]
        %v432 = vld [vmem:[#allocation5] sm:$0xff]
        %v433 = vld [vmem:[#allocation5 + $0x8] sm:$0xff]
        %v434 = vld [vmem:[#allocation5 + $0x10] sm:$0xff]
        %v435 = vld [vmem:[#allocation5 + $0x18] sm:$0xff]
        %v436 = vld [vmem:[#allocation5 + $0x20] sm:$0xff]
        %v437 = vld [vmem:[#allocation5 + $0x28] sm:$0xff]
        %v438 = vld [vmem:[#allocation5 + $0x30] sm:$0xff]
        %v439 = vld [vmem:[#allocation5 + $0x38] sm:$0xff]
        %v440 = vld [vmem:[#allocation5 + $0x40] sm:$0xff]
        %v441 = vld [vmem:[#allocation5 + $0x48] sm:$0xff]
        %v442 = vld [vmem:[#allocation5 + $0x50] sm:$0xff]
        %v443 = vld [vmem:[#allocation5 + $0x58] sm:$0xff]
        %v444 = vld [vmem:[#allocation5 + $0x60] sm:$0xff]
        %v445 = vld [vmem:[#allocation5 + $0x68] sm:$0xff]
        %v446 = vld [vmem:[#allocation5 + $0x70] sm:$0xff]
        %v447 = vld [vmem:[#allocation5 + $0x78] sm:$0xff]
        %v448 = vld [vmem:[#allocation5 + $0x80] sm:$0xff]
        %v449 = vld [vmem:[#allocation5 + $0x88] sm:$0xff]
        %v450 = vld [vmem:[#allocation5 + $0x90] sm:$0xff]
        %v451 = vld [vmem:[#allocation5 + $0x98] sm:$0xff]
        %v452 = vld [vmem:[#allocation5 + $0xa0] sm:$0xff]
        %v453 = vld [vmem:[#allocation5 + $0xa8] sm:$0xff]
        %v454 = vld [vmem:[#allocation5 + $0xb0] sm:$0xff]
        %v455 = vld [vmem:[#allocation5 + $0xb8] sm:$0xff]
        %v456 = vld [vmem:[#allocation5 + $0xc0] sm:$0xff]
        %v457 = vld [vmem:[#allocation5 + $0xc8] sm:$0xff]
        %v458 = vld [vmem:[#allocation5 + $0xd0] sm:$0xff]
        %v459 = vld [vmem:[#allocation5 + $0xd8] sm:$0xff]
        %v460 = vld [vmem:[#allocation5 + $0xe0] sm:$0xff]
        %v461 = vld [vmem:[#allocation5 + $0xe8] sm:$0xff]
        %v462 = vld [vmem:[#allocation5 + $0xf0] sm:$0xff]
        %v463 = vld [vmem:[#allocation5 + $0xf8] sm:$0xff]
        %v464 = vld [vmem:[#allocation5 + $0x100] sm:$0xff]
        %v465 = vld [vmem:[#allocation5 + $0x108] sm:$0xff]
        %v466 = vld [vmem:[#allocation5 + $0x110] sm:$0xff]
        %v467 = vld [vmem:[#allocation5 + $0x118] sm:$0xff]
        %v468 = vld [vmem:[#allocation5 + $0x120] sm:$0xff]
        %v469 = vld [vmem:[#allocation5 + $0x128] sm:$0xff]
        %v470 = vld [vmem:[#allocation5 + $0x130] sm:$0xff]
        %v471 = vld [vmem:[#allocation5 + $0x138] sm:$0xff]
        %v472 = vld [vmem:[#allocation5 + $0x140] sm:$0xff]
        %v473 = vld [vmem:[#allocation5 + $0x148] sm:$0xff]
        %v474 = vld [vmem:[#allocation5 + $0x150] sm:$0xff]
        %v475 = vld [vmem:[#allocation5 + $0x158] sm:$0xff]
        %v476 = vld [vmem:[#allocation5 + $0x160] sm:$0xff]
        %v477 = vld [vmem:[#allocation5 + $0x168] sm:$0xff]
        %v478 = vld [vmem:[#allocation5 + $0x170] sm:$0xff]
        %v479 = vld [vmem:[#allocation5 + $0x178] sm:$0xff]
        %v480 = vld [vmem:[#allocation5 + $0x180] sm:$0xff]
        %v481 = vld [vmem:[#allocation5 + $0x188] sm:$0xff]
        %v482 = vld [vmem:[#allocation5 + $0x190] sm:$0xff]
        %v483 = vld [vmem:[#allocation5 + $0x198] sm:$0xff]
        %v484 = vld [vmem:[#allocation5 + $0x1a0] sm:$0xff]
        %v485 = vld [vmem:[#allocation5 + $0x1a8] sm:$0xff]
        %v486 = vld [vmem:[#allocation5 + $0x1b0] sm:$0xff]
        %v487 = vld [vmem:[#allocation5 + $0x1b8] sm:$0xff]
        %v488 = vld [vmem:[#allocation5 + $0x1c0] sm:$0xff]
        %v489 = vld [vmem:[#allocation5 + $0x1c8] sm:$0xff]
        %v490 = vld [vmem:[#allocation5 + $0x1d0] sm:$0xff]
        %v491 = vld [vmem:[#allocation5 + $0x1d8] sm:$0xff]
        %v492 = vld [vmem:[#allocation5 + $0x1e0] sm:$0xff]
        %v493 = vld [vmem:[#allocation5 + $0x1e8] sm:$0xff]
        %v494 = vld [vmem:[#allocation5 + $0x1f0] sm:$0xff]
        %v495 = vld [vmem:[#allocation5 + $0x1f8] sm:$0xff]
        %v496 = vld [vmem:[#allocation5 + $0x200] sm:$0xff]
        %v497 = vld [vmem:[#allocation5 + $0x208] sm:$0xff]
        %v498 = vld [vmem:[#allocation5 + $0x210] sm:$0xff]
        %v499 = vld [vmem:[#allocation5 + $0x218] sm:$0xff]
        %v500 = vld [vmem:[#allocation5 + $0x220] sm:$0xff]
        %v501 = vld [vmem:[#allocation5 + $0x228] sm:$0xff]
        %v502 = vld [vmem:[#allocation5 + $0x230] sm:$0xff]
        %v503 = vld [vmem:[#allocation5 + $0x238] sm:$0xff]
        %v504 = vld [vmem:[#allocation5 + $0x240] sm:$0xff]
        %v505 = vld [vmem:[#allocation5 + $0x248] sm:$0xff]
        %v506 = vld [vmem:[#allocation5 + $0x250] sm:$0xff]
        %v507 = vld [vmem:[#allocation5 + $0x258] sm:$0xff]
        %v508 = vld [vmem:[#allocation5 + $0x260] sm:$0xff]
        %v509 = vld [vmem:[#allocation5 + $0x268] sm:$0xff]
        %v510 = vld [vmem:[#allocation5 + $0x270] sm:$0xff]
        %v511 = vld [vmem:[#allocation5 + $0x278] sm:$0xff]
        %v512 = vld [vmem:[#allocation5 + $0x280] sm:$0xff]
        %v513 = vld [vmem:[#allocation5 + $0x288] sm:$0xff]
        %v514 = vld [vmem:[#allocation5 + $0x290] sm:$0xff]
        %v515 = vld [vmem:[#allocation5 + $0x298] sm:$0xff]
        %v516 = vld [vmem:[#allocation5 + $0x2a0] sm:$0xff]
        %v517 = vld [vmem:[#allocation5 + $0x2a8] sm:$0xff]
        %v518 = vld [vmem:[#allocation5 + $0x2b0] sm:$0xff]
        %v519 = vld [vmem:[#allocation5 + $0x2b8] sm:$0xff]
        %v520 = vld [vmem:[#allocation5 + $0x2c0] sm:$0xff]
        %v521 = vld [vmem:[#allocation5 + $0x2c8] sm:$0xff]
        %v522 = vld [vmem:[#allocation5 + $0x2d0] sm:$0xff]
        %v523 = vld [vmem:[#allocation5 + $0x2d8] sm:$0xff]
        %v524 = vld [vmem:[#allocation5 + $0x2e0] sm:$0xff]
        %v525 = vld [vmem:[#allocation5 + $0x2e8] sm:$0xff]
        %v526 = vld [vmem:[#allocation5 + $0x2f0] sm:$0xff]
        %v527 = vld [vmem:[#allocation5 + $0x2f8] sm:$0xff]
        %v528 = vld [vmem:[#allocation5 + $0x300] sm:$0xff]
        %v529 = vld [vmem:[#allocation5 + $0x308] sm:$0xff]
        %v530 = vld [vmem:[#allocation5 + $0x310] sm:$0xff]
        %v531 = vld [vmem:[#allocation5 + $0x318] sm:$0xff]
        %v532 = vld [vmem:[#allocation5 + $0x320] sm:$0xff]
        %v533 = vld [vmem:[#allocation5 + $0x328] sm:$0xff]
        %v534 = vld [vmem:[#allocation5 + $0x330] sm:$0xff]
        %v535 = vld [vmem:[#allocation5 + $0x338] sm:$0xff]
        %v536 = vld [vmem:[#allocation5 + $0x340] sm:$0xff]
        %v537 = vld [vmem:[#allocation5 + $0x348] sm:$0xff]
        %v538 = vld [vmem:[#allocation5 + $0x350] sm:$0xff]
        %v539 = vld [vmem:[#allocation5 + $0x358] sm:$0xff]
        %v540 = vld [vmem:[#allocation5 + $0x360] sm:$0xff]
        %v541 = vld [vmem:[#allocation5 + $0x368] sm:$0xff]
        %v542 = vld [vmem:[#allocation5 + $0x370] sm:$0xff]
        %v543 = vld [vmem:[#allocation5 + $0x378] sm:$0xff]
        %v544 = vld [vmem:[#allocation5 + $0x380] sm:$0xff]
        %v545 = vld [vmem:[#allocation5 + $0x388] sm:$0xff]
        %v546 = vld [vmem:[#allocation5 + $0x390] sm:$0xff]
        %v547 = vld [vmem:[#allocation5 + $0x398] sm:$0xff]
        %v548 = vld [vmem:[#allocation5 + $0x3a0] sm:$0xff]
        %v549 = vld [vmem:[#allocation5 + $0x3a8] sm:$0xff]
        %v550 = vld [vmem:[#allocation5 + $0x3b0] sm:$0xff]
        %v551 = vld [vmem:[#allocation5 + $0x3b8] sm:$0xff]
        %v552 = vld [vmem:[#allocation5 + $0x3c0] sm:$0xff]
        %v553 = vld [vmem:[#allocation5 + $0x3c8] sm:$0xff]
        %v554 = vld [vmem:[#allocation5 + $0x3d0] sm:$0xff]
        %v555 = vld [vmem:[#allocation5 + $0x3d8] sm:$0xff]
        %v556 = vld [vmem:[#allocation5 + $0x3e0] sm:$0xff]
        %v557 = vld [vmem:[#allocation5 + $0x3e8] sm:$0xff]
        %v558 = vld [vmem:[#allocation5 + $0x3f0] sm:$0xff]
        %v559 = vld [vmem:[#allocation5 + $0x3f8] sm:$0xff]
        %v560 = vld [vmem:[#allocation5 + $0x400] sm:$0xff]
        %v561 = vld [vmem:[#allocation5 + $0x408] sm:$0xff]
        %v562 = vld [vmem:[#allocation5 + $0x410] sm:$0xff]
        %v563 = vld [vmem:[#allocation5 + $0x418] sm:$0xff]
        %v564 = vld [vmem:[#allocation5 + $0x420] sm:$0xff]
        %v565 = vld [vmem:[#allocation5 + $0x428] sm:$0xff]
        %v566 = vld [vmem:[#allocation5 + $0x430] sm:$0xff]
        %v567 = vld [vmem:[#allocation5 + $0x438] sm:$0xff]
        %v568 = vld [vmem:[#allocation5 + $0x440] sm:$0xff]
        %v569 = vld [vmem:[#allocation5 + $0x448] sm:$0xff]
        %v570 = vld [vmem:[#allocation5 + $0x450] sm:$0xff]
        %v571 = vld [vmem:[#allocation5 + $0x458] sm:$0xff]
        %v572 = vld [vmem:[#allocation5 + $0x460] sm:$0xff]
        %v573 = vld [vmem:[#allocation5 + $0x468] sm:$0xff]
        %v574 = vld [vmem:[#allocation5 + $0x470] sm:$0xff]
        %v575 = vld [vmem:[#allocation5 + $0x478] sm:$0xff]
        %v576 = vld [vmem:[#allocation5 + $0x480] sm:$0xff]
        %v577 = vld [vmem:[#allocation5 + $0x488] sm:$0xff]
        %v578 = vld [vmem:[#allocation5 + $0x490] sm:$0xff]
        %v579 = vld [vmem:[#allocation5 + $0x498] sm:$0xff]
        %v580 = vld [vmem:[#allocation5 + $0x4a0] sm:$0xff]
        %v581 = vld [vmem:[#allocation5 + $0x4a8] sm:$0xff]
        %v582 = vld [vmem:[#allocation5 + $0x4b0] sm:$0xff]
        %v583 = vld [vmem:[#allocation5 + $0x4b8] sm:$0xff]
        %v584 = vld [vmem:[#allocation5 + $0x4c0] sm:$0xff]
        %v585 = vld [vmem:[#allocation5 + $0x4c8] sm:$0xff]
        %v586 = vld [vmem:[#allocation5 + $0x4d0] sm:$0xff]
        %v587 = vld [vmem:[#allocation5 + $0x4d8] sm:$0xff]
        %v588 = vld [vmem:[#allocation5 + $0x4e0] sm:$0xff]
        %v589 = vld [vmem:[#allocation5 + $0x4e8] sm:$0xff]
        %v590 = vld [vmem:[#allocation5 + $0x4f0] sm:$0xff]
        %v591 = vld [vmem:[#allocation5 + $0x4f8] sm:$0xff]
        %v592 = vld [vmem:[#allocation5 + $0x500] sm:$0xff]
        %v593 = vld [vmem:[#allocation5 + $0x508] sm:$0xff]
        %v594 = vld [vmem:[#allocation5 + $0x510] sm:$0xff]
        %v595 = vld [vmem:[#allocation5 + $0x518] sm:$0xff]
        %v596 = vld [vmem:[#allocation5 + $0x520] sm:$0xff]
        %v597 = vld [vmem:[#allocation5 + $0x528] sm:$0xff]
        %v598 = vld [vmem:[#allocation5 + $0x530] sm:$0xff]
        %v599 = vld [vmem:[#allocation5 + $0x538] sm:$0xff]
        %v600 = vld [vmem:[#allocation5 + $0x540] sm:$0xff]
        %v601 = vld [vmem:[#allocation5 + $0x548] sm:$0xff]
        %v602 = vld [vmem:[#allocation5 + $0x550] sm:$0xff]
        %v603 = vld [vmem:[#allocation5 + $0x558] sm:$0xff]
        %v604 = vld [vmem:[#allocation5 + $0x560] sm:$0xff]
        %v605 = vld [vmem:[#allocation5 + $0x568] sm:$0xff]
        %v606 = vld [vmem:[#allocation5 + $0x570] sm:$0xff]
        %v607 = vld [vmem:[#allocation5 + $0x578] sm:$0xff]
        %v608 = vld [vmem:[#allocation5 + $0x580] sm:$0xff]
        %v609 = vld [vmem:[#allocation5 + $0x588] sm:$0xff]
        %v610 = vld [vmem:[#allocation5 + $0x590] sm:$0xff]
        %v611 = vld [vmem:[#allocation5 + $0x598] sm:$0xff]
        %v612 = vld [vmem:[#allocation5 + $0x5a0] sm:$0xff]
        %v613 = vld [vmem:[#allocation5 + $0x5a8] sm:$0xff]
        %v614 = vld [vmem:[#allocation5 + $0x5b0] sm:$0xff]
        %v615 = vld [vmem:[#allocation5 + $0x5b8] sm:$0xff]
        %v616 = vld [vmem:[#allocation5 + $0x5c0] sm:$0xff]
        %v617 = vld [vmem:[#allocation5 + $0x5c8] sm:$0xff]
        %v618 = vld [vmem:[#allocation5 + $0x5d0] sm:$0xff]
        %v619 = vld [vmem:[#allocation5 + $0x5d8] sm:$0xff]
        %v620 = vld [vmem:[#allocation5 + $0x5e0] sm:$0xff]
        %v621 = vld [vmem:[#allocation5 + $0x5e8] sm:$0xff]
        %v622 = vld [vmem:[#allocation5 + $0x5f0] sm:$0xff]
        %v623 = vld [vmem:[#allocation5 + $0x5f8] sm:$0xff]
        %v624 = vld [vmem:[#allocation5 + $0x600] sm:$0xff]
        %v625 = vld [vmem:[#allocation5 + $0x608] sm:$0xff]
        %v626 = vld [vmem:[#allocation5 + $0x610] sm:$0xff]
        %v627 = vld [vmem:[#allocation5 + $0x618] sm:$0xff]
        %v628 = vld [vmem:[#allocation5 + $0x620] sm:$0xff]
        %v629 = vld [vmem:[#allocation5 + $0x628] sm:$0xff]
        %v630 = vld [vmem:[#allocation5 + $0x630] sm:$0xff]
        %v631 = vld [vmem:[#allocation5 + $0x638] sm:$0xff]
        %v632 = vld [vmem:[#allocation5 + $0x640] sm:$0xff]
        %v633 = vld [vmem:[#allocation5 + $0x648] sm:$0xff]
        %v634 = vld [vmem:[#allocation5 + $0x650] sm:$0xff]
        %v635 = vld [vmem:[#allocation5 + $0x658] sm:$0xff]
        %v636 = vld [vmem:[#allocation5 + $0x660] sm:$0xff]
        %v637 = vld [vmem:[#allocation5 + $0x668] sm:$0xff]
        %v638 = vld [vmem:[#allocation5 + $0x670] sm:$0xff]
        %v639 = vld [vmem:[#allocation5 + $0x678] sm:$0xff]
        %v640 = vld [vmem:[#allocation5 + $0x680] sm:$0xff]
        %v641 = vld [vmem:[#allocation5 + $0x688] sm:$0xff]
        %v642 = vld [vmem:[#allocation5 + $0x690] sm:$0xff]
        %v643 = vld [vmem:[#allocation5 + $0x698] sm:$0xff]
        %v644 = vld [vmem:[#allocation5 + $0x6a0] sm:$0xff]
        %v645 = vld [vmem:[#allocation5 + $0x6a8] sm:$0xff]
        %v646 = vld [vmem:[#allocation5 + $0x6b0] sm:$0xff]
        %v647 = vld [vmem:[#allocation5 + $0x6b8] sm:$0xff]
        %v648 = vld [vmem:[#allocation5 + $0x6c0] sm:$0xff]
        %v649 = vld [vmem:[#allocation5 + $0x6c8] sm:$0xff]
        %v650 = vld [vmem:[#allocation5 + $0x6d0] sm:$0xff]
        %v651 = vld [vmem:[#allocation5 + $0x6d8] sm:$0xff]
        %v652 = vld [vmem:[#allocation5 + $0x6e0] sm:$0xff]
        %v653 = vld [vmem:[#allocation5 + $0x6e8] sm:$0xff]
        %v654 = vld [vmem:[#allocation5 + $0x6f0] sm:$0xff]
        %v655 = vld [vmem:[#allocation5 + $0x6f8] sm:$0xff]
        %v656 = vld [vmem:[#allocation5 + $0x700] sm:$0xff]
        %v657 = vld [vmem:[#allocation5 + $0x708] sm:$0xff]
        %v658 = vld [vmem:[#allocation5 + $0x710] sm:$0xff]
        %v659 = vld [vmem:[#allocation5 + $0x718] sm:$0xff]
        %v660 = vld [vmem:[#allocation5 + $0x720] sm:$0xff]
        %v661 = vld [vmem:[#allocation5 + $0x728] sm:$0xff]
        %v662 = vld [vmem:[#allocation5 + $0x730] sm:$0xff]
        %v663 = vld [vmem:[#allocation5 + $0x738] sm:$0xff]
        %v664 = vld [vmem:[#allocation5 + $0x740] sm:$0xff]
        %v665 = vld [vmem:[#allocation5 + $0x748] sm:$0xff]
        %v666 = vld [vmem:[#allocation5 + $0x750] sm:$0xff]
        %v667 = vld [vmem:[#allocation5 + $0x758] sm:$0xff]
        %v668 = vld [vmem:[#allocation5 + $0x760] sm:$0xff]
        %v669 = vld [vmem:[#allocation5 + $0x768] sm:$0xff]
        %v670 = vld [vmem:[#allocation5 + $0x770] sm:$0xff]
        %v671 = vld [vmem:[#allocation5 + $0x778] sm:$0xff]
        %v672 = vld [vmem:[#allocation5 + $0x780] sm:$0xff]
        %v673 = vld [vmem:[#allocation5 + $0x788] sm:$0xff]
        %v674 = vld [vmem:[#allocation5 + $0x790] sm:$0xff]
        %v675 = vld [vmem:[#allocation5 + $0x798] sm:$0xff]
        %v676 = vld [vmem:[#allocation5 + $0x7a0] sm:$0xff]
        %v677 = vld [vmem:[#allocation5 + $0x7a8] sm:$0xff]
        %v678 = vld [vmem:[#allocation5 + $0x7b0] sm:$0xff]
        %v679 = vld [vmem:[#allocation5 + $0x7b8] sm:$0xff]
        %v680 = vld [vmem:[#allocation5 + $0x7c0] sm:$0xff]
        %v681 = vld [vmem:[#allocation5 + $0x7c8] sm:$0xff]
        %v682 = vld [vmem:[#allocation5 + $0x7d0] sm:$0xff]
        %v683 = vld [vmem:[#allocation5 + $0x7d8] sm:$0xff]
        %v684 = vld [vmem:[#allocation5 + $0x7e0] sm:$0xff]
        %v685 = vld [vmem:[#allocation5 + $0x7e8] sm:$0xff]
        %v686 = vld [vmem:[#allocation5 + $0x7f0] sm:$0xff]
        %v687 = vld [vmem:[#allocation5 + $0x7f8] sm:$0xff]
        %v688 = vld [vmem:[#allocation7] sm:$0xff]
        %v690 = vperm.slane %v688, 0
        %v691 = vperm.slane %v688, 1
        %v692 = vperm.slane %v688, 2
        %v693 = vperm.slane %v688, 3
        %v694 = vperm.slane %v688, 4
        %v695 = vperm.slane %v688, 5
        %v696 = vperm.slane %v688, 6
        %v697 = vperm.slane %v688, 7
        %v714 = vunpack.c.l.b16 %v424
        %v715 = vunpack.c.h.b16 %v424
        %v716 = vunpack.c.l.b16 %v425
        %v717 = vunpack.c.h.b16 %v425
        %v718 = vunpack.c.l.b16 %v426
        %v719 = vunpack.c.h.b16 %v426
        %v720 = vunpack.c.l.b16 %v427
        %v721 = vunpack.c.h.b16 %v427
        %v722 = vunpack.c.l.b16 %v428
        %v723 = vunpack.c.h.b16 %v428
        %v724 = vunpack.c.l.b16 %v429
        %v725 = vunpack.c.h.b16 %v429
        %v726 = vunpack.c.l.b16 %v430
        %v727 = vunpack.c.h.b16 %v430
        %v728 = vunpack.c.l.b16 %v431
        %v729 = vunpack.c.h.b16 %v431
        %v730 = vpack.c.b16 %v718, %v714
        %v731 = vpack.c.b16 %v719, %v715
        %v732 = vpack.c.b16 %v720, %v716
        %v733 = vpack.c.b16 %v721, %v717
        %v734 = vpack.c.b16 %v726, %v722
        %v735 = vpack.c.b16 %v727, %v723
        %v736 = vpack.c.b16 %v728, %v724
        %v737 = vpack.c.b16 %v729, %v725
        %v1002 = vunpack.c.l.b16 %v432
        %v1003 = vunpack.c.h.b16 %v432
        %v1004 = vunpack.c.l.b16 %v433
        %v1005 = vunpack.c.h.b16 %v433
        %v1006 = vunpack.c.l.b16 %v434
        %v1007 = vunpack.c.h.b16 %v434
        %v1008 = vunpack.c.l.b16 %v435
        %v1009 = vunpack.c.h.b16 %v435
        %v1010 = vunpack.c.l.b16 %v436
        %v1011 = vunpack.c.h.b16 %v436
        %v1012 = vunpack.c.l.b16 %v437
        %v1013 = vunpack.c.h.b16 %v437
        %v1014 = vunpack.c.l.b16 %v438
        %v1015 = vunpack.c.h.b16 %v438
        %v1016 = vunpack.c.l.b16 %v439
        %v1017 = vunpack.c.h.b16 %v439
        %v1018 = vunpack.c.l.b16 %v440
        %v1019 = vunpack.c.h.b16 %v440
        %v1020 = vunpack.c.l.b16 %v441
        %v1021 = vunpack.c.h.b16 %v441
        %v1022 = vunpack.c.l.b16 %v442
        %v1023 = vunpack.c.h.b16 %v442
        %v1024 = vunpack.c.l.b16 %v443
        %v1025 = vunpack.c.h.b16 %v443
        %v1026 = vunpack.c.l.b16 %v444
        %v1027 = vunpack.c.h.b16 %v444
        %v1028 = vunpack.c.l.b16 %v445
        %v1029 = vunpack.c.h.b16 %v445
        %v1030 = vunpack.c.l.b16 %v446
        %v1031 = vunpack.c.h.b16 %v446
        %v1032 = vunpack.c.l.b16 %v447
        %v1033 = vunpack.c.h.b16 %v447
        %v1034 = vunpack.c.l.b16 %v448
        %v1035 = vunpack.c.h.b16 %v448
        %v1036 = vunpack.c.l.b16 %v449
        %v1037 = vunpack.c.h.b16 %v449
        %v1038 = vunpack.c.l.b16 %v450
        %v1039 = vunpack.c.h.b16 %v450
        %v1040 = vunpack.c.l.b16 %v451
        %v1041 = vunpack.c.h.b16 %v451
        %v1042 = vunpack.c.l.b16 %v452
        %v1043 = vunpack.c.h.b16 %v452
        %v1044 = vunpack.c.l.b16 %v453
        %v1045 = vunpack.c.h.b16 %v453
        %v1046 = vunpack.c.l.b16 %v454
        %v1047 = vunpack.c.h.b16 %v454
        %v1048 = vunpack.c.l.b16 %v455
        %v1049 = vunpack.c.h.b16 %v455
        %v1050 = vunpack.c.l.b16 %v456
        %v1051 = vunpack.c.h.b16 %v456
        %v1052 = vunpack.c.l.b16 %v457
        %v1053 = vunpack.c.h.b16 %v457
        %v1054 = vunpack.c.l.b16 %v458
        %v1055 = vunpack.c.h.b16 %v458
        %v1056 = vunpack.c.l.b16 %v459
        %v1057 = vunpack.c.h.b16 %v459
        %v1058 = vunpack.c.l.b16 %v460
        %v1059 = vunpack.c.h.b16 %v460
        %v1060 = vunpack.c.l.b16 %v461
        %v1061 = vunpack.c.h.b16 %v461
        %v1062 = vunpack.c.l.b16 %v462
        %v1063 = vunpack.c.h.b16 %v462
        %v1064 = vunpack.c.l.b16 %v463
        %v1065 = vunpack.c.h.b16 %v463
        %v1066 = vunpack.c.l.b16 %v464
        %v1067 = vunpack.c.h.b16 %v464
        %v1068 = vunpack.c.l.b16 %v465
        %v1069 = vunpack.c.h.b16 %v465
        %v1070 = vunpack.c.l.b16 %v466
        %v1071 = vunpack.c.h.b16 %v466
        %v1072 = vunpack.c.l.b16 %v467
        %v1073 = vunpack.c.h.b16 %v467
        %v1074 = vunpack.c.l.b16 %v468
        %v1075 = vunpack.c.h.b16 %v468
        %v1076 = vunpack.c.l.b16 %v469
        %v1077 = vunpack.c.h.b16 %v469
        %v1078 = vunpack.c.l.b16 %v470
        %v1079 = vunpack.c.h.b16 %v470
        %v1080 = vunpack.c.l.b16 %v471
        %v1081 = vunpack.c.h.b16 %v471
        %v1082 = vunpack.c.l.b16 %v472
        %v1083 = vunpack.c.h.b16 %v472
        %v1084 = vunpack.c.l.b16 %v473
        %v1085 = vunpack.c.h.b16 %v473
        %v1086 = vunpack.c.l.b16 %v474
        %v1087 = vunpack.c.h.b16 %v474
        %v1088 = vunpack.c.l.b16 %v475
        %v1089 = vunpack.c.h.b16 %v475
        %v1090 = vunpack.c.l.b16 %v476
        %v1091 = vunpack.c.h.b16 %v476
        %v1092 = vunpack.c.l.b16 %v477
        %v1093 = vunpack.c.h.b16 %v477
        %v1094 = vunpack.c.l.b16 %v478
        %v1095 = vunpack.c.h.b16 %v478
        %v1096 = vunpack.c.l.b16 %v479
        %v1097 = vunpack.c.h.b16 %v479
        %v1098 = vunpack.c.l.b16 %v480
        %v1099 = vunpack.c.h.b16 %v480
        %v1100 = vunpack.c.l.b16 %v481
        %v1101 = vunpack.c.h.b16 %v481
        %v1102 = vunpack.c.l.b16 %v482
        %v1103 = vunpack.c.h.b16 %v482
        %v1104 = vunpack.c.l.b16 %v483
        %v1105 = vunpack.c.h.b16 %v483
        %v1106 = vunpack.c.l.b16 %v484
        %v1107 = vunpack.c.h.b16 %v484
        %v1108 = vunpack.c.l.b16 %v485
        %v1109 = vunpack.c.h.b16 %v485
        %v1110 = vunpack.c.l.b16 %v486
        %v1111 = vunpack.c.h.b16 %v486
        %v1112 = vunpack.c.l.b16 %v487
        %v1113 = vunpack.c.h.b16 %v487
        %v1114 = vunpack.c.l.b16 %v488
        %v1115 = vunpack.c.h.b16 %v488
        %v1116 = vunpack.c.l.b16 %v489
        %v1117 = vunpack.c.h.b16 %v489
        %v1118 = vunpack.c.l.b16 %v490
        %v1119 = vunpack.c.h.b16 %v490
        %v1120 = vunpack.c.l.b16 %v491
        %v1121 = vunpack.c.h.b16 %v491
        %v1122 = vunpack.c.l.b16 %v492
        %v1123 = vunpack.c.h.b16 %v492
        %v1124 = vunpack.c.l.b16 %v493
        %v1125 = vunpack.c.h.b16 %v493
        %v1126 = vunpack.c.l.b16 %v494
        %v1127 = vunpack.c.h.b16 %v494
        %v1128 = vunpack.c.l.b16 %v495
        %v1129 = vunpack.c.h.b16 %v495
        %v1130 = vunpack.c.l.b16 %v496
        %v1131 = vunpack.c.h.b16 %v496
        %v1132 = vunpack.c.l.b16 %v497
        %v1133 = vunpack.c.h.b16 %v497
        %v1134 = vunpack.c.l.b16 %v498
        %v1135 = vunpack.c.h.b16 %v498
        %v1136 = vunpack.c.l.b16 %v499
        %v1137 = vunpack.c.h.b16 %v499
        %v1138 = vunpack.c.l.b16 %v500
        %v1139 = vunpack.c.h.b16 %v500
        %v1140 = vunpack.c.l.b16 %v501
        %v1141 = vunpack.c.h.b16 %v501
        %v1142 = vunpack.c.l.b16 %v502
        %v1143 = vunpack.c.h.b16 %v502
        %v1144 = vunpack.c.l.b16 %v503
        %v1145 = vunpack.c.h.b16 %v503
        %v1146 = vunpack.c.l.b16 %v504
        %v1147 = vunpack.c.h.b16 %v504
        %v1148 = vunpack.c.l.b16 %v505
        %v1149 = vunpack.c.h.b16 %v505
        %v1150 = vunpack.c.l.b16 %v506
        %v1151 = vunpack.c.h.b16 %v506
        %v1152 = vunpack.c.l.b16 %v507
        %v1153 = vunpack.c.h.b16 %v507
        %v1154 = vunpack.c.l.b16 %v508
        %v1155 = vunpack.c.h.b16 %v508
        %v1156 = vunpack.c.l.b16 %v509
        %v1157 = vunpack.c.h.b16 %v509
        %v1158 = vunpack.c.l.b16 %v510
        %v1159 = vunpack.c.h.b16 %v510
        %v1160 = vunpack.c.l.b16 %v511
        %v1161 = vunpack.c.h.b16 %v511
        %v1162 = vunpack.c.l.b16 %v512
        %v1163 = vunpack.c.h.b16 %v512
        %v1164 = vunpack.c.l.b16 %v513
        %v1165 = vunpack.c.h.b16 %v513
        %v1166 = vunpack.c.l.b16 %v514
        %v1167 = vunpack.c.h.b16 %v514
        %v1168 = vunpack.c.l.b16 %v515
        %v1169 = vunpack.c.h.b16 %v515
        %v1170 = vunpack.c.l.b16 %v516
        %v1171 = vunpack.c.h.b16 %v516
        %v1172 = vunpack.c.l.b16 %v517
        %v1173 = vunpack.c.h.b16 %v517
        %v1174 = vunpack.c.l.b16 %v518
        %v1175 = vunpack.c.h.b16 %v518
        %v1176 = vunpack.c.l.b16 %v519
        %v1177 = vunpack.c.h.b16 %v519
        %v1178 = vunpack.c.l.b16 %v520
        %v1179 = vunpack.c.h.b16 %v520
        %v1180 = vunpack.c.l.b16 %v521
        %v1181 = vunpack.c.h.b16 %v521
        %v1182 = vunpack.c.l.b16 %v522
        %v1183 = vunpack.c.h.b16 %v522
        %v1184 = vunpack.c.l.b16 %v523
        %v1185 = vunpack.c.h.b16 %v523
        %v1186 = vunpack.c.l.b16 %v524
        %v1187 = vunpack.c.h.b16 %v524
        %v1188 = vunpack.c.l.b16 %v525
        %v1189 = vunpack.c.h.b16 %v525
        %v1190 = vunpack.c.l.b16 %v526
        %v1191 = vunpack.c.h.b16 %v526
        %v1192 = vunpack.c.l.b16 %v527
        %v1193 = vunpack.c.h.b16 %v527
        %v1194 = vunpack.c.l.b16 %v528
        %v1195 = vunpack.c.h.b16 %v528
        %v1196 = vunpack.c.l.b16 %v529
        %v1197 = vunpack.c.h.b16 %v529
        %v1198 = vunpack.c.l.b16 %v530
        %v1199 = vunpack.c.h.b16 %v530
        %v1200 = vunpack.c.l.b16 %v531
        %v1201 = vunpack.c.h.b16 %v531
        %v1202 = vunpack.c.l.b16 %v532
        %v1203 = vunpack.c.h.b16 %v532
        %v1204 = vunpack.c.l.b16 %v533
        %v1205 = vunpack.c.h.b16 %v533
        %v1206 = vunpack.c.l.b16 %v534
        %v1207 = vunpack.c.h.b16 %v534
        %v1208 = vunpack.c.l.b16 %v535
        %v1209 = vunpack.c.h.b16 %v535
        %v1210 = vunpack.c.l.b16 %v536
        %v1211 = vunpack.c.h.b16 %v536
        %v1212 = vunpack.c.l.b16 %v537
        %v1213 = vunpack.c.h.b16 %v537
        %v1214 = vunpack.c.l.b16 %v538
        %v1215 = vunpack.c.h.b16 %v538
        %v1216 = vunpack.c.l.b16 %v539
        %v1217 = vunpack.c.h.b16 %v539
        %v1218 = vunpack.c.l.b16 %v540
        %v1219 = vunpack.c.h.b16 %v540
        %v1220 = vunpack.c.l.b16 %v541
        %v1221 = vunpack.c.h.b16 %v541
        %v1222 = vunpack.c.l.b16 %v542
        %v1223 = vunpack.c.h.b16 %v542
        %v1224 = vunpack.c.l.b16 %v543
        %v1225 = vunpack.c.h.b16 %v543
        %v1226 = vunpack.c.l.b16 %v544
        %v1227 = vunpack.c.h.b16 %v544
        %v1228 = vunpack.c.l.b16 %v545
        %v1229 = vunpack.c.h.b16 %v545
        %v1230 = vunpack.c.l.b16 %v546
        %v1231 = vunpack.c.h.b16 %v546
        %v1232 = vunpack.c.l.b16 %v547
        %v1233 = vunpack.c.h.b16 %v547
        %v1234 = vunpack.c.l.b16 %v548
        %v1235 = vunpack.c.h.b16 %v548
        %v1236 = vunpack.c.l.b16 %v549
        %v1237 = vunpack.c.h.b16 %v549
        %v1238 = vunpack.c.l.b16 %v550
        %v1239 = vunpack.c.h.b16 %v550
        %v1240 = vunpack.c.l.b16 %v551
        %v1241 = vunpack.c.h.b16 %v551
        %v1242 = vunpack.c.l.b16 %v552
        %v1243 = vunpack.c.h.b16 %v552
        %v1244 = vunpack.c.l.b16 %v553
        %v1245 = vunpack.c.h.b16 %v553
        %v1246 = vunpack.c.l.b16 %v554
        %v1247 = vunpack.c.h.b16 %v554
        %v1248 = vunpack.c.l.b16 %v555
        %v1249 = vunpack.c.h.b16 %v555
        %v1250 = vunpack.c.l.b16 %v556
        %v1251 = vunpack.c.h.b16 %v556
        %v1252 = vunpack.c.l.b16 %v557
        %v1253 = vunpack.c.h.b16 %v557
        %v1254 = vunpack.c.l.b16 %v558
        %v1255 = vunpack.c.h.b16 %v558
        %v1256 = vunpack.c.l.b16 %v559
        %v1257 = vunpack.c.h.b16 %v559
        %v1258 = vunpack.c.l.b16 %v560
        %v1259 = vunpack.c.h.b16 %v560
        %v1260 = vunpack.c.l.b16 %v561
        %v1261 = vunpack.c.h.b16 %v561
        %v1262 = vunpack.c.l.b16 %v562
        %v1263 = vunpack.c.h.b16 %v562
        %v1264 = vunpack.c.l.b16 %v563
        %v1265 = vunpack.c.h.b16 %v563
        %v1266 = vunpack.c.l.b16 %v564
        %v1267 = vunpack.c.h.b16 %v564
        %v1268 = vunpack.c.l.b16 %v565
        %v1269 = vunpack.c.h.b16 %v565
        %v1270 = vunpack.c.l.b16 %v566
        %v1271 = vunpack.c.h.b16 %v566
        %v1272 = vunpack.c.l.b16 %v567
        %v1273 = vunpack.c.h.b16 %v567
        %v1274 = vunpack.c.l.b16 %v568
        %v1275 = vunpack.c.h.b16 %v568
        %v1276 = vunpack.c.l.b16 %v569
        %v1277 = vunpack.c.h.b16 %v569
        %v1278 = vunpack.c.l.b16 %v570
        %v1279 = vunpack.c.h.b16 %v570
        %v1280 = vunpack.c.l.b16 %v571
        %v1281 = vunpack.c.h.b16 %v571
        %v1282 = vunpack.c.l.b16 %v572
        %v1283 = vunpack.c.h.b16 %v572
        %v1284 = vunpack.c.l.b16 %v573
        %v1285 = vunpack.c.h.b16 %v573
        %v1286 = vunpack.c.l.b16 %v574
        %v1287 = vunpack.c.h.b16 %v574
        %v1288 = vunpack.c.l.b16 %v575
        %v1289 = vunpack.c.h.b16 %v575
        %v1290 = vunpack.c.l.b16 %v576
        %v1291 = vunpack.c.h.b16 %v576
        %v1292 = vunpack.c.l.b16 %v577
        %v1293 = vunpack.c.h.b16 %v577
        %v1294 = vunpack.c.l.b16 %v578
        %v1295 = vunpack.c.h.b16 %v578
        %v1296 = vunpack.c.l.b16 %v579
        %v1297 = vunpack.c.h.b16 %v579
        %v1298 = vunpack.c.l.b16 %v580
        %v1299 = vunpack.c.h.b16 %v580
        %v1300 = vunpack.c.l.b16 %v581
        %v1301 = vunpack.c.h.b16 %v581
        %v1302 = vunpack.c.l.b16 %v582
        %v1303 = vunpack.c.h.b16 %v582
        %v1304 = vunpack.c.l.b16 %v583
        %v1305 = vunpack.c.h.b16 %v583
        %v1306 = vunpack.c.l.b16 %v584
        %v1307 = vunpack.c.h.b16 %v584
        %v1308 = vunpack.c.l.b16 %v585
        %v1309 = vunpack.c.h.b16 %v585
        %v1310 = vunpack.c.l.b16 %v586
        %v1311 = vunpack.c.h.b16 %v586
        %v1312 = vunpack.c.l.b16 %v587
        %v1313 = vunpack.c.h.b16 %v587
        %v1314 = vunpack.c.l.b16 %v588
        %v1315 = vunpack.c.h.b16 %v588
        %v1316 = vunpack.c.l.b16 %v589
        %v1317 = vunpack.c.h.b16 %v589
        %v1318 = vunpack.c.l.b16 %v590
        %v1319 = vunpack.c.h.b16 %v590
        %v1320 = vunpack.c.l.b16 %v591
        %v1321 = vunpack.c.h.b16 %v591
        %v1322 = vunpack.c.l.b16 %v592
        %v1323 = vunpack.c.h.b16 %v592
        %v1324 = vunpack.c.l.b16 %v593
        %v1325 = vunpack.c.h.b16 %v593
        %v1326 = vunpack.c.l.b16 %v594
        %v1327 = vunpack.c.h.b16 %v594
        %v1328 = vunpack.c.l.b16 %v595
        %v1329 = vunpack.c.h.b16 %v595
        %v1330 = vunpack.c.l.b16 %v596
        %v1331 = vunpack.c.h.b16 %v596
        %v1332 = vunpack.c.l.b16 %v597
        %v1333 = vunpack.c.h.b16 %v597
        %v1334 = vunpack.c.l.b16 %v598
        %v1335 = vunpack.c.h.b16 %v598
        %v1336 = vunpack.c.l.b16 %v599
        %v1337 = vunpack.c.h.b16 %v599
        %v1338 = vunpack.c.l.b16 %v600
        %v1339 = vunpack.c.h.b16 %v600
        %v1340 = vunpack.c.l.b16 %v601
        %v1341 = vunpack.c.h.b16 %v601
        %v1342 = vunpack.c.l.b16 %v602
        %v1343 = vunpack.c.h.b16 %v602
        %v1344 = vunpack.c.l.b16 %v603
        %v1345 = vunpack.c.h.b16 %v603
        %v1346 = vunpack.c.l.b16 %v604
        %v1347 = vunpack.c.h.b16 %v604
        %v1348 = vunpack.c.l.b16 %v605
        %v1349 = vunpack.c.h.b16 %v605
        %v1350 = vunpack.c.l.b16 %v606
        %v1351 = vunpack.c.h.b16 %v606
        %v1352 = vunpack.c.l.b16 %v607
        %v1353 = vunpack.c.h.b16 %v607
        %v1354 = vunpack.c.l.b16 %v608
        %v1355 = vunpack.c.h.b16 %v608
        %v1356 = vunpack.c.l.b16 %v609
        %v1357 = vunpack.c.h.b16 %v609
        %v1358 = vunpack.c.l.b16 %v610
        %v1359 = vunpack.c.h.b16 %v610
        %v1360 = vunpack.c.l.b16 %v611
        %v1361 = vunpack.c.h.b16 %v611
        %v1362 = vunpack.c.l.b16 %v612
        %v1363 = vunpack.c.h.b16 %v612
        %v1364 = vunpack.c.l.b16 %v613
        %v1365 = vunpack.c.h.b16 %v613
        %v1366 = vunpack.c.l.b16 %v614
        %v1367 = vunpack.c.h.b16 %v614
        %v1368 = vunpack.c.l.b16 %v615
        %v1369 = vunpack.c.h.b16 %v615
        %v1370 = vunpack.c.l.b16 %v616
        %v1371 = vunpack.c.h.b16 %v616
        %v1372 = vunpack.c.l.b16 %v617
        %v1373 = vunpack.c.h.b16 %v617
        %v1374 = vunpack.c.l.b16 %v618
        %v1375 = vunpack.c.h.b16 %v618
        %v1376 = vunpack.c.l.b16 %v619
        %v1377 = vunpack.c.h.b16 %v619
        %v1378 = vunpack.c.l.b16 %v620
        %v1379 = vunpack.c.h.b16 %v620
        %v1380 = vunpack.c.l.b16 %v621
        %v1381 = vunpack.c.h.b16 %v621
        %v1382 = vunpack.c.l.b16 %v622
        %v1383 = vunpack.c.h.b16 %v622
        %v1384 = vunpack.c.l.b16 %v623
        %v1385 = vunpack.c.h.b16 %v623
        %v1386 = vunpack.c.l.b16 %v624
        %v1387 = vunpack.c.h.b16 %v624
        %v1388 = vunpack.c.l.b16 %v625
        %v1389 = vunpack.c.h.b16 %v625
        %v1390 = vunpack.c.l.b16 %v626
        %v1391 = vunpack.c.h.b16 %v626
        %v1392 = vunpack.c.l.b16 %v627
        %v1393 = vunpack.c.h.b16 %v627
        %v1394 = vunpack.c.l.b16 %v628
        %v1395 = vunpack.c.h.b16 %v628
        %v1396 = vunpack.c.l.b16 %v629
        %v1397 = vunpack.c.h.b16 %v629
        %v1398 = vunpack.c.l.b16 %v630
        %v1399 = vunpack.c.h.b16 %v630
        %v1400 = vunpack.c.l.b16 %v631
        %v1401 = vunpack.c.h.b16 %v631
        %v1402 = vunpack.c.l.b16 %v632
        %v1403 = vunpack.c.h.b16 %v632
        %v1404 = vunpack.c.l.b16 %v633
        %v1405 = vunpack.c.h.b16 %v633
        %v1406 = vunpack.c.l.b16 %v634
        %v1407 = vunpack.c.h.b16 %v634
        %v1408 = vunpack.c.l.b16 %v635
        %v1409 = vunpack.c.h.b16 %v635
        %v1410 = vunpack.c.l.b16 %v636
        %v1411 = vunpack.c.h.b16 %v636
        %v1412 = vunpack.c.l.b16 %v637
        %v1413 = vunpack.c.h.b16 %v637
        %v1414 = vunpack.c.l.b16 %v638
        %v1415 = vunpack.c.h.b16 %v638
        %v1416 = vunpack.c.l.b16 %v639
        %v1417 = vunpack.c.h.b16 %v639
        %v1418 = vunpack.c.l.b16 %v640
        %v1419 = vunpack.c.h.b16 %v640
        %v1420 = vunpack.c.l.b16 %v641
        %v1421 = vunpack.c.h.b16 %v641
        %v1422 = vunpack.c.l.b16 %v642
        %v1423 = vunpack.c.h.b16 %v642
        %v1424 = vunpack.c.l.b16 %v643
        %v1425 = vunpack.c.h.b16 %v643
        %v1426 = vunpack.c.l.b16 %v644
        %v1427 = vunpack.c.h.b16 %v644
        %v1428 = vunpack.c.l.b16 %v645
        %v1429 = vunpack.c.h.b16 %v645
        %v1430 = vunpack.c.l.b16 %v646
        %v1431 = vunpack.c.h.b16 %v646
        %v1432 = vunpack.c.l.b16 %v647
        %v1433 = vunpack.c.h.b16 %v647
        %v1434 = vunpack.c.l.b16 %v648
        %v1435 = vunpack.c.h.b16 %v648
        %v1436 = vunpack.c.l.b16 %v649
        %v1437 = vunpack.c.h.b16 %v649
        %v1438 = vunpack.c.l.b16 %v650
        %v1439 = vunpack.c.h.b16 %v650
        %v1440 = vunpack.c.l.b16 %v651
        %v1441 = vunpack.c.h.b16 %v651
        %v1442 = vunpack.c.l.b16 %v652
        %v1443 = vunpack.c.h.b16 %v652
        %v1444 = vunpack.c.l.b16 %v653
        %v1445 = vunpack.c.h.b16 %v653
        %v1446 = vunpack.c.l.b16 %v654
        %v1447 = vunpack.c.h.b16 %v654
        %v1448 = vunpack.c.l.b16 %v655
        %v1449 = vunpack.c.h.b16 %v655
        %v1450 = vunpack.c.l.b16 %v656
        %v1451 = vunpack.c.h.b16 %v656
        %v1452 = vunpack.c.l.b16 %v657
        %v1453 = vunpack.c.h.b16 %v657
        %v1454 = vunpack.c.l.b16 %v658
        %v1455 = vunpack.c.h.b16 %v658
        %v1456 = vunpack.c.l.b16 %v659
        %v1457 = vunpack.c.h.b16 %v659
        %v1458 = vunpack.c.l.b16 %v660
        %v1459 = vunpack.c.h.b16 %v660
        %v1460 = vunpack.c.l.b16 %v661
        %v1461 = vunpack.c.h.b16 %v661
        %v1462 = vunpack.c.l.b16 %v662
        %v1463 = vunpack.c.h.b16 %v662
        %v1464 = vunpack.c.l.b16 %v663
        %v1465 = vunpack.c.h.b16 %v663
        %v1466 = vunpack.c.l.b16 %v664
        %v1467 = vunpack.c.h.b16 %v664
        %v1468 = vunpack.c.l.b16 %v665
        %v1469 = vunpack.c.h.b16 %v665
        %v1470 = vunpack.c.l.b16 %v666
        %v1471 = vunpack.c.h.b16 %v666
        %v1472 = vunpack.c.l.b16 %v667
        %v1473 = vunpack.c.h.b16 %v667
        %v1474 = vunpack.c.l.b16 %v668
        %v1475 = vunpack.c.h.b16 %v668
        %v1476 = vunpack.c.l.b16 %v669
        %v1477 = vunpack.c.h.b16 %v669
        %v1478 = vunpack.c.l.b16 %v670
        %v1479 = vunpack.c.h.b16 %v670
        %v1480 = vunpack.c.l.b16 %v671
        %v1481 = vunpack.c.h.b16 %v671
        %v1482 = vunpack.c.l.b16 %v672
        %v1483 = vunpack.c.h.b16 %v672
        %v1484 = vunpack.c.l.b16 %v673
        %v1485 = vunpack.c.h.b16 %v673
        %v1486 = vunpack.c.l.b16 %v674
        %v1487 = vunpack.c.h.b16 %v674
        %v1488 = vunpack.c.l.b16 %v675
        %v1489 = vunpack.c.h.b16 %v675
        %v1490 = vunpack.c.l.b16 %v676
        %v1491 = vunpack.c.h.b16 %v676
        %v1492 = vunpack.c.l.b16 %v677
        %v1493 = vunpack.c.h.b16 %v677
        %v1494 = vunpack.c.l.b16 %v678
        %v1495 = vunpack.c.h.b16 %v678
        %v1496 = vunpack.c.l.b16 %v679
        %v1497 = vunpack.c.h.b16 %v679
        %v1498 = vunpack.c.l.b16 %v680
        %v1499 = vunpack.c.h.b16 %v680
        %v1500 = vunpack.c.l.b16 %v681
        %v1501 = vunpack.c.h.b16 %v681
        %v1502 = vunpack.c.l.b16 %v682
        %v1503 = vunpack.c.h.b16 %v682
        %v1504 = vunpack.c.l.b16 %v683
        %v1505 = vunpack.c.h.b16 %v683
        %v1506 = vunpack.c.l.b16 %v684
        %v1507 = vunpack.c.h.b16 %v684
        %v1508 = vunpack.c.l.b16 %v685
        %v1509 = vunpack.c.h.b16 %v685
        %v1510 = vunpack.c.l.b16 %v686
        %v1511 = vunpack.c.h.b16 %v686
        %v1512 = vunpack.c.l.b16 %v687
        %v1513 = vunpack.c.h.b16 %v687
        %v1514 = vpack.c.b16 %v1010, %v1002
        %v1515 = vpack.c.b16 %v1011, %v1003
        %v1516 = vpack.c.b16 %v1012, %v1004
        %v1517 = vpack.c.b16 %v1013, %v1005
        %v1518 = vpack.c.b16 %v1014, %v1006
        %v1519 = vpack.c.b16 %v1015, %v1007
        %v1520 = vpack.c.b16 %v1016, %v1008
        %v1521 = vpack.c.b16 %v1017, %v1009
        %v1522 = vpack.c.b16 %v1026, %v1018
        %v1523 = vpack.c.b16 %v1027, %v1019
        %v1524 = vpack.c.b16 %v1028, %v1020
        %v1525 = vpack.c.b16 %v1029, %v1021
        %v1526 = vpack.c.b16 %v1030, %v1022
        %v1527 = vpack.c.b16 %v1031, %v1023
        %v1528 = vpack.c.b16 %v1032, %v1024
        %v1529 = vpack.c.b16 %v1033, %v1025
        %v1530 = vpack.c.b16 %v1042, %v1034
        %v1531 = vpack.c.b16 %v1043, %v1035
        %v1532 = vpack.c.b16 %v1044, %v1036
        %v1533 = vpack.c.b16 %v1045, %v1037
        %v1534 = vpack.c.b16 %v1046, %v1038
        %v1535 = vpack.c.b16 %v1047, %v1039
        %v1536 = vpack.c.b16 %v1048, %v1040
        %v1537 = vpack.c.b16 %v1049, %v1041
        %v1538 = vpack.c.b16 %v1058, %v1050
        %v1539 = vpack.c.b16 %v1059, %v1051
        %v1540 = vpack.c.b16 %v1060, %v1052
        %v1541 = vpack.c.b16 %v1061, %v1053
        %v1542 = vpack.c.b16 %v1062, %v1054
        %v1543 = vpack.c.b16 %v1063, %v1055
        %v1544 = vpack.c.b16 %v1064, %v1056
        %v1545 = vpack.c.b16 %v1065, %v1057
        %v1546 = vpack.c.b16 %v1074, %v1066
        %v1547 = vpack.c.b16 %v1075, %v1067
        %v1548 = vpack.c.b16 %v1076, %v1068
        %v1549 = vpack.c.b16 %v1077, %v1069
        %v1550 = vpack.c.b16 %v1078, %v1070
        %v1551 = vpack.c.b16 %v1079, %v1071
        %v1552 = vpack.c.b16 %v1080, %v1072
        %v1553 = vpack.c.b16 %v1081, %v1073
        %v1554 = vpack.c.b16 %v1090, %v1082
        %v1555 = vpack.c.b16 %v1091, %v1083
        %v1556 = vpack.c.b16 %v1092, %v1084
        %v1557 = vpack.c.b16 %v1093, %v1085
        %v1558 = vpack.c.b16 %v1094, %v1086
        %v1559 = vpack.c.b16 %v1095, %v1087
        %v1560 = vpack.c.b16 %v1096, %v1088
        %v1561 = vpack.c.b16 %v1097, %v1089
        %v1562 = vpack.c.b16 %v1106, %v1098
        %v1563 = vpack.c.b16 %v1107, %v1099
        %v1564 = vpack.c.b16 %v1108, %v1100
        %v1565 = vpack.c.b16 %v1109, %v1101
        %v1566 = vpack.c.b16 %v1110, %v1102
        %v1567 = vpack.c.b16 %v1111, %v1103
        %v1568 = vpack.c.b16 %v1112, %v1104
        %v1569 = vpack.c.b16 %v1113, %v1105
        %v1570 = vpack.c.b16 %v1122, %v1114
        %v1571 = vpack.c.b16 %v1123, %v1115
        %v1572 = vpack.c.b16 %v1124, %v1116
        %v1573 = vpack.c.b16 %v1125, %v1117
        %v1574 = vpack.c.b16 %v1126, %v1118
        %v1575 = vpack.c.b16 %v1127, %v1119
        %v1576 = vpack.c.b16 %v1128, %v1120
        %v1577 = vpack.c.b16 %v1129, %v1121
        %v1578 = vpack.c.b16 %v1138, %v1130
        %v1579 = vpack.c.b16 %v1139, %v1131
        %v1580 = vpack.c.b16 %v1140, %v1132
        %v1581 = vpack.c.b16 %v1141, %v1133
        %v1582 = vpack.c.b16 %v1142, %v1134
        %v1583 = vpack.c.b16 %v1143, %v1135
        %v1584 = vpack.c.b16 %v1144, %v1136
        %v1585 = vpack.c.b16 %v1145, %v1137
        %v1586 = vpack.c.b16 %v1154, %v1146
        %v1587 = vpack.c.b16 %v1155, %v1147
        %v1588 = vpack.c.b16 %v1156, %v1148
        %v1589 = vpack.c.b16 %v1157, %v1149
        %v1590 = vpack.c.b16 %v1158, %v1150
        %v1591 = vpack.c.b16 %v1159, %v1151
        %v1592 = vpack.c.b16 %v1160, %v1152
        %v1593 = vpack.c.b16 %v1161, %v1153
        %v1594 = vpack.c.b16 %v1170, %v1162
        %v1595 = vpack.c.b16 %v1171, %v1163
        %v1596 = vpack.c.b16 %v1172, %v1164
        %v1597 = vpack.c.b16 %v1173, %v1165
        %v1598 = vpack.c.b16 %v1174, %v1166
        %v1599 = vpack.c.b16 %v1175, %v1167
        %v1600 = vpack.c.b16 %v1176, %v1168
        %v1601 = vpack.c.b16 %v1177, %v1169
        %v1602 = vpack.c.b16 %v1186, %v1178
        %v1603 = vpack.c.b16 %v1187, %v1179
        %v1604 = vpack.c.b16 %v1188, %v1180
        %v1605 = vpack.c.b16 %v1189, %v1181
        %v1606 = vpack.c.b16 %v1190, %v1182
        %v1607 = vpack.c.b16 %v1191, %v1183
        %v1608 = vpack.c.b16 %v1192, %v1184
        %v1609 = vpack.c.b16 %v1193, %v1185
        %v1610 = vpack.c.b16 %v1202, %v1194
        %v1611 = vpack.c.b16 %v1203, %v1195
        %v1612 = vpack.c.b16 %v1204, %v1196
        %v1613 = vpack.c.b16 %v1205, %v1197
        %v1614 = vpack.c.b16 %v1206, %v1198
        %v1615 = vpack.c.b16 %v1207, %v1199
        %v1616 = vpack.c.b16 %v1208, %v1200
        %v1617 = vpack.c.b16 %v1209, %v1201
        %v1618 = vpack.c.b16 %v1218, %v1210
        %v1619 = vpack.c.b16 %v1219, %v1211
        %v1620 = vpack.c.b16 %v1220, %v1212
        %v1621 = vpack.c.b16 %v1221, %v1213
        %v1622 = vpack.c.b16 %v1222, %v1214
        %v1623 = vpack.c.b16 %v1223, %v1215
        %v1624 = vpack.c.b16 %v1224, %v1216
        %v1625 = vpack.c.b16 %v1225, %v1217
        %v1626 = vpack.c.b16 %v1234, %v1226
        %v1627 = vpack.c.b16 %v1235, %v1227
        %v1628 = vpack.c.b16 %v1236, %v1228
        %v1629 = vpack.c.b16 %v1237, %v1229
        %v1630 = vpack.c.b16 %v1238, %v1230
        %v1631 = vpack.c.b16 %v1239, %v1231
        %v1632 = vpack.c.b16 %v1240, %v1232
        %v1633 = vpack.c.b16 %v1241, %v1233
        %v1634 = vpack.c.b16 %v1250, %v1242
        %v1635 = vpack.c.b16 %v1251, %v1243
        %v1636 = vpack.c.b16 %v1252, %v1244
        %v1637 = vpack.c.b16 %v1253, %v1245
        %v1638 = vpack.c.b16 %v1254, %v1246
        %v1639 = vpack.c.b16 %v1255, %v1247
        %v1640 = vpack.c.b16 %v1256, %v1248
        %v1641 = vpack.c.b16 %v1257, %v1249
        %v1642 = vpack.c.b16 %v1266, %v1258
        %v1643 = vpack.c.b16 %v1267, %v1259
        %v1644 = vpack.c.b16 %v1268, %v1260
        %v1645 = vpack.c.b16 %v1269, %v1261
        %v1646 = vpack.c.b16 %v1270, %v1262
        %v1647 = vpack.c.b16 %v1271, %v1263
        %v1648 = vpack.c.b16 %v1272, %v1264
        %v1649 = vpack.c.b16 %v1273, %v1265
        %v1650 = vpack.c.b16 %v1282, %v1274
        %v1651 = vpack.c.b16 %v1283, %v1275
        %v1652 = vpack.c.b16 %v1284, %v1276
        %v1653 = vpack.c.b16 %v1285, %v1277
        %v1654 = vpack.c.b16 %v1286, %v1278
        %v1655 = vpack.c.b16 %v1287, %v1279
        %v1656 = vpack.c.b16 %v1288, %v1280
        %v1657 = vpack.c.b16 %v1289, %v1281
        %v1658 = vpack.c.b16 %v1298, %v1290
        %v1659 = vpack.c.b16 %v1299, %v1291
        %v1660 = vpack.c.b16 %v1300, %v1292
        %v1661 = vpack.c.b16 %v1301, %v1293
        %v1662 = vpack.c.b16 %v1302, %v1294
        %v1663 = vpack.c.b16 %v1303, %v1295
        %v1664 = vpack.c.b16 %v1304, %v1296
        %v1665 = vpack.c.b16 %v1305, %v1297
        %v1666 = vpack.c.b16 %v1314, %v1306
        %v1667 = vpack.c.b16 %v1315, %v1307
        %v1668 = vpack.c.b16 %v1316, %v1308
        %v1669 = vpack.c.b16 %v1317, %v1309
        %v1670 = vpack.c.b16 %v1318, %v1310
        %v1671 = vpack.c.b16 %v1319, %v1311
        %v1672 = vpack.c.b16 %v1320, %v1312
        %v1673 = vpack.c.b16 %v1321, %v1313
        %v1674 = vpack.c.b16 %v1330, %v1322
        %v1675 = vpack.c.b16 %v1331, %v1323
        %v1676 = vpack.c.b16 %v1332, %v1324
        %v1677 = vpack.c.b16 %v1333, %v1325
        %v1678 = vpack.c.b16 %v1334, %v1326
        %v1679 = vpack.c.b16 %v1335, %v1327
        %v1680 = vpack.c.b16 %v1336, %v1328
        %v1681 = vpack.c.b16 %v1337, %v1329
        %v1682 = vpack.c.b16 %v1346, %v1338
        %v1683 = vpack.c.b16 %v1347, %v1339
        %v1684 = vpack.c.b16 %v1348, %v1340
        %v1685 = vpack.c.b16 %v1349, %v1341
        %v1686 = vpack.c.b16 %v1350, %v1342
        %v1687 = vpack.c.b16 %v1351, %v1343
        %v1688 = vpack.c.b16 %v1352, %v1344
        %v1689 = vpack.c.b16 %v1353, %v1345
        %v1690 = vpack.c.b16 %v1362, %v1354
        %v1691 = vpack.c.b16 %v1363, %v1355
        %v1692 = vpack.c.b16 %v1364, %v1356
        %v1693 = vpack.c.b16 %v1365, %v1357
        %v1694 = vpack.c.b16 %v1366, %v1358
        %v1695 = vpack.c.b16 %v1367, %v1359
        %v1696 = vpack.c.b16 %v1368, %v1360
        %v1697 = vpack.c.b16 %v1369, %v1361
        %v1698 = vpack.c.b16 %v1378, %v1370
        %v1699 = vpack.c.b16 %v1379, %v1371
        %v1700 = vpack.c.b16 %v1380, %v1372
        %v1701 = vpack.c.b16 %v1381, %v1373
        %v1702 = vpack.c.b16 %v1382, %v1374
        %v1703 = vpack.c.b16 %v1383, %v1375
        %v1704 = vpack.c.b16 %v1384, %v1376
        %v1705 = vpack.c.b16 %v1385, %v1377
        %v1706 = vpack.c.b16 %v1394, %v1386
        %v1707 = vpack.c.b16 %v1395, %v1387
        %v1708 = vpack.c.b16 %v1396, %v1388
        %v1709 = vpack.c.b16 %v1397, %v1389
        %v1710 = vpack.c.b16 %v1398, %v1390
        %v1711 = vpack.c.b16 %v1399, %v1391
        %v1712 = vpack.c.b16 %v1400, %v1392
        %v1713 = vpack.c.b16 %v1401, %v1393
        %v1714 = vpack.c.b16 %v1410, %v1402
        %v1715 = vpack.c.b16 %v1411, %v1403
        %v1716 = vpack.c.b16 %v1412, %v1404
        %v1717 = vpack.c.b16 %v1413, %v1405
        %v1718 = vpack.c.b16 %v1414, %v1406
        %v1719 = vpack.c.b16 %v1415, %v1407
        %v1720 = vpack.c.b16 %v1416, %v1408
        %v1721 = vpack.c.b16 %v1417, %v1409
        %v1722 = vpack.c.b16 %v1426, %v1418
        %v1723 = vpack.c.b16 %v1427, %v1419
        %v1724 = vpack.c.b16 %v1428, %v1420
        %v1725 = vpack.c.b16 %v1429, %v1421
        %v1726 = vpack.c.b16 %v1430, %v1422
        %v1727 = vpack.c.b16 %v1431, %v1423
        %v1728 = vpack.c.b16 %v1432, %v1424
        %v1729 = vpack.c.b16 %v1433, %v1425
        %v1730 = vpack.c.b16 %v1442, %v1434
        %v1731 = vpack.c.b16 %v1443, %v1435
        %v1732 = vpack.c.b16 %v1444, %v1436
        %v1733 = vpack.c.b16 %v1445, %v1437
        %v1734 = vpack.c.b16 %v1446, %v1438
        %v1735 = vpack.c.b16 %v1447, %v1439
        %v1736 = vpack.c.b16 %v1448, %v1440
        %v1737 = vpack.c.b16 %v1449, %v1441
        %v1738 = vpack.c.b16 %v1458, %v1450
        %v1739 = vpack.c.b16 %v1459, %v1451
        %v1740 = vpack.c.b16 %v1460, %v1452
        %v1741 = vpack.c.b16 %v1461, %v1453
        %v1742 = vpack.c.b16 %v1462, %v1454
        %v1743 = vpack.c.b16 %v1463, %v1455
        %v1744 = vpack.c.b16 %v1464, %v1456
        %v1745 = vpack.c.b16 %v1465, %v1457
        %v1746 = vpack.c.b16 %v1474, %v1466
        %v1747 = vpack.c.b16 %v1475, %v1467
        %v1748 = vpack.c.b16 %v1476, %v1468
        %v1749 = vpack.c.b16 %v1477, %v1469
        %v1750 = vpack.c.b16 %v1478, %v1470
        %v1751 = vpack.c.b16 %v1479, %v1471
        %v1752 = vpack.c.b16 %v1480, %v1472
        %v1753 = vpack.c.b16 %v1481, %v1473
        %v1754 = vpack.c.b16 %v1490, %v1482
        %v1755 = vpack.c.b16 %v1491, %v1483
        %v1756 = vpack.c.b16 %v1492, %v1484
        %v1757 = vpack.c.b16 %v1493, %v1485
        %v1758 = vpack.c.b16 %v1494, %v1486
        %v1759 = vpack.c.b16 %v1495, %v1487
        %v1760 = vpack.c.b16 %v1496, %v1488
        %v1761 = vpack.c.b16 %v1497, %v1489
        %v1762 = vpack.c.b16 %v1506, %v1498
        %v1763 = vpack.c.b16 %v1507, %v1499
        %v1764 = vpack.c.b16 %v1508, %v1500
        %v1765 = vpack.c.b16 %v1509, %v1501
        %v1766 = vpack.c.b16 %v1510, %v1502
        %v1767 = vpack.c.b16 %v1511, %v1503
        %v1768 = vpack.c.b16 %v1512, %v1504
        %v1769 = vpack.c.b16 %v1513, %v1505
        %2026 = vmatpush.bf16.msra.mxu0 %v1570
        %2027 = vmatpush.bf16.msra.mxu0 %v1562
        %2028 = vmatpush.bf16.msra.mxu0 %v1554
        %2029 = vmatpush.bf16.msra.mxu0 %v1546
        %2030 = vmatpush.bf16.msra.mxu0 %v1538
        %2031 = vmatpush.bf16.msra.mxu0 %v1530
        %2032 = vmatpush.bf16.msra.mxu0 %v1522
        %2033 = vmatpush.bf16.msra.mxu0 %v1514
        %2034 = vmatmul.bf16.gmra.mxu0 %v730
        %v2035 = vpop.f32.mrf.mxu0
        %v2036 = vadd.f32 %v690, %v2035
        %v2037 = vpop.f32.mrf.mxu0
        %v2038 = vadd.f32 %v690, %v2037
        %2039 = vmatmul.bf16.gmra.mxu0 %v734
        %v2040 = vpop.f32.mrf.mxu0
        %v2041 = vadd.f32 %v690, %v2040
        %v2042 = vpop.f32.mrf.mxu0
        %v2043 = vadd.f32 %v690, %v2042
        %2044 = vdwg.mxu0
        %2045 = vmatpush.bf16.msra.mxu0 %v1634
        %2046 = vmatpush.bf16.msra.mxu0 %v1626
        %2047 = vmatpush.bf16.msra.mxu0 %v1618
        %2048 = vmatpush.bf16.msra.mxu0 %v1610
        %2049 = vmatpush.bf16.msra.mxu0 %v1602
        %2050 = vmatpush.bf16.msra.mxu0 %v1594
        %2051 = vmatpush.bf16.msra.mxu0 %v1586
        %2052 = vmatpush.bf16.msra.mxu0 %v1578
        %2053 = vmatmul.bf16.gmra.mxu0 %v731
        %v2054 = vpop.f32.mrf.mxu0
        %v2055 = vadd.f32 %v2036, %v2054
        %v2056 = vpop.f32.mrf.mxu0
        %v2057 = vadd.f32 %v2038, %v2056
        %2058 = vmatmul.bf16.gmra.mxu0 %v735
        %v2059 = vpop.f32.mrf.mxu0
        %v2060 = vadd.f32 %v2041, %v2059
        %v2061 = vpop.f32.mrf.mxu0
        %v2062 = vadd.f32 %v2043, %v2061
        %2063 = vdwg.mxu0
        %2064 = vmatpush.bf16.msra.mxu0 %v1698
        %2065 = vmatpush.bf16.msra.mxu0 %v1690
        %2066 = vmatpush.bf16.msra.mxu0 %v1682
        %2067 = vmatpush.bf16.msra.mxu0 %v1674
        %2068 = vmatpush.bf16.msra.mxu0 %v1666
        %2069 = vmatpush.bf16.msra.mxu0 %v1658
        %2070 = vmatpush.bf16.msra.mxu0 %v1650
        %2071 = vmatpush.bf16.msra.mxu0 %v1642
        %2072 = vmatmul.bf16.gmra.mxu0 %v732
        %v2073 = vpop.f32.mrf.mxu0
        %v2074 = vadd.f32 %v2055, %v2073
        %v2075 = vpop.f32.mrf.mxu0
        %v2076 = vadd.f32 %v2057, %v2075
        %2077 = vmatmul.bf16.gmra.mxu0 %v736
        %v2078 = vpop.f32.mrf.mxu0
        %v2079 = vadd.f32 %v2060, %v2078
        %v2080 = vpop.f32.mrf.mxu0
        %v2081 = vadd.f32 %v2062, %v2080
        %2082 = vdwg.mxu0
        %2083 = vmatpush.bf16.msra.mxu0 %v1762
        %2084 = vmatpush.bf16.msra.mxu0 %v1754
        %2085 = vmatpush.bf16.msra.mxu0 %v1746
        %2086 = vmatpush.bf16.msra.mxu0 %v1738
        %2087 = vmatpush.bf16.msra.mxu0 %v1730
        %2088 = vmatpush.bf16.msra.mxu0 %v1722
        %2089 = vmatpush.bf16.msra.mxu0 %v1714
        %2090 = vmatpush.bf16.msra.mxu0 %v1706
        %2091 = vmatmul.bf16.gmra.mxu0 %v733
        %v2092 = vpop.f32.mrf.mxu0
        %v2093 = vadd.f32 %v2074, %v2092
        %v2094 = vpop.f32.mrf.mxu0
        %v2095 = vadd.f32 %v2076, %v2094
        %2096 = vmatmul.bf16.gmra.mxu0 %v737
        %v2097 = vpop.f32.mrf.mxu0
        %v2098 = vadd.f32 %v2079, %v2097
        %v2099 = vpop.f32.mrf.mxu0
        %v2100 = vadd.f32 %v2081, %v2099
        %2101 = vdwg.mxu0
        %2102 = vmatpush.bf16.msra.mxu0 %v1571
        %2103 = vmatpush.bf16.msra.mxu0 %v1563
        %2104 = vmatpush.bf16.msra.mxu0 %v1555
        %2105 = vmatpush.bf16.msra.mxu0 %v1547
        %2106 = vmatpush.bf16.msra.mxu0 %v1539
        %2107 = vmatpush.bf16.msra.mxu0 %v1531
        %2108 = vmatpush.bf16.msra.mxu0 %v1523
        %2109 = vmatpush.bf16.msra.mxu0 %v1515
        %2110 = vmatmul.bf16.gmra.mxu0 %v730
        %v2111 = vpop.f32.mrf.mxu0
        %v2112 = vadd.f32 %v691, %v2111
        %v2113 = vpop.f32.mrf.mxu0
        %v2114 = vadd.f32 %v691, %v2113
        %2115 = vmatmul.bf16.gmra.mxu0 %v734
        %v2116 = vpop.f32.mrf.mxu0
        %v2117 = vadd.f32 %v691, %v2116
        %v2118 = vpop.f32.mrf.mxu0
        %v2119 = vadd.f32 %v691, %v2118
        %2120 = vdwg.mxu0
        %2121 = vmatpush.bf16.msra.mxu0 %v1635
        %2122 = vmatpush.bf16.msra.mxu0 %v1627
        %2123 = vmatpush.bf16.msra.mxu0 %v1619
        %2124 = vmatpush.bf16.msra.mxu0 %v1611
        %2125 = vmatpush.bf16.msra.mxu0 %v1603
        %2126 = vmatpush.bf16.msra.mxu0 %v1595
        %2127 = vmatpush.bf16.msra.mxu0 %v1587
        %2128 = vmatpush.bf16.msra.mxu0 %v1579
        %2129 = vmatmul.bf16.gmra.mxu0 %v731
        %v2130 = vpop.f32.mrf.mxu0
        %v2131 = vadd.f32 %v2112, %v2130
        %v2132 = vpop.f32.mrf.mxu0
        %v2133 = vadd.f32 %v2114, %v2132
        %2134 = vmatmul.bf16.gmra.mxu0 %v735
        %v2135 = vpop.f32.mrf.mxu0
        %v2136 = vadd.f32 %v2117, %v2135
        %v2137 = vpop.f32.mrf.mxu0
        %v2138 = vadd.f32 %v2119, %v2137
        %2139 = vdwg.mxu0
        %2140 = vmatpush.bf16.msra.mxu0 %v1699
        %2141 = vmatpush.bf16.msra.mxu0 %v1691
        %2142 = vmatpush.bf16.msra.mxu0 %v1683
        %2143 = vmatpush.bf16.msra.mxu0 %v1675
        %2144 = vmatpush.bf16.msra.mxu0 %v1667
        %2145 = vmatpush.bf16.msra.mxu0 %v1659
        %2146 = vmatpush.bf16.msra.mxu0 %v1651
        %2147 = vmatpush.bf16.msra.mxu0 %v1643
        %2148 = vmatmul.bf16.gmra.mxu0 %v732
        %v2149 = vpop.f32.mrf.mxu0
        %v2150 = vadd.f32 %v2131, %v2149
        %v2151 = vpop.f32.mrf.mxu0
        %v2152 = vadd.f32 %v2133, %v2151
        %2153 = vmatmul.bf16.gmra.mxu0 %v736
        %v2154 = vpop.f32.mrf.mxu0
        %v2155 = vadd.f32 %v2136, %v2154
        %v2156 = vpop.f32.mrf.mxu0
        %v2157 = vadd.f32 %v2138, %v2156
        %2158 = vdwg.mxu0
        %2159 = vmatpush.bf16.msra.mxu0 %v1763
        %2160 = vmatpush.bf16.msra.mxu0 %v1755
        %2161 = vmatpush.bf16.msra.mxu0 %v1747
        %2162 = vmatpush.bf16.msra.mxu0 %v1739
        %2163 = vmatpush.bf16.msra.mxu0 %v1731
        %2164 = vmatpush.bf16.msra.mxu0 %v1723
        %2165 = vmatpush.bf16.msra.mxu0 %v1715
        %2166 = vmatpush.bf16.msra.mxu0 %v1707
        %2167 = vmatmul.bf16.gmra.mxu0 %v733
        %v2168 = vpop.f32.mrf.mxu0
        %v2169 = vadd.f32 %v2150, %v2168
        %v2170 = vpop.f32.mrf.mxu0
        %v2171 = vadd.f32 %v2152, %v2170
        %2172 = vmatmul.bf16.gmra.mxu0 %v737
        %v2173 = vpop.f32.mrf.mxu0
        %v2174 = vadd.f32 %v2155, %v2173
        %v2175 = vpop.f32.mrf.mxu0
        %v2176 = vadd.f32 %v2157, %v2175
        %2177 = vdwg.mxu0
        %2178 = vmatpush.bf16.msra.mxu0 %v1572
        %2179 = vmatpush.bf16.msra.mxu0 %v1564
        %2180 = vmatpush.bf16.msra.mxu0 %v1556
        %2181 = vmatpush.bf16.msra.mxu0 %v1548
        %2182 = vmatpush.bf16.msra.mxu0 %v1540
        %2183 = vmatpush.bf16.msra.mxu0 %v1532
        %2184 = vmatpush.bf16.msra.mxu0 %v1524
        %2185 = vmatpush.bf16.msra.mxu0 %v1516
        %2186 = vmatmul.bf16.gmra.mxu0 %v730
        %v2187 = vpop.f32.mrf.mxu0
        %v2188 = vadd.f32 %v692, %v2187
        %v2189 = vpop.f32.mrf.mxu0
        %v2190 = vadd.f32 %v692, %v2189
        %2191 = vmatmul.bf16.gmra.mxu0 %v734
        %v2192 = vpop.f32.mrf.mxu0
        %v2193 = vadd.f32 %v692, %v2192
        %v2194 = vpop.f32.mrf.mxu0
        %v2195 = vadd.f32 %v692, %v2194
        %2196 = vdwg.mxu0
        %2197 = vmatpush.bf16.msra.mxu0 %v1636
        %2198 = vmatpush.bf16.msra.mxu0 %v1628
        %2199 = vmatpush.bf16.msra.mxu0 %v1620
        %2200 = vmatpush.bf16.msra.mxu0 %v1612
        %2201 = vmatpush.bf16.msra.mxu0 %v1604
        %2202 = vmatpush.bf16.msra.mxu0 %v1596
        %2203 = vmatpush.bf16.msra.mxu0 %v1588
        %2204 = vmatpush.bf16.msra.mxu0 %v1580
        %2205 = vmatmul.bf16.gmra.mxu0 %v731
        %v2206 = vpop.f32.mrf.mxu0
        %v2207 = vadd.f32 %v2188, %v2206
        %v2208 = vpop.f32.mrf.mxu0
        %v2209 = vadd.f32 %v2190, %v2208
        %2210 = vmatmul.bf16.gmra.mxu0 %v735
        %v2211 = vpop.f32.mrf.mxu0
        %v2212 = vadd.f32 %v2193, %v2211
        %v2213 = vpop.f32.mrf.mxu0
        %v2214 = vadd.f32 %v2195, %v2213
        %2215 = vdwg.mxu0
        %2216 = vmatpush.bf16.msra.mxu0 %v1700
        %2217 = vmatpush.bf16.msra.mxu0 %v1692
        %2218 = vmatpush.bf16.msra.mxu0 %v1684
        %2219 = vmatpush.bf16.msra.mxu0 %v1676
        %2220 = vmatpush.bf16.msra.mxu0 %v1668
        %2221 = vmatpush.bf16.msra.mxu0 %v1660
        %2222 = vmatpush.bf16.msra.mxu0 %v1652
        %2223 = vmatpush.bf16.msra.mxu0 %v1644
        %2224 = vmatmul.bf16.gmra.mxu0 %v732
        %v2225 = vpop.f32.mrf.mxu0
        %v2226 = vadd.f32 %v2207, %v2225
        %v2227 = vpop.f32.mrf.mxu0
        %v2228 = vadd.f32 %v2209, %v2227
        %2229 = vmatmul.bf16.gmra.mxu0 %v736
        %v2230 = vpop.f32.mrf.mxu0
        %v2231 = vadd.f32 %v2212, %v2230
        %v2232 = vpop.f32.mrf.mxu0
        %v2233 = vadd.f32 %v2214, %v2232
        %2234 = vdwg.mxu0
        %2235 = vmatpush.bf16.msra.mxu0 %v1764
        %2236 = vmatpush.bf16.msra.mxu0 %v1756
        %2237 = vmatpush.bf16.msra.mxu0 %v1748
        %2238 = vmatpush.bf16.msra.mxu0 %v1740
        %2239 = vmatpush.bf16.msra.mxu0 %v1732
        %2240 = vmatpush.bf16.msra.mxu0 %v1724
        %2241 = vmatpush.bf16.msra.mxu0 %v1716
        %2242 = vmatpush.bf16.msra.mxu0 %v1708
        %2243 = vmatmul.bf16.gmra.mxu0 %v733
        %v2244 = vpop.f32.mrf.mxu0
        %v2245 = vadd.f32 %v2226, %v2244
        %v2246 = vpop.f32.mrf.mxu0
        %v2247 = vadd.f32 %v2228, %v2246
        %2248 = vmatmul.bf16.gmra.mxu0 %v737
        %v2249 = vpop.f32.mrf.mxu0
        %v2250 = vadd.f32 %v2231, %v2249
        %v2251 = vpop.f32.mrf.mxu0
        %v2252 = vadd.f32 %v2233, %v2251
        %2253 = vdwg.mxu0
        %2254 = vmatpush.bf16.msra.mxu0 %v1573
        %2255 = vmatpush.bf16.msra.mxu0 %v1565
        %2256 = vmatpush.bf16.msra.mxu0 %v1557
        %2257 = vmatpush.bf16.msra.mxu0 %v1549
        %2258 = vmatpush.bf16.msra.mxu0 %v1541
        %2259 = vmatpush.bf16.msra.mxu0 %v1533
        %2260 = vmatpush.bf16.msra.mxu0 %v1525
        %2261 = vmatpush.bf16.msra.mxu0 %v1517
        %2262 = vmatmul.bf16.gmra.mxu0 %v730
        %v2263 = vpop.f32.mrf.mxu0
        %v2264 = vadd.f32 %v693, %v2263
        %v2265 = vpop.f32.mrf.mxu0
        %v2266 = vadd.f32 %v693, %v2265
        %2267 = vmatmul.bf16.gmra.mxu0 %v734
        %v2268 = vpop.f32.mrf.mxu0
        %v2269 = vadd.f32 %v693, %v2268
        %v2270 = vpop.f32.mrf.mxu0
        %v2271 = vadd.f32 %v693, %v2270
        %2272 = vdwg.mxu0
        %2273 = vmatpush.bf16.msra.mxu0 %v1637
        %2274 = vmatpush.bf16.msra.mxu0 %v1629
        %2275 = vmatpush.bf16.msra.mxu0 %v1621
        %2276 = vmatpush.bf16.msra.mxu0 %v1613
        %2277 = vmatpush.bf16.msra.mxu0 %v1605
        %2278 = vmatpush.bf16.msra.mxu0 %v1597
        %2279 = vmatpush.bf16.msra.mxu0 %v1589
        %2280 = vmatpush.bf16.msra.mxu0 %v1581
        %2281 = vmatmul.bf16.gmra.mxu0 %v731
        %v2282 = vpop.f32.mrf.mxu0
        %v2283 = vadd.f32 %v2264, %v2282
        %v2284 = vpop.f32.mrf.mxu0
        %v2285 = vadd.f32 %v2266, %v2284
        %2286 = vmatmul.bf16.gmra.mxu0 %v735
        %v2287 = vpop.f32.mrf.mxu0
        %v2288 = vadd.f32 %v2269, %v2287
        %v2289 = vpop.f32.mrf.mxu0
        %v2290 = vadd.f32 %v2271, %v2289
        %2291 = vdwg.mxu0
        %2292 = vmatpush.bf16.msra.mxu0 %v1701
        %2293 = vmatpush.bf16.msra.mxu0 %v1693
        %2294 = vmatpush.bf16.msra.mxu0 %v1685
        %2295 = vmatpush.bf16.msra.mxu0 %v1677
        %2296 = vmatpush.bf16.msra.mxu0 %v1669
        %2297 = vmatpush.bf16.msra.mxu0 %v1661
        %2298 = vmatpush.bf16.msra.mxu0 %v1653
        %2299 = vmatpush.bf16.msra.mxu0 %v1645
        %2300 = vmatmul.bf16.gmra.mxu0 %v732
        %v2301 = vpop.f32.mrf.mxu0
        %v2302 = vadd.f32 %v2283, %v2301
        %v2303 = vpop.f32.mrf.mxu0
        %v2304 = vadd.f32 %v2285, %v2303
        %2305 = vmatmul.bf16.gmra.mxu0 %v736
        %v2306 = vpop.f32.mrf.mxu0
        %v2307 = vadd.f32 %v2288, %v2306
        %v2308 = vpop.f32.mrf.mxu0
        %v2309 = vadd.f32 %v2290, %v2308
        %2310 = vdwg.mxu0
        %2311 = vmatpush.bf16.msra.mxu0 %v1765
        %2312 = vmatpush.bf16.msra.mxu0 %v1757
        %2313 = vmatpush.bf16.msra.mxu0 %v1749
        %2314 = vmatpush.bf16.msra.mxu0 %v1741
        %2315 = vmatpush.bf16.msra.mxu0 %v1733
        %2316 = vmatpush.bf16.msra.mxu0 %v1725
        %2317 = vmatpush.bf16.msra.mxu0 %v1717
        %2318 = vmatpush.bf16.msra.mxu0 %v1709
        %2319 = vmatmul.bf16.gmra.mxu0 %v733
        %v2320 = vpop.f32.mrf.mxu0
        %v2321 = vadd.f32 %v2302, %v2320
        %v2322 = vpop.f32.mrf.mxu0
        %v2323 = vadd.f32 %v2304, %v2322
        %2324 = vmatmul.bf16.gmra.mxu0 %v737
        %v2325 = vpop.f32.mrf.mxu0
        %v2326 = vadd.f32 %v2307, %v2325
        %v2327 = vpop.f32.mrf.mxu0
        %v2328 = vadd.f32 %v2309, %v2327
        %2329 = vdwg.mxu0
        %2330 = vmatpush.bf16.msra.mxu0 %v1574
        %2331 = vmatpush.bf16.msra.mxu0 %v1566
        %2332 = vmatpush.bf16.msra.mxu0 %v1558
        %2333 = vmatpush.bf16.msra.mxu0 %v1550
        %2334 = vmatpush.bf16.msra.mxu0 %v1542
        %2335 = vmatpush.bf16.msra.mxu0 %v1534
        %2336 = vmatpush.bf16.msra.mxu0 %v1526
        %2337 = vmatpush.bf16.msra.mxu0 %v1518
        %2338 = vmatmul.bf16.gmra.mxu0 %v730
        %v2339 = vpop.f32.mrf.mxu0
        %v2340 = vadd.f32 %v694, %v2339
        %v2341 = vpop.f32.mrf.mxu0
        %v2342 = vadd.f32 %v694, %v2341
        %2343 = vmatmul.bf16.gmra.mxu0 %v734
        %v2344 = vpop.f32.mrf.mxu0
        %v2345 = vadd.f32 %v694, %v2344
        %v2346 = vpop.f32.mrf.mxu0
        %v2347 = vadd.f32 %v694, %v2346
        %2348 = vdwg.mxu0
        %2349 = vmatpush.bf16.msra.mxu0 %v1638
        %2350 = vmatpush.bf16.msra.mxu0 %v1630
        %2351 = vmatpush.bf16.msra.mxu0 %v1622
        %2352 = vmatpush.bf16.msra.mxu0 %v1614
        %2353 = vmatpush.bf16.msra.mxu0 %v1606
        %2354 = vmatpush.bf16.msra.mxu0 %v1598
        %2355 = vmatpush.bf16.msra.mxu0 %v1590
        %2356 = vmatpush.bf16.msra.mxu0 %v1582
        %2357 = vmatmul.bf16.gmra.mxu0 %v731
        %v2358 = vpop.f32.mrf.mxu0
        %v2359 = vadd.f32 %v2340, %v2358
        %v2360 = vpop.f32.mrf.mxu0
        %v2361 = vadd.f32 %v2342, %v2360
        %2362 = vmatmul.bf16.gmra.mxu0 %v735
        %v2363 = vpop.f32.mrf.mxu0
        %v2364 = vadd.f32 %v2345, %v2363
        %v2365 = vpop.f32.mrf.mxu0
        %v2366 = vadd.f32 %v2347, %v2365
        %2367 = vdwg.mxu0
        %2368 = vmatpush.bf16.msra.mxu0 %v1702
        %2369 = vmatpush.bf16.msra.mxu0 %v1694
        %2370 = vmatpush.bf16.msra.mxu0 %v1686
        %2371 = vmatpush.bf16.msra.mxu0 %v1678
        %2372 = vmatpush.bf16.msra.mxu0 %v1670
        %2373 = vmatpush.bf16.msra.mxu0 %v1662
        %2374 = vmatpush.bf16.msra.mxu0 %v1654
        %2375 = vmatpush.bf16.msra.mxu0 %v1646
        %2376 = vmatmul.bf16.gmra.mxu0 %v732
        %v2377 = vpop.f32.mrf.mxu0
        %v2378 = vadd.f32 %v2359, %v2377
        %v2379 = vpop.f32.mrf.mxu0
        %v2380 = vadd.f32 %v2361, %v2379
        %2381 = vmatmul.bf16.gmra.mxu0 %v736
        %v2382 = vpop.f32.mrf.mxu0
        %v2383 = vadd.f32 %v2364, %v2382
        %v2384 = vpop.f32.mrf.mxu0
        %v2385 = vadd.f32 %v2366, %v2384
        %2386 = vdwg.mxu0
        %2387 = vmatpush.bf16.msra.mxu0 %v1766
        %2388 = vmatpush.bf16.msra.mxu0 %v1758
        %2389 = vmatpush.bf16.msra.mxu0 %v1750
        %2390 = vmatpush.bf16.msra.mxu0 %v1742
        %2391 = vmatpush.bf16.msra.mxu0 %v1734
        %2392 = vmatpush.bf16.msra.mxu0 %v1726
        %2393 = vmatpush.bf16.msra.mxu0 %v1718
        %2394 = vmatpush.bf16.msra.mxu0 %v1710
        %2395 = vmatmul.bf16.gmra.mxu0 %v733
        %v2396 = vpop.f32.mrf.mxu0
        %v2397 = vadd.f32 %v2378, %v2396
        %v2398 = vpop.f32.mrf.mxu0
        %v2399 = vadd.f32 %v2380, %v2398
        %2400 = vmatmul.bf16.gmra.mxu0 %v737
        %v2401 = vpop.f32.mrf.mxu0
        %v2402 = vadd.f32 %v2383, %v2401
        %v2403 = vpop.f32.mrf.mxu0
        %v2404 = vadd.f32 %v2385, %v2403
        %2405 = vdwg.mxu0
        %2406 = vmatpush.bf16.msra.mxu0 %v1575
        %2407 = vmatpush.bf16.msra.mxu0 %v1567
        %2408 = vmatpush.bf16.msra.mxu0 %v1559
        %2409 = vmatpush.bf16.msra.mxu0 %v1551
        %2410 = vmatpush.bf16.msra.mxu0 %v1543
        %2411 = vmatpush.bf16.msra.mxu0 %v1535
        %2412 = vmatpush.bf16.msra.mxu0 %v1527
        %2413 = vmatpush.bf16.msra.mxu0 %v1519
        %2414 = vmatmul.bf16.gmra.mxu0 %v730
        %v2415 = vpop.f32.mrf.mxu0
        %v2416 = vadd.f32 %v695, %v2415
        %v2417 = vpop.f32.mrf.mxu0
        %v2418 = vadd.f32 %v695, %v2417
        %2419 = vmatmul.bf16.gmra.mxu0 %v734
        %v2420 = vpop.f32.mrf.mxu0
        %v2421 = vadd.f32 %v695, %v2420
        %v2422 = vpop.f32.mrf.mxu0
        %v2423 = vadd.f32 %v695, %v2422
        %2424 = vdwg.mxu0
        %2425 = vmatpush.bf16.msra.mxu0 %v1639
        %2426 = vmatpush.bf16.msra.mxu0 %v1631
        %2427 = vmatpush.bf16.msra.mxu0 %v1623
        %2428 = vmatpush.bf16.msra.mxu0 %v1615
        %2429 = vmatpush.bf16.msra.mxu0 %v1607
        %2430 = vmatpush.bf16.msra.mxu0 %v1599
        %2431 = vmatpush.bf16.msra.mxu0 %v1591
        %2432 = vmatpush.bf16.msra.mxu0 %v1583
        %2433 = vmatmul.bf16.gmra.mxu0 %v731
        %v2434 = vpop.f32.mrf.mxu0
        %v2435 = vadd.f32 %v2416, %v2434
        %v2436 = vpop.f32.mrf.mxu0
        %v2437 = vadd.f32 %v2418, %v2436
        %2438 = vmatmul.bf16.gmra.mxu0 %v735
        %v2439 = vpop.f32.mrf.mxu0
        %v2440 = vadd.f32 %v2421, %v2439
        %v2441 = vpop.f32.mrf.mxu0
        %v2442 = vadd.f32 %v2423, %v2441
        %2443 = vdwg.mxu0
        %2444 = vmatpush.bf16.msra.mxu0 %v1703
        %2445 = vmatpush.bf16.msra.mxu0 %v1695
        %2446 = vmatpush.bf16.msra.mxu0 %v1687
        %2447 = vmatpush.bf16.msra.mxu0 %v1679
        %2448 = vmatpush.bf16.msra.mxu0 %v1671
        %2449 = vmatpush.bf16.msra.mxu0 %v1663
        %2450 = vmatpush.bf16.msra.mxu0 %v1655
        %2451 = vmatpush.bf16.msra.mxu0 %v1647
        %2452 = vmatmul.bf16.gmra.mxu0 %v732
        %v2453 = vpop.f32.mrf.mxu0
        %v2454 = vadd.f32 %v2435, %v2453
        %v2455 = vpop.f32.mrf.mxu0
        %v2456 = vadd.f32 %v2437, %v2455
        %2457 = vmatmul.bf16.gmra.mxu0 %v736
        %v2458 = vpop.f32.mrf.mxu0
        %v2459 = vadd.f32 %v2440, %v2458
        %v2460 = vpop.f32.mrf.mxu0
        %v2461 = vadd.f32 %v2442, %v2460
        %2462 = vdwg.mxu0
        %2463 = vmatpush.bf16.msra.mxu0 %v1767
        %2464 = vmatpush.bf16.msra.mxu0 %v1759
        %2465 = vmatpush.bf16.msra.mxu0 %v1751
        %2466 = vmatpush.bf16.msra.mxu0 %v1743
        %2467 = vmatpush.bf16.msra.mxu0 %v1735
        %2468 = vmatpush.bf16.msra.mxu0 %v1727
        %2469 = vmatpush.bf16.msra.mxu0 %v1719
        %2470 = vmatpush.bf16.msra.mxu0 %v1711
        %2471 = vmatmul.bf16.gmra.mxu0 %v733
        %v2472 = vpop.f32.mrf.mxu0
        %v2473 = vadd.f32 %v2454, %v2472
        %v2474 = vpop.f32.mrf.mxu0
        %v2475 = vadd.f32 %v2456, %v2474
        %2476 = vmatmul.bf16.gmra.mxu0 %v737
        %v2477 = vpop.f32.mrf.mxu0
        %v2478 = vadd.f32 %v2459, %v2477
        %v2479 = vpop.f32.mrf.mxu0
        %v2480 = vadd.f32 %v2461, %v2479
        %2481 = vdwg.mxu0
        %2482 = vmatpush.bf16.msra.mxu0 %v1576
        %2483 = vmatpush.bf16.msra.mxu0 %v1568
        %2484 = vmatpush.bf16.msra.mxu0 %v1560
        %2485 = vmatpush.bf16.msra.mxu0 %v1552
        %2486 = vmatpush.bf16.msra.mxu0 %v1544
        %2487 = vmatpush.bf16.msra.mxu0 %v1536
        %2488 = vmatpush.bf16.msra.mxu0 %v1528
        %2489 = vmatpush.bf16.msra.mxu0 %v1520
        %2490 = vmatmul.bf16.gmra.mxu0 %v730
        %v2491 = vpop.f32.mrf.mxu0
        %v2492 = vadd.f32 %v696, %v2491
        %v2493 = vpop.f32.mrf.mxu0
        %v2494 = vadd.f32 %v696, %v2493
        %2495 = vmatmul.bf16.gmra.mxu0 %v734
        %v2496 = vpop.f32.mrf.mxu0
        %v2497 = vadd.f32 %v696, %v2496
        %v2498 = vpop.f32.mrf.mxu0
        %v2499 = vadd.f32 %v696, %v2498
        %2500 = vdwg.mxu0
        %2501 = vmatpush.bf16.msra.mxu0 %v1640
        %2502 = vmatpush.bf16.msra.mxu0 %v1632
        %2503 = vmatpush.bf16.msra.mxu0 %v1624
        %2504 = vmatpush.bf16.msra.mxu0 %v1616
        %2505 = vmatpush.bf16.msra.mxu0 %v1608
        %2506 = vmatpush.bf16.msra.mxu0 %v1600
        %2507 = vmatpush.bf16.msra.mxu0 %v1592
        %2508 = vmatpush.bf16.msra.mxu0 %v1584
        %2509 = vmatmul.bf16.gmra.mxu0 %v731
        %v2510 = vpop.f32.mrf.mxu0
        %v2511 = vadd.f32 %v2492, %v2510
        %v2512 = vpop.f32.mrf.mxu0
        %v2513 = vadd.f32 %v2494, %v2512
        %2514 = vmatmul.bf16.gmra.mxu0 %v735
        %v2515 = vpop.f32.mrf.mxu0
        %v2516 = vadd.f32 %v2497, %v2515
        %v2517 = vpop.f32.mrf.mxu0
        %v2518 = vadd.f32 %v2499, %v2517
        %2519 = vdwg.mxu0
        %2520 = vmatpush.bf16.msra.mxu0 %v1704
        %2521 = vmatpush.bf16.msra.mxu0 %v1696
        %2522 = vmatpush.bf16.msra.mxu0 %v1688
        %2523 = vmatpush.bf16.msra.mxu0 %v1680
        %2524 = vmatpush.bf16.msra.mxu0 %v1672
        %2525 = vmatpush.bf16.msra.mxu0 %v1664
        %2526 = vmatpush.bf16.msra.mxu0 %v1656
        %2527 = vmatpush.bf16.msra.mxu0 %v1648
        %2528 = vmatmul.bf16.gmra.mxu0 %v732
        %v2529 = vpop.f32.mrf.mxu0
        %v2530 = vadd.f32 %v2511, %v2529
        %v2531 = vpop.f32.mrf.mxu0
        %v2532 = vadd.f32 %v2513, %v2531
        %2533 = vmatmul.bf16.gmra.mxu0 %v736
        %v2534 = vpop.f32.mrf.mxu0
        %v2535 = vadd.f32 %v2516, %v2534
        %v2536 = vpop.f32.mrf.mxu0
        %v2537 = vadd.f32 %v2518, %v2536
        %2538 = vdwg.mxu0
        %2539 = vmatpush.bf16.msra.mxu0 %v1768
        %2540 = vmatpush.bf16.msra.mxu0 %v1760
        %2541 = vmatpush.bf16.msra.mxu0 %v1752
        %2542 = vmatpush.bf16.msra.mxu0 %v1744
        %2543 = vmatpush.bf16.msra.mxu0 %v1736
        %2544 = vmatpush.bf16.msra.mxu0 %v1728
        %2545 = vmatpush.bf16.msra.mxu0 %v1720
        %2546 = vmatpush.bf16.msra.mxu0 %v1712
        %2547 = vmatmul.bf16.gmra.mxu0 %v733
        %v2548 = vpop.f32.mrf.mxu0
        %v2549 = vadd.f32 %v2530, %v2548
        %v2550 = vpop.f32.mrf.mxu0
        %v2551 = vadd.f32 %v2532, %v2550
        %2552 = vmatmul.bf16.gmra.mxu0 %v737
        %v2553 = vpop.f32.mrf.mxu0
        %v2554 = vadd.f32 %v2535, %v2553
        %v2555 = vpop.f32.mrf.mxu0
        %v2556 = vadd.f32 %v2537, %v2555
        %2557 = vdwg.mxu0
        %2558 = vmatpush.bf16.msra.mxu0 %v1577
        %2559 = vmatpush.bf16.msra.mxu0 %v1569
        %2560 = vmatpush.bf16.msra.mxu0 %v1561
        %2561 = vmatpush.bf16.msra.mxu0 %v1553
        %2562 = vmatpush.bf16.msra.mxu0 %v1545
        %2563 = vmatpush.bf16.msra.mxu0 %v1537
        %2564 = vmatpush.bf16.msra.mxu0 %v1529
        %2565 = vmatpush.bf16.msra.mxu0 %v1521
        %2566 = vmatmul.bf16.gmra.mxu0 %v730
        %v2567 = vpop.f32.mrf.mxu0
        %v2568 = vadd.f32 %v697, %v2567
        %v2569 = vpop.f32.mrf.mxu0
        %v2570 = vadd.f32 %v697, %v2569
        %2571 = vmatmul.bf16.gmra.mxu0 %v734
        %v2572 = vpop.f32.mrf.mxu0
        %v2573 = vadd.f32 %v697, %v2572
        %v2574 = vpop.f32.mrf.mxu0
        %v2575 = vadd.f32 %v697, %v2574
        %2576 = vdwg.mxu0
        %2577 = vmatpush.bf16.msra.mxu0 %v1641
        %2578 = vmatpush.bf16.msra.mxu0 %v1633
        %2579 = vmatpush.bf16.msra.mxu0 %v1625
        %2580 = vmatpush.bf16.msra.mxu0 %v1617
        %2581 = vmatpush.bf16.msra.mxu0 %v1609
        %2582 = vmatpush.bf16.msra.mxu0 %v1601
        %2583 = vmatpush.bf16.msra.mxu0 %v1593
        %2584 = vmatpush.bf16.msra.mxu0 %v1585
        %2585 = vmatmul.bf16.gmra.mxu0 %v731
        %v2586 = vpop.f32.mrf.mxu0
        %v2587 = vadd.f32 %v2568, %v2586
        %v2588 = vpop.f32.mrf.mxu0
        %v2589 = vadd.f32 %v2570, %v2588
        %2590 = vmatmul.bf16.gmra.mxu0 %v735
        %v2591 = vpop.f32.mrf.mxu0
        %v2592 = vadd.f32 %v2573, %v2591
        %v2593 = vpop.f32.mrf.mxu0
        %v2594 = vadd.f32 %v2575, %v2593
        %2595 = vdwg.mxu0
        %2596 = vmatpush.bf16.msra.mxu0 %v1705
        %2597 = vmatpush.bf16.msra.mxu0 %v1697
        %2598 = vmatpush.bf16.msra.mxu0 %v1689
        %2599 = vmatpush.bf16.msra.mxu0 %v1681
        %2600 = vmatpush.bf16.msra.mxu0 %v1673
        %2601 = vmatpush.bf16.msra.mxu0 %v1665
        %2602 = vmatpush.bf16.msra.mxu0 %v1657
        %2603 = vmatpush.bf16.msra.mxu0 %v1649
        %2604 = vmatmul.bf16.gmra.mxu0 %v732
        %v2605 = vpop.f32.mrf.mxu0
        %v2606 = vadd.f32 %v2587, %v2605
        %v2607 = vpop.f32.mrf.mxu0
        %v2608 = vadd.f32 %v2589, %v2607
        %2609 = vmatmul.bf16.gmra.mxu0 %v736
        %v2610 = vpop.f32.mrf.mxu0
        %v2611 = vadd.f32 %v2592, %v2610
        %v2612 = vpop.f32.mrf.mxu0
        %v2613 = vadd.f32 %v2594, %v2612
        %2614 = vdwg.mxu0
        %2615 = vmatpush.bf16.msra.mxu0 %v1769
        %2616 = vmatpush.bf16.msra.mxu0 %v1761
        %2617 = vmatpush.bf16.msra.mxu0 %v1753
        %2618 = vmatpush.bf16.msra.mxu0 %v1745
        %2619 = vmatpush.bf16.msra.mxu0 %v1737
        %2620 = vmatpush.bf16.msra.mxu0 %v1729
        %2621 = vmatpush.bf16.msra.mxu0 %v1721
        %2622 = vmatpush.bf16.msra.mxu0 %v1713
        %2623 = vmatmul.bf16.gmra.mxu0 %v733
        %v2624 = vpop.f32.mrf.mxu0
        %v2625 = vadd.f32 %v2606, %v2624
        %v2626 = vpop.f32.mrf.mxu0
        %v2627 = vadd.f32 %v2608, %v2626
        %2628 = vmatmul.bf16.gmra.mxu0 %v737
        %v2629 = vpop.f32.mrf.mxu0
        %v2630 = vadd.f32 %v2611, %v2629
        %v2631 = vpop.f32.mrf.mxu0
        %v2632 = vadd.f32 %v2613, %v2631
        %2633 = vdwg.mxu0
        %v2634 = vxor.u32 %v2093, 2147483648
        %v2635 = vxor.u32 %v2169, 2147483648
        %v2636 = vxor.u32 %v2245, 2147483648
        %v2637 = vxor.u32 %v2321, 2147483648
        %v2638 = vxor.u32 %v2397, 2147483648
        %v2639 = vxor.u32 %v2473, 2147483648
        %v2640 = vxor.u32 %v2549, 2147483648
        %v2641 = vxor.u32 %v2625, 2147483648
        %v2642 = vxor.u32 %v2095, 2147483648
        %v2643 = vxor.u32 %v2171, 2147483648
        %v2644 = vxor.u32 %v2247, 2147483648
        %v2645 = vxor.u32 %v2323, 2147483648
        %v2646 = vxor.u32 %v2399, 2147483648
        %v2647 = vxor.u32 %v2475, 2147483648
        %v2648 = vxor.u32 %v2551, 2147483648
        %v2649 = vxor.u32 %v2627, 2147483648
        %v2650 = vxor.u32 %v2098, 2147483648
        %v2651 = vxor.u32 %v2174, 2147483648
        %v2652 = vxor.u32 %v2250, 2147483648
        %v2653 = vxor.u32 %v2326, 2147483648
        %v2654 = vxor.u32 %v2402, 2147483648
        %v2655 = vxor.u32 %v2478, 2147483648
        %v2656 = vxor.u32 %v2554, 2147483648
        %v2657 = vxor.u32 %v2630, 2147483648
        %v2658 = vxor.u32 %v2100, 2147483648
        %v2659 = vxor.u32 %v2176, 2147483648
        %v2660 = vxor.u32 %v2252, 2147483648
        %v2661 = vxor.u32 %v2328, 2147483648
        %v2662 = vxor.u32 %v2404, 2147483648
        %v2663 = vxor.u32 %v2480, 2147483648
        %v2664 = vxor.u32 %v2556, 2147483648
        %v2665 = vxor.u32 %v2632, 2147483648
        %v2666 = vmul.f32 %v2634, 1.442695
        %v2667 = vpow.pop %v2666
        %v2668 = vmul.f32 %v2635, 1.442695
        %v2669 = vpow.pop %v2668
        %v2670 = vmul.f32 %v2636, 1.442695
        %v2671 = vpow.pop %v2670
        %v2672 = vmul.f32 %v2637, 1.442695
        %v2673 = vpow.pop %v2672
        %v2674 = vmul.f32 %v2638, 1.442695
        %v2675 = vpow.pop %v2674
        %v2676 = vmul.f32 %v2639, 1.442695
        %v2677 = vpow.pop %v2676
        %v2678 = vmul.f32 %v2640, 1.442695
        %v2679 = vpow.pop %v2678
        %v2680 = vmul.f32 %v2641, 1.442695
        %v2681 = vpow.pop %v2680
        %v2682 = vmul.f32 %v2642, 1.442695
        %v2683 = vpow.pop %v2682
        %v2684 = vmul.f32 %v2643, 1.442695
        %v2685 = vpow.pop %v2684
        %v2686 = vmul.f32 %v2644, 1.442695
        %v2687 = vpow.pop %v2686
        %v2688 = vmul.f32 %v2645, 1.442695
        %v2689 = vpow.pop %v2688
        %v2690 = vmul.f32 %v2646, 1.442695
        %v2691 = vpow.pop %v2690
        %v2692 = vmul.f32 %v2647, 1.442695
        %v2693 = vpow.pop %v2692
        %v2694 = vmul.f32 %v2648, 1.442695
        %v2695 = vpow.pop %v2694
        %v2696 = vmul.f32 %v2649, 1.442695
        %v2697 = vpow.pop %v2696
        %v2698 = vmul.f32 %v2650, 1.442695
        %v2699 = vpow.pop %v2698
        %v2700 = vmul.f32 %v2651, 1.442695
        %v2701 = vpow.pop %v2700
        %v2702 = vmul.f32 %v2652, 1.442695
        %v2703 = vpow.pop %v2702
        %v2704 = vmul.f32 %v2653, 1.442695
        %v2705 = vpow.pop %v2704
        %v2706 = vmul.f32 %v2654, 1.442695
        %v2707 = vpow.pop %v2706
        %v2708 = vmul.f32 %v2655, 1.442695
        %v2709 = vpow.pop %v2708
        %v2710 = vmul.f32 %v2656, 1.442695
        %v2711 = vpow.pop %v2710
        %v2712 = vmul.f32 %v2657, 1.442695
        %v2713 = vpow.pop %v2712
        %v2714 = vmul.f32 %v2658, 1.442695
        %v2715 = vpow.pop %v2714
        %v2716 = vmul.f32 %v2659, 1.442695
        %v2717 = vpow.pop %v2716
        %v2718 = vmul.f32 %v2660, 1.442695
        %v2719 = vpow.pop %v2718
        %v2720 = vmul.f32 %v2661, 1.442695
        %v2721 = vpow.pop %v2720
        %v2722 = vmul.f32 %v2662, 1.442695
        %v2723 = vpow.pop %v2722
        %v2724 = vmul.f32 %v2663, 1.442695
        %v2725 = vpow.pop %v2724
        %v2726 = vmul.f32 %v2664, 1.442695
        %v2727 = vpow.pop %v2726
        %v2728 = vmul.f32 %v2665, 1.442695
        %v2729 = vpow.pop %v2728
        %v2730 = vadd.f32 %v2667, 1.0
        %v2731 = vadd.f32 %v2669, 1.0
        %v2732 = vadd.f32 %v2671, 1.0
        %v2733 = vadd.f32 %v2673, 1.0
        %v2734 = vadd.f32 %v2675, 1.0
        %v2735 = vadd.f32 %v2677, 1.0
        %v2736 = vadd.f32 %v2679, 1.0
        %v2737 = vadd.f32 %v2681, 1.0
        %v2738 = vadd.f32 %v2683, 1.0
        %v2739 = vadd.f32 %v2685, 1.0
        %v2740 = vadd.f32 %v2687, 1.0
        %v2741 = vadd.f32 %v2689, 1.0
        %v2742 = vadd.f32 %v2691, 1.0
        %v2743 = vadd.f32 %v2693, 1.0
        %v2744 = vadd.f32 %v2695, 1.0
        %v2745 = vadd.f32 %v2697, 1.0
        %v2746 = vadd.f32 %v2699, 1.0
        %v2747 = vadd.f32 %v2701, 1.0
        %v2748 = vadd.f32 %v2703, 1.0
        %v2749 = vadd.f32 %v2705, 1.0
        %v2750 = vadd.f32 %v2707, 1.0
        %v2751 = vadd.f32 %v2709, 1.0
        %v2752 = vadd.f32 %v2711, 1.0
        %v2753 = vadd.f32 %v2713, 1.0
        %v2754 = vadd.f32 %v2715, 1.0
        %v2755 = vadd.f32 %v2717, 1.0
        %v2756 = vadd.f32 %v2719, 1.0
        %v2757 = vadd.f32 %v2721, 1.0
        %v2758 = vadd.f32 %v2723, 1.0
        %v2759 = vadd.f32 %v2725, 1.0
        %v2760 = vadd.f32 %v2727, 1.0
        %v2761 = vadd.f32 %v2729, 1.0
        %v2762 = vrcp.pop %v2730
        %v2763 = vmul.f32 %v2730, %v2762
        %v2764 = vsub.f32 1.0, %v2763
        %v2765 = vmul.f32 %v2762, %v2764
        %v2766 = vadd.f32 %v2762, %v2765
        %vm2767 = vweird.f32 %v2730
        %vm2768 = vweird.f32 %v2762
        %vm2769 = vmor %vm2767, %vm2768
        %v2770 = vsel %vm2769, %v2762, %v2766
        %v2771 = vand.u32 2147483647, %v2730
        %vm2772 = vcmp.eq.f32.partialorder %v2771, 8.507059e+37
        %v2773 = vand.u32 %v2730, 2147483648
        %v2774 = vor.u32 1.1754944e-38, %v2773
        %v2775 = vsel %vm2772, %v2774, %v2770
        %v2776 = vmul.f32 1.0, %v2775
        %v2777 = vrcp.pop %v2731
        %v2778 = vmul.f32 %v2731, %v2777
        %v2779 = vsub.f32 1.0, %v2778
        %v2780 = vmul.f32 %v2777, %v2779
        %v2781 = vadd.f32 %v2777, %v2780
        %vm2782 = vweird.f32 %v2731
        %vm2783 = vweird.f32 %v2777
        %vm2784 = vmor %vm2782, %vm2783
        %v2785 = vsel %vm2784, %v2777, %v2781
        %v2786 = vand.u32 2147483647, %v2731
        %vm2787 = vcmp.eq.f32.partialorder %v2786, 8.507059e+37
        %v2788 = vand.u32 %v2731, 2147483648
        %v2789 = vor.u32 1.1754944e-38, %v2788
        %v2790 = vsel %vm2787, %v2789, %v2785
        %v2791 = vmul.f32 1.0, %v2790
        %v2792 = vrcp.pop %v2732
        %v2793 = vmul.f32 %v2732, %v2792
        %v2794 = vsub.f32 1.0, %v2793
        %v2795 = vmul.f32 %v2792, %v2794
        %v2796 = vadd.f32 %v2792, %v2795
        %vm2797 = vweird.f32 %v2732
        %vm2798 = vweird.f32 %v2792
        %vm2799 = vmor %vm2797, %vm2798
        %v2800 = vsel %vm2799, %v2792, %v2796
        %v2801 = vand.u32 2147483647, %v2732
        %vm2802 = vcmp.eq.f32.partialorder %v2801, 8.507059e+37
        %v2803 = vand.u32 %v2732, 2147483648
        %v2804 = vor.u32 1.1754944e-38, %v2803
        %v2805 = vsel %vm2802, %v2804, %v2800
        %v2806 = vmul.f32 1.0, %v2805
        %v2807 = vrcp.pop %v2733
        %v2808 = vmul.f32 %v2733, %v2807
        %v2809 = vsub.f32 1.0, %v2808
        %v2810 = vmul.f32 %v2807, %v2809
        %v2811 = vadd.f32 %v2807, %v2810
        %vm2812 = vweird.f32 %v2733
        %vm2813 = vweird.f32 %v2807
        %vm2814 = vmor %vm2812, %vm2813
        %v2815 = vsel %vm2814, %v2807, %v2811
        %v2816 = vand.u32 2147483647, %v2733
        %vm2817 = vcmp.eq.f32.partialorder %v2816, 8.507059e+37
        %v2818 = vand.u32 %v2733, 2147483648
        %v2819 = vor.u32 1.1754944e-38, %v2818
        %v2820 = vsel %vm2817, %v2819, %v2815
        %v2821 = vmul.f32 1.0, %v2820
        %v2822 = vrcp.pop %v2734
        %v2823 = vmul.f32 %v2734, %v2822
        %v2824 = vsub.f32 1.0, %v2823
        %v2825 = vmul.f32 %v2822, %v2824
        %v2826 = vadd.f32 %v2822, %v2825
        %vm2827 = vweird.f32 %v2734
        %vm2828 = vweird.f32 %v2822
        %vm2829 = vmor %vm2827, %vm2828
        %v2830 = vsel %vm2829, %v2822, %v2826
        %v2831 = vand.u32 2147483647, %v2734
        %vm2832 = vcmp.eq.f32.partialorder %v2831, 8.507059e+37
        %v2833 = vand.u32 %v2734, 2147483648
        %v2834 = vor.u32 1.1754944e-38, %v2833
        %v2835 = vsel %vm2832, %v2834, %v2830
        %v2836 = vmul.f32 1.0, %v2835
        %v2837 = vrcp.pop %v2735
        %v2838 = vmul.f32 %v2735, %v2837
        %v2839 = vsub.f32 1.0, %v2838
        %v2840 = vmul.f32 %v2837, %v2839
        %v2841 = vadd.f32 %v2837, %v2840
        %vm2842 = vweird.f32 %v2735
        %vm2843 = vweird.f32 %v2837
        %vm2844 = vmor %vm2842, %vm2843
        %v2845 = vsel %vm2844, %v2837, %v2841
        %v2846 = vand.u32 2147483647, %v2735
        %vm2847 = vcmp.eq.f32.partialorder %v2846, 8.507059e+37
        %v2848 = vand.u32 %v2735, 2147483648
        %v2849 = vor.u32 1.1754944e-38, %v2848
        %v2850 = vsel %vm2847, %v2849, %v2845
        %v2851 = vmul.f32 1.0, %v2850
        %v2852 = vrcp.pop %v2736
        %v2853 = vmul.f32 %v2736, %v2852
        %v2854 = vsub.f32 1.0, %v2853
        %v2855 = vmul.f32 %v2852, %v2854
        %v2856 = vadd.f32 %v2852, %v2855
        %vm2857 = vweird.f32 %v2736
        %vm2858 = vweird.f32 %v2852
        %vm2859 = vmor %vm2857, %vm2858
        %v2860 = vsel %vm2859, %v2852, %v2856
        %v2861 = vand.u32 2147483647, %v2736
        %vm2862 = vcmp.eq.f32.partialorder %v2861, 8.507059e+37
        %v2863 = vand.u32 %v2736, 2147483648
        %v2864 = vor.u32 1.1754944e-38, %v2863
        %v2865 = vsel %vm2862, %v2864, %v2860
        %v2866 = vmul.f32 1.0, %v2865
        %v2867 = vrcp.pop %v2737
        %v2868 = vmul.f32 %v2737, %v2867
        %v2869 = vsub.f32 1.0, %v2868
        %v2870 = vmul.f32 %v2867, %v2869
        %v2871 = vadd.f32 %v2867, %v2870
        %vm2872 = vweird.f32 %v2737
        %vm2873 = vweird.f32 %v2867
        %vm2874 = vmor %vm2872, %vm2873
        %v2875 = vsel %vm2874, %v2867, %v2871
        %v2876 = vand.u32 2147483647, %v2737
        %vm2877 = vcmp.eq.f32.partialorder %v2876, 8.507059e+37
        %v2878 = vand.u32 %v2737, 2147483648
        %v2879 = vor.u32 1.1754944e-38, %v2878
        %v2880 = vsel %vm2877, %v2879, %v2875
        %v2881 = vmul.f32 1.0, %v2880
        %v2882 = vrcp.pop %v2738
        %v2883 = vmul.f32 %v2738, %v2882
        %v2884 = vsub.f32 1.0, %v2883
        %v2885 = vmul.f32 %v2882, %v2884
        %v2886 = vadd.f32 %v2882, %v2885
        %vm2887 = vweird.f32 %v2738
        %vm2888 = vweird.f32 %v2882
        %vm2889 = vmor %vm2887, %vm2888
        %v2890 = vsel %vm2889, %v2882, %v2886
        %v2891 = vand.u32 2147483647, %v2738
        %vm2892 = vcmp.eq.f32.partialorder %v2891, 8.507059e+37
        %v2893 = vand.u32 %v2738, 2147483648
        %v2894 = vor.u32 1.1754944e-38, %v2893
        %v2895 = vsel %vm2892, %v2894, %v2890
        %v2896 = vmul.f32 1.0, %v2895
        %v2897 = vrcp.pop %v2739
        %v2898 = vmul.f32 %v2739, %v2897
        %v2899 = vsub.f32 1.0, %v2898
        %v2900 = vmul.f32 %v2897, %v2899
        %v2901 = vadd.f32 %v2897, %v2900
        %vm2902 = vweird.f32 %v2739
        %vm2903 = vweird.f32 %v2897
        %vm2904 = vmor %vm2902, %vm2903
        %v2905 = vsel %vm2904, %v2897, %v2901
        %v2906 = vand.u32 2147483647, %v2739
        %vm2907 = vcmp.eq.f32.partialorder %v2906, 8.507059e+37
        %v2908 = vand.u32 %v2739, 2147483648
        %v2909 = vor.u32 1.1754944e-38, %v2908
        %v2910 = vsel %vm2907, %v2909, %v2905
        %v2911 = vmul.f32 1.0, %v2910
        %v2912 = vrcp.pop %v2740
        %v2913 = vmul.f32 %v2740, %v2912
        %v2914 = vsub.f32 1.0, %v2913
        %v2915 = vmul.f32 %v2912, %v2914
        %v2916 = vadd.f32 %v2912, %v2915
        %vm2917 = vweird.f32 %v2740
        %vm2918 = vweird.f32 %v2912
        %vm2919 = vmor %vm2917, %vm2918
        %v2920 = vsel %vm2919, %v2912, %v2916
        %v2921 = vand.u32 2147483647, %v2740
        %vm2922 = vcmp.eq.f32.partialorder %v2921, 8.507059e+37
        %v2923 = vand.u32 %v2740, 2147483648
        %v2924 = vor.u32 1.1754944e-38, %v2923
        %v2925 = vsel %vm2922, %v2924, %v2920
        %v2926 = vmul.f32 1.0, %v2925
        %v2927 = vrcp.pop %v2741
        %v2928 = vmul.f32 %v2741, %v2927
        %v2929 = vsub.f32 1.0, %v2928
        %v2930 = vmul.f32 %v2927, %v2929
        %v2931 = vadd.f32 %v2927, %v2930
        %vm2932 = vweird.f32 %v2741
        %vm2933 = vweird.f32 %v2927
        %vm2934 = vmor %vm2932, %vm2933
        %v2935 = vsel %vm2934, %v2927, %v2931
        %v2936 = vand.u32 2147483647, %v2741
        %vm2937 = vcmp.eq.f32.partialorder %v2936, 8.507059e+37
        %v2938 = vand.u32 %v2741, 2147483648
        %v2939 = vor.u32 1.1754944e-38, %v2938
        %v2940 = vsel %vm2937, %v2939, %v2935
        %v2941 = vmul.f32 1.0, %v2940
        %v2942 = vrcp.pop %v2742
        %v2943 = vmul.f32 %v2742, %v2942
        %v2944 = vsub.f32 1.0, %v2943
        %v2945 = vmul.f32 %v2942, %v2944
        %v2946 = vadd.f32 %v2942, %v2945
        %vm2947 = vweird.f32 %v2742
        %vm2948 = vweird.f32 %v2942
        %vm2949 = vmor %vm2947, %vm2948
        %v2950 = vsel %vm2949, %v2942, %v2946
        %v2951 = vand.u32 2147483647, %v2742
        %vm2952 = vcmp.eq.f32.partialorder %v2951, 8.507059e+37
        %v2953 = vand.u32 %v2742, 2147483648
        %v2954 = vor.u32 1.1754944e-38, %v2953
        %v2955 = vsel %vm2952, %v2954, %v2950
        %v2956 = vmul.f32 1.0, %v2955
        %v2957 = vrcp.pop %v2743
        %v2958 = vmul.f32 %v2743, %v2957
        %v2959 = vsub.f32 1.0, %v2958
        %v2960 = vmul.f32 %v2957, %v2959
        %v2961 = vadd.f32 %v2957, %v2960
        %vm2962 = vweird.f32 %v2743
        %vm2963 = vweird.f32 %v2957
        %vm2964 = vmor %vm2962, %vm2963
        %v2965 = vsel %vm2964, %v2957, %v2961
        %v2966 = vand.u32 2147483647, %v2743
        %vm2967 = vcmp.eq.f32.partialorder %v2966, 8.507059e+37
        %v2968 = vand.u32 %v2743, 2147483648
        %v2969 = vor.u32 1.1754944e-38, %v2968
        %v2970 = vsel %vm2967, %v2969, %v2965
        %v2971 = vmul.f32 1.0, %v2970
        %v2972 = vrcp.pop %v2744
        %v2973 = vmul.f32 %v2744, %v2972
        %v2974 = vsub.f32 1.0, %v2973
        %v2975 = vmul.f32 %v2972, %v2974
        %v2976 = vadd.f32 %v2972, %v2975
        %vm2977 = vweird.f32 %v2744
        %vm2978 = vweird.f32 %v2972
        %vm2979 = vmor %vm2977, %vm2978
        %v2980 = vsel %vm2979, %v2972, %v2976
        %v2981 = vand.u32 2147483647, %v2744
        %vm2982 = vcmp.eq.f32.partialorder %v2981, 8.507059e+37
        %v2983 = vand.u32 %v2744, 2147483648
        %v2984 = vor.u32 1.1754944e-38, %v2983
        %v2985 = vsel %vm2982, %v2984, %v2980
        %v2986 = vmul.f32 1.0, %v2985
        %v2987 = vrcp.pop %v2745
        %v2988 = vmul.f32 %v2745, %v2987
        %v2989 = vsub.f32 1.0, %v2988
        %v2990 = vmul.f32 %v2987, %v2989
        %v2991 = vadd.f32 %v2987, %v2990
        %vm2992 = vweird.f32 %v2745
        %vm2993 = vweird.f32 %v2987
        %vm2994 = vmor %vm2992, %vm2993
        %v2995 = vsel %vm2994, %v2987, %v2991
        %v2996 = vand.u32 2147483647, %v2745
        %vm2997 = vcmp.eq.f32.partialorder %v2996, 8.507059e+37
        %v2998 = vand.u32 %v2745, 2147483648
        %v2999 = vor.u32 1.1754944e-38, %v2998
        %v3000 = vsel %vm2997, %v2999, %v2995
        %v3001 = vmul.f32 1.0, %v3000
        %v3002 = vrcp.pop %v2746
        %v3003 = vmul.f32 %v2746, %v3002
        %v3004 = vsub.f32 1.0, %v3003
        %v3005 = vmul.f32 %v3002, %v3004
        %v3006 = vadd.f32 %v3002, %v3005
        %vm3007 = vweird.f32 %v2746
        %vm3008 = vweird.f32 %v3002
        %vm3009 = vmor %vm3007, %vm3008
        %v3010 = vsel %vm3009, %v3002, %v3006
        %v3011 = vand.u32 2147483647, %v2746
        %vm3012 = vcmp.eq.f32.partialorder %v3011, 8.507059e+37
        %v3013 = vand.u32 %v2746, 2147483648
        %v3014 = vor.u32 1.1754944e-38, %v3013
        %v3015 = vsel %vm3012, %v3014, %v3010
        %v3016 = vmul.f32 1.0, %v3015
        %v3017 = vrcp.pop %v2747
        %v3018 = vmul.f32 %v2747, %v3017
        %v3019 = vsub.f32 1.0, %v3018
        %v3020 = vmul.f32 %v3017, %v3019
        %v3021 = vadd.f32 %v3017, %v3020
        %vm3022 = vweird.f32 %v2747
        %vm3023 = vweird.f32 %v3017
        %vm3024 = vmor %vm3022, %vm3023
        %v3025 = vsel %vm3024, %v3017, %v3021
        %v3026 = vand.u32 2147483647, %v2747
        %vm3027 = vcmp.eq.f32.partialorder %v3026, 8.507059e+37
        %v3028 = vand.u32 %v2747, 2147483648
        %v3029 = vor.u32 1.1754944e-38, %v3028
        %v3030 = vsel %vm3027, %v3029, %v3025
        %v3031 = vmul.f32 1.0, %v3030
        %v3032 = vrcp.pop %v2748
        %v3033 = vmul.f32 %v2748, %v3032
        %v3034 = vsub.f32 1.0, %v3033
        %v3035 = vmul.f32 %v3032, %v3034
        %v3036 = vadd.f32 %v3032, %v3035
        %vm3037 = vweird.f32 %v2748
        %vm3038 = vweird.f32 %v3032
        %vm3039 = vmor %vm3037, %vm3038
        %v3040 = vsel %vm3039, %v3032, %v3036
        %v3041 = vand.u32 2147483647, %v2748
        %vm3042 = vcmp.eq.f32.partialorder %v3041, 8.507059e+37
        %v3043 = vand.u32 %v2748, 2147483648
        %v3044 = vor.u32 1.1754944e-38, %v3043
        %v3045 = vsel %vm3042, %v3044, %v3040
        %v3046 = vmul.f32 1.0, %v3045
        %v3047 = vrcp.pop %v2749
        %v3048 = vmul.f32 %v2749, %v3047
        %v3049 = vsub.f32 1.0, %v3048
        %v3050 = vmul.f32 %v3047, %v3049
        %v3051 = vadd.f32 %v3047, %v3050
        %vm3052 = vweird.f32 %v2749
        %vm3053 = vweird.f32 %v3047
        %vm3054 = vmor %vm3052, %vm3053
        %v3055 = vsel %vm3054, %v3047, %v3051
        %v3056 = vand.u32 2147483647, %v2749
        %vm3057 = vcmp.eq.f32.partialorder %v3056, 8.507059e+37
        %v3058 = vand.u32 %v2749, 2147483648
        %v3059 = vor.u32 1.1754944e-38, %v3058
        %v3060 = vsel %vm3057, %v3059, %v3055
        %v3061 = vmul.f32 1.0, %v3060
        %v3062 = vrcp.pop %v2750
        %v3063 = vmul.f32 %v2750, %v3062
        %v3064 = vsub.f32 1.0, %v3063
        %v3065 = vmul.f32 %v3062, %v3064
        %v3066 = vadd.f32 %v3062, %v3065
        %vm3067 = vweird.f32 %v2750
        %vm3068 = vweird.f32 %v3062
        %vm3069 = vmor %vm3067, %vm3068
        %v3070 = vsel %vm3069, %v3062, %v3066
        %v3071 = vand.u32 2147483647, %v2750
        %vm3072 = vcmp.eq.f32.partialorder %v3071, 8.507059e+37
        %v3073 = vand.u32 %v2750, 2147483648
        %v3074 = vor.u32 1.1754944e-38, %v3073
        %v3075 = vsel %vm3072, %v3074, %v3070
        %v3076 = vmul.f32 1.0, %v3075
        %v3077 = vrcp.pop %v2751
        %v3078 = vmul.f32 %v2751, %v3077
        %v3079 = vsub.f32 1.0, %v3078
        %v3080 = vmul.f32 %v3077, %v3079
        %v3081 = vadd.f32 %v3077, %v3080
        %vm3082 = vweird.f32 %v2751
        %vm3083 = vweird.f32 %v3077
        %vm3084 = vmor %vm3082, %vm3083
        %v3085 = vsel %vm3084, %v3077, %v3081
        %v3086 = vand.u32 2147483647, %v2751
        %vm3087 = vcmp.eq.f32.partialorder %v3086, 8.507059e+37
        %v3088 = vand.u32 %v2751, 2147483648
        %v3089 = vor.u32 1.1754944e-38, %v3088
        %v3090 = vsel %vm3087, %v3089, %v3085
        %v3091 = vmul.f32 1.0, %v3090
        %v3092 = vrcp.pop %v2752
        %v3093 = vmul.f32 %v2752, %v3092
        %v3094 = vsub.f32 1.0, %v3093
        %v3095 = vmul.f32 %v3092, %v3094
        %v3096 = vadd.f32 %v3092, %v3095
        %vm3097 = vweird.f32 %v2752
        %vm3098 = vweird.f32 %v3092
        %vm3099 = vmor %vm3097, %vm3098
        %v3100 = vsel %vm3099, %v3092, %v3096
        %v3101 = vand.u32 2147483647, %v2752
        %vm3102 = vcmp.eq.f32.partialorder %v3101, 8.507059e+37
        %v3103 = vand.u32 %v2752, 2147483648
        %v3104 = vor.u32 1.1754944e-38, %v3103
        %v3105 = vsel %vm3102, %v3104, %v3100
        %v3106 = vmul.f32 1.0, %v3105
        %v3107 = vrcp.pop %v2753
        %v3108 = vmul.f32 %v2753, %v3107
        %v3109 = vsub.f32 1.0, %v3108
        %v3110 = vmul.f32 %v3107, %v3109
        %v3111 = vadd.f32 %v3107, %v3110
        %vm3112 = vweird.f32 %v2753
        %vm3113 = vweird.f32 %v3107
        %vm3114 = vmor %vm3112, %vm3113
        %v3115 = vsel %vm3114, %v3107, %v3111
        %v3116 = vand.u32 2147483647, %v2753
        %vm3117 = vcmp.eq.f32.partialorder %v3116, 8.507059e+37
        %v3118 = vand.u32 %v2753, 2147483648
        %v3119 = vor.u32 1.1754944e-38, %v3118
        %v3120 = vsel %vm3117, %v3119, %v3115
        %v3121 = vmul.f32 1.0, %v3120
        %v3122 = vrcp.pop %v2754
        %v3123 = vmul.f32 %v2754, %v3122
        %v3124 = vsub.f32 1.0, %v3123
        %v3125 = vmul.f32 %v3122, %v3124
        %v3126 = vadd.f32 %v3122, %v3125
        %vm3127 = vweird.f32 %v2754
        %vm3128 = vweird.f32 %v3122
        %vm3129 = vmor %vm3127, %vm3128
        %v3130 = vsel %vm3129, %v3122, %v3126
        %v3131 = vand.u32 2147483647, %v2754
        %vm3132 = vcmp.eq.f32.partialorder %v3131, 8.507059e+37
        %v3133 = vand.u32 %v2754, 2147483648
        %v3134 = vor.u32 1.1754944e-38, %v3133
        %v3135 = vsel %vm3132, %v3134, %v3130
        %v3136 = vmul.f32 1.0, %v3135
        %v3137 = vrcp.pop %v2755
        %v3138 = vmul.f32 %v2755, %v3137
        %v3139 = vsub.f32 1.0, %v3138
        %v3140 = vmul.f32 %v3137, %v3139
        %v3141 = vadd.f32 %v3137, %v3140
        %vm3142 = vweird.f32 %v2755
        %vm3143 = vweird.f32 %v3137
        %vm3144 = vmor %vm3142, %vm3143
        %v3145 = vsel %vm3144, %v3137, %v3141
        %v3146 = vand.u32 2147483647, %v2755
        %vm3147 = vcmp.eq.f32.partialorder %v3146, 8.507059e+37
        %v3148 = vand.u32 %v2755, 2147483648
        %v3149 = vor.u32 1.1754944e-38, %v3148
        %v3150 = vsel %vm3147, %v3149, %v3145
        %v3151 = vmul.f32 1.0, %v3150
        %v3152 = vrcp.pop %v2756
        %v3153 = vmul.f32 %v2756, %v3152
        %v3154 = vsub.f32 1.0, %v3153
        %v3155 = vmul.f32 %v3152, %v3154
        %v3156 = vadd.f32 %v3152, %v3155
        %vm3157 = vweird.f32 %v2756
        %vm3158 = vweird.f32 %v3152
        %vm3159 = vmor %vm3157, %vm3158
        %v3160 = vsel %vm3159, %v3152, %v3156
        %v3161 = vand.u32 2147483647, %v2756
        %vm3162 = vcmp.eq.f32.partialorder %v3161, 8.507059e+37
        %v3163 = vand.u32 %v2756, 2147483648
        %v3164 = vor.u32 1.1754944e-38, %v3163
        %v3165 = vsel %vm3162, %v3164, %v3160
        %v3166 = vmul.f32 1.0, %v3165
        %v3167 = vrcp.pop %v2757
        %v3168 = vmul.f32 %v2757, %v3167
        %v3169 = vsub.f32 1.0, %v3168
        %v3170 = vmul.f32 %v3167, %v3169
        %v3171 = vadd.f32 %v3167, %v3170
        %vm3172 = vweird.f32 %v2757
        %vm3173 = vweird.f32 %v3167
        %vm3174 = vmor %vm3172, %vm3173
        %v3175 = vsel %vm3174, %v3167, %v3171
        %v3176 = vand.u32 2147483647, %v2757
        %vm3177 = vcmp.eq.f32.partialorder %v3176, 8.507059e+37
        %v3178 = vand.u32 %v2757, 2147483648
        %v3179 = vor.u32 1.1754944e-38, %v3178
        %v3180 = vsel %vm3177, %v3179, %v3175
        %v3181 = vmul.f32 1.0, %v3180
        %v3182 = vrcp.pop %v2758
        %v3183 = vmul.f32 %v2758, %v3182
        %v3184 = vsub.f32 1.0, %v3183
        %v3185 = vmul.f32 %v3182, %v3184
        %v3186 = vadd.f32 %v3182, %v3185
        %vm3187 = vweird.f32 %v2758
        %vm3188 = vweird.f32 %v3182
        %vm3189 = vmor %vm3187, %vm3188
        %v3190 = vsel %vm3189, %v3182, %v3186
        %v3191 = vand.u32 2147483647, %v2758
        %vm3192 = vcmp.eq.f32.partialorder %v3191, 8.507059e+37
        %v3193 = vand.u32 %v2758, 2147483648
        %v3194 = vor.u32 1.1754944e-38, %v3193
        %v3195 = vsel %vm3192, %v3194, %v3190
        %v3196 = vmul.f32 1.0, %v3195
        %v3197 = vrcp.pop %v2759
        %v3198 = vmul.f32 %v2759, %v3197
        %v3199 = vsub.f32 1.0, %v3198
        %v3200 = vmul.f32 %v3197, %v3199
        %v3201 = vadd.f32 %v3197, %v3200
        %vm3202 = vweird.f32 %v2759
        %vm3203 = vweird.f32 %v3197
        %vm3204 = vmor %vm3202, %vm3203
        %v3205 = vsel %vm3204, %v3197, %v3201
        %v3206 = vand.u32 2147483647, %v2759
        %vm3207 = vcmp.eq.f32.partialorder %v3206, 8.507059e+37
        %v3208 = vand.u32 %v2759, 2147483648
        %v3209 = vor.u32 1.1754944e-38, %v3208
        %v3210 = vsel %vm3207, %v3209, %v3205
        %v3211 = vmul.f32 1.0, %v3210
        %v3212 = vrcp.pop %v2760
        %v3213 = vmul.f32 %v2760, %v3212
        %v3214 = vsub.f32 1.0, %v3213
        %v3215 = vmul.f32 %v3212, %v3214
        %v3216 = vadd.f32 %v3212, %v3215
        %vm3217 = vweird.f32 %v2760
        %vm3218 = vweird.f32 %v3212
        %vm3219 = vmor %vm3217, %vm3218
        %v3220 = vsel %vm3219, %v3212, %v3216
        %v3221 = vand.u32 2147483647, %v2760
        %vm3222 = vcmp.eq.f32.partialorder %v3221, 8.507059e+37
        %v3223 = vand.u32 %v2760, 2147483648
        %v3224 = vor.u32 1.1754944e-38, %v3223
        %v3225 = vsel %vm3222, %v3224, %v3220
        %v3226 = vmul.f32 1.0, %v3225
        %v3227 = vrcp.pop %v2761
        %v3228 = vmul.f32 %v2761, %v3227
        %v3229 = vsub.f32 1.0, %v3228
        %v3230 = vmul.f32 %v3227, %v3229
        %v3231 = vadd.f32 %v3227, %v3230
        %vm3232 = vweird.f32 %v2761
        %vm3233 = vweird.f32 %v3227
        %vm3234 = vmor %vm3232, %vm3233
        %v3235 = vsel %vm3234, %v3227, %v3231
        %v3236 = vand.u32 2147483647, %v2761
        %vm3237 = vcmp.eq.f32.partialorder %v3236, 8.507059e+37
        %v3238 = vand.u32 %v2761, 2147483648
        %v3239 = vor.u32 1.1754944e-38, %v3238
        %v3240 = vsel %vm3237, %v3239, %v3235
        %v3241 = vmul.f32 1.0, %v3240
        %v3242 = vpack.c.bf16 %v2896, %v2776
        %v3243 = vpack.c.bf16 %v2911, %v2791
        %v3244 = vpack.c.bf16 %v2926, %v2806
        %v3245 = vpack.c.bf16 %v2941, %v2821
        %v3246 = vpack.c.bf16 %v2956, %v2836
        %v3247 = vpack.c.bf16 %v2971, %v2851
        %v3248 = vpack.c.bf16 %v2986, %v2866
        %v3249 = vpack.c.bf16 %v3001, %v2881
        %v3250 = vpack.c.bf16 %v3136, %v3016
        %v3251 = vpack.c.bf16 %v3151, %v3031
        %v3252 = vpack.c.bf16 %v3166, %v3046
        %v3253 = vpack.c.bf16 %v3181, %v3061
        %v3254 = vpack.c.bf16 %v3196, %v3076
        %v3255 = vpack.c.bf16 %v3211, %v3091
        %v3256 = vpack.c.bf16 %v3226, %v3106
        %v3257 = vpack.c.bf16 %v3241, %v3121
        %v3258 = vld [vmem:[#allocation8] sm:$0xff]
        %v3259 = vld [vmem:[#allocation8 + $0x8] sm:$0xff]
        %v3260 = vld [vmem:[#allocation8 + $0x10] sm:$0xff]
        %v3261 = vld [vmem:[#allocation8 + $0x18] sm:$0xff]
        %v3262 = vld [vmem:[#allocation8 + $0x20] sm:$0xff]
        %v3263 = vld [vmem:[#allocation8 + $0x28] sm:$0xff]
        %v3264 = vld [vmem:[#allocation8 + $0x30] sm:$0xff]
        %v3265 = vld [vmem:[#allocation8 + $0x38] sm:$0xff]
        %v3266 = vld [vmem:[#allocation8 + $0x40] sm:$0xff]
        %v3267 = vld [vmem:[#allocation8 + $0x48] sm:$0xff]
        %v3268 = vld [vmem:[#allocation8 + $0x50] sm:$0xff]
        %v3269 = vld [vmem:[#allocation8 + $0x58] sm:$0xff]
        %v3270 = vld [vmem:[#allocation8 + $0x60] sm:$0xff]
        %v3271 = vld [vmem:[#allocation8 + $0x68] sm:$0xff]
        %v3272 = vld [vmem:[#allocation8 + $0x70] sm:$0xff]
        %v3273 = vld [vmem:[#allocation8 + $0x78] sm:$0xff]
        %v3274 = vld [vmem:[#allocation8 + $0x80] sm:$0xff]
        %v3275 = vld [vmem:[#allocation8 + $0x88] sm:$0xff]
        %v3276 = vld [vmem:[#allocation8 + $0x90] sm:$0xff]
        %v3277 = vld [vmem:[#allocation8 + $0x98] sm:$0xff]
        %v3278 = vld [vmem:[#allocation8 + $0xa0] sm:$0xff]
        %v3279 = vld [vmem:[#allocation8 + $0xa8] sm:$0xff]
        %v3280 = vld [vmem:[#allocation8 + $0xb0] sm:$0xff]
        %v3281 = vld [vmem:[#allocation8 + $0xb8] sm:$0xff]
        %v3282 = vld [vmem:[#allocation8 + $0xc0] sm:$0xff]
        %v3283 = vld [vmem:[#allocation8 + $0xc8] sm:$0xff]
        %v3284 = vld [vmem:[#allocation8 + $0xd0] sm:$0xff]
        %v3285 = vld [vmem:[#allocation8 + $0xd8] sm:$0xff]
        %v3286 = vld [vmem:[#allocation8 + $0xe0] sm:$0xff]
        %v3287 = vld [vmem:[#allocation8 + $0xe8] sm:$0xff]
        %v3288 = vld [vmem:[#allocation8 + $0xf0] sm:$0xff]
        %v3289 = vld [vmem:[#allocation8 + $0xf8] sm:$0xff]
        %v3290 = vld [vmem:[#allocation8 + $0x100] sm:$0xff]
        %v3291 = vld [vmem:[#allocation8 + $0x108] sm:$0xff]
        %v3292 = vld [vmem:[#allocation8 + $0x110] sm:$0xff]
        %v3293 = vld [vmem:[#allocation8 + $0x118] sm:$0xff]
        %v3294 = vld [vmem:[#allocation8 + $0x120] sm:$0xff]
        %v3295 = vld [vmem:[#allocation8 + $0x128] sm:$0xff]
        %v3296 = vld [vmem:[#allocation8 + $0x130] sm:$0xff]
        %v3297 = vld [vmem:[#allocation8 + $0x138] sm:$0xff]
        %v3298 = vld [vmem:[#allocation8 + $0x140] sm:$0xff]
        %v3299 = vld [vmem:[#allocation8 + $0x148] sm:$0xff]
        %v3300 = vld [vmem:[#allocation8 + $0x150] sm:$0xff]
        %v3301 = vld [vmem:[#allocation8 + $0x158] sm:$0xff]
        %v3302 = vld [vmem:[#allocation8 + $0x160] sm:$0xff]
        %v3303 = vld [vmem:[#allocation8 + $0x168] sm:$0xff]
        %v3304 = vld [vmem:[#allocation8 + $0x170] sm:$0xff]
        %v3305 = vld [vmem:[#allocation8 + $0x178] sm:$0xff]
        %v3306 = vld [vmem:[#allocation8 + $0x180] sm:$0xff]
        %v3307 = vld [vmem:[#allocation8 + $0x188] sm:$0xff]
        %v3308 = vld [vmem:[#allocation8 + $0x190] sm:$0xff]
        %v3309 = vld [vmem:[#allocation8 + $0x198] sm:$0xff]
        %v3310 = vld [vmem:[#allocation8 + $0x1a0] sm:$0xff]
        %v3311 = vld [vmem:[#allocation8 + $0x1a8] sm:$0xff]
        %v3312 = vld [vmem:[#allocation8 + $0x1b0] sm:$0xff]
        %v3313 = vld [vmem:[#allocation8 + $0x1b8] sm:$0xff]
        %v3314 = vld [vmem:[#allocation8 + $0x1c0] sm:$0xff]
        %v3315 = vld [vmem:[#allocation8 + $0x1c8] sm:$0xff]
        %v3316 = vld [vmem:[#allocation8 + $0x1d0] sm:$0xff]
        %v3317 = vld [vmem:[#allocation8 + $0x1d8] sm:$0xff]
        %v3318 = vld [vmem:[#allocation8 + $0x1e0] sm:$0xff]
        %v3319 = vld [vmem:[#allocation8 + $0x1e8] sm:$0xff]
        %v3320 = vld [vmem:[#allocation8 + $0x1f0] sm:$0xff]
        %v3321 = vld [vmem:[#allocation8 + $0x1f8] sm:$0xff]
        %v3322 = vld [vmem:[#allocation8 + $0x200] sm:$0xff]
        %v3323 = vld [vmem:[#allocation8 + $0x208] sm:$0xff]
        %v3324 = vld [vmem:[#allocation8 + $0x210] sm:$0xff]
        %v3325 = vld [vmem:[#allocation8 + $0x218] sm:$0xff]
        %v3326 = vld [vmem:[#allocation8 + $0x220] sm:$0xff]
        %v3327 = vld [vmem:[#allocation8 + $0x228] sm:$0xff]
        %v3328 = vld [vmem:[#allocation8 + $0x230] sm:$0xff]
        %v3329 = vld [vmem:[#allocation8 + $0x238] sm:$0xff]
        %v3330 = vld [vmem:[#allocation8 + $0x240] sm:$0xff]
        %v3331 = vld [vmem:[#allocation8 + $0x248] sm:$0xff]
        %v3332 = vld [vmem:[#allocation8 + $0x250] sm:$0xff]
        %v3333 = vld [vmem:[#allocation8 + $0x258] sm:$0xff]
        %v3334 = vld [vmem:[#allocation8 + $0x260] sm:$0xff]
        %v3335 = vld [vmem:[#allocation8 + $0x268] sm:$0xff]
        %v3336 = vld [vmem:[#allocation8 + $0x270] sm:$0xff]
        %v3337 = vld [vmem:[#allocation8 + $0x278] sm:$0xff]
        %v3338 = vld [vmem:[#allocation8 + $0x280] sm:$0xff]
        %v3339 = vld [vmem:[#allocation8 + $0x288] sm:$0xff]
        %v3340 = vld [vmem:[#allocation8 + $0x290] sm:$0xff]
        %v3341 = vld [vmem:[#allocation8 + $0x298] sm:$0xff]
        %v3342 = vld [vmem:[#allocation8 + $0x2a0] sm:$0xff]
        %v3343 = vld [vmem:[#allocation8 + $0x2a8] sm:$0xff]
        %v3344 = vld [vmem:[#allocation8 + $0x2b0] sm:$0xff]
        %v3345 = vld [vmem:[#allocation8 + $0x2b8] sm:$0xff]
        %v3346 = vld [vmem:[#allocation8 + $0x2c0] sm:$0xff]
        %v3347 = vld [vmem:[#allocation8 + $0x2c8] sm:$0xff]
        %v3348 = vld [vmem:[#allocation8 + $0x2d0] sm:$0xff]
        %v3349 = vld [vmem:[#allocation8 + $0x2d8] sm:$0xff]
        %v3350 = vld [vmem:[#allocation8 + $0x2e0] sm:$0xff]
        %v3351 = vld [vmem:[#allocation8 + $0x2e8] sm:$0xff]
        %v3352 = vld [vmem:[#allocation8 + $0x2f0] sm:$0xff]
        %v3353 = vld [vmem:[#allocation8 + $0x2f8] sm:$0xff]
        %v3354 = vld [vmem:[#allocation8 + $0x300] sm:$0xff]
        %v3355 = vld [vmem:[#allocation8 + $0x308] sm:$0xff]
        %v3356 = vld [vmem:[#allocation8 + $0x310] sm:$0xff]
        %v3357 = vld [vmem:[#allocation8 + $0x318] sm:$0xff]
        %v3358 = vld [vmem:[#allocation8 + $0x320] sm:$0xff]
        %v3359 = vld [vmem:[#allocation8 + $0x328] sm:$0xff]
        %v3360 = vld [vmem:[#allocation8 + $0x330] sm:$0xff]
        %v3361 = vld [vmem:[#allocation8 + $0x338] sm:$0xff]
        %v3362 = vld [vmem:[#allocation8 + $0x340] sm:$0xff]
        %v3363 = vld [vmem:[#allocation8 + $0x348] sm:$0xff]
        %v3364 = vld [vmem:[#allocation8 + $0x350] sm:$0xff]
        %v3365 = vld [vmem:[#allocation8 + $0x358] sm:$0xff]
        %v3366 = vld [vmem:[#allocation8 + $0x360] sm:$0xff]
        %v3367 = vld [vmem:[#allocation8 + $0x368] sm:$0xff]
        %v3368 = vld [vmem:[#allocation8 + $0x370] sm:$0xff]
        %v3369 = vld [vmem:[#allocation8 + $0x378] sm:$0xff]
        %v3370 = vld [vmem:[#allocation8 + $0x380] sm:$0xff]
        %v3371 = vld [vmem:[#allocation8 + $0x388] sm:$0xff]
        %v3372 = vld [vmem:[#allocation8 + $0x390] sm:$0xff]
        %v3373 = vld [vmem:[#allocation8 + $0x398] sm:$0xff]
        %v3374 = vld [vmem:[#allocation8 + $0x3a0] sm:$0xff]
        %v3375 = vld [vmem:[#allocation8 + $0x3a8] sm:$0xff]
        %v3376 = vld [vmem:[#allocation8 + $0x3b0] sm:$0xff]
        %v3377 = vld [vmem:[#allocation8 + $0x3b8] sm:$0xff]
        %v3378 = vld [vmem:[#allocation8 + $0x3c0] sm:$0xff]
        %v3379 = vld [vmem:[#allocation8 + $0x3c8] sm:$0xff]
        %v3380 = vld [vmem:[#allocation8 + $0x3d0] sm:$0xff]
        %v3381 = vld [vmem:[#allocation8 + $0x3d8] sm:$0xff]
        %v3382 = vld [vmem:[#allocation8 + $0x3e0] sm:$0xff]
        %v3383 = vld [vmem:[#allocation8 + $0x3e8] sm:$0xff]
        %v3384 = vld [vmem:[#allocation8 + $0x3f0] sm:$0xff]
        %v3385 = vld [vmem:[#allocation8 + $0x3f8] sm:$0xff]
        %v3386 = vld [vmem:[#allocation8 + $0x400] sm:$0xff]
        %v3387 = vld [vmem:[#allocation8 + $0x408] sm:$0xff]
        %v3388 = vld [vmem:[#allocation8 + $0x410] sm:$0xff]
        %v3389 = vld [vmem:[#allocation8 + $0x418] sm:$0xff]
        %v3390 = vld [vmem:[#allocation8 + $0x420] sm:$0xff]
        %v3391 = vld [vmem:[#allocation8 + $0x428] sm:$0xff]
        %v3392 = vld [vmem:[#allocation8 + $0x430] sm:$0xff]
        %v3393 = vld [vmem:[#allocation8 + $0x438] sm:$0xff]
        %v3394 = vld [vmem:[#allocation8 + $0x440] sm:$0xff]
        %v3395 = vld [vmem:[#allocation8 + $0x448] sm:$0xff]
        %v3396 = vld [vmem:[#allocation8 + $0x450] sm:$0xff]
        %v3397 = vld [vmem:[#allocation8 + $0x458] sm:$0xff]
        %v3398 = vld [vmem:[#allocation8 + $0x460] sm:$0xff]
        %v3399 = vld [vmem:[#allocation8 + $0x468] sm:$0xff]
        %v3400 = vld [vmem:[#allocation8 + $0x470] sm:$0xff]
        %v3401 = vld [vmem:[#allocation8 + $0x478] sm:$0xff]
        %v3402 = vld [vmem:[#allocation8 + $0x480] sm:$0xff]
        %v3403 = vld [vmem:[#allocation8 + $0x488] sm:$0xff]
        %v3404 = vld [vmem:[#allocation8 + $0x490] sm:$0xff]
        %v3405 = vld [vmem:[#allocation8 + $0x498] sm:$0xff]
        %v3406 = vld [vmem:[#allocation8 + $0x4a0] sm:$0xff]
        %v3407 = vld [vmem:[#allocation8 + $0x4a8] sm:$0xff]
        %v3408 = vld [vmem:[#allocation8 + $0x4b0] sm:$0xff]
        %v3409 = vld [vmem:[#allocation8 + $0x4b8] sm:$0xff]
        %v3410 = vld [vmem:[#allocation8 + $0x4c0] sm:$0xff]
        %v3411 = vld [vmem:[#allocation8 + $0x4c8] sm:$0xff]
        %v3412 = vld [vmem:[#allocation8 + $0x4d0] sm:$0xff]
        %v3413 = vld [vmem:[#allocation8 + $0x4d8] sm:$0xff]
        %v3414 = vld [vmem:[#allocation8 + $0x4e0] sm:$0xff]
        %v3415 = vld [vmem:[#allocation8 + $0x4e8] sm:$0xff]
        %v3416 = vld [vmem:[#allocation8 + $0x4f0] sm:$0xff]
        %v3417 = vld [vmem:[#allocation8 + $0x4f8] sm:$0xff]
        %v3418 = vld [vmem:[#allocation8 + $0x500] sm:$0xff]
        %v3419 = vld [vmem:[#allocation8 + $0x508] sm:$0xff]
        %v3420 = vld [vmem:[#allocation8 + $0x510] sm:$0xff]
        %v3421 = vld [vmem:[#allocation8 + $0x518] sm:$0xff]
        %v3422 = vld [vmem:[#allocation8 + $0x520] sm:$0xff]
        %v3423 = vld [vmem:[#allocation8 + $0x528] sm:$0xff]
        %v3424 = vld [vmem:[#allocation8 + $0x530] sm:$0xff]
        %v3425 = vld [vmem:[#allocation8 + $0x538] sm:$0xff]
        %v3426 = vld [vmem:[#allocation8 + $0x540] sm:$0xff]
        %v3427 = vld [vmem:[#allocation8 + $0x548] sm:$0xff]
        %v3428 = vld [vmem:[#allocation8 + $0x550] sm:$0xff]
        %v3429 = vld [vmem:[#allocation8 + $0x558] sm:$0xff]
        %v3430 = vld [vmem:[#allocation8 + $0x560] sm:$0xff]
        %v3431 = vld [vmem:[#allocation8 + $0x568] sm:$0xff]
        %v3432 = vld [vmem:[#allocation8 + $0x570] sm:$0xff]
        %v3433 = vld [vmem:[#allocation8 + $0x578] sm:$0xff]
        %v3434 = vld [vmem:[#allocation8 + $0x580] sm:$0xff]
        %v3435 = vld [vmem:[#allocation8 + $0x588] sm:$0xff]
        %v3436 = vld [vmem:[#allocation8 + $0x590] sm:$0xff]
        %v3437 = vld [vmem:[#allocation8 + $0x598] sm:$0xff]
        %v3438 = vld [vmem:[#allocation8 + $0x5a0] sm:$0xff]
        %v3439 = vld [vmem:[#allocation8 + $0x5a8] sm:$0xff]
        %v3440 = vld [vmem:[#allocation8 + $0x5b0] sm:$0xff]
        %v3441 = vld [vmem:[#allocation8 + $0x5b8] sm:$0xff]
        %v3442 = vld [vmem:[#allocation8 + $0x5c0] sm:$0xff]
        %v3443 = vld [vmem:[#allocation8 + $0x5c8] sm:$0xff]
        %v3444 = vld [vmem:[#allocation8 + $0x5d0] sm:$0xff]
        %v3445 = vld [vmem:[#allocation8 + $0x5d8] sm:$0xff]
        %v3446 = vld [vmem:[#allocation8 + $0x5e0] sm:$0xff]
        %v3447 = vld [vmem:[#allocation8 + $0x5e8] sm:$0xff]
        %v3448 = vld [vmem:[#allocation8 + $0x5f0] sm:$0xff]
        %v3449 = vld [vmem:[#allocation8 + $0x5f8] sm:$0xff]
        %v3450 = vld [vmem:[#allocation8 + $0x600] sm:$0xff]
        %v3451 = vld [vmem:[#allocation8 + $0x608] sm:$0xff]
        %v3452 = vld [vmem:[#allocation8 + $0x610] sm:$0xff]
        %v3453 = vld [vmem:[#allocation8 + $0x618] sm:$0xff]
        %v3454 = vld [vmem:[#allocation8 + $0x620] sm:$0xff]
        %v3455 = vld [vmem:[#allocation8 + $0x628] sm:$0xff]
        %v3456 = vld [vmem:[#allocation8 + $0x630] sm:$0xff]
        %v3457 = vld [vmem:[#allocation8 + $0x638] sm:$0xff]
        %v3458 = vld [vmem:[#allocation8 + $0x640] sm:$0xff]
        %v3459 = vld [vmem:[#allocation8 + $0x648] sm:$0xff]
        %v3460 = vld [vmem:[#allocation8 + $0x650] sm:$0xff]
        %v3461 = vld [vmem:[#allocation8 + $0x658] sm:$0xff]
        %v3462 = vld [vmem:[#allocation8 + $0x660] sm:$0xff]
        %v3463 = vld [vmem:[#allocation8 + $0x668] sm:$0xff]
        %v3464 = vld [vmem:[#allocation8 + $0x670] sm:$0xff]
        %v3465 = vld [vmem:[#allocation8 + $0x678] sm:$0xff]
        %v3466 = vld [vmem:[#allocation8 + $0x680] sm:$0xff]
        %v3467 = vld [vmem:[#allocation8 + $0x688] sm:$0xff]
        %v3468 = vld [vmem:[#allocation8 + $0x690] sm:$0xff]
        %v3469 = vld [vmem:[#allocation8 + $0x698] sm:$0xff]
        %v3470 = vld [vmem:[#allocation8 + $0x6a0] sm:$0xff]
        %v3471 = vld [vmem:[#allocation8 + $0x6a8] sm:$0xff]
        %v3472 = vld [vmem:[#allocation8 + $0x6b0] sm:$0xff]
        %v3473 = vld [vmem:[#allocation8 + $0x6b8] sm:$0xff]
        %v3474 = vld [vmem:[#allocation8 + $0x6c0] sm:$0xff]
        %v3475 = vld [vmem:[#allocation8 + $0x6c8] sm:$0xff]
        %v3476 = vld [vmem:[#allocation8 + $0x6d0] sm:$0xff]
        %v3477 = vld [vmem:[#allocation8 + $0x6d8] sm:$0xff]
        %v3478 = vld [vmem:[#allocation8 + $0x6e0] sm:$0xff]
        %v3479 = vld [vmem:[#allocation8 + $0x6e8] sm:$0xff]
        %v3480 = vld [vmem:[#allocation8 + $0x6f0] sm:$0xff]
        %v3481 = vld [vmem:[#allocation8 + $0x6f8] sm:$0xff]
        %v3482 = vld [vmem:[#allocation8 + $0x700] sm:$0xff]
        %v3483 = vld [vmem:[#allocation8 + $0x708] sm:$0xff]
        %v3484 = vld [vmem:[#allocation8 + $0x710] sm:$0xff]
        %v3485 = vld [vmem:[#allocation8 + $0x718] sm:$0xff]
        %v3486 = vld [vmem:[#allocation8 + $0x720] sm:$0xff]
        %v3487 = vld [vmem:[#allocation8 + $0x728] sm:$0xff]
        %v3488 = vld [vmem:[#allocation8 + $0x730] sm:$0xff]
        %v3489 = vld [vmem:[#allocation8 + $0x738] sm:$0xff]
        %v3490 = vld [vmem:[#allocation8 + $0x740] sm:$0xff]
        %v3491 = vld [vmem:[#allocation8 + $0x748] sm:$0xff]
        %v3492 = vld [vmem:[#allocation8 + $0x750] sm:$0xff]
        %v3493 = vld [vmem:[#allocation8 + $0x758] sm:$0xff]
        %v3494 = vld [vmem:[#allocation8 + $0x760] sm:$0xff]
        %v3495 = vld [vmem:[#allocation8 + $0x768] sm:$0xff]
        %v3496 = vld [vmem:[#allocation8 + $0x770] sm:$0xff]
        %v3497 = vld [vmem:[#allocation8 + $0x778] sm:$0xff]
        %v3498 = vld [vmem:[#allocation8 + $0x780] sm:$0xff]
        %v3499 = vld [vmem:[#allocation8 + $0x788] sm:$0xff]
        %v3500 = vld [vmem:[#allocation8 + $0x790] sm:$0xff]
        %v3501 = vld [vmem:[#allocation8 + $0x798] sm:$0xff]
        %v3502 = vld [vmem:[#allocation8 + $0x7a0] sm:$0xff]
        %v3503 = vld [vmem:[#allocation8 + $0x7a8] sm:$0xff]
        %v3504 = vld [vmem:[#allocation8 + $0x7b0] sm:$0xff]
        %v3505 = vld [vmem:[#allocation8 + $0x7b8] sm:$0xff]
        %v3506 = vld [vmem:[#allocation8 + $0x7c0] sm:$0xff]
        %v3507 = vld [vmem:[#allocation8 + $0x7c8] sm:$0xff]
        %v3508 = vld [vmem:[#allocation8 + $0x7d0] sm:$0xff]
        %v3509 = vld [vmem:[#allocation8 + $0x7d8] sm:$0xff]
        %v3510 = vld [vmem:[#allocation8 + $0x7e0] sm:$0xff]
        %v3511 = vld [vmem:[#allocation8 + $0x7e8] sm:$0xff]
        %v3512 = vld [vmem:[#allocation8 + $0x7f0] sm:$0xff]
        %v3513 = vld [vmem:[#allocation8 + $0x7f8] sm:$0xff]
        %v3514 = vld [vmem:[%s4] sm:$0xf]
        %v3516 = vperm.slane %v3514, 0
        %v3517 = vperm.slane %v3514, 1
        %v3518 = vperm.slane %v3514, 2
        %v3519 = vperm.slane %v3514, 3
        %v3780 = vunpack.c.l.b16 %v3258
        %v3781 = vunpack.c.h.b16 %v3258
        %v3782 = vunpack.c.l.b16 %v3259
        %v3783 = vunpack.c.h.b16 %v3259
        %v3784 = vunpack.c.l.b16 %v3260
        %v3785 = vunpack.c.h.b16 %v3260
        %v3786 = vunpack.c.l.b16 %v3261
        %v3787 = vunpack.c.h.b16 %v3261
        %v3788 = vunpack.c.l.b16 %v3262
        %v3789 = vunpack.c.h.b16 %v3262
        %v3790 = vunpack.c.l.b16 %v3263
        %v3791 = vunpack.c.h.b16 %v3263
        %v3792 = vunpack.c.l.b16 %v3264
        %v3793 = vunpack.c.h.b16 %v3264
        %v3794 = vunpack.c.l.b16 %v3265
        %v3795 = vunpack.c.h.b16 %v3265
        %v3796 = vunpack.c.l.b16 %v3266
        %v3797 = vunpack.c.h.b16 %v3266
        %v3798 = vunpack.c.l.b16 %v3267
        %v3799 = vunpack.c.h.b16 %v3267
        %v3800 = vunpack.c.l.b16 %v3268
        %v3801 = vunpack.c.h.b16 %v3268
        %v3802 = vunpack.c.l.b16 %v3269
        %v3803 = vunpack.c.h.b16 %v3269
        %v3804 = vunpack.c.l.b16 %v3270
        %v3805 = vunpack.c.h.b16 %v3270
        %v3806 = vunpack.c.l.b16 %v3271
        %v3807 = vunpack.c.h.b16 %v3271
        %v3808 = vunpack.c.l.b16 %v3272
        %v3809 = vunpack.c.h.b16 %v3272
        %v3810 = vunpack.c.l.b16 %v3273
        %v3811 = vunpack.c.h.b16 %v3273
        %v3812 = vunpack.c.l.b16 %v3274
        %v3813 = vunpack.c.h.b16 %v3274
        %v3814 = vunpack.c.l.b16 %v3275
        %v3815 = vunpack.c.h.b16 %v3275
        %v3816 = vunpack.c.l.b16 %v3276
        %v3817 = vunpack.c.h.b16 %v3276
        %v3818 = vunpack.c.l.b16 %v3277
        %v3819 = vunpack.c.h.b16 %v3277
        %v3820 = vunpack.c.l.b16 %v3278
        %v3821 = vunpack.c.h.b16 %v3278
        %v3822 = vunpack.c.l.b16 %v3279
        %v3823 = vunpack.c.h.b16 %v3279
        %v3824 = vunpack.c.l.b16 %v3280
        %v3825 = vunpack.c.h.b16 %v3280
        %v3826 = vunpack.c.l.b16 %v3281
        %v3827 = vunpack.c.h.b16 %v3281
        %v3828 = vunpack.c.l.b16 %v3282
        %v3829 = vunpack.c.h.b16 %v3282
        %v3830 = vunpack.c.l.b16 %v3283
        %v3831 = vunpack.c.h.b16 %v3283
        %v3832 = vunpack.c.l.b16 %v3284
        %v3833 = vunpack.c.h.b16 %v3284
        %v3834 = vunpack.c.l.b16 %v3285
        %v3835 = vunpack.c.h.b16 %v3285
        %v3836 = vunpack.c.l.b16 %v3286
        %v3837 = vunpack.c.h.b16 %v3286
        %v3838 = vunpack.c.l.b16 %v3287
        %v3839 = vunpack.c.h.b16 %v3287
        %v3840 = vunpack.c.l.b16 %v3288
        %v3841 = vunpack.c.h.b16 %v3288
        %v3842 = vunpack.c.l.b16 %v3289
        %v3843 = vunpack.c.h.b16 %v3289
        %v3844 = vunpack.c.l.b16 %v3290
        %v3845 = vunpack.c.h.b16 %v3290
        %v3846 = vunpack.c.l.b16 %v3291
        %v3847 = vunpack.c.h.b16 %v3291
        %v3848 = vunpack.c.l.b16 %v3292
        %v3849 = vunpack.c.h.b16 %v3292
        %v3850 = vunpack.c.l.b16 %v3293
        %v3851 = vunpack.c.h.b16 %v3293
        %v3852 = vunpack.c.l.b16 %v3294
        %v3853 = vunpack.c.h.b16 %v3294
        %v3854 = vunpack.c.l.b16 %v3295
        %v3855 = vunpack.c.h.b16 %v3295
        %v3856 = vunpack.c.l.b16 %v3296
        %v3857 = vunpack.c.h.b16 %v3296
        %v3858 = vunpack.c.l.b16 %v3297
        %v3859 = vunpack.c.h.b16 %v3297
        %v3860 = vunpack.c.l.b16 %v3298
        %v3861 = vunpack.c.h.b16 %v3298
        %v3862 = vunpack.c.l.b16 %v3299
        %v3863 = vunpack.c.h.b16 %v3299
        %v3864 = vunpack.c.l.b16 %v3300
        %v3865 = vunpack.c.h.b16 %v3300
        %v3866 = vunpack.c.l.b16 %v3301
        %v3867 = vunpack.c.h.b16 %v3301
        %v3868 = vunpack.c.l.b16 %v3302
        %v3869 = vunpack.c.h.b16 %v3302
        %v3870 = vunpack.c.l.b16 %v3303
        %v3871 = vunpack.c.h.b16 %v3303
        %v3872 = vunpack.c.l.b16 %v3304
        %v3873 = vunpack.c.h.b16 %v3304
        %v3874 = vunpack.c.l.b16 %v3305
        %v3875 = vunpack.c.h.b16 %v3305
        %v3876 = vunpack.c.l.b16 %v3306
        %v3877 = vunpack.c.h.b16 %v3306
        %v3878 = vunpack.c.l.b16 %v3307
        %v3879 = vunpack.c.h.b16 %v3307
        %v3880 = vunpack.c.l.b16 %v3308
        %v3881 = vunpack.c.h.b16 %v3308
        %v3882 = vunpack.c.l.b16 %v3309
        %v3883 = vunpack.c.h.b16 %v3309
        %v3884 = vunpack.c.l.b16 %v3310
        %v3885 = vunpack.c.h.b16 %v3310
        %v3886 = vunpack.c.l.b16 %v3311
        %v3887 = vunpack.c.h.b16 %v3311
        %v3888 = vunpack.c.l.b16 %v3312
        %v3889 = vunpack.c.h.b16 %v3312
        %v3890 = vunpack.c.l.b16 %v3313
        %v3891 = vunpack.c.h.b16 %v3313
        %v3892 = vunpack.c.l.b16 %v3314
        %v3893 = vunpack.c.h.b16 %v3314
        %v3894 = vunpack.c.l.b16 %v3315
        %v3895 = vunpack.c.h.b16 %v3315
        %v3896 = vunpack.c.l.b16 %v3316
        %v3897 = vunpack.c.h.b16 %v3316
        %v3898 = vunpack.c.l.b16 %v3317
        %v3899 = vunpack.c.h.b16 %v3317
        %v3900 = vunpack.c.l.b16 %v3318
        %v3901 = vunpack.c.h.b16 %v3318
        %v3902 = vunpack.c.l.b16 %v3319
        %v3903 = vunpack.c.h.b16 %v3319
        %v3904 = vunpack.c.l.b16 %v3320
        %v3905 = vunpack.c.h.b16 %v3320
        %v3906 = vunpack.c.l.b16 %v3321
        %v3907 = vunpack.c.h.b16 %v3321
        %v3908 = vunpack.c.l.b16 %v3322
        %v3909 = vunpack.c.h.b16 %v3322
        %v3910 = vunpack.c.l.b16 %v3323
        %v3911 = vunpack.c.h.b16 %v3323
        %v3912 = vunpack.c.l.b16 %v3324
        %v3913 = vunpack.c.h.b16 %v3324
        %v3914 = vunpack.c.l.b16 %v3325
        %v3915 = vunpack.c.h.b16 %v3325
        %v3916 = vunpack.c.l.b16 %v3326
        %v3917 = vunpack.c.h.b16 %v3326
        %v3918 = vunpack.c.l.b16 %v3327
        %v3919 = vunpack.c.h.b16 %v3327
        %v3920 = vunpack.c.l.b16 %v3328
        %v3921 = vunpack.c.h.b16 %v3328
        %v3922 = vunpack.c.l.b16 %v3329
        %v3923 = vunpack.c.h.b16 %v3329
        %v3924 = vunpack.c.l.b16 %v3330
        %v3925 = vunpack.c.h.b16 %v3330
        %v3926 = vunpack.c.l.b16 %v3331
        %v3927 = vunpack.c.h.b16 %v3331
        %v3928 = vunpack.c.l.b16 %v3332
        %v3929 = vunpack.c.h.b16 %v3332
        %v3930 = vunpack.c.l.b16 %v3333
        %v3931 = vunpack.c.h.b16 %v3333
        %v3932 = vunpack.c.l.b16 %v3334
        %v3933 = vunpack.c.h.b16 %v3334
        %v3934 = vunpack.c.l.b16 %v3335
        %v3935 = vunpack.c.h.b16 %v3335
        %v3936 = vunpack.c.l.b16 %v3336
        %v3937 = vunpack.c.h.b16 %v3336
        %v3938 = vunpack.c.l.b16 %v3337
        %v3939 = vunpack.c.h.b16 %v3337
        %v3940 = vunpack.c.l.b16 %v3338
        %v3941 = vunpack.c.h.b16 %v3338
        %v3942 = vunpack.c.l.b16 %v3339
        %v3943 = vunpack.c.h.b16 %v3339
        %v3944 = vunpack.c.l.b16 %v3340
        %v3945 = vunpack.c.h.b16 %v3340
        %v3946 = vunpack.c.l.b16 %v3341
        %v3947 = vunpack.c.h.b16 %v3341
        %v3948 = vunpack.c.l.b16 %v3342
        %v3949 = vunpack.c.h.b16 %v3342
        %v3950 = vunpack.c.l.b16 %v3343
        %v3951 = vunpack.c.h.b16 %v3343
        %v3952 = vunpack.c.l.b16 %v3344
        %v3953 = vunpack.c.h.b16 %v3344
        %v3954 = vunpack.c.l.b16 %v3345
        %v3955 = vunpack.c.h.b16 %v3345
        %v3956 = vunpack.c.l.b16 %v3346
        %v3957 = vunpack.c.h.b16 %v3346
        %v3958 = vunpack.c.l.b16 %v3347
        %v3959 = vunpack.c.h.b16 %v3347
        %v3960 = vunpack.c.l.b16 %v3348
        %v3961 = vunpack.c.h.b16 %v3348
        %v3962 = vunpack.c.l.b16 %v3349
        %v3963 = vunpack.c.h.b16 %v3349
        %v3964 = vunpack.c.l.b16 %v3350
        %v3965 = vunpack.c.h.b16 %v3350
        %v3966 = vunpack.c.l.b16 %v3351
        %v3967 = vunpack.c.h.b16 %v3351
        %v3968 = vunpack.c.l.b16 %v3352
        %v3969 = vunpack.c.h.b16 %v3352
        %v3970 = vunpack.c.l.b16 %v3353
        %v3971 = vunpack.c.h.b16 %v3353
        %v3972 = vunpack.c.l.b16 %v3354
        %v3973 = vunpack.c.h.b16 %v3354
        %v3974 = vunpack.c.l.b16 %v3355
        %v3975 = vunpack.c.h.b16 %v3355
        %v3976 = vunpack.c.l.b16 %v3356
        %v3977 = vunpack.c.h.b16 %v3356
        %v3978 = vunpack.c.l.b16 %v3357
        %v3979 = vunpack.c.h.b16 %v3357
        %v3980 = vunpack.c.l.b16 %v3358
        %v3981 = vunpack.c.h.b16 %v3358
        %v3982 = vunpack.c.l.b16 %v3359
        %v3983 = vunpack.c.h.b16 %v3359
        %v3984 = vunpack.c.l.b16 %v3360
        %v3985 = vunpack.c.h.b16 %v3360
        %v3986 = vunpack.c.l.b16 %v3361
        %v3987 = vunpack.c.h.b16 %v3361
        %v3988 = vunpack.c.l.b16 %v3362
        %v3989 = vunpack.c.h.b16 %v3362
        %v3990 = vunpack.c.l.b16 %v3363
        %v3991 = vunpack.c.h.b16 %v3363
        %v3992 = vunpack.c.l.b16 %v3364
        %v3993 = vunpack.c.h.b16 %v3364
        %v3994 = vunpack.c.l.b16 %v3365
        %v3995 = vunpack.c.h.b16 %v3365
        %v3996 = vunpack.c.l.b16 %v3366
        %v3997 = vunpack.c.h.b16 %v3366
        %v3998 = vunpack.c.l.b16 %v3367
        %v3999 = vunpack.c.h.b16 %v3367
        %v4000 = vunpack.c.l.b16 %v3368
        %v4001 = vunpack.c.h.b16 %v3368
        %v4002 = vunpack.c.l.b16 %v3369
        %v4003 = vunpack.c.h.b16 %v3369
        %v4004 = vunpack.c.l.b16 %v3370
        %v4005 = vunpack.c.h.b16 %v3370
        %v4006 = vunpack.c.l.b16 %v3371
        %v4007 = vunpack.c.h.b16 %v3371
        %v4008 = vunpack.c.l.b16 %v3372
        %v4009 = vunpack.c.h.b16 %v3372
        %v4010 = vunpack.c.l.b16 %v3373
        %v4011 = vunpack.c.h.b16 %v3373
        %v4012 = vunpack.c.l.b16 %v3374
        %v4013 = vunpack.c.h.b16 %v3374
        %v4014 = vunpack.c.l.b16 %v3375
        %v4015 = vunpack.c.h.b16 %v3375
        %v4016 = vunpack.c.l.b16 %v3376
        %v4017 = vunpack.c.h.b16 %v3376
        %v4018 = vunpack.c.l.b16 %v3377
        %v4019 = vunpack.c.h.b16 %v3377
        %v4020 = vunpack.c.l.b16 %v3378
        %v4021 = vunpack.c.h.b16 %v3378
        %v4022 = vunpack.c.l.b16 %v3379
        %v4023 = vunpack.c.h.b16 %v3379
        %v4024 = vunpack.c.l.b16 %v3380
        %v4025 = vunpack.c.h.b16 %v3380
        %v4026 = vunpack.c.l.b16 %v3381
        %v4027 = vunpack.c.h.b16 %v3381
        %v4028 = vunpack.c.l.b16 %v3382
        %v4029 = vunpack.c.h.b16 %v3382
        %v4030 = vunpack.c.l.b16 %v3383
        %v4031 = vunpack.c.h.b16 %v3383
        %v4032 = vunpack.c.l.b16 %v3384
        %v4033 = vunpack.c.h.b16 %v3384
        %v4034 = vunpack.c.l.b16 %v3385
        %v4035 = vunpack.c.h.b16 %v3385
        %v4036 = vunpack.c.l.b16 %v3386
        %v4037 = vunpack.c.h.b16 %v3386
        %v4038 = vunpack.c.l.b16 %v3387
        %v4039 = vunpack.c.h.b16 %v3387
        %v4040 = vunpack.c.l.b16 %v3388
        %v4041 = vunpack.c.h.b16 %v3388
        %v4042 = vunpack.c.l.b16 %v3389
        %v4043 = vunpack.c.h.b16 %v3389
        %v4044 = vunpack.c.l.b16 %v3390
        %v4045 = vunpack.c.h.b16 %v3390
        %v4046 = vunpack.c.l.b16 %v3391
        %v4047 = vunpack.c.h.b16 %v3391
        %v4048 = vunpack.c.l.b16 %v3392
        %v4049 = vunpack.c.h.b16 %v3392
        %v4050 = vunpack.c.l.b16 %v3393
        %v4051 = vunpack.c.h.b16 %v3393
        %v4052 = vunpack.c.l.b16 %v3394
        %v4053 = vunpack.c.h.b16 %v3394
        %v4054 = vunpack.c.l.b16 %v3395
        %v4055 = vunpack.c.h.b16 %v3395
        %v4056 = vunpack.c.l.b16 %v3396
        %v4057 = vunpack.c.h.b16 %v3396
        %v4058 = vunpack.c.l.b16 %v3397
        %v4059 = vunpack.c.h.b16 %v3397
        %v4060 = vunpack.c.l.b16 %v3398
        %v4061 = vunpack.c.h.b16 %v3398
        %v4062 = vunpack.c.l.b16 %v3399
        %v4063 = vunpack.c.h.b16 %v3399
        %v4064 = vunpack.c.l.b16 %v3400
        %v4065 = vunpack.c.h.b16 %v3400
        %v4066 = vunpack.c.l.b16 %v3401
        %v4067 = vunpack.c.h.b16 %v3401
        %v4068 = vunpack.c.l.b16 %v3402
        %v4069 = vunpack.c.h.b16 %v3402
        %v4070 = vunpack.c.l.b16 %v3403
        %v4071 = vunpack.c.h.b16 %v3403
        %v4072 = vunpack.c.l.b16 %v3404
        %v4073 = vunpack.c.h.b16 %v3404
        %v4074 = vunpack.c.l.b16 %v3405
        %v4075 = vunpack.c.h.b16 %v3405
        %v4076 = vunpack.c.l.b16 %v3406
        %v4077 = vunpack.c.h.b16 %v3406
        %v4078 = vunpack.c.l.b16 %v3407
        %v4079 = vunpack.c.h.b16 %v3407
        %v4080 = vunpack.c.l.b16 %v3408
        %v4081 = vunpack.c.h.b16 %v3408
        %v4082 = vunpack.c.l.b16 %v3409
        %v4083 = vunpack.c.h.b16 %v3409
        %v4084 = vunpack.c.l.b16 %v3410
        %v4085 = vunpack.c.h.b16 %v3410
        %v4086 = vunpack.c.l.b16 %v3411
        %v4087 = vunpack.c.h.b16 %v3411
        %v4088 = vunpack.c.l.b16 %v3412
        %v4089 = vunpack.c.h.b16 %v3412
        %v4090 = vunpack.c.l.b16 %v3413
        %v4091 = vunpack.c.h.b16 %v3413
        %v4092 = vunpack.c.l.b16 %v3414
        %v4093 = vunpack.c.h.b16 %v3414
        %v4094 = vunpack.c.l.b16 %v3415
        %v4095 = vunpack.c.h.b16 %v3415
        %v4096 = vunpack.c.l.b16 %v3416
        %v4097 = vunpack.c.h.b16 %v3416
        %v4098 = vunpack.c.l.b16 %v3417
        %v4099 = vunpack.c.h.b16 %v3417
        %v4100 = vunpack.c.l.b16 %v3418
        %v4101 = vunpack.c.h.b16 %v3418
        %v4102 = vunpack.c.l.b16 %v3419
        %v4103 = vunpack.c.h.b16 %v3419
        %v4104 = vunpack.c.l.b16 %v3420
        %v4105 = vunpack.c.h.b16 %v3420
        %v4106 = vunpack.c.l.b16 %v3421
        %v4107 = vunpack.c.h.b16 %v3421
        %v4108 = vunpack.c.l.b16 %v3422
        %v4109 = vunpack.c.h.b16 %v3422
        %v4110 = vunpack.c.l.b16 %v3423
        %v4111 = vunpack.c.h.b16 %v3423
        %v4112 = vunpack.c.l.b16 %v3424
        %v4113 = vunpack.c.h.b16 %v3424
        %v4114 = vunpack.c.l.b16 %v3425
        %v4115 = vunpack.c.h.b16 %v3425
        %v4116 = vunpack.c.l.b16 %v3426
        %v4117 = vunpack.c.h.b16 %v3426
        %v4118 = vunpack.c.l.b16 %v3427
        %v4119 = vunpack.c.h.b16 %v3427
        %v4120 = vunpack.c.l.b16 %v3428
        %v4121 = vunpack.c.h.b16 %v3428
        %v4122 = vunpack.c.l.b16 %v3429
        %v4123 = vunpack.c.h.b16 %v3429
        %v4124 = vunpack.c.l.b16 %v3430
        %v4125 = vunpack.c.h.b16 %v3430
        %v4126 = vunpack.c.l.b16 %v3431
        %v4127 = vunpack.c.h.b16 %v3431
        %v4128 = vunpack.c.l.b16 %v3432
        %v4129 = vunpack.c.h.b16 %v3432
        %v4130 = vunpack.c.l.b16 %v3433
        %v4131 = vunpack.c.h.b16 %v3433
        %v4132 = vunpack.c.l.b16 %v3434
        %v4133 = vunpack.c.h.b16 %v3434
        %v4134 = vunpack.c.l.b16 %v3435
        %v4135 = vunpack.c.h.b16 %v3435
        %v4136 = vunpack.c.l.b16 %v3436
        %v4137 = vunpack.c.h.b16 %v3436
        %v4138 = vunpack.c.l.b16 %v3437
        %v4139 = vunpack.c.h.b16 %v3437
        %v4140 = vunpack.c.l.b16 %v3438
        %v4141 = vunpack.c.h.b16 %v3438
        %v4142 = vunpack.c.l.b16 %v3439
        %v4143 = vunpack.c.h.b16 %v3439
        %v4144 = vunpack.c.l.b16 %v3440
        %v4145 = vunpack.c.h.b16 %v3440
        %v4146 = vunpack.c.l.b16 %v3441
        %v4147 = vunpack.c.h.b16 %v3441
        %v4148 = vunpack.c.l.b16 %v3442
        %v4149 = vunpack.c.h.b16 %v3442
        %v4150 = vunpack.c.l.b16 %v3443
        %v4151 = vunpack.c.h.b16 %v3443
        %v4152 = vunpack.c.l.b16 %v3444
        %v4153 = vunpack.c.h.b16 %v3444
        %v4154 = vunpack.c.l.b16 %v3445
        %v4155 = vunpack.c.h.b16 %v3445
        %v4156 = vunpack.c.l.b16 %v3446
        %v4157 = vunpack.c.h.b16 %v3446
        %v4158 = vunpack.c.l.b16 %v3447
        %v4159 = vunpack.c.h.b16 %v3447
        %v4160 = vunpack.c.l.b16 %v3448
        %v4161 = vunpack.c.h.b16 %v3448
        %v4162 = vunpack.c.l.b16 %v3449
        %v4163 = vunpack.c.h.b16 %v3449
        %v4164 = vunpack.c.l.b16 %v3450
        %v4165 = vunpack.c.h.b16 %v3450
        %v4166 = vunpack.c.l.b16 %v3451
        %v4167 = vunpack.c.h.b16 %v3451
        %v4168 = vunpack.c.l.b16 %v3452
        %v4169 = vunpack.c.h.b16 %v3452
        %v4170 = vunpack.c.l.b16 %v3453
        %v4171 = vunpack.c.h.b16 %v3453
        %v4172 = vunpack.c.l.b16 %v3454
        %v4173 = vunpack.c.h.b16 %v3454
        %v4174 = vunpack.c.l.b16 %v3455
        %v4175 = vunpack.c.h.b16 %v3455
        %v4176 = vunpack.c.l.b16 %v3456
        %v4177 = vunpack.c.h.b16 %v3456
        %v4178 = vunpack.c.l.b16 %v3457
        %v4179 = vunpack.c.h.b16 %v3457
        %v4180 = vunpack.c.l.b16 %v3458
        %v4181 = vunpack.c.h.b16 %v3458
        %v4182 = vunpack.c.l.b16 %v3459
        %v4183 = vunpack.c.h.b16 %v3459
        %v4184 = vunpack.c.l.b16 %v3460
        %v4185 = vunpack.c.h.b16 %v3460
        %v4186 = vunpack.c.l.b16 %v3461
        %v4187 = vunpack.c.h.b16 %v3461
        %v4188 = vunpack.c.l.b16 %v3462
        %v4189 = vunpack.c.h.b16 %v3462
        %v4190 = vunpack.c.l.b16 %v3463
        %v4191 = vunpack.c.h.b16 %v3463
        %v4192 = vunpack.c.l.b16 %v3464
        %v4193 = vunpack.c.h.b16 %v3464
        %v4194 = vunpack.c.l.b16 %v3465
        %v4195 = vunpack.c.h.b16 %v3465
        %v4196 = vunpack.c.l.b16 %v3466
        %v4197 = vunpack.c.h.b16 %v3466
        %v4198 = vunpack.c.l.b16 %v3467
        %v4199 = vunpack.c.h.b16 %v3467
        %v4200 = vunpack.c.l.b16 %v3468
        %v4201 = vunpack.c.h.b16 %v3468
        %v4202 = vunpack.c.l.b16 %v3469
        %v4203 = vunpack.c.h.b16 %v3469
        %v4204 = vunpack.c.l.b16 %v3470
        %v4205 = vunpack.c.h.b16 %v3470
        %v4206 = vunpack.c.l.b16 %v3471
        %v4207 = vunpack.c.h.b16 %v3471
        %v4208 = vunpack.c.l.b16 %v3472
        %v4209 = vunpack.c.h.b16 %v3472
        %v4210 = vunpack.c.l.b16 %v3473
        %v4211 = vunpack.c.h.b16 %v3473
        %v4212 = vunpack.c.l.b16 %v3474
        %v4213 = vunpack.c.h.b16 %v3474
        %v4214 = vunpack.c.l.b16 %v3475
        %v4215 = vunpack.c.h.b16 %v3475
        %v4216 = vunpack.c.l.b16 %v3476
        %v4217 = vunpack.c.h.b16 %v3476
        %v4218 = vunpack.c.l.b16 %v3477
        %v4219 = vunpack.c.h.b16 %v3477
        %v4220 = vunpack.c.l.b16 %v3478
        %v4221 = vunpack.c.h.b16 %v3478
        %v4222 = vunpack.c.l.b16 %v3479
        %v4223 = vunpack.c.h.b16 %v3479
        %v4224 = vunpack.c.l.b16 %v3480
        %v4225 = vunpack.c.h.b16 %v3480
        %v4226 = vunpack.c.l.b16 %v3481
        %v4227 = vunpack.c.h.b16 %v3481
        %v4228 = vunpack.c.l.b16 %v3482
        %v4229 = vunpack.c.h.b16 %v3482
        %v4230 = vunpack.c.l.b16 %v3483
        %v4231 = vunpack.c.h.b16 %v3483
        %v4232 = vunpack.c.l.b16 %v3484
        %v4233 = vunpack.c.h.b16 %v3484
        %v4234 = vunpack.c.l.b16 %v3485
        %v4235 = vunpack.c.h.b16 %v3485
        %v4236 = vunpack.c.l.b16 %v3486
        %v4237 = vunpack.c.h.b16 %v3486
        %v4238 = vunpack.c.l.b16 %v3487
        %v4239 = vunpack.c.h.b16 %v3487
        %v4240 = vunpack.c.l.b16 %v3488
        %v4241 = vunpack.c.h.b16 %v3488
        %v4242 = vunpack.c.l.b16 %v3489
        %v4243 = vunpack.c.h.b16 %v3489
        %v4244 = vunpack.c.l.b16 %v3490
        %v4245 = vunpack.c.h.b16 %v3490
        %v4246 = vunpack.c.l.b16 %v3491
        %v4247 = vunpack.c.h.b16 %v3491
        %v4248 = vunpack.c.l.b16 %v3492
        %v4249 = vunpack.c.h.b16 %v3492
        %v4250 = vunpack.c.l.b16 %v3493
        %v4251 = vunpack.c.h.b16 %v3493
        %v4252 = vunpack.c.l.b16 %v3494
        %v4253 = vunpack.c.h.b16 %v3494
        %v4254 = vunpack.c.l.b16 %v3495
        %v4255 = vunpack.c.h.b16 %v3495
        %v4256 = vunpack.c.l.b16 %v3496
        %v4257 = vunpack.c.h.b16 %v3496
        %v4258 = vunpack.c.l.b16 %v3497
        %v4259 = vunpack.c.h.b16 %v3497
        %v4260 = vunpack.c.l.b16 %v3498
        %v4261 = vunpack.c.h.b16 %v3498
        %v4262 = vunpack.c.l.b16 %v3499
        %v4263 = vunpack.c.h.b16 %v3499
        %v4264 = vunpack.c.l.b16 %v3500
        %v4265 = vunpack.c.h.b16 %v3500
        %v4266 = vunpack.c.l.b16 %v3501
        %v4267 = vunpack.c.h.b16 %v3501
        %v4268 = vunpack.c.l.b16 %v3502
        %v4269 = vunpack.c.h.b16 %v3502
        %v4270 = vunpack.c.l.b16 %v3503
        %v4271 = vunpack.c.h.b16 %v3503
        %v4272 = vunpack.c.l.b16 %v3504
        %v4273 = vunpack.c.h.b16 %v3504
        %v4274 = vunpack.c.l.b16 %v3505
        %v4275 = vunpack.c.h.b16 %v3505
        %v4276 = vunpack.c.l.b16 %v3506
        %v4277 = vunpack.c.h.b16 %v3506
        %v4278 = vunpack.c.l.b16 %v3507
        %v4279 = vunpack.c.h.b16 %v3507
        %v4280 = vunpack.c.l.b16 %v3508
        %v4281 = vunpack.c.h.b16 %v3508
        %v4282 = vunpack.c.l.b16 %v3509
        %v4283 = vunpack.c.h.b16 %v3509
        %v4284 = vunpack.c.l.b16 %v3510
        %v4285 = vunpack.c.h.b16 %v3510
        %v4286 = vunpack.c.l.b16 %v3511
        %v4287 = vunpack.c.h.b16 %v3511
        %v4288 = vunpack.c.l.b16 %v3512
        %v4289 = vunpack.c.h.b16 %v3512
        %v4290 = vunpack.c.l.b16 %v3513
        %v4291 = vunpack.c.h.b16 %v3513
        %v4292 = vpack.c.b16 %v3784, %v3780
        %v4293 = vpack.c.b16 %v3785, %v3781
        %v4294 = vpack.c.b16 %v3786, %v3782
        %v4295 = vpack.c.b16 %v3787, %v3783
        %v4296 = vpack.c.b16 %v3792, %v3788
        %v4297 = vpack.c.b16 %v3793, %v3789
        %v4298 = vpack.c.b16 %v3794, %v3790
        %v4299 = vpack.c.b16 %v3795, %v3791
        %v4300 = vpack.c.b16 %v3800, %v3796
        %v4301 = vpack.c.b16 %v3801, %v3797
        %v4302 = vpack.c.b16 %v3802, %v3798
        %v4303 = vpack.c.b16 %v3803, %v3799
        %v4304 = vpack.c.b16 %v3808, %v3804
        %v4305 = vpack.c.b16 %v3809, %v3805
        %v4306 = vpack.c.b16 %v3810, %v3806
        %v4307 = vpack.c.b16 %v3811, %v3807
        %v4308 = vpack.c.b16 %v3816, %v3812
        %v4309 = vpack.c.b16 %v3817, %v3813
        %v4310 = vpack.c.b16 %v3818, %v3814
        %v4311 = vpack.c.b16 %v3819, %v3815
        %v4312 = vpack.c.b16 %v3824, %v3820
        %v4313 = vpack.c.b16 %v3825, %v3821
        %v4314 = vpack.c.b16 %v3826, %v3822
        %v4315 = vpack.c.b16 %v3827, %v3823
        %v4316 = vpack.c.b16 %v3832, %v3828
        %v4317 = vpack.c.b16 %v3833, %v3829
        %v4318 = vpack.c.b16 %v3834, %v3830
        %v4319 = vpack.c.b16 %v3835, %v3831
        %v4320 = vpack.c.b16 %v3840, %v3836
        %v4321 = vpack.c.b16 %v3841, %v3837
        %v4322 = vpack.c.b16 %v3842, %v3838
        %v4323 = vpack.c.b16 %v3843, %v3839
        %v4324 = vpack.c.b16 %v3848, %v3844
        %v4325 = vpack.c.b16 %v3849, %v3845
        %v4326 = vpack.c.b16 %v3850, %v3846
        %v4327 = vpack.c.b16 %v3851, %v3847
        %v4328 = vpack.c.b16 %v3856, %v3852
        %v4329 = vpack.c.b16 %v3857, %v3853
        %v4330 = vpack.c.b16 %v3858, %v3854
        %v4331 = vpack.c.b16 %v3859, %v3855
        %v4332 = vpack.c.b16 %v3864, %v3860
        %v4333 = vpack.c.b16 %v3865, %v3861
        %v4334 = vpack.c.b16 %v3866, %v3862
        %v4335 = vpack.c.b16 %v3867, %v3863
        %v4336 = vpack.c.b16 %v3872, %v3868
        %v4337 = vpack.c.b16 %v3873, %v3869
        %v4338 = vpack.c.b16 %v3874, %v3870
        %v4339 = vpack.c.b16 %v3875, %v3871
        %v4340 = vpack.c.b16 %v3880, %v3876
        %v4341 = vpack.c.b16 %v3881, %v3877
        %v4342 = vpack.c.b16 %v3882, %v3878
        %v4343 = vpack.c.b16 %v3883, %v3879
        %v4344 = vpack.c.b16 %v3888, %v3884
        %v4345 = vpack.c.b16 %v3889, %v3885
        %v4346 = vpack.c.b16 %v3890, %v3886
        %v4347 = vpack.c.b16 %v3891, %v3887
        %v4348 = vpack.c.b16 %v3896, %v3892
        %v4349 = vpack.c.b16 %v3897, %v3893
        %v4350 = vpack.c.b16 %v3898, %v3894
        %v4351 = vpack.c.b16 %v3899, %v3895
        %v4352 = vpack.c.b16 %v3904, %v3900
        %v4353 = vpack.c.b16 %v3905, %v3901
        %v4354 = vpack.c.b16 %v3906, %v3902
        %v4355 = vpack.c.b16 %v3907, %v3903
        %v4356 = vpack.c.b16 %v3912, %v3908
        %v4357 = vpack.c.b16 %v3913, %v3909
        %v4358 = vpack.c.b16 %v3914, %v3910
        %v4359 = vpack.c.b16 %v3915, %v3911
        %v4360 = vpack.c.b16 %v3920, %v3916
        %v4361 = vpack.c.b16 %v3921, %v3917
        %v4362 = vpack.c.b16 %v3922, %v3918
        %v4363 = vpack.c.b16 %v3923, %v3919
        %v4364 = vpack.c.b16 %v3928, %v3924
        %v4365 = vpack.c.b16 %v3929, %v3925
        %v4366 = vpack.c.b16 %v3930, %v3926
        %v4367 = vpack.c.b16 %v3931, %v3927
        %v4368 = vpack.c.b16 %v3936, %v3932
        %v4369 = vpack.c.b16 %v3937, %v3933
        %v4370 = vpack.c.b16 %v3938, %v3934
        %v4371 = vpack.c.b16 %v3939, %v3935
        %v4372 = vpack.c.b16 %v3944, %v3940
        %v4373 = vpack.c.b16 %v3945, %v3941
        %v4374 = vpack.c.b16 %v3946, %v3942
        %v4375 = vpack.c.b16 %v3947, %v3943
        %v4376 = vpack.c.b16 %v3952, %v3948
        %v4377 = vpack.c.b16 %v3953, %v3949
        %v4378 = vpack.c.b16 %v3954, %v3950
        %v4379 = vpack.c.b16 %v3955, %v3951
        %v4380 = vpack.c.b16 %v3960, %v3956
        %v4381 = vpack.c.b16 %v3961, %v3957
        %v4382 = vpack.c.b16 %v3962, %v3958
        %v4383 = vpack.c.b16 %v3963, %v3959
        %v4384 = vpack.c.b16 %v3968, %v3964
        %v4385 = vpack.c.b16 %v3969, %v3965
        %v4386 = vpack.c.b16 %v3970, %v3966
        %v4387 = vpack.c.b16 %v3971, %v3967
        %v4388 = vpack.c.b16 %v3976, %v3972
        %v4389 = vpack.c.b16 %v3977, %v3973
        %v4390 = vpack.c.b16 %v3978, %v3974
        %v4391 = vpack.c.b16 %v3979, %v3975
        %v4392 = vpack.c.b16 %v3984, %v3980
        %v4393 = vpack.c.b16 %v3985, %v3981
        %v4394 = vpack.c.b16 %v3986, %v3982
        %v4395 = vpack.c.b16 %v3987, %v3983
        %v4396 = vpack.c.b16 %v3992, %v3988
        %v4397 = vpack.c.b16 %v3993, %v3989
        %v4398 = vpack.c.b16 %v3994, %v3990
        %v4399 = vpack.c.b16 %v3995, %v3991
        %v4400 = vpack.c.b16 %v4000, %v3996
        %v4401 = vpack.c.b16 %v4001, %v3997
        %v4402 = vpack.c.b16 %v4002, %v3998
        %v4403 = vpack.c.b16 %v4003, %v3999
        %v4404 = vpack.c.b16 %v4008, %v4004
        %v4405 = vpack.c.b16 %v4009, %v4005
        %v4406 = vpack.c.b16 %v4010, %v4006
        %v4407 = vpack.c.b16 %v4011, %v4007
        %v4408 = vpack.c.b16 %v4016, %v4012
        %v4409 = vpack.c.b16 %v4017, %v4013
        %v4410 = vpack.c.b16 %v4018, %v4014
        %v4411 = vpack.c.b16 %v4019, %v4015
        %v4412 = vpack.c.b16 %v4024, %v4020
        %v4413 = vpack.c.b16 %v4025, %v4021
        %v4414 = vpack.c.b16 %v4026, %v4022
        %v4415 = vpack.c.b16 %v4027, %v4023
        %v4416 = vpack.c.b16 %v4032, %v4028
        %v4417 = vpack.c.b16 %v4033, %v4029
        %v4418 = vpack.c.b16 %v4034, %v4030
        %v4419 = vpack.c.b16 %v4035, %v4031
        %v4420 = vpack.c.b16 %v4040, %v4036
        %v4421 = vpack.c.b16 %v4041, %v4037
        %v4422 = vpack.c.b16 %v4042, %v4038
        %v4423 = vpack.c.b16 %v4043, %v4039
        %v4424 = vpack.c.b16 %v4048, %v4044
        %v4425 = vpack.c.b16 %v4049, %v4045
        %v4426 = vpack.c.b16 %v4050, %v4046
        %v4427 = vpack.c.b16 %v4051, %v4047
        %v4428 = vpack.c.b16 %v4056, %v4052
        %v4429 = vpack.c.b16 %v4057, %v4053
        %v4430 = vpack.c.b16 %v4058, %v4054
        %v4431 = vpack.c.b16 %v4059, %v4055
        %v4432 = vpack.c.b16 %v4064, %v4060
        %v4433 = vpack.c.b16 %v4065, %v4061
        %v4434 = vpack.c.b16 %v4066, %v4062
        %v4435 = vpack.c.b16 %v4067, %v4063
        %v4436 = vpack.c.b16 %v4072, %v4068
        %v4437 = vpack.c.b16 %v4073, %v4069
        %v4438 = vpack.c.b16 %v4074, %v4070
        %v4439 = vpack.c.b16 %v4075, %v4071
        %v4440 = vpack.c.b16 %v4080, %v4076
        %v4441 = vpack.c.b16 %v4081, %v4077
        %v4442 = vpack.c.b16 %v4082, %v4078
        %v4443 = vpack.c.b16 %v4083, %v4079
        %v4444 = vpack.c.b16 %v4088, %v4084
        %v4445 = vpack.c.b16 %v4089, %v4085
        %v4446 = vpack.c.b16 %v4090, %v4086
        %v4447 = vpack.c.b16 %v4091, %v4087
        %v4448 = vpack.c.b16 %v4096, %v4092
        %v4449 = vpack.c.b16 %v4097, %v4093
        %v4450 = vpack.c.b16 %v4098, %v4094
        %v4451 = vpack.c.b16 %v4099, %v4095
        %v4452 = vpack.c.b16 %v4104, %v4100
        %v4453 = vpack.c.b16 %v4105, %v4101
        %v4454 = vpack.c.b16 %v4106, %v4102
        %v4455 = vpack.c.b16 %v4107, %v4103
        %v4456 = vpack.c.b16 %v4112, %v4108
        %v4457 = vpack.c.b16 %v4113, %v4109
        %v4458 = vpack.c.b16 %v4114, %v4110
        %v4459 = vpack.c.b16 %v4115, %v4111
        %v4460 = vpack.c.b16 %v4120, %v4116
        %v4461 = vpack.c.b16 %v4121, %v4117
        %v4462 = vpack.c.b16 %v4122, %v4118
        %v4463 = vpack.c.b16 %v4123, %v4119
        %v4464 = vpack.c.b16 %v4128, %v4124
        %v4465 = vpack.c.b16 %v4129, %v4125
        %v4466 = vpack.c.b16 %v4130, %v4126
        %v4467 = vpack.c.b16 %v4131, %v4127
        %v4468 = vpack.c.b16 %v4136, %v4132
        %v4469 = vpack.c.b16 %v4137, %v4133
        %v4470 = vpack.c.b16 %v4138, %v4134
        %v4471 = vpack.c.b16 %v4139, %v4135
        %v4472 = vpack.c.b16 %v4144, %v4140
        %v4473 = vpack.c.b16 %v4145, %v4141
        %v4474 = vpack.c.b16 %v4146, %v4142
        %v4475 = vpack.c.b16 %v4147, %v4143
        %v4476 = vpack.c.b16 %v4152, %v4148
        %v4477 = vpack.c.b16 %v4153, %v4149
        %v4478 = vpack.c.b16 %v4154, %v4150
        %v4479 = vpack.c.b16 %v4155, %v4151
        %v4480 = vpack.c.b16 %v4160, %v4156
        %v4481 = vpack.c.b16 %v4161, %v4157
        %v4482 = vpack.c.b16 %v4162, %v4158
        %v4483 = vpack.c.b16 %v4163, %v4159
        %v4484 = vpack.c.b16 %v4168, %v4164
        %v4485 = vpack.c.b16 %v4169, %v4165
        %v4486 = vpack.c.b16 %v4170, %v4166
        %v4487 = vpack.c.b16 %v4171, %v4167
        %v4488 = vpack.c.b16 %v4176, %v4172
        %v4489 = vpack.c.b16 %v4177, %v4173
        %v4490 = vpack.c.b16 %v4178, %v4174
        %v4491 = vpack.c.b16 %v4179, %v4175
        %v4492 = vpack.c.b16 %v4184, %v4180
        %v4493 = vpack.c.b16 %v4185, %v4181
        %v4494 = vpack.c.b16 %v4186, %v4182
        %v4495 = vpack.c.b16 %v4187, %v4183
        %v4496 = vpack.c.b16 %v4192, %v4188
        %v4497 = vpack.c.b16 %v4193, %v4189
        %v4498 = vpack.c.b16 %v4194, %v4190
        %v4499 = vpack.c.b16 %v4195, %v4191
        %v4500 = vpack.c.b16 %v4200, %v4196
        %v4501 = vpack.c.b16 %v4201, %v4197
        %v4502 = vpack.c.b16 %v4202, %v4198
        %v4503 = vpack.c.b16 %v4203, %v4199
        %v4504 = vpack.c.b16 %v4208, %v4204
        %v4505 = vpack.c.b16 %v4209, %v4205
        %v4506 = vpack.c.b16 %v4210, %v4206
        %v4507 = vpack.c.b16 %v4211, %v4207
        %v4508 = vpack.c.b16 %v4216, %v4212
        %v4509 = vpack.c.b16 %v4217, %v4213
        %v4510 = vpack.c.b16 %v4218, %v4214
        %v4511 = vpack.c.b16 %v4219, %v4215
        %v4512 = vpack.c.b16 %v4224, %v4220
        %v4513 = vpack.c.b16 %v4225, %v4221
        %v4514 = vpack.c.b16 %v4226, %v4222
        %v4515 = vpack.c.b16 %v4227, %v4223
        %v4516 = vpack.c.b16 %v4232, %v4228
        %v4517 = vpack.c.b16 %v4233, %v4229
        %v4518 = vpack.c.b16 %v4234, %v4230
        %v4519 = vpack.c.b16 %v4235, %v4231
        %v4520 = vpack.c.b16 %v4240, %v4236
        %v4521 = vpack.c.b16 %v4241, %v4237
        %v4522 = vpack.c.b16 %v4242, %v4238
        %v4523 = vpack.c.b16 %v4243, %v4239
        %v4524 = vpack.c.b16 %v4248, %v4244
        %v4525 = vpack.c.b16 %v4249, %v4245
        %v4526 = vpack.c.b16 %v4250, %v4246
        %v4527 = vpack.c.b16 %v4251, %v4247
        %v4528 = vpack.c.b16 %v4256, %v4252
        %v4529 = vpack.c.b16 %v4257, %v4253
        %v4530 = vpack.c.b16 %v4258, %v4254
        %v4531 = vpack.c.b16 %v4259, %v4255
        %v4532 = vpack.c.b16 %v4264, %v4260
        %v4533 = vpack.c.b16 %v4265, %v4261
        %v4534 = vpack.c.b16 %v4266, %v4262
        %v4535 = vpack.c.b16 %v4267, %v4263
        %v4536 = vpack.c.b16 %v4272, %v4268
        %v4537 = vpack.c.b16 %v4273, %v4269
        %v4538 = vpack.c.b16 %v4274, %v4270
        %v4539 = vpack.c.b16 %v4275, %v4271
        %v4540 = vpack.c.b16 %v4280, %v4276
        %v4541 = vpack.c.b16 %v4281, %v4277
        %v4542 = vpack.c.b16 %v4282, %v4278
        %v4543 = vpack.c.b16 %v4283, %v4279
        %v4544 = vpack.c.b16 %v4288, %v4284
        %v4545 = vpack.c.b16 %v4289, %v4285
        %v4546 = vpack.c.b16 %v4290, %v4286
        %v4547 = vpack.c.b16 %v4291, %v4287
        %4804 = vmatpush.bf16.msra.mxu0 %v4320
        %4805 = vmatpush.bf16.msra.mxu0 %v4316
        %4806 = vmatpush.bf16.msra.mxu0 %v4312
        %4807 = vmatpush.bf16.msra.mxu0 %v4308
        %4808 = vmatpush.bf16.msra.mxu0 %v4304
        %4809 = vmatpush.bf16.msra.mxu0 %v4300
        %4810 = vmatpush.bf16.msra.mxu0 %v4296
        %4811 = vmatpush.bf16.msra.mxu0 %v4292
        %4812 = vmatmul.bf16.gmra.mxu0 %v3242
        %v4813 = vpop.f32.mrf.mxu0
        %v4814 = vadd.f32 %v3516, %v4813
        %v4815 = vpop.f32.mrf.mxu0
        %v4816 = vadd.f32 %v3516, %v4815
        %4817 = vmatmul.bf16.gmra.mxu0 %v3250
        %v4818 = vpop.f32.mrf.mxu0
        %v4819 = vadd.f32 %v3516, %v4818
        %v4820 = vpop.f32.mrf.mxu0
        %v4821 = vadd.f32 %v3516, %v4820
        %4822 = vdwg.mxu0
        %4823 = vmatpush.bf16.msra.mxu0 %v4352
        %4824 = vmatpush.bf16.msra.mxu0 %v4348
        %4825 = vmatpush.bf16.msra.mxu0 %v4344
        %4826 = vmatpush.bf16.msra.mxu0 %v4340
        %4827 = vmatpush.bf16.msra.mxu0 %v4336
        %4828 = vmatpush.bf16.msra.mxu0 %v4332
        %4829 = vmatpush.bf16.msra.mxu0 %v4328
        %4830 = vmatpush.bf16.msra.mxu0 %v4324
        %4831 = vmatmul.bf16.gmra.mxu0 %v3243
        %v4832 = vpop.f32.mrf.mxu0
        %v4833 = vadd.f32 %v4814, %v4832
        %v4834 = vpop.f32.mrf.mxu0
        %v4835 = vadd.f32 %v4816, %v4834
        %4836 = vmatmul.bf16.gmra.mxu0 %v3251
        %v4837 = vpop.f32.mrf.mxu0
        %v4838 = vadd.f32 %v4819, %v4837
        %v4839 = vpop.f32.mrf.mxu0
        %v4840 = vadd.f32 %v4821, %v4839
        %4841 = vdwg.mxu0
        %4842 = vmatpush.bf16.msra.mxu0 %v4384
        %4843 = vmatpush.bf16.msra.mxu0 %v4380
        %4844 = vmatpush.bf16.msra.mxu0 %v4376
        %4845 = vmatpush.bf16.msra.mxu0 %v4372
        %4846 = vmatpush.bf16.msra.mxu0 %v4368
        %4847 = vmatpush.bf16.msra.mxu0 %v4364
        %4848 = vmatpush.bf16.msra.mxu0 %v4360
        %4849 = vmatpush.bf16.msra.mxu0 %v4356
        %4850 = vmatmul.bf16.gmra.mxu0 %v3244
        %v4851 = vpop.f32.mrf.mxu0
        %v4852 = vadd.f32 %v4833, %v4851
        %v4853 = vpop.f32.mrf.mxu0
        %v4854 = vadd.f32 %v4835, %v4853
        %4855 = vmatmul.bf16.gmra.mxu0 %v3252
        %v4856 = vpop.f32.mrf.mxu0
        %v4857 = vadd.f32 %v4838, %v4856
        %v4858 = vpop.f32.mrf.mxu0
        %v4859 = vadd.f32 %v4840, %v4858
        %4860 = vdwg.mxu0
        %4861 = vmatpush.bf16.msra.mxu0 %v4416
        %4862 = vmatpush.bf16.msra.mxu0 %v4412
        %4863 = vmatpush.bf16.msra.mxu0 %v4408
        %4864 = vmatpush.bf16.msra.mxu0 %v4404
        %4865 = vmatpush.bf16.msra.mxu0 %v4400
        %4866 = vmatpush.bf16.msra.mxu0 %v4396
        %4867 = vmatpush.bf16.msra.mxu0 %v4392
        %4868 = vmatpush.bf16.msra.mxu0 %v4388
        %4869 = vmatmul.bf16.gmra.mxu0 %v3245
        %v4870 = vpop.f32.mrf.mxu0
        %v4871 = vadd.f32 %v4852, %v4870
        %v4872 = vpop.f32.mrf.mxu0
        %v4873 = vadd.f32 %v4854, %v4872
        %4874 = vmatmul.bf16.gmra.mxu0 %v3253
        %v4875 = vpop.f32.mrf.mxu0
        %v4876 = vadd.f32 %v4857, %v4875
        %v4877 = vpop.f32.mrf.mxu0
        %v4878 = vadd.f32 %v4859, %v4877
        %4879 = vdwg.mxu0
        %4880 = vmatpush.bf16.msra.mxu0 %v4448
        %4881 = vmatpush.bf16.msra.mxu0 %v4444
        %4882 = vmatpush.bf16.msra.mxu0 %v4440
        %4883 = vmatpush.bf16.msra.mxu0 %v4436
        %4884 = vmatpush.bf16.msra.mxu0 %v4432
        %4885 = vmatpush.bf16.msra.mxu0 %v4428
        %4886 = vmatpush.bf16.msra.mxu0 %v4424
        %4887 = vmatpush.bf16.msra.mxu0 %v4420
        %4888 = vmatmul.bf16.gmra.mxu0 %v3246
        %v4889 = vpop.f32.mrf.mxu0
        %v4890 = vadd.f32 %v4871, %v4889
        %v4891 = vpop.f32.mrf.mxu0
        %v4892 = vadd.f32 %v4873, %v4891
        %4893 = vmatmul.bf16.gmra.mxu0 %v3254
        %v4894 = vpop.f32.mrf.mxu0
        %v4895 = vadd.f32 %v4876, %v4894
        %v4896 = vpop.f32.mrf.mxu0
        %v4897 = vadd.f32 %v4878, %v4896
        %4898 = vdwg.mxu0
        %4899 = vmatpush.bf16.msra.mxu0 %v4480
        %4900 = vmatpush.bf16.msra.mxu0 %v4476
        %4901 = vmatpush.bf16.msra.mxu0 %v4472
        %4902 = vmatpush.bf16.msra.mxu0 %v4468
        %4903 = vmatpush.bf16.msra.mxu0 %v4464
        %4904 = vmatpush.bf16.msra.mxu0 %v4460
        %4905 = vmatpush.bf16.msra.mxu0 %v4456
        %4906 = vmatpush.bf16.msra.mxu0 %v4452
        %4907 = vmatmul.bf16.gmra.mxu0 %v3247
        %v4908 = vpop.f32.mrf.mxu0
        %v4909 = vadd.f32 %v4890, %v4908
        %v4910 = vpop.f32.mrf.mxu0
        %v4911 = vadd.f32 %v4892, %v4910
        %4912 = vmatmul.bf16.gmra.mxu0 %v3255
        %v4913 = vpop.f32.mrf.mxu0
        %v4914 = vadd.f32 %v4895, %v4913
        %v4915 = vpop.f32.mrf.mxu0
        %v4916 = vadd.f32 %v4897, %v4915
        %4917 = vdwg.mxu0
        %4918 = vmatpush.bf16.msra.mxu0 %v4512
        %4919 = vmatpush.bf16.msra.mxu0 %v4508
        %4920 = vmatpush.bf16.msra.mxu0 %v4504
        %4921 = vmatpush.bf16.msra.mxu0 %v4500
        %4922 = vmatpush.bf16.msra.mxu0 %v4496
        %4923 = vmatpush.bf16.msra.mxu0 %v4492
        %4924 = vmatpush.bf16.msra.mxu0 %v4488
        %4925 = vmatpush.bf16.msra.mxu0 %v4484
        %4926 = vmatmul.bf16.gmra.mxu0 %v3248
        %v4927 = vpop.f32.mrf.mxu0
        %v4928 = vadd.f32 %v4909, %v4927
        %v4929 = vpop.f32.mrf.mxu0
        %v4930 = vadd.f32 %v4911, %v4929
        %4931 = vmatmul.bf16.gmra.mxu0 %v3256
        %v4932 = vpop.f32.mrf.mxu0
        %v4933 = vadd.f32 %v4914, %v4932
        %v4934 = vpop.f32.mrf.mxu0
        %v4935 = vadd.f32 %v4916, %v4934
        %4936 = vdwg.mxu0
        %4937 = vmatpush.bf16.msra.mxu0 %v4544
        %4938 = vmatpush.bf16.msra.mxu0 %v4540
        %4939 = vmatpush.bf16.msra.mxu0 %v4536
        %4940 = vmatpush.bf16.msra.mxu0 %v4532
        %4941 = vmatpush.bf16.msra.mxu0 %v4528
        %4942 = vmatpush.bf16.msra.mxu0 %v4524
        %4943 = vmatpush.bf16.msra.mxu0 %v4520
        %4944 = vmatpush.bf16.msra.mxu0 %v4516
        %4945 = vmatmul.bf16.gmra.mxu0 %v3249
        %v4946 = vpop.f32.mrf.mxu0
        %v4947 = vadd.f32 %v4928, %v4946
        %v4948 = vpop.f32.mrf.mxu0
        %v4949 = vadd.f32 %v4930, %v4948
        %4950 = vmatmul.bf16.gmra.mxu0 %v3257
        %v4951 = vpop.f32.mrf.mxu0
        %v4952 = vadd.f32 %v4933, %v4951
        %v4953 = vpop.f32.mrf.mxu0
        %v4954 = vadd.f32 %v4935, %v4953
        %4955 = vdwg.mxu0
        %4956 = vmatpush.bf16.msra.mxu0 %v4321
        %4957 = vmatpush.bf16.msra.mxu0 %v4317
        %4958 = vmatpush.bf16.msra.mxu0 %v4313
        %4959 = vmatpush.bf16.msra.mxu0 %v4309
        %4960 = vmatpush.bf16.msra.mxu0 %v4305
        %4961 = vmatpush.bf16.msra.mxu0 %v4301
        %4962 = vmatpush.bf16.msra.mxu0 %v4297
        %4963 = vmatpush.bf16.msra.mxu0 %v4293
        %4964 = vmatmul.bf16.gmra.mxu0 %v3242
        %v4965 = vpop.f32.mrf.mxu0
        %v4966 = vadd.f32 %v3517, %v4965
        %v4967 = vpop.f32.mrf.mxu0
        %v4968 = vadd.f32 %v3517, %v4967
        %4969 = vmatmul.bf16.gmra.mxu0 %v3250
        %v4970 = vpop.f32.mrf.mxu0
        %v4971 = vadd.f32 %v3517, %v4970
        %v4972 = vpop.f32.mrf.mxu0
        %v4973 = vadd.f32 %v3517, %v4972
        %4974 = vdwg.mxu0
        %4975 = vmatpush.bf16.msra.mxu0 %v4353
        %4976 = vmatpush.bf16.msra.mxu0 %v4349
        %4977 = vmatpush.bf16.msra.mxu0 %v4345
        %4978 = vmatpush.bf16.msra.mxu0 %v4341
        %4979 = vmatpush.bf16.msra.mxu0 %v4337
        %4980 = vmatpush.bf16.msra.mxu0 %v4333
        %4981 = vmatpush.bf16.msra.mxu0 %v4329
        %4982 = vmatpush.bf16.msra.mxu0 %v4325
        %4983 = vmatmul.bf16.gmra.mxu0 %v3243
        %v4984 = vpop.f32.mrf.mxu0
        %v4985 = vadd.f32 %v4966, %v4984
        %v4986 = vpop.f32.mrf.mxu0
        %v4987 = vadd.f32 %v4968, %v4986
        %4988 = vmatmul.bf16.gmra.mxu0 %v3251
        %v4989 = vpop.f32.mrf.mxu0
        %v4990 = vadd.f32 %v4971, %v4989
        %v4991 = vpop.f32.mrf.mxu0
        %v4992 = vadd.f32 %v4973, %v4991
        %4993 = vdwg.mxu0
        %4994 = vmatpush.bf16.msra.mxu0 %v4385
        %4995 = vmatpush.bf16.msra.mxu0 %v4381
        %4996 = vmatpush.bf16.msra.mxu0 %v4377
        %4997 = vmatpush.bf16.msra.mxu0 %v4373
        %4998 = vmatpush.bf16.msra.mxu0 %v4369
        %4999 = vmatpush.bf16.msra.mxu0 %v4365
        %5000 = vmatpush.bf16.msra.mxu0 %v4361
        %5001 = vmatpush.bf16.msra.mxu0 %v4357
        %5002 = vmatmul.bf16.gmra.mxu0 %v3244
        %v5003 = vpop.f32.mrf.mxu0
        %v5004 = vadd.f32 %v4985, %v5003
        %v5005 = vpop.f32.mrf.mxu0
        %v5006 = vadd.f32 %v4987, %v5005
        %5007 = vmatmul.bf16.gmra.mxu0 %v3252
        %v5008 = vpop.f32.mrf.mxu0
        %v5009 = vadd.f32 %v4990, %v5008
        %v5010 = vpop.f32.mrf.mxu0
        %v5011 = vadd.f32 %v4992, %v5010
        %5012 = vdwg.mxu0
        %5013 = vmatpush.bf16.msra.mxu0 %v4417
        %5014 = vmatpush.bf16.msra.mxu0 %v4413
        %5015 = vmatpush.bf16.msra.mxu0 %v4409
        %5016 = vmatpush.bf16.msra.mxu0 %v4405
        %5017 = vmatpush.bf16.msra.mxu0 %v4401
        %5018 = vmatpush.bf16.msra.mxu0 %v4397
        %5019 = vmatpush.bf16.msra.mxu0 %v4393
        %5020 = vmatpush.bf16.msra.mxu0 %v4389
        %5021 = vmatmul.bf16.gmra.mxu0 %v3245
        %v5022 = vpop.f32.mrf.mxu0
        %v5023 = vadd.f32 %v5004, %v5022
        %v5024 = vpop.f32.mrf.mxu0
        %v5025 = vadd.f32 %v5006, %v5024
        %5026 = vmatmul.bf16.gmra.mxu0 %v3253
        %v5027 = vpop.f32.mrf.mxu0
        %v5028 = vadd.f32 %v5009, %v5027
        %v5029 = vpop.f32.mrf.mxu0
        %v5030 = vadd.f32 %v5011, %v5029
        %5031 = vdwg.mxu0
        %5032 = vmatpush.bf16.msra.mxu0 %v4449
        %5033 = vmatpush.bf16.msra.mxu0 %v4445
        %5034 = vmatpush.bf16.msra.mxu0 %v4441
        %5035 = vmatpush.bf16.msra.mxu0 %v4437
        %5036 = vmatpush.bf16.msra.mxu0 %v4433
        %5037 = vmatpush.bf16.msra.mxu0 %v4429
        %5038 = vmatpush.bf16.msra.mxu0 %v4425
        %5039 = vmatpush.bf16.msra.mxu0 %v4421
        %5040 = vmatmul.bf16.gmra.mxu0 %v3246
        %v5041 = vpop.f32.mrf.mxu0
        %v5042 = vadd.f32 %v5023, %v5041
        %v5043 = vpop.f32.mrf.mxu0
        %v5044 = vadd.f32 %v5025, %v5043
        %5045 = vmatmul.bf16.gmra.mxu0 %v3254
        %v5046 = vpop.f32.mrf.mxu0
        %v5047 = vadd.f32 %v5028, %v5046
        %v5048 = vpop.f32.mrf.mxu0
        %v5049 = vadd.f32 %v5030, %v5048
        %5050 = vdwg.mxu0
        %5051 = vmatpush.bf16.msra.mxu0 %v4481
        %5052 = vmatpush.bf16.msra.mxu0 %v4477
        %5053 = vmatpush.bf16.msra.mxu0 %v4473
        %5054 = vmatpush.bf16.msra.mxu0 %v4469
        %5055 = vmatpush.bf16.msra.mxu0 %v4465
        %5056 = vmatpush.bf16.msra.mxu0 %v4461
        %5057 = vmatpush.bf16.msra.mxu0 %v4457
        %5058 = vmatpush.bf16.msra.mxu0 %v4453
        %5059 = vmatmul.bf16.gmra.mxu0 %v3247
        %v5060 = vpop.f32.mrf.mxu0
        %v5061 = vadd.f32 %v5042, %v5060
        %v5062 = vpop.f32.mrf.mxu0
        %v5063 = vadd.f32 %v5044, %v5062
        %5064 = vmatmul.bf16.gmra.mxu0 %v3255
        %v5065 = vpop.f32.mrf.mxu0
        %v5066 = vadd.f32 %v5047, %v5065
        %v5067 = vpop.f32.mrf.mxu0
        %v5068 = vadd.f32 %v5049, %v5067
        %5069 = vdwg.mxu0
        %5070 = vmatpush.bf16.msra.mxu0 %v4513
        %5071 = vmatpush.bf16.msra.mxu0 %v4509
        %5072 = vmatpush.bf16.msra.mxu0 %v4505
        %5073 = vmatpush.bf16.msra.mxu0 %v4501
        %5074 = vmatpush.bf16.msra.mxu0 %v4497
        %5075 = vmatpush.bf16.msra.mxu0 %v4493
        %5076 = vmatpush.bf16.msra.mxu0 %v4489
        %5077 = vmatpush.bf16.msra.mxu0 %v4485
        %5078 = vmatmul.bf16.gmra.mxu0 %v3248
        %v5079 = vpop.f32.mrf.mxu0
        %v5080 = vadd.f32 %v5061, %v5079
        %v5081 = vpop.f32.mrf.mxu0
        %v5082 = vadd.f32 %v5063, %v5081
        %5083 = vmatmul.bf16.gmra.mxu0 %v3256
        %v5084 = vpop.f32.mrf.mxu0
        %v5085 = vadd.f32 %v5066, %v5084
        %v5086 = vpop.f32.mrf.mxu0
        %v5087 = vadd.f32 %v5068, %v5086
        %5088 = vdwg.mxu0
        %5089 = vmatpush.bf16.msra.mxu0 %v4545
        %5090 = vmatpush.bf16.msra.mxu0 %v4541
        %5091 = vmatpush.bf16.msra.mxu0 %v4537
        %5092 = vmatpush.bf16.msra.mxu0 %v4533
        %5093 = vmatpush.bf16.msra.mxu0 %v4529
        %5094 = vmatpush.bf16.msra.mxu0 %v4525
        %5095 = vmatpush.bf16.msra.mxu0 %v4521
        %5096 = vmatpush.bf16.msra.mxu0 %v4517
        %5097 = vmatmul.bf16.gmra.mxu0 %v3249
        %v5098 = vpop.f32.mrf.mxu0
        %v5099 = vadd.f32 %v5080, %v5098
        %v5100 = vpop.f32.mrf.mxu0
        %v5101 = vadd.f32 %v5082, %v5100
        %5102 = vmatmul.bf16.gmra.mxu0 %v3257
        %v5103 = vpop.f32.mrf.mxu0
        %v5104 = vadd.f32 %v5085, %v5103
        %v5105 = vpop.f32.mrf.mxu0
        %v5106 = vadd.f32 %v5087, %v5105
        %5107 = vdwg.mxu0
        %5108 = vmatpush.bf16.msra.mxu0 %v4322
        %5109 = vmatpush.bf16.msra.mxu0 %v4318
        %5110 = vmatpush.bf16.msra.mxu0 %v4314
        %5111 = vmatpush.bf16.msra.mxu0 %v4310
        %5112 = vmatpush.bf16.msra.mxu0 %v4306
        %5113 = vmatpush.bf16.msra.mxu0 %v4302
        %5114 = vmatpush.bf16.msra.mxu0 %v4298
        %5115 = vmatpush.bf16.msra.mxu0 %v4294
        %5116 = vmatmul.bf16.gmra.mxu0 %v3242
        %v5117 = vpop.f32.mrf.mxu0
        %v5118 = vadd.f32 %v3518, %v5117
        %v5119 = vpop.f32.mrf.mxu0
        %v5120 = vadd.f32 %v3518, %v5119
        %5121 = vmatmul.bf16.gmra.mxu0 %v3250
        %v5122 = vpop.f32.mrf.mxu0
        %v5123 = vadd.f32 %v3518, %v5122
        %v5124 = vpop.f32.mrf.mxu0
        %v5125 = vadd.f32 %v3518, %v5124
        %5126 = vdwg.mxu0
        %5127 = vmatpush.bf16.msra.mxu0 %v4354
        %5128 = vmatpush.bf16.msra.mxu0 %v4350
        %5129 = vmatpush.bf16.msra.mxu0 %v4346
        %5130 = vmatpush.bf16.msra.mxu0 %v4342
        %5131 = vmatpush.bf16.msra.mxu0 %v4338
        %5132 = vmatpush.bf16.msra.mxu0 %v4334
        %5133 = vmatpush.bf16.msra.mxu0 %v4330
        %5134 = vmatpush.bf16.msra.mxu0 %v4326
        %5135 = vmatmul.bf16.gmra.mxu0 %v3243
        %v5136 = vpop.f32.mrf.mxu0
        %v5137 = vadd.f32 %v5118, %v5136
        %v5138 = vpop.f32.mrf.mxu0
        %v5139 = vadd.f32 %v5120, %v5138
        %5140 = vmatmul.bf16.gmra.mxu0 %v3251
        %v5141 = vpop.f32.mrf.mxu0
        %v5142 = vadd.f32 %v5123, %v5141
        %v5143 = vpop.f32.mrf.mxu0
        %v5144 = vadd.f32 %v5125, %v5143
        %5145 = vdwg.mxu0
        %5146 = vmatpush.bf16.msra.mxu0 %v4386
        %5147 = vmatpush.bf16.msra.mxu0 %v4382
        %5148 = vmatpush.bf16.msra.mxu0 %v4378
        %5149 = vmatpush.bf16.msra.mxu0 %v4374
        %5150 = vmatpush.bf16.msra.mxu0 %v4370
        %5151 = vmatpush.bf16.msra.mxu0 %v4366
        %5152 = vmatpush.bf16.msra.mxu0 %v4362
        %5153 = vmatpush.bf16.msra.mxu0 %v4358
        %5154 = vmatmul.bf16.gmra.mxu0 %v3244
        %v5155 = vpop.f32.mrf.mxu0
        %v5156 = vadd.f32 %v5137, %v5155
        %v5157 = vpop.f32.mrf.mxu0
        %v5158 = vadd.f32 %v5139, %v5157
        %5159 = vmatmul.bf16.gmra.mxu0 %v3252
        %v5160 = vpop.f32.mrf.mxu0
        %v5161 = vadd.f32 %v5142, %v5160
        %v5162 = vpop.f32.mrf.mxu0
        %v5163 = vadd.f32 %v5144, %v5162
        %5164 = vdwg.mxu0
        %5165 = vmatpush.bf16.msra.mxu0 %v4418
        %5166 = vmatpush.bf16.msra.mxu0 %v4414
        %5167 = vmatpush.bf16.msra.mxu0 %v4410
        %5168 = vmatpush.bf16.msra.mxu0 %v4406
        %5169 = vmatpush.bf16.msra.mxu0 %v4402
        %5170 = vmatpush.bf16.msra.mxu0 %v4398
        %5171 = vmatpush.bf16.msra.mxu0 %v4394
        %5172 = vmatpush.bf16.msra.mxu0 %v4390
        %5173 = vmatmul.bf16.gmra.mxu0 %v3245
        %v5174 = vpop.f32.mrf.mxu0
        %v5175 = vadd.f32 %v5156, %v5174
        %v5176 = vpop.f32.mrf.mxu0
        %v5177 = vadd.f32 %v5158, %v5176
        %5178 = vmatmul.bf16.gmra.mxu0 %v3253
        %v5179 = vpop.f32.mrf.mxu0
        %v5180 = vadd.f32 %v5161, %v5179
        %v5181 = vpop.f32.mrf.mxu0
        %v5182 = vadd.f32 %v5163, %v5181
        %5183 = vdwg.mxu0
        %5184 = vmatpush.bf16.msra.mxu0 %v4450
        %5185 = vmatpush.bf16.msra.mxu0 %v4446
        %5186 = vmatpush.bf16.msra.mxu0 %v4442
        %5187 = vmatpush.bf16.msra.mxu0 %v4438
        %5188 = vmatpush.bf16.msra.mxu0 %v4434
        %5189 = vmatpush.bf16.msra.mxu0 %v4430
        %5190 = vmatpush.bf16.msra.mxu0 %v4426
        %5191 = vmatpush.bf16.msra.mxu0 %v4422
        %5192 = vmatmul.bf16.gmra.mxu0 %v3246
        %v5193 = vpop.f32.mrf.mxu0
        %v5194 = vadd.f32 %v5175, %v5193
        %v5195 = vpop.f32.mrf.mxu0
        %v5196 = vadd.f32 %v5177, %v5195
        %5197 = vmatmul.bf16.gmra.mxu0 %v3254
        %v5198 = vpop.f32.mrf.mxu0
        %v5199 = vadd.f32 %v5180, %v5198
        %v5200 = vpop.f32.mrf.mxu0
        %v5201 = vadd.f32 %v5182, %v5200
        %5202 = vdwg.mxu0
        %5203 = vmatpush.bf16.msra.mxu0 %v4482
        %5204 = vmatpush.bf16.msra.mxu0 %v4478
        %5205 = vmatpush.bf16.msra.mxu0 %v4474
        %5206 = vmatpush.bf16.msra.mxu0 %v4470
        %5207 = vmatpush.bf16.msra.mxu0 %v4466
        %5208 = vmatpush.bf16.msra.mxu0 %v4462
        %5209 = vmatpush.bf16.msra.mxu0 %v4458
        %5210 = vmatpush.bf16.msra.mxu0 %v4454
        %5211 = vmatmul.bf16.gmra.mxu0 %v3247
        %v5212 = vpop.f32.mrf.mxu0
        %v5213 = vadd.f32 %v5194, %v5212
        %v5214 = vpop.f32.mrf.mxu0
        %v5215 = vadd.f32 %v5196, %v5214
        %5216 = vmatmul.bf16.gmra.mxu0 %v3255
        %v5217 = vpop.f32.mrf.mxu0
        %v5218 = vadd.f32 %v5199, %v5217
        %v5219 = vpop.f32.mrf.mxu0
        %v5220 = vadd.f32 %v5201, %v5219
        %5221 = vdwg.mxu0
        %5222 = vmatpush.bf16.msra.mxu0 %v4514
        %5223 = vmatpush.bf16.msra.mxu0 %v4510
        %5224 = vmatpush.bf16.msra.mxu0 %v4506
        %5225 = vmatpush.bf16.msra.mxu0 %v4502
        %5226 = vmatpush.bf16.msra.mxu0 %v4498
        %5227 = vmatpush.bf16.msra.mxu0 %v4494
        %5228 = vmatpush.bf16.msra.mxu0 %v4490
        %5229 = vmatpush.bf16.msra.mxu0 %v4486
        %5230 = vmatmul.bf16.gmra.mxu0 %v3248
        %v5231 = vpop.f32.mrf.mxu0
        %v5232 = vadd.f32 %v5213, %v5231
        %v5233 = vpop.f32.mrf.mxu0
        %v5234 = vadd.f32 %v5215, %v5233
        %5235 = vmatmul.bf16.gmra.mxu0 %v3256
        %v5236 = vpop.f32.mrf.mxu0
        %v5237 = vadd.f32 %v5218, %v5236
        %v5238 = vpop.f32.mrf.mxu0
        %v5239 = vadd.f32 %v5220, %v5238
        %5240 = vdwg.mxu0
        %5241 = vmatpush.bf16.msra.mxu0 %v4546
        %5242 = vmatpush.bf16.msra.mxu0 %v4542
        %5243 = vmatpush.bf16.msra.mxu0 %v4538
        %5244 = vmatpush.bf16.msra.mxu0 %v4534
        %5245 = vmatpush.bf16.msra.mxu0 %v4530
        %5246 = vmatpush.bf16.msra.mxu0 %v4526
        %5247 = vmatpush.bf16.msra.mxu0 %v4522
        %5248 = vmatpush.bf16.msra.mxu0 %v4518
        %5249 = vmatmul.bf16.gmra.mxu0 %v3249
        %v5250 = vpop.f32.mrf.mxu0
        %v5251 = vadd.f32 %v5232, %v5250
        %v5252 = vpop.f32.mrf.mxu0
        %v5253 = vadd.f32 %v5234, %v5252
        %5254 = vmatmul.bf16.gmra.mxu0 %v3257
        %v5255 = vpop.f32.mrf.mxu0
        %v5256 = vadd.f32 %v5237, %v5255
        %v5257 = vpop.f32.mrf.mxu0
        %v5258 = vadd.f32 %v5239, %v5257
        %5259 = vdwg.mxu0
        %5260 = vmatpush.bf16.msra.mxu0 %v4323
        %5261 = vmatpush.bf16.msra.mxu0 %v4319
        %5262 = vmatpush.bf16.msra.mxu0 %v4315
        %5263 = vmatpush.bf16.msra.mxu0 %v4311
        %5264 = vmatpush.bf16.msra.mxu0 %v4307
        %5265 = vmatpush.bf16.msra.mxu0 %v4303
        %5266 = vmatpush.bf16.msra.mxu0 %v4299
        %5267 = vmatpush.bf16.msra.mxu0 %v4295
        %5268 = vmatmul.bf16.gmra.mxu0 %v3242
        %v5269 = vpop.f32.mrf.mxu0
        %v5270 = vadd.f32 %v3519, %v5269
        %v5271 = vpop.f32.mrf.mxu0
        %v5272 = vadd.f32 %v3519, %v5271
        %5273 = vmatmul.bf16.gmra.mxu0 %v3250
        %v5274 = vpop.f32.mrf.mxu0
        %v5275 = vadd.f32 %v3519, %v5274
        %v5276 = vpop.f32.mrf.mxu0
        %v5277 = vadd.f32 %v3519, %v5276
        %5278 = vdwg.mxu0
        %5279 = vmatpush.bf16.msra.mxu0 %v4355
        %5280 = vmatpush.bf16.msra.mxu0 %v4351
        %5281 = vmatpush.bf16.msra.mxu0 %v4347
        %5282 = vmatpush.bf16.msra.mxu0 %v4343
        %5283 = vmatpush.bf16.msra.mxu0 %v4339
        %5284 = vmatpush.bf16.msra.mxu0 %v4335
        %5285 = vmatpush.bf16.msra.mxu0 %v4331
        %5286 = vmatpush.bf16.msra.mxu0 %v4327
        %5287 = vmatmul.bf16.gmra.mxu0 %v3243
        %v5288 = vpop.f32.mrf.mxu0
        %v5289 = vadd.f32 %v5270, %v5288
        %v5290 = vpop.f32.mrf.mxu0
        %v5291 = vadd.f32 %v5272, %v5290
        %5292 = vmatmul.bf16.gmra.mxu0 %v3251
        %v5293 = vpop.f32.mrf.mxu0
        %v5294 = vadd.f32 %v5275, %v5293
        %v5295 = vpop.f32.mrf.mxu0
        %v5296 = vadd.f32 %v5277, %v5295
        %5297 = vdwg.mxu0
        %5298 = vmatpush.bf16.msra.mxu0 %v4387
        %5299 = vmatpush.bf16.msra.mxu0 %v4383
        %5300 = vmatpush.bf16.msra.mxu0 %v4379
        %5301 = vmatpush.bf16.msra.mxu0 %v4375
        %5302 = vmatpush.bf16.msra.mxu0 %v4371
        %5303 = vmatpush.bf16.msra.mxu0 %v4367
        %5304 = vmatpush.bf16.msra.mxu0 %v4363
        %5305 = vmatpush.bf16.msra.mxu0 %v4359
        %5306 = vmatmul.bf16.gmra.mxu0 %v3244
        %v5307 = vpop.f32.mrf.mxu0
        %v5308 = vadd.f32 %v5289, %v5307
        %v5309 = vpop.f32.mrf.mxu0
        %v5310 = vadd.f32 %v5291, %v5309
        %5311 = vmatmul.bf16.gmra.mxu0 %v3252
        %v5312 = vpop.f32.mrf.mxu0
        %v5313 = vadd.f32 %v5294, %v5312
        %v5314 = vpop.f32.mrf.mxu0
        %v5315 = vadd.f32 %v5296, %v5314
        %5316 = vdwg.mxu0
        %5317 = vmatpush.bf16.msra.mxu0 %v4419
        %5318 = vmatpush.bf16.msra.mxu0 %v4415
        %5319 = vmatpush.bf16.msra.mxu0 %v4411
        %5320 = vmatpush.bf16.msra.mxu0 %v4407
        %5321 = vmatpush.bf16.msra.mxu0 %v4403
        %5322 = vmatpush.bf16.msra.mxu0 %v4399
        %5323 = vmatpush.bf16.msra.mxu0 %v4395
        %5324 = vmatpush.bf16.msra.mxu0 %v4391
        %5325 = vmatmul.bf16.gmra.mxu0 %v3245
        %v5326 = vpop.f32.mrf.mxu0
        %v5327 = vadd.f32 %v5308, %v5326
        %v5328 = vpop.f32.mrf.mxu0
        %v5329 = vadd.f32 %v5310, %v5328
        %5330 = vmatmul.bf16.gmra.mxu0 %v3253
        %v5331 = vpop.f32.mrf.mxu0
        %v5332 = vadd.f32 %v5313, %v5331
        %v5333 = vpop.f32.mrf.mxu0
        %v5334 = vadd.f32 %v5315, %v5333
        %5335 = vdwg.mxu0
        %5336 = vmatpush.bf16.msra.mxu0 %v4451
        %5337 = vmatpush.bf16.msra.mxu0 %v4447
        %5338 = vmatpush.bf16.msra.mxu0 %v4443
        %5339 = vmatpush.bf16.msra.mxu0 %v4439
        %5340 = vmatpush.bf16.msra.mxu0 %v4435
        %5341 = vmatpush.bf16.msra.mxu0 %v4431
        %5342 = vmatpush.bf16.msra.mxu0 %v4427
        %5343 = vmatpush.bf16.msra.mxu0 %v4423
        %5344 = vmatmul.bf16.gmra.mxu0 %v3246
        %v5345 = vpop.f32.mrf.mxu0
        %v5346 = vadd.f32 %v5327, %v5345
        %v5347 = vpop.f32.mrf.mxu0
        %v5348 = vadd.f32 %v5329, %v5347
        %5349 = vmatmul.bf16.gmra.mxu0 %v3254
        %v5350 = vpop.f32.mrf.mxu0
        %v5351 = vadd.f32 %v5332, %v5350
        %v5352 = vpop.f32.mrf.mxu0
        %v5353 = vadd.f32 %v5334, %v5352
        %5354 = vdwg.mxu0
        %5355 = vmatpush.bf16.msra.mxu0 %v4483
        %5356 = vmatpush.bf16.msra.mxu0 %v4479
        %5357 = vmatpush.bf16.msra.mxu0 %v4475
        %5358 = vmatpush.bf16.msra.mxu0 %v4471
        %5359 = vmatpush.bf16.msra.mxu0 %v4467
        %5360 = vmatpush.bf16.msra.mxu0 %v4463
        %5361 = vmatpush.bf16.msra.mxu0 %v4459
        %5362 = vmatpush.bf16.msra.mxu0 %v4455
        %5363 = vmatmul.bf16.gmra.mxu0 %v3247
        %v5364 = vpop.f32.mrf.mxu0
        %v5365 = vadd.f32 %v5346, %v5364
        %v5366 = vpop.f32.mrf.mxu0
        %v5367 = vadd.f32 %v5348, %v5366
        %5368 = vmatmul.bf16.gmra.mxu0 %v3255
        %v5369 = vpop.f32.mrf.mxu0
        %v5370 = vadd.f32 %v5351, %v5369
        %v5371 = vpop.f32.mrf.mxu0
        %v5372 = vadd.f32 %v5353, %v5371
        %5373 = vdwg.mxu0
        %5374 = vmatpush.bf16.msra.mxu0 %v4515
        %5375 = vmatpush.bf16.msra.mxu0 %v4511
        %5376 = vmatpush.bf16.msra.mxu0 %v4507
        %5377 = vmatpush.bf16.msra.mxu0 %v4503
        %5378 = vmatpush.bf16.msra.mxu0 %v4499
        %5379 = vmatpush.bf16.msra.mxu0 %v4495
        %5380 = vmatpush.bf16.msra.mxu0 %v4491
        %5381 = vmatpush.bf16.msra.mxu0 %v4487
        %5382 = vmatmul.bf16.gmra.mxu0 %v3248
        %v5383 = vpop.f32.mrf.mxu0
        %v5384 = vadd.f32 %v5365, %v5383
        %v5385 = vpop.f32.mrf.mxu0
        %v5386 = vadd.f32 %v5367, %v5385
        %5387 = vmatmul.bf16.gmra.mxu0 %v3256
        %v5388 = vpop.f32.mrf.mxu0
        %v5389 = vadd.f32 %v5370, %v5388
        %v5390 = vpop.f32.mrf.mxu0
        %v5391 = vadd.f32 %v5372, %v5390
        %5392 = vdwg.mxu0
        %5393 = vmatpush.bf16.msra.mxu0 %v4547
        %5394 = vmatpush.bf16.msra.mxu0 %v4543
        %5395 = vmatpush.bf16.msra.mxu0 %v4539
        %5396 = vmatpush.bf16.msra.mxu0 %v4535
        %5397 = vmatpush.bf16.msra.mxu0 %v4531
        %5398 = vmatpush.bf16.msra.mxu0 %v4527
        %5399 = vmatpush.bf16.msra.mxu0 %v4523
        %5400 = vmatpush.bf16.msra.mxu0 %v4519
        %5401 = vmatmul.bf16.gmra.mxu0 %v3249
        %v5402 = vpop.f32.mrf.mxu0
        %v5403 = vadd.f32 %v5384, %v5402
        %v5404 = vpop.f32.mrf.mxu0
        %v5405 = vadd.f32 %v5386, %v5404
        %5406 = vmatmul.bf16.gmra.mxu0 %v3257
        %v5407 = vpop.f32.mrf.mxu0
        %v5408 = vadd.f32 %v5389, %v5407
        %v5409 = vpop.f32.mrf.mxu0
        %v5410 = vadd.f32 %v5391, %v5409
        %5411 = vdwg.mxu0
        %v5412 = vxor.u32 %v4947, 2147483648
        %v5413 = vxor.u32 %v5099, 2147483648
        %v5414 = vxor.u32 %v5251, 2147483648
        %v5415 = vxor.u32 %v5403, 2147483648
        %v5416 = vxor.u32 %v4949, 2147483648
        %v5417 = vxor.u32 %v5101, 2147483648
        %v5418 = vxor.u32 %v5253, 2147483648
        %v5419 = vxor.u32 %v5405, 2147483648
        %v5420 = vxor.u32 %v4952, 2147483648
        %v5421 = vxor.u32 %v5104, 2147483648
        %v5422 = vxor.u32 %v5256, 2147483648
        %v5423 = vxor.u32 %v5408, 2147483648
        %v5424 = vxor.u32 %v4954, 2147483648
        %v5425 = vxor.u32 %v5106, 2147483648
        %v5426 = vxor.u32 %v5258, 2147483648
        %v5427 = vxor.u32 %v5410, 2147483648
        %v5428 = vmul.f32 %v5412, 1.442695
        %v5429 = vpow.pop %v5428
        %v5430 = vmul.f32 %v5413, 1.442695
        %v5431 = vpow.pop %v5430
        %v5432 = vmul.f32 %v5414, 1.442695
        %v5433 = vpow.pop %v5432
        %v5434 = vmul.f32 %v5415, 1.442695
        %v5435 = vpow.pop %v5434
        %v5436 = vmul.f32 %v5416, 1.442695
        %v5437 = vpow.pop %v5436
        %v5438 = vmul.f32 %v5417, 1.442695
        %v5439 = vpow.pop %v5438
        %v5440 = vmul.f32 %v5418, 1.442695
        %v5441 = vpow.pop %v5440
        %v5442 = vmul.f32 %v5419, 1.442695
        %v5443 = vpow.pop %v5442
        %v5444 = vmul.f32 %v5420, 1.442695
        %v5445 = vpow.pop %v5444
        %v5446 = vmul.f32 %v5421, 1.442695
        %v5447 = vpow.pop %v5446
        %v5448 = vmul.f32 %v5422, 1.442695
        %v5449 = vpow.pop %v5448
        %v5450 = vmul.f32 %v5423, 1.442695
        %v5451 = vpow.pop %v5450
        %v5452 = vmul.f32 %v5424, 1.442695
        %v5453 = vpow.pop %v5452
        %v5454 = vmul.f32 %v5425, 1.442695
        %v5455 = vpow.pop %v5454
        %v5456 = vmul.f32 %v5426, 1.442695
        %v5457 = vpow.pop %v5456
        %v5458 = vmul.f32 %v5427, 1.442695
        %v5459 = vpow.pop %v5458
        %v5460 = vadd.f32 %v5429, 1.0
        %v5461 = vadd.f32 %v5431, 1.0
        %v5462 = vadd.f32 %v5433, 1.0
        %v5463 = vadd.f32 %v5435, 1.0
        %v5464 = vadd.f32 %v5437, 1.0
        %v5465 = vadd.f32 %v5439, 1.0
        %v5466 = vadd.f32 %v5441, 1.0
        %v5467 = vadd.f32 %v5443, 1.0
        %v5468 = vadd.f32 %v5445, 1.0
        %v5469 = vadd.f32 %v5447, 1.0
        %v5470 = vadd.f32 %v5449, 1.0
        %v5471 = vadd.f32 %v5451, 1.0
        %v5472 = vadd.f32 %v5453, 1.0
        %v5473 = vadd.f32 %v5455, 1.0
        %v5474 = vadd.f32 %v5457, 1.0
        %v5475 = vadd.f32 %v5459, 1.0
        %v5476 = vrcp.pop %v5460
        %v5477 = vmul.f32 %v5460, %v5476
        %v5478 = vsub.f32 1.0, %v5477
        %v5479 = vmul.f32 %v5476, %v5478
        %v5480 = vadd.f32 %v5476, %v5479
        %vm5481 = vweird.f32 %v5460
        %vm5482 = vweird.f32 %v5476
        %vm5483 = vmor %vm5481, %vm5482
        %v5484 = vsel %vm5483, %v5476, %v5480
        %v5485 = vand.u32 2147483647, %v5460
        %vm5486 = vcmp.eq.f32.partialorder %v5485, 8.507059e+37
        %v5487 = vand.u32 %v5460, 2147483648
        %v5488 = vor.u32 1.1754944e-38, %v5487
        %v5489 = vsel %vm5486, %v5488, %v5484
        %v5490 = vmul.f32 1.0, %v5489
        %v5491 = vrcp.pop %v5461
        %v5492 = vmul.f32 %v5461, %v5491
        %v5493 = vsub.f32 1.0, %v5492
        %v5494 = vmul.f32 %v5491, %v5493
        %v5495 = vadd.f32 %v5491, %v5494
        %vm5496 = vweird.f32 %v5461
        %vm5497 = vweird.f32 %v5491
        %vm5498 = vmor %vm5496, %vm5497
        %v5499 = vsel %vm5498, %v5491, %v5495
        %v5500 = vand.u32 2147483647, %v5461
        %vm5501 = vcmp.eq.f32.partialorder %v5500, 8.507059e+37
        %v5502 = vand.u32 %v5461, 2147483648
        %v5503 = vor.u32 1.1754944e-38, %v5502
        %v5504 = vsel %vm5501, %v5503, %v5499
        %v5505 = vmul.f32 1.0, %v5504
        %v5506 = vrcp.pop %v5462
        %v5507 = vmul.f32 %v5462, %v5506
        %v5508 = vsub.f32 1.0, %v5507
        %v5509 = vmul.f32 %v5506, %v5508
        %v5510 = vadd.f32 %v5506, %v5509
        %vm5511 = vweird.f32 %v5462
        %vm5512 = vweird.f32 %v5506
        %vm5513 = vmor %vm5511, %vm5512
        %v5514 = vsel %vm5513, %v5506, %v5510
        %v5515 = vand.u32 2147483647, %v5462
        %vm5516 = vcmp.eq.f32.partialorder %v5515, 8.507059e+37
        %v5517 = vand.u32 %v5462, 2147483648
        %v5518 = vor.u32 1.1754944e-38, %v5517
        %v5519 = vsel %vm5516, %v5518, %v5514
        %v5520 = vmul.f32 1.0, %v5519
        %v5521 = vrcp.pop %v5463
        %v5522 = vmul.f32 %v5463, %v5521
        %v5523 = vsub.f32 1.0, %v5522
        %v5524 = vmul.f32 %v5521, %v5523
        %v5525 = vadd.f32 %v5521, %v5524
        %vm5526 = vweird.f32 %v5463
        %vm5527 = vweird.f32 %v5521
        %vm5528 = vmor %vm5526, %vm5527
        %v5529 = vsel %vm5528, %v5521, %v5525
        %v5530 = vand.u32 2147483647, %v5463
        %vm5531 = vcmp.eq.f32.partialorder %v5530, 8.507059e+37
        %v5532 = vand.u32 %v5463, 2147483648
        %v5533 = vor.u32 1.1754944e-38, %v5532
        %v5534 = vsel %vm5531, %v5533, %v5529
        %v5535 = vmul.f32 1.0, %v5534
        %v5536 = vrcp.pop %v5464
        %v5537 = vmul.f32 %v5464, %v5536
        %v5538 = vsub.f32 1.0, %v5537
        %v5539 = vmul.f32 %v5536, %v5538
        %v5540 = vadd.f32 %v5536, %v5539
        %vm5541 = vweird.f32 %v5464
        %vm5542 = vweird.f32 %v5536
        %vm5543 = vmor %vm5541, %vm5542
        %v5544 = vsel %vm5543, %v5536, %v5540
        %v5545 = vand.u32 2147483647, %v5464
        %vm5546 = vcmp.eq.f32.partialorder %v5545, 8.507059e+37
        %v5547 = vand.u32 %v5464, 2147483648
        %v5548 = vor.u32 1.1754944e-38, %v5547
        %v5549 = vsel %vm5546, %v5548, %v5544
        %v5550 = vmul.f32 1.0, %v5549
        %v5551 = vrcp.pop %v5465
        %v5552 = vmul.f32 %v5465, %v5551
        %v5553 = vsub.f32 1.0, %v5552
        %v5554 = vmul.f32 %v5551, %v5553
        %v5555 = vadd.f32 %v5551, %v5554
        %vm5556 = vweird.f32 %v5465
        %vm5557 = vweird.f32 %v5551
        %vm5558 = vmor %vm5556, %vm5557
        %v5559 = vsel %vm5558, %v5551, %v5555
        %v5560 = vand.u32 2147483647, %v5465
        %vm5561 = vcmp.eq.f32.partialorder %v5560, 8.507059e+37
        %v5562 = vand.u32 %v5465, 2147483648
        %v5563 = vor.u32 1.1754944e-38, %v5562
        %v5564 = vsel %vm5561, %v5563, %v5559
        %v5565 = vmul.f32 1.0, %v5564
        %v5566 = vrcp.pop %v5466
        %v5567 = vmul.f32 %v5466, %v5566
        %v5568 = vsub.f32 1.0, %v5567
        %v5569 = vmul.f32 %v5566, %v5568
        %v5570 = vadd.f32 %v5566, %v5569
        %vm5571 = vweird.f32 %v5466
        %vm5572 = vweird.f32 %v5566
        %vm5573 = vmor %vm5571, %vm5572
        %v5574 = vsel %vm5573, %v5566, %v5570
        %v5575 = vand.u32 2147483647, %v5466
        %vm5576 = vcmp.eq.f32.partialorder %v5575, 8.507059e+37
        %v5577 = vand.u32 %v5466, 2147483648
        %v5578 = vor.u32 1.1754944e-38, %v5577
        %v5579 = vsel %vm5576, %v5578, %v5574
        %v5580 = vmul.f32 1.0, %v5579
        %v5581 = vrcp.pop %v5467
        %v5582 = vmul.f32 %v5467, %v5581
        %v5583 = vsub.f32 1.0, %v5582
        %v5584 = vmul.f32 %v5581, %v5583
        %v5585 = vadd.f32 %v5581, %v5584
        %vm5586 = vweird.f32 %v5467
        %vm5587 = vweird.f32 %v5581
        %vm5588 = vmor %vm5586, %vm5587
        %v5589 = vsel %vm5588, %v5581, %v5585
        %v5590 = vand.u32 2147483647, %v5467
        %vm5591 = vcmp.eq.f32.partialorder %v5590, 8.507059e+37
        %v5592 = vand.u32 %v5467, 2147483648
        %v5593 = vor.u32 1.1754944e-38, %v5592
        %v5594 = vsel %vm5591, %v5593, %v5589
        %v5595 = vmul.f32 1.0, %v5594
        %v5596 = vrcp.pop %v5468
        %v5597 = vmul.f32 %v5468, %v5596
        %v5598 = vsub.f32 1.0, %v5597
        %v5599 = vmul.f32 %v5596, %v5598
        %v5600 = vadd.f32 %v5596, %v5599
        %vm5601 = vweird.f32 %v5468
        %vm5602 = vweird.f32 %v5596
        %vm5603 = vmor %vm5601, %vm5602
        %v5604 = vsel %vm5603, %v5596, %v5600
        %v5605 = vand.u32 2147483647, %v5468
        %vm5606 = vcmp.eq.f32.partialorder %v5605, 8.507059e+37
        %v5607 = vand.u32 %v5468, 2147483648
        %v5608 = vor.u32 1.1754944e-38, %v5607
        %v5609 = vsel %vm5606, %v5608, %v5604
        %v5610 = vmul.f32 1.0, %v5609
        %v5611 = vrcp.pop %v5469
        %v5612 = vmul.f32 %v5469, %v5611
        %v5613 = vsub.f32 1.0, %v5612
        %v5614 = vmul.f32 %v5611, %v5613
        %v5615 = vadd.f32 %v5611, %v5614
        %vm5616 = vweird.f32 %v5469
        %vm5617 = vweird.f32 %v5611
        %vm5618 = vmor %vm5616, %vm5617
        %v5619 = vsel %vm5618, %v5611, %v5615
        %v5620 = vand.u32 2147483647, %v5469
        %vm5621 = vcmp.eq.f32.partialorder %v5620, 8.507059e+37
        %v5622 = vand.u32 %v5469, 2147483648
        %v5623 = vor.u32 1.1754944e-38, %v5622
        %v5624 = vsel %vm5621, %v5623, %v5619
        %v5625 = vmul.f32 1.0, %v5624
        %v5626 = vrcp.pop %v5470
        %v5627 = vmul.f32 %v5470, %v5626
        %v5628 = vsub.f32 1.0, %v5627
        %v5629 = vmul.f32 %v5626, %v5628
        %v5630 = vadd.f32 %v5626, %v5629
        %vm5631 = vweird.f32 %v5470
        %vm5632 = vweird.f32 %v5626
        %vm5633 = vmor %vm5631, %vm5632
        %v5634 = vsel %vm5633, %v5626, %v5630
        %v5635 = vand.u32 2147483647, %v5470
        %vm5636 = vcmp.eq.f32.partialorder %v5635, 8.507059e+37
        %v5637 = vand.u32 %v5470, 2147483648
        %v5638 = vor.u32 1.1754944e-38, %v5637
        %v5639 = vsel %vm5636, %v5638, %v5634
        %v5640 = vmul.f32 1.0, %v5639
        %v5641 = vrcp.pop %v5471
        %v5642 = vmul.f32 %v5471, %v5641
        %v5643 = vsub.f32 1.0, %v5642
        %v5644 = vmul.f32 %v5641, %v5643
        %v5645 = vadd.f32 %v5641, %v5644
        %vm5646 = vweird.f32 %v5471
        %vm5647 = vweird.f32 %v5641
        %vm5648 = vmor %vm5646, %vm5647
        %v5649 = vsel %vm5648, %v5641, %v5645
        %v5650 = vand.u32 2147483647, %v5471
        %vm5651 = vcmp.eq.f32.partialorder %v5650, 8.507059e+37
        %v5652 = vand.u32 %v5471, 2147483648
        %v5653 = vor.u32 1.1754944e-38, %v5652
        %v5654 = vsel %vm5651, %v5653, %v5649
        %v5655 = vmul.f32 1.0, %v5654
        %v5656 = vrcp.pop %v5472
        %v5657 = vmul.f32 %v5472, %v5656
        %v5658 = vsub.f32 1.0, %v5657
        %v5659 = vmul.f32 %v5656, %v5658
        %v5660 = vadd.f32 %v5656, %v5659
        %vm5661 = vweird.f32 %v5472
        %vm5662 = vweird.f32 %v5656
        %vm5663 = vmor %vm5661, %vm5662
        %v5664 = vsel %vm5663, %v5656, %v5660
        %v5665 = vand.u32 2147483647, %v5472
        %vm5666 = vcmp.eq.f32.partialorder %v5665, 8.507059e+37
        %v5667 = vand.u32 %v5472, 2147483648
        %v5668 = vor.u32 1.1754944e-38, %v5667
        %v5669 = vsel %vm5666, %v5668, %v5664
        %v5670 = vmul.f32 1.0, %v5669
        %v5671 = vrcp.pop %v5473
        %v5672 = vmul.f32 %v5473, %v5671
        %v5673 = vsub.f32 1.0, %v5672
        %v5674 = vmul.f32 %v5671, %v5673
        %v5675 = vadd.f32 %v5671, %v5674
        %vm5676 = vweird.f32 %v5473
        %vm5677 = vweird.f32 %v5671
        %vm5678 = vmor %vm5676, %vm5677
        %v5679 = vsel %vm5678, %v5671, %v5675
        %v5680 = vand.u32 2147483647, %v5473
        %vm5681 = vcmp.eq.f32.partialorder %v5680, 8.507059e+37
        %v5682 = vand.u32 %v5473, 2147483648
        %v5683 = vor.u32 1.1754944e-38, %v5682
        %v5684 = vsel %vm5681, %v5683, %v5679
        %v5685 = vmul.f32 1.0, %v5684
        %v5686 = vrcp.pop %v5474
        %v5687 = vmul.f32 %v5474, %v5686
        %v5688 = vsub.f32 1.0, %v5687
        %v5689 = vmul.f32 %v5686, %v5688
        %v5690 = vadd.f32 %v5686, %v5689
        %vm5691 = vweird.f32 %v5474
        %vm5692 = vweird.f32 %v5686
        %vm5693 = vmor %vm5691, %vm5692
        %v5694 = vsel %vm5693, %v5686, %v5690
        %v5695 = vand.u32 2147483647, %v5474
        %vm5696 = vcmp.eq.f32.partialorder %v5695, 8.507059e+37
        %v5697 = vand.u32 %v5474, 2147483648
        %v5698 = vor.u32 1.1754944e-38, %v5697
        %v5699 = vsel %vm5696, %v5698, %v5694
        %v5700 = vmul.f32 1.0, %v5699
        %v5701 = vrcp.pop %v5475
        %v5702 = vmul.f32 %v5475, %v5701
        %v5703 = vsub.f32 1.0, %v5702
        %v5704 = vmul.f32 %v5701, %v5703
        %v5705 = vadd.f32 %v5701, %v5704
        %vm5706 = vweird.f32 %v5475
        %vm5707 = vweird.f32 %v5701
        %vm5708 = vmor %vm5706, %vm5707
        %v5709 = vsel %vm5708, %v5701, %v5705
        %v5710 = vand.u32 2147483647, %v5475
        %vm5711 = vcmp.eq.f32.partialorder %v5710, 8.507059e+37
        %v5712 = vand.u32 %v5475, 2147483648
        %v5713 = vor.u32 1.1754944e-38, %v5712
        %v5714 = vsel %vm5711, %v5713, %v5709
        %v5715 = vmul.f32 1.0, %v5714
        %v5716 = vpack.c.bf16 %v5550, %v5490
        %v5717 = vpack.c.bf16 %v5565, %v5505
        %v5718 = vpack.c.bf16 %v5580, %v5520
        %v5719 = vpack.c.bf16 %v5595, %v5535
        %v5720 = vpack.c.bf16 %v5670, %v5610
        %v5721 = vpack.c.bf16 %v5685, %v5625
        %v5722 = vpack.c.bf16 %v5700, %v5640
        %v5723 = vpack.c.bf16 %v5715, %v5655
        %v5724 = vld [vmem:[#allocation10] sm:$0xf]
        %v5725 = vld [vmem:[#allocation10 + $0x4] sm:$0xf]
        %v5726 = vld [vmem:[#allocation10 + $0x8] sm:$0xf]
        %v5727 = vld [vmem:[#allocation10 + $0xc] sm:$0xf]
        %v5728 = vld [vmem:[#allocation10 + $0x10] sm:$0xf]
        %v5729 = vld [vmem:[#allocation10 + $0x14] sm:$0xf]
        %v5730 = vld [vmem:[#allocation10 + $0x18] sm:$0xf]
        %v5731 = vld [vmem:[#allocation10 + $0x1c] sm:$0xf]
        %v5732 = vld [vmem:[#allocation10 + $0x20] sm:$0xf]
        %v5733 = vld [vmem:[#allocation10 + $0x24] sm:$0xf]
        %v5734 = vld [vmem:[#allocation10 + $0x28] sm:$0xf]
        %v5735 = vld [vmem:[#allocation10 + $0x2c] sm:$0xf]
        %v5736 = vld [vmem:[#allocation10 + $0x30] sm:$0xf]
        %v5737 = vld [vmem:[#allocation10 + $0x34] sm:$0xf]
        %v5738 = vld [vmem:[#allocation10 + $0x38] sm:$0xf]
        %v5739 = vld [vmem:[#allocation10 + $0x3c] sm:$0xf]
        %v5740 = vld [vmem:[#allocation10 + $0x40] sm:$0xf]
        %v5741 = vld [vmem:[#allocation10 + $0x44] sm:$0xf]
        %v5742 = vld [vmem:[#allocation10 + $0x48] sm:$0xf]
        %v5743 = vld [vmem:[#allocation10 + $0x4c] sm:$0xf]
        %v5744 = vld [vmem:[#allocation10 + $0x50] sm:$0xf]
        %v5745 = vld [vmem:[#allocation10 + $0x54] sm:$0xf]
        %v5746 = vld [vmem:[#allocation10 + $0x58] sm:$0xf]
        %v5747 = vld [vmem:[#allocation10 + $0x5c] sm:$0xf]
        %v5748 = vld [vmem:[#allocation10 + $0x60] sm:$0xf]
        %v5749 = vld [vmem:[#allocation10 + $0x64] sm:$0xf]
        %v5750 = vld [vmem:[#allocation10 + $0x68] sm:$0xf]
        %v5751 = vld [vmem:[#allocation10 + $0x6c] sm:$0xf]
        %v5752 = vld [vmem:[#allocation10 + $0x70] sm:$0xf]
        %v5753 = vld [vmem:[#allocation10 + $0x74] sm:$0xf]
        %v5754 = vld [vmem:[#allocation10 + $0x78] sm:$0xf]
        %v5755 = vld [vmem:[#allocation10 + $0x7c] sm:$0xf]
        %v5756 = vld [vmem:[#allocation10 + $0x80] sm:$0xf]
        %v5757 = vld [vmem:[#allocation10 + $0x84] sm:$0xf]
        %v5758 = vld [vmem:[#allocation10 + $0x88] sm:$0xf]
        %v5759 = vld [vmem:[#allocation10 + $0x8c] sm:$0xf]
        %v5760 = vld [vmem:[#allocation10 + $0x90] sm:$0xf]
        %v5761 = vld [vmem:[#allocation10 + $0x94] sm:$0xf]
        %v5762 = vld [vmem:[#allocation10 + $0x98] sm:$0xf]
        %v5763 = vld [vmem:[#allocation10 + $0x9c] sm:$0xf]
        %v5764 = vld [vmem:[#allocation10 + $0xa0] sm:$0xf]
        %v5765 = vld [vmem:[#allocation10 + $0xa4] sm:$0xf]
        %v5766 = vld [vmem:[#allocation10 + $0xa8] sm:$0xf]
        %v5767 = vld [vmem:[#allocation10 + $0xac] sm:$0xf]
        %v5768 = vld [vmem:[#allocation10 + $0xb0] sm:$0xf]
        %v5769 = vld [vmem:[#allocation10 + $0xb4] sm:$0xf]
        %v5770 = vld [vmem:[#allocation10 + $0xb8] sm:$0xf]
        %v5771 = vld [vmem:[#allocation10 + $0xbc] sm:$0xf]
        %v5772 = vld [vmem:[#allocation10 + $0xc0] sm:$0xf]
        %v5773 = vld [vmem:[#allocation10 + $0xc4] sm:$0xf]
        %v5774 = vld [vmem:[#allocation10 + $0xc8] sm:$0xf]
        %v5775 = vld [vmem:[#allocation10 + $0xcc] sm:$0xf]
        %v5776 = vld [vmem:[#allocation10 + $0xd0] sm:$0xf]
        %v5777 = vld [vmem:[#allocation10 + $0xd4] sm:$0xf]
        %v5778 = vld [vmem:[#allocation10 + $0xd8] sm:$0xf]
        %v5779 = vld [vmem:[#allocation10 + $0xdc] sm:$0xf]
        %v5780 = vld [vmem:[#allocation10 + $0xe0] sm:$0xf]
        %v5781 = vld [vmem:[#allocation10 + $0xe4] sm:$0xf]
        %v5782 = vld [vmem:[#allocation10 + $0xe8] sm:$0xf]
        %v5783 = vld [vmem:[#allocation10 + $0xec] sm:$0xf]
        %v5784 = vld [vmem:[#allocation10 + $0xf0] sm:$0xf]
        %v5785 = vld [vmem:[#allocation10 + $0xf4] sm:$0xf]
        %v5786 = vld [vmem:[#allocation10 + $0xf8] sm:$0xf]
        %v5787 = vld [vmem:[#allocation10 + $0xfc] sm:$0xf]
        %v5788 = vld [vmem:[%s6] sm:$0x1]
        %v5790 = vperm.slane %v5788, 0
        %v5856 = vunpack.c.l.b16 %v5724
        %v5857 = vunpack.c.l.b16 %v5725
        %v5858 = vunpack.c.l.b16 %v5726
        %v5859 = vunpack.c.l.b16 %v5727
        %v5860 = vunpack.c.l.b16 %v5728
        %v5861 = vunpack.c.l.b16 %v5729
        %v5862 = vunpack.c.l.b16 %v5730
        %v5863 = vunpack.c.l.b16 %v5731
        %v5864 = vunpack.c.l.b16 %v5732
        %v5865 = vunpack.c.l.b16 %v5733
        %v5866 = vunpack.c.l.b16 %v5734
        %v5867 = vunpack.c.l.b16 %v5735
        %v5868 = vunpack.c.l.b16 %v5736
        %v5869 = vunpack.c.l.b16 %v5737
        %v5870 = vunpack.c.l.b16 %v5738
        %v5871 = vunpack.c.l.b16 %v5739
        %v5872 = vunpack.c.l.b16 %v5740
        %v5873 = vunpack.c.l.b16 %v5741
        %v5874 = vunpack.c.l.b16 %v5742
        %v5875 = vunpack.c.l.b16 %v5743
        %v5876 = vunpack.c.l.b16 %v5744
        %v5877 = vunpack.c.l.b16 %v5745
        %v5878 = vunpack.c.l.b16 %v5746
        %v5879 = vunpack.c.l.b16 %v5747
        %v5880 = vunpack.c.l.b16 %v5748
        %v5881 = vunpack.c.l.b16 %v5749
        %v5882 = vunpack.c.l.b16 %v5750
        %v5883 = vunpack.c.l.b16 %v5751
        %v5884 = vunpack.c.l.b16 %v5752
        %v5885 = vunpack.c.l.b16 %v5753
        %v5886 = vunpack.c.l.b16 %v5754
        %v5887 = vunpack.c.l.b16 %v5755
        %v5888 = vunpack.c.l.b16 %v5756
        %v5889 = vunpack.c.l.b16 %v5757
        %v5890 = vunpack.c.l.b16 %v5758
        %v5891 = vunpack.c.l.b16 %v5759
        %v5892 = vunpack.c.l.b16 %v5760
        %v5893 = vunpack.c.l.b16 %v5761
        %v5894 = vunpack.c.l.b16 %v5762
        %v5895 = vunpack.c.l.b16 %v5763
        %v5896 = vunpack.c.l.b16 %v5764
        %v5897 = vunpack.c.l.b16 %v5765
        %v5898 = vunpack.c.l.b16 %v5766
        %v5899 = vunpack.c.l.b16 %v5767
        %v5900 = vunpack.c.l.b16 %v5768
        %v5901 = vunpack.c.l.b16 %v5769
        %v5902 = vunpack.c.l.b16 %v5770
        %v5903 = vunpack.c.l.b16 %v5771
        %v5904 = vunpack.c.l.b16 %v5772
        %v5905 = vunpack.c.l.b16 %v5773
        %v5906 = vunpack.c.l.b16 %v5774
        %v5907 = vunpack.c.l.b16 %v5775
        %v5908 = vunpack.c.l.b16 %v5776
        %v5909 = vunpack.c.l.b16 %v5777
        %v5910 = vunpack.c.l.b16 %v5778
        %v5911 = vunpack.c.l.b16 %v5779
        %v5912 = vunpack.c.l.b16 %v5780
        %v5913 = vunpack.c.l.b16 %v5781
        %v5914 = vunpack.c.l.b16 %v5782
        %v5915 = vunpack.c.l.b16 %v5783
        %v5916 = vunpack.c.l.b16 %v5784
        %v5917 = vunpack.c.l.b16 %v5785
        %v5918 = vunpack.c.l.b16 %v5786
        %v5919 = vunpack.c.l.b16 %v5787
        %v5920 = vpack.c.b16 %v5857, %v5856
        %v5921 = vpack.c.b16 %v5859, %v5858
        %v5922 = vpack.c.b16 %v5861, %v5860
        %v5923 = vpack.c.b16 %v5863, %v5862
        %v5924 = vpack.c.b16 %v5865, %v5864
        %v5925 = vpack.c.b16 %v5867, %v5866
        %v5926 = vpack.c.b16 %v5869, %v5868
        %v5927 = vpack.c.b16 %v5871, %v5870
        %v5928 = vpack.c.b16 %v5873, %v5872
        %v5929 = vpack.c.b16 %v5875, %v5874
        %v5930 = vpack.c.b16 %v5877, %v5876
        %v5931 = vpack.c.b16 %v5879, %v5878
        %v5932 = vpack.c.b16 %v5881, %v5880
        %v5933 = vpack.c.b16 %v5883, %v5882
        %v5934 = vpack.c.b16 %v5885, %v5884
        %v5935 = vpack.c.b16 %v5887, %v5886
        %v5936 = vpack.c.b16 %v5889, %v5888
        %v5937 = vpack.c.b16 %v5891, %v5890
        %v5938 = vpack.c.b16 %v5893, %v5892
        %v5939 = vpack.c.b16 %v5895, %v5894
        %v5940 = vpack.c.b16 %v5897, %v5896
        %v5941 = vpack.c.b16 %v5899, %v5898
        %v5942 = vpack.c.b16 %v5901, %v5900
        %v5943 = vpack.c.b16 %v5903, %v5902
        %v5944 = vpack.c.b16 %v5905, %v5904
        %v5945 = vpack.c.b16 %v5907, %v5906
        %v5946 = vpack.c.b16 %v5909, %v5908
        %v5947 = vpack.c.b16 %v5911, %v5910
        %v5948 = vpack.c.b16 %v5913, %v5912
        %v5949 = vpack.c.b16 %v5915, %v5914
        %v5950 = vpack.c.b16 %v5917, %v5916
        %v5951 = vpack.c.b16 %v5919, %v5918
        %5984 = vmatpush.bf16.msra.mxu0 %v5927
        %5985 = vmatpush.bf16.msra.mxu0 %v5926
        %5986 = vmatpush.bf16.msra.mxu0 %v5925
        %5987 = vmatpush.bf16.msra.mxu0 %v5924
        %5988 = vmatpush.bf16.msra.mxu0 %v5923
        %5989 = vmatpush.bf16.msra.mxu0 %v5922
        %5990 = vmatpush.bf16.msra.mxu0 %v5921
        %5991 = vmatpush.bf16.msra.mxu0 %v5920
        %5992 = vmatmul.bf16.gmra.mxu0 %v5716
        %v5993 = vpop.f32.mrf.mxu0
        %v5994 = vadd.f32 %v5790, %v5993
        %v5995 = vpop.f32.mrf.mxu0
        %v5996 = vadd.f32 %v5790, %v5995
        %5997 = vmatmul.bf16.gmra.mxu0 %v5720
        %v5998 = vpop.f32.mrf.mxu0
        %v5999 = vadd.f32 %v5790, %v5998
        %v6000 = vpop.f32.mrf.mxu0
        %v6001 = vadd.f32 %v5790, %v6000
        %6002 = vdwg.mxu0
        %6003 = vmatpush.bf16.msra.mxu0 %v5935
        %6004 = vmatpush.bf16.msra.mxu0 %v5934
        %6005 = vmatpush.bf16.msra.mxu0 %v5933
        %6006 = vmatpush.bf16.msra.mxu0 %v5932
        %6007 = vmatpush.bf16.msra.mxu0 %v5931
        %6008 = vmatpush.bf16.msra.mxu0 %v5930
        %6009 = vmatpush.bf16.msra.mxu0 %v5929
        %6010 = vmatpush.bf16.msra.mxu0 %v5928
        %6011 = vmatmul.bf16.gmra.mxu0 %v5717
        %v6012 = vpop.f32.mrf.mxu0
        %v6013 = vadd.f32 %v5994, %v6012
        %v6014 = vpop.f32.mrf.mxu0
        %v6015 = vadd.f32 %v5996, %v6014
        %6016 = vmatmul.bf16.gmra.mxu0 %v5721
        %v6017 = vpop.f32.mrf.mxu0
        %v6018 = vadd.f32 %v5999, %v6017
        %v6019 = vpop.f32.mrf.mxu0
        %v6020 = vadd.f32 %v6001, %v6019
        %6021 = vdwg.mxu0
        %6022 = vmatpush.bf16.msra.mxu0 %v5943
        %6023 = vmatpush.bf16.msra.mxu0 %v5942
        %6024 = vmatpush.bf16.msra.mxu0 %v5941
        %6025 = vmatpush.bf16.msra.mxu0 %v5940
        %6026 = vmatpush.bf16.msra.mxu0 %v5939
        %6027 = vmatpush.bf16.msra.mxu0 %v5938
        %6028 = vmatpush.bf16.msra.mxu0 %v5937
        %6029 = vmatpush.bf16.msra.mxu0 %v5936
        %6030 = vmatmul.bf16.gmra.mxu0 %v5718
        %v6031 = vpop.f32.mrf.mxu0
        %v6032 = vadd.f32 %v6013, %v6031
        %v6033 = vpop.f32.mrf.mxu0
        %v6034 = vadd.f32 %v6015, %v6033
        %6035 = vmatmul.bf16.gmra.mxu0 %v5722
        %v6036 = vpop.f32.mrf.mxu0
        %v6037 = vadd.f32 %v6018, %v6036
        %v6038 = vpop.f32.mrf.mxu0
        %v6039 = vadd.f32 %v6020, %v6038
        %6040 = vdwg.mxu0
        %6041 = vmatpush.bf16.msra.mxu0 %v5951
        %6042 = vmatpush.bf16.msra.mxu0 %v5950
        %6043 = vmatpush.bf16.msra.mxu0 %v5949
        %6044 = vmatpush.bf16.msra.mxu0 %v5948
        %6045 = vmatpush.bf16.msra.mxu0 %v5947
        %6046 = vmatpush.bf16.msra.mxu0 %v5946
        %6047 = vmatpush.bf16.msra.mxu0 %v5945
        %6048 = vmatpush.bf16.msra.mxu0 %v5944
        %6049 = vmatmul.bf16.gmra.mxu0 %v5719
        %v6050 = vpop.f32.mrf.mxu0
        %v6051 = vadd.f32 %v6032, %v6050
        %v6052 = vpop.f32.mrf.mxu0
        %v6053 = vadd.f32 %v6034, %v6052
        %6054 = vmatmul.bf16.gmra.mxu0 %v5723
        %v6055 = vpop.f32.mrf.mxu0
        %v6056 = vadd.f32 %v6037, %v6055
        %v6057 = vpop.f32.mrf.mxu0
        %v6058 = vadd.f32 %v6039, %v6057
        %6059 = vdwg.mxu0
        %v6060 = vxor.u32 %v6051, 2147483648
        %v6061 = vxor.u32 %v6053, 2147483648
        %v6062 = vxor.u32 %v6056, 2147483648
        %v6063 = vxor.u32 %v6058, 2147483648
        %v6064 = vmul.f32 %v6060, 1.442695
        %v6065 = vpow.pop %v6064
        %v6066 = vmul.f32 %v6061, 1.442695
        %v6067 = vpow.pop %v6066
        %v6068 = vmul.f32 %v6062, 1.442695
        %v6069 = vpow.pop %v6068
        %v6070 = vmul.f32 %v6063, 1.442695
        %v6071 = vpow.pop %v6070
        %v6072 = vadd.f32 %v6065, 1.0
        %v6073 = vadd.f32 %v6067, 1.0
        %v6074 = vadd.f32 %v6069, 1.0
        %v6075 = vadd.f32 %v6071, 1.0
        %v6076 = vrcp.pop %v6072
        %v6077 = vmul.f32 %v6072, %v6076
        %v6078 = vsub.f32 1.0, %v6077
        %v6079 = vmul.f32 %v6076, %v6078
        %v6080 = vadd.f32 %v6076, %v6079
        %vm6081 = vweird.f32 %v6072
        %vm6082 = vweird.f32 %v6076
        %vm6083 = vmor %vm6081, %vm6082
        %v6084 = vsel %vm6083, %v6076, %v6080
        %v6085 = vand.u32 2147483647, %v6072
        %vm6086 = vcmp.eq.f32.partialorder %v6085, 8.507059e+37
        %v6087 = vand.u32 %v6072, 2147483648
        %v6088 = vor.u32 1.1754944e-38, %v6087
        %v6089 = vsel %vm6086, %v6088, %v6084
        %v6090 = vmul.f32 1.0, %v6089
        %v6091 = vrcp.pop %v6073
        %v6092 = vmul.f32 %v6073, %v6091
        %v6093 = vsub.f32 1.0, %v6092
        %v6094 = vmul.f32 %v6091, %v6093
        %v6095 = vadd.f32 %v6091, %v6094
        %vm6096 = vweird.f32 %v6073
        %vm6097 = vweird.f32 %v6091
        %vm6098 = vmor %vm6096, %vm6097
        %v6099 = vsel %vm6098, %v6091, %v6095
        %v6100 = vand.u32 2147483647, %v6073
        %vm6101 = vcmp.eq.f32.partialorder %v6100, 8.507059e+37
        %v6102 = vand.u32 %v6073, 2147483648
        %v6103 = vor.u32 1.1754944e-38, %v6102
        %v6104 = vsel %vm6101, %v6103, %v6099
        %v6105 = vmul.f32 1.0, %v6104
        %v6106 = vrcp.pop %v6074
        %v6107 = vmul.f32 %v6074, %v6106
        %v6108 = vsub.f32 1.0, %v6107
        %v6109 = vmul.f32 %v6106, %v6108
        %v6110 = vadd.f32 %v6106, %v6109
        %vm6111 = vweird.f32 %v6074
        %vm6112 = vweird.f32 %v6106
        %vm6113 = vmor %vm6111, %vm6112
        %v6114 = vsel %vm6113, %v6106, %v6110
        %v6115 = vand.u32 2147483647, %v6074
        %vm6116 = vcmp.eq.f32.partialorder %v6115, 8.507059e+37
        %v6117 = vand.u32 %v6074, 2147483648
        %v6118 = vor.u32 1.1754944e-38, %v6117
        %v6119 = vsel %vm6116, %v6118, %v6114
        %v6120 = vmul.f32 1.0, %v6119
        %v6121 = vrcp.pop %v6075
        %v6122 = vmul.f32 %v6075, %v6121
        %v6123 = vsub.f32 1.0, %v6122
        %v6124 = vmul.f32 %v6121, %v6123
        %v6125 = vadd.f32 %v6121, %v6124
        %vm6126 = vweird.f32 %v6075
        %vm6127 = vweird.f32 %v6121
        %vm6128 = vmor %vm6126, %vm6127
        %v6129 = vsel %vm6128, %v6121, %v6125
        %v6130 = vand.u32 2147483647, %v6075
        %vm6131 = vcmp.eq.f32.partialorder %v6130, 8.507059e+37
        %v6132 = vand.u32 %v6075, 2147483648
        %v6133 = vor.u32 1.1754944e-38, %v6132
        %v6134 = vsel %vm6131, %v6133, %v6129
        %v6135 = vmul.f32 1.0, %v6134
        %v6136 = vld [vmem:[%s7] sm:$0x1]
        %v6138 = vperm.slane %v6136, 0
        %v6140 = vmul.f32 %v6090, %v6138
        %v6141 = vmul.f32 %v6105, %v6138
        %v6142 = vmul.f32 %v6120, %v6138
        %v6143 = vmul.f32 %v6135, %v6138
        %6144 = vadd.xlane.f32.xlu0 %v6140
        %v6145 = vpop.xlane.xlu0 %6144
        %6146 = vadd.xlane.f32.xlu0 %v6141
        %v6147 = vpop.xlane.xlu0 %6146
        %6148 = vadd.xlane.f32.xlu0 %v6142
        %v6149 = vpop.xlane.xlu0 %6148
        %6150 = vadd.xlane.f32.xlu0 %v6143
        %v6151 = vpop.xlane.xlu0 %6150
        %v6152 = vld [vmem:[#allocation2] sm:$0x1]
        %v6154 = vperm.slane %v6152, 0
        %v6156 = vadd.f32 %v6145, %v6154
        %v6157 = vadd.f32 %v6147, %v6154
        %v6158 = vadd.f32 %v6149, %v6154
        %v6159 = vadd.f32 %v6151, %v6154
        %vm6160 = vcmask 7168
        %6161 = vst.msk [vmem:[%s422] sm:$0xff] %vm6160, %v6156
        %6162 = vst.msk [vmem:[%s422 + $0x8] sm:$0xff] %vm6160, %v6157
        %6163 = vst.msk [vmem:[%s422 + $0x10] sm:$0xff] %vm6160, %v6158
        %6164 = vst.msk [vmem:[%s422 + $0x18] sm:$0xff] %vm6160, %v6159
        %s6165 = smul.u32 4, %s27
        %p6166 = scmp.lt.s32.totalorder %s6165, 7
        %s6167 = scalar_select %p6166, %s6165, 7
        %s6168 = smul.addr %s6167, 8
        %s6169 = scalar_lea.vmem %s9, %s6168
        // Predicated region
        $region77: #{tpu_custom_call.1} parent=55 // pred_check
          %p6170 = pneg %p239
        $region78: #{tpu_custom_call.1} parent=55 // pred_check_branch
          %6172 = sbr.rel (%p6170) target = $region80
        $region79: #{tpu_custom_call.1} parent=55 // pred_region
          %s6173 = smul.u32 4, %s27
        $region80: #{tpu_custom_call.1} parent=55 // pred_fallthru
          _
      $region56: #{tpu_custom_call.1} parent=5 // pred_fallthru
        _
      %p6174 = scmp.le.s32.totalorder 2, %s22
      // Predicated region
      $region81: #{tpu_custom_call.1} parent=5 // pred_check
        %p6175 = pneg %p6174
      $region82: #{tpu_custom_call.1} parent=5 // pred_check_branch
        %6177 = sbr.rel (%p6175) target = $region84
      $region83: #{tpu_custom_call.1} parent=5 // pred_region
        %s6178 = ssub.s32 %s22, 2
        // Predicated region
        $region85: #{tpu_custom_call.1} parent=83 // pred_check
          %p6179 = pneg %p245
        $region86: #{tpu_custom_call.1} parent=83 // pred_check_branch
          %6181 = sbr.rel (%p6179) target = $region88
        $region87: #{tpu_custom_call.1} parent=83 // pred_region
          %s6182 = smul.u32 4, %s28
          %p6183 = scmp.lt.s32.totalorder %s6182, 7
          %s6184 = scalar_select %p6183, %s6182, 7
          %s6185 = smul.addr %s6184, 8
          %s6186 = scalar_lea.vmem %s9, %s6185
        $region88: #{tpu_custom_call.1} parent=83 // pred_fallthru
          _
      $region84: #{tpu_custom_call.1} parent=5 // pred_fallthru
        _
    $region6: #{tpu_custom_call.1} parent=1 // loop_footer
      %s26 = sadd.s32 1, %s22
    $region7: #{tpu_custom_call.1} parent=1 // loop_footer_branch
      %21 = sbr.rel target = $region3
    $region8: #{tpu_custom_call.1} parent=1 // loop_exit
      _
    %6187 = vsyncpa [#allocation4], 1
    %s6188 = scalar_lea.sflag [#allocation4], 1
    %6189 = vsyncpa %s6188, 1
    %6190 = vsyncpa [#allocation6], 1
    %6191 = vsyncpa [#allocation9], 1

// kernel: tpu_custom_call.1
$region0: #{tpu_custom_call.1}
  #allocation0 [shape = 'u32[]', space=smem, size = 0x4, offset = 0x4, fixed_abs, tag = 'smem constant byte address 0x4 - core index']
  #allocation1 [shape = 'u32[72,128]{1,0:T(1,128)}', space=vmem, size = 0x9000, scoped, tag = 'internal scratch']
  #allocation2 [shape = 'f32[1,1]{1,0:T(1,128)S(1)}', space=vmem, size = 0x200, scoped, tag = 'scoped memory for tpu_custom_call.1']
  %s0 = inlined_call_operand.hbm [shape: bf16[64,512], index: 0, kind: input, shape index: {}]
  %s1 = inlined_call_operand.hbm [shape: bf16[512,1024], index: 1, kind: input, shape index: {}]
  %s2 = inlined_call_operand.hbm [shape: f32[1,1024], index: 2, kind: input, shape index: {}]
  %s3 = inlined_call_operand.hbm [shape: bf16[1024,512], index: 3, kind: input, shape index: {}]
  %s4 = inlined_call_operand.vmem [shape: f32[1,512], index: 4, kind: input, shape index: {}]
  %s5 = inlined_call_operand.hbm [shape: bf16[512,128], index: 5, kind: input, shape index: {}]
  %s6 = inlined_call_operand.vmem [shape: f32[1,128], index: 6, kind: input, shape index: {}]
  %s7 = inlined_call_operand.vmem [shape: f32[1,128], index: 7, kind: input, shape index: {}]
  %s8 = inlined_call_operand.<no memory space> [shape: f32[1,1], index: 8, kind: input, shape index: {}]
  %s9 = inlined_call_operand.vmem [shape: f32[64,1], index: 9, kind: output, shape index: {}]
  %s10 = sld [smem:[#allocation0]]
  $region89: #{tpu_custom_call.1} parent=0
    _
  %s12 = ssub.s32 1, %s10
  %s13 = scalar_select 0, %s12, %s10
  %v14 = vstv %s8
  %15 = vst [vmem:[#allocation2] sm:$0x1] %v14
  $region1: #{tpu_custom_call.1} parent=0
    #allocation3 [shape = 'u8[65536]{0}', space=vmem, size = 0x10000, scoped, tag = 'input window, operand 0']
    #allocation4 [shape = 's32[2]{0}', space=sflag, size = 0x8, scoped, tag = 'scoped memory for tpu_custom_call.1']
    #allocation5 [shape = 'u8[1048576]{0}', space=vmem, size = 0x100000, scoped, tag = 'input window, operand 1, single buffered']
    #allocation6 [shape = 's32[1]{0}', space=sflag, size = 0x4, scoped, tag = 'scoped memory for tpu_custom_call.1']
    #allocation7 [shape = 'u8[4096]{0}', space=vmem, size = 0x1000, scoped, tag = 'input window, operand 2, single buffered']
    #allocation8 [shape = 'u8[1048576]{0}', space=vmem, size = 0x100000, scoped, tag = 'input window, operand 3, single buffered']
    #allocation9 [shape = 's32[1]{0}', space=sflag, size = 0x4, scoped, tag = 'scoped memory for tpu_custom_call.1']
    #allocation10 [shape = 'u8[131072]{0}', space=vmem, size = 0x20000, scoped, tag = 'input window, operand 5, single buffered']
    %16 = vsyncpa [#allocation4], 0
    %s17 = scalar_lea.sflag [#allocation4], 1
    %18 = vsyncpa %s17, 0
    %19 = vsyncpa [#allocation6], 0
    %20 = vsyncpa [#allocation9], 0
    loop: start=0, step=1, limit=4
    $region2: #{tpu_custom_call.1} parent=1 // loop_pre_header
      _
    $region3: #{tpu_custom_call.1} parent=1 // loop_header
      %s22 = sphi 0, %s26
      %p23 = scmp.ge.s32.totalorder %s22, 4
      %s32 = sphi 0, %s34
      %s35 = sphi 0, %s32
      %s36 = sphi 0, %s35
      %s52 = sphi 0, %s36
      %s56 = sphi 0, %s56
      %s58 = sphi 0, %s56
      %s59 = sphi 0, %s58
      %s73 = sphi 0, %s59
      %s77 = sphi 0, %s77
      %s79 = sphi 0, %s77
      %s80 = sphi 0, %s79
      %s94 = sphi 0, %s80
      %s98 = sphi 0, %s98
      %s100 = sphi 0, %s98
      %s101 = sphi 0, %s100
      %s115 = sphi 0, %s101
      %s119 = sphi 0, %s119
      %s121 = sphi 0, %s119
      %s122 = sphi 0, %s121
      %s136 = sphi 0, %s122
      %s140 = sphi 0, %s140
      %s142 = sphi 0, %s140
      %s143 = sphi 0, %s142
      %s157 = sphi 0, %s143
      %s161 = sphi 0, %s161
      %s163 = sphi 0, %s161
      %s164 = sphi 0, %s163
      %s178 = sphi 0, %s164
      %s182 = sphi 0, %s182
      %s184 = sphi 0, %s182
      %s185 = sphi 0, %s184
      %s199 = sphi 0, %s185
      %s203 = sphi 0, %s203
      %s205 = sphi 0, %s203
      %s206 = sphi 0, %s205
      %s220 = sphi 0, %s206
      %s226 = sphi 0, %s228
      %s229 = sphi 0, %s226
      %s230 = sphi 0, %s229
      %s246 = sphi 0, %s230
    $region4: #{tpu_custom_call.1} parent=1 // loop_header_branch
      %25 = sbr.rel (%p23) target = $region8
    $region5: #{tpu_custom_call.1} parent=1 // loop_body
      %s27 = ssub.s32 %s22, 1
      %s28 = ssub.s32 %s22, 2
      %s29 = sadd.s32 %s22, 1
      %s30 = ssub.s32 %s22, %s29
      %p31 = scmp.eq.s32.totalorder %s30, 0
      %s33 = sadd.s32 %s32, 1
      %s34 = scalar_select %p31, %s32, %s33
      %p37 = pneg %p31
      %p38 = scmp.eq.s32.totalorder %s22, 1
      %p39 = por %p37, %p38
      %p40 = scmp.ne.s32.totalorder %s32, %s35
      %p41 = scmp.eq.s32.totalorder %s22, 0
      %p42 = por %p40, %p41
      %p43 = scmp.ne.s32.totalorder %s32, %s35
      %p44 = scmp.eq.s32.totalorder %s27, 1
      %p45 = por %p43, %p44
      %p46 = scmp.ne.s32.totalorder %s35, %s36
      %p47 = scmp.eq.s32.totalorder %s27, 0
      %p48 = por %p46, %p47
      %p49 = scmp.ne.s32.totalorder %s35, %s36
      %p50 = scmp.eq.s32.totalorder %s28, 1
      %p51 = por %p49, %p50
      %p53 = scmp.ne.s32.totalorder %s36, %s52
      %p54 = scmp.eq.s32.totalorder %s28, 0
      %p55 = por %p53, %p54
      %s57 = sadd.s32 %s56, 1
      %p60 = scmp.eq.s32.totalorder %s22, 1
      %p61 = scmp.ne.s32.totalorder %s56, %s58
      %p62 = scmp.eq.s32.totalorder %s22, 0
      %p63 = por %p61, %p62
      %p64 = scmp.ne.s32.totalorder %s56, %s58
      %p65 = scmp.eq.s32.totalorder %s27, 1
      %p66 = por %p64, %p65
      %p67 = scmp.ne.s32.totalorder %s58, %s59
      %p68 = scmp.eq.s32.totalorder %s27, 0
      %p69 = por %p67, %p68
      %p70 = scmp.ne.s32.totalorder %s58, %s59
      %p71 = scmp.eq.s32.totalorder %s28, 1
      %p72 = por %p70, %p71
      %p74 = scmp.ne.s32.totalorder %s59, %s73
      %p75 = scmp.eq.s32.totalorder %s28, 0
      %p76 = por %p74, %p75
      %s78 = sadd.s32 %s77, 1
      %p81 = scmp.eq.s32.totalorder %s22, 1
      %p82 = scmp.ne.s32.totalorder %s77, %s79
      %p83 = scmp.eq.s32.totalorder %s22, 0
      %p84 = por %p82, %p83
      %p85 = scmp.ne.s32.totalorder %s77, %s79
      %p86 = scmp.eq.s32.totalorder %s27, 1
      %p87 = por %p85, %p86
      %p88 = scmp.ne.s32.totalorder %s79, %s80
      %p89 = scmp.eq.s32.totalorder %s27, 0
      %p90 = por %p88, %p89
      %p91 = scmp.ne.s32.totalorder %s79, %s80
      %p92 = scmp.eq.s32.totalorder %s28, 1
      %p93 = por %p91, %p92
      %p95 = scmp.ne.s32.totalorder %s80, %s94
      %p96 = scmp.eq.s32.totalorder %s28, 0
      %p97 = por %p95, %p96
      %s99 = sadd.s32 %s98, 1
      %p102 = scmp.eq.s32.totalorder %s22, 1
      %p103 = scmp.ne.s32.totalorder %s98, %s100
      %p104 = scmp.eq.s32.totalorder %s22, 0
      %p105 = por %p103, %p104
      %p106 = scmp.ne.s32.totalorder %s98, %s100
      %p107 = scmp.eq.s32.totalorder %s27, 1
      %p108 = por %p106, %p107
      %p109 = scmp.ne.s32.totalorder %s100, %s101
      %p110 = scmp.eq.s32.totalorder %s27, 0
      %p111 = por %p109, %p110
      %p112 = scmp.ne.s32.totalorder %s100, %s101
      %p113 = scmp.eq.s32.totalorder %s28, 1
      %p114 = por %p112, %p113
      %p116 = scmp.ne.s32.totalorder %s101, %s115
      %p117 = scmp.eq.s32.totalorder %s28, 0
      %p118 = por %p116, %p117
      %s120 = sadd.s32 %s119, 1
      %p123 = scmp.eq.s32.totalorder %s22, 1
      %p124 = scmp.ne.s32.totalorder %s119, %s121
      %p125 = scmp.eq.s32.totalorder %s22, 0
      %p126 = por %p124, %p125
      %p127 = scmp.ne.s32.totalorder %s119, %s121
      %p128 = scmp.eq.s32.totalorder %s27, 1
      %p129 = por %p127, %p128
      %p130 = scmp.ne.s32.totalorder %s121, %s122
      %p131 = scmp.eq.s32.totalorder %s27, 0
      %p132 = por %p130, %p131
      %p133 = scmp.ne.s32.totalorder %s121, %s122
      %p134 = scmp.eq.s32.totalorder %s28, 1
      %p135 = por %p133, %p134
      %p137 = scmp.ne.s32.totalorder %s122, %s136
      %p138 = scmp.eq.s32.totalorder %s28, 0
      %p139 = por %p137, %p138
      %s141 = sadd.s32 %s140, 1
      %p144 = scmp.eq.s32.totalorder %s22, 1
      %p145 = scmp.ne.s32.totalorder %s140, %s142
      %p146 = scmp.eq.s32.totalorder %s22, 0
      %p147 = por %p145, %p146
      %p148 = scmp.ne.s32.totalorder %s140, %s142
      %p149 = scmp.eq.s32.totalorder %s27, 1
      %p150 = por %p148, %p149
      %p151 = scmp.ne.s32.totalorder %s142, %s143
      %p152 = scmp.eq.s32.totalorder %s27, 0
      %p153 = por %p151, %p152
      %p154 = scmp.ne.s32.totalorder %s142, %s143
      %p155 = scmp.eq.s32.totalorder %s28, 1
      %p156 = por %p154, %p155
      %p158 = scmp.ne.s32.totalorder %s143, %s157
      %p159 = scmp.eq.s32.totalorder %s28, 0
      %p160 = por %p158, %p159
      %s162 = sadd.s32 %s161, 1
      %p165 = scmp.eq.s32.totalorder %s22, 1
      %p166 = scmp.ne.s32.totalorder %s161, %s163
      %p167 = scmp.eq.s32.totalorder %s22, 0
      %p168 = por %p166, %p167
      %p169 = scmp.ne.s32.totalorder %s161, %s163
      %p170 = scmp.eq.s32.totalorder %s27, 1
      %p171 = por %p169, %p170
      %p172 = scmp.ne.s32.totalorder %s163, %s164
      %p173 = scmp.eq.s32.totalorder %s27, 0
      %p174 = por %p172, %p173
      %p175 = scmp.ne.s32.totalorder %s163, %s164
      %p176 = scmp.eq.s32.totalorder %s28, 1
      %p177 = por %p175, %p176
      %p179 = scmp.ne.s32.totalorder %s164, %s178
      %p180 = scmp.eq.s32.totalorder %s28, 0
      %p181 = por %p179, %p180
      %s183 = sadd.s32 %s182, 1
      %p186 = scmp.eq.s32.totalorder %s22, 1
      %p187 = scmp.ne.s32.totalorder %s182, %s184
      %p188 = scmp.eq.s32.totalorder %s22, 0
      %p189 = por %p187, %p188
      %p190 = scmp.ne.s32.totalorder %s182, %s184
      %p191 = scmp.eq.s32.totalorder %s27, 1
      %p192 = por %p190, %p191
      %p193 = scmp.ne.s32.totalorder %s184, %s185
      %p194 = scmp.eq.s32.totalorder %s27, 0
      %p195 = por %p193, %p194
      %p196 = scmp.ne.s32.totalorder %s184, %s185
      %p197 = scmp.eq.s32.totalorder %s28, 1
      %p198 = por %p196, %p197
      %p200 = scmp.ne.s32.totalorder %s185, %s199
      %p201 = scmp.eq.s32.totalorder %s28, 0
      %p202 = por %p200, %p201
      %s204 = sadd.s32 %s203, 1
      %p207 = scmp.eq.s32.totalorder %s22, 1
      %p208 = scmp.ne.s32.totalorder %s203, %s205
      %p209 = scmp.eq.s32.totalorder %s22, 0
      %p210 = por %p208, %p209
      %p211 = scmp.ne.s32.totalorder %s203, %s205
      %p212 = scmp.eq.s32.totalorder %s27, 1
      %p213 = por %p211, %p212
      %p214 = scmp.ne.s32.totalorder %s205, %s206
      %p215 = scmp.eq.s32.totalorder %s27, 0
      %p216 = por %p214, %p215
      %p217 = scmp.ne.s32.totalorder %s205, %s206
      %p218 = scmp.eq.s32.totalorder %s28, 1
      %p219 = por %p217, %p218
      %p221 = scmp.ne.s32.totalorder %s206, %s220
      %p222 = scmp.eq.s32.totalorder %s28, 0
      %p223 = por %p221, %p222
      %s224 = ssub.s32 %s22, %s29
      %p225 = scmp.eq.s32.totalorder %s224, 0
      %s227 = sadd.s32 %s226, 1
      %s228 = scalar_select %p225, %s226, %s227
      %p231 = pneg %p225
      %p232 = scmp.eq.s32.totalorder %s22, 1
      %p233 = por %p231, %p232
      %p234 = scmp.ne.s32.totalorder %s226, %s229
      %p235 = scmp.eq.s32.totalorder %s22, 0
      %p236 = por %p234, %p235
      %p237 = scmp.ne.s32.totalorder %s226, %s229
      %p238 = scmp.eq.s32.totalorder %s27, 1
      %p239 = por %p237, %p238
      %p240 = scmp.ne.s32.totalorder %s229, %s230
      %p241 = scmp.eq.s32.totalorder %s27, 0
      %p242 = por %p240, %p241
      %p243 = scmp.ne.s32.totalorder %s229, %s230
      %p244 = scmp.eq.s32.totalorder %s28, 1
      %p245 = por %p243, %p244
      %p247 = scmp.ne.s32.totalorder %s230, %s246
      %p248 = scmp.eq.s32.totalorder %s28, 0
      %p249 = por %p247, %p248
      %p250 = scmp.le.s32.totalorder 1, %s22
      %p251 = scmp.lt.s32.totalorder %s22, 3
      %p252 = pnand %p250, %p251
      %p253 = pneg %p252
      // Predicated region
      $region9: #{tpu_custom_call.1} parent=5 // pred_check
        _
      $region10: #{tpu_custom_call.1} parent=5 // pred_check_branch
        %255 = sbr.rel (%p252) target = $region12
      $region11: #{tpu_custom_call.1} parent=5 // pred_region
        %s256 = ssub.s32 %s22, 1
        // Predicated region
        $region13: #{tpu_custom_call.1} parent=11 // pred_check
          %p257 = pneg %p69
        $region14: #{tpu_custom_call.1} parent=11 // pred_check_branch
          %259 = sbr.rel (%p257) target = $region16
        $region15: #{tpu_custom_call.1} parent=11 // pred_region
          %261 = vsyncadd [#allocation6], 0
          %s262 = sshll.u32 %s1, 4
          %s263 = int_to_ptr.hbm [resolvable:$true] %s262
          %s264 = sshll.u32 [#allocation5], 4
          %s265 = int_to_ptr.vmem [resolvable:$true] %s264
          %270 = dma.hbm_to_vmem [thread:$0]  %s263, 32768, %s265, [#allocation6], 512, 512, 32
        $region16: #{tpu_custom_call.1} parent=11 // pred_fallthru
          _
        // Predicated region
        $region17: #{tpu_custom_call.1} parent=11 // pred_check
          %p271 = pneg %p90
        $region18: #{tpu_custom_call.1} parent=11 // pred_check_branch
          %273 = sbr.rel (%p271) target = $region20
        $region19: #{tpu_custom_call.1} parent=11 // pred_region
          %275 = vsyncadd [#allocation6], 0
          %s277 = sshll.u32 %s2, 4
          %s278 = int_to_ptr.hbm [resolvable:$true] %s277
          %s279 = sshll.u32 [#allocation7], 4
          %s280 = int_to_ptr.vmem [resolvable:$true] %s279
          %282 = dma.hbm_to_vmem [thread:$0]  %s278, 128, %s280, [#allocation6]
        $region20: #{tpu_custom_call.1} parent=11 // pred_fallthru
          _
        // Predicated region
        $region21: #{tpu_custom_call.1} parent=11 // pred_check
          %p283 = pneg %p111
        $region22: #{tpu_custom_call.1} parent=11 // pred_check_branch
          %285 = sbr.rel (%p283) target = $region24
        $region23: #{tpu_custom_call.1} parent=11 // pred_region
          %287 = vsyncadd [#allocation9], 0
          %s288 = sshll.u32 %s3, 4
          %s289 = int_to_ptr.hbm [resolvable:$true] %s288
          %s290 = sshll.u32 [#allocation8], 4
          %s291 = int_to_ptr.vmem [resolvable:$true] %s290
          %296 = dma.hbm_to_vmem [thread:$0]  %s289, 32768, %s291, [#allocation9], 256, 256, 16
        $region24: #{tpu_custom_call.1} parent=11 // pred_fallthru
          _
        // Predicated region
        $region25: #{tpu_custom_call.1} parent=11 // pred_check
          %p297 = pneg %p132
        $region26: #{tpu_custom_call.1} parent=11 // pred_check_branch
          %299 = sbr.rel (%p297) target = $region28
        $region27: #{tpu_custom_call.1} parent=11 // pred_region
          _
        $region28: #{tpu_custom_call.1} parent=11 // pred_fallthru
          _
        // Predicated region
        $region29: #{tpu_custom_call.1} parent=11 // pred_check
          %p300 = pneg %p153
        $region30: #{tpu_custom_call.1} parent=11 // pred_check_branch
          %302 = sbr.rel (%p300) target = $region32
        $region31: #{tpu_custom_call.1} parent=11 // pred_region
          %304 = vsyncadd [#allocation9], 0
          %s305 = sshll.u32 %s5, 4
          %s306 = int_to_ptr.hbm [resolvable:$true] %s305
          %s307 = sshll.u32 [#allocation10], 4
          %s308 = int_to_ptr.vmem [resolvable:$true] %s307
          %313 = dma.hbm_to_vmem [thread:$0]  %s306, 4096, %s308, [#allocation9], 64, 64, 4
        $region32: #{tpu_custom_call.1} parent=11 // pred_fallthru
          _
        // Predicated region
        $region33: #{tpu_custom_call.1} parent=11 // pred_check
          %p314 = pneg %p174
        $region34: #{tpu_custom_call.1} parent=11 // pred_check_branch
          %316 = sbr.rel (%p314) target = $region36
        $region35: #{tpu_custom_call.1} parent=11 // pred_region
          _
        $region36: #{tpu_custom_call.1} parent=11 // pred_fallthru
          _
        // Predicated region
        $region37: #{tpu_custom_call.1} parent=11 // pred_check
          %p317 = pneg %p195
        $region38: #{tpu_custom_call.1} parent=11 // pred_check_branch
          %319 = sbr.rel (%p317) target = $region40
        $region39: #{tpu_custom_call.1} parent=11 // pred_region
          _
        $region40: #{tpu_custom_call.1} parent=11 // pred_fallthru
          _
        // Predicated region
        $region41: #{tpu_custom_call.1} parent=11 // pred_check
          %p320 = pneg %p216
        $region42: #{tpu_custom_call.1} parent=11 // pred_check_branch
          %322 = sbr.rel (%p320) target = $region44
        $region43: #{tpu_custom_call.1} parent=11 // pred_region
          _
        $region44: #{tpu_custom_call.1} parent=11 // pred_fallthru
          _
      $region12: #{tpu_custom_call.1} parent=5 // pred_fallthru
        _
      %p323 = scmp.lt.s32.totalorder %s22, 2
      // Predicated region
      $region45: #{tpu_custom_call.1} parent=5 // pred_check
        %p324 = pneg %p323
      $region46: #{tpu_custom_call.1} parent=5 // pred_check_branch
        %326 = sbr.rel (%p324) target = $region48
      $region47: #{tpu_custom_call.1} parent=5 // pred_region
        // Predicated region
        $region49: #{tpu_custom_call.1} parent=47 // pred_check
          %p327 = pneg %p42
        $region50: #{tpu_custom_call.1} parent=47 // pred_check_branch
          %329 = sbr.rel (%p327) target = $region52
        $region51: #{tpu_custom_call.1} parent=47 // pred_region
          %s330 = sand.u32 %s32, 1
          %s331 = scalar_lea.sflag [#allocation4], %s330
          %s332 = sand.u32 %s32, 1
          %s333 = smul.addr %s332, 64
          %s334 = scalar_lea.vmem [#allocation3], %s333
          %s335 = smul.u32 4, %s22
          %337 = vsyncadd %s331, 0
          %s338 = smul.addr %s335, 4
          %s339 = smul.addr %s338, 4
          %s340 = scalar_lea.hbm %s0, %s339
          %s341 = sshll.u32 %s340, 4
          %s342 = int_to_ptr.hbm [resolvable:$true] %s341
          %s343 = sshll.u32 %s334, 4
          %s344 = int_to_ptr.vmem [resolvable:$true] %s343
          %349 = dma.hbm_to_vmem [thread:$0]  %s342, 1024, %s344, %s331, 256, 256, 16
        $region52: #{tpu_custom_call.1} parent=47 // pred_fallthru
          _
      $region48: #{tpu_custom_call.1} parent=5 // pred_fallthru
        _
      %p350 = scmp.le.s32.totalorder 1, %s22
      %p351 = scmp.lt.s32.totalorder %s22, 3
      %p352 = pnand %p350, %p351
      %p353 = pneg %p352
      // Predicated region
      $region53: #{tpu_custom_call.1} parent=5 // pred_check
        _
      $region54: #{tpu_custom_call.1} parent=5 // pred_check_branch
        %355 = sbr.rel (%p352) target = $region56
      $region55: #{tpu_custom_call.1} parent=5 // pred_region
        %s356 = ssub.s32 %s22, 1
        %s357 = sand.u32 %s35, 1
        %s358 = scalar_lea.sflag [#allocation4], %s357
        %s359 = sand.u32 %s35, 1
        %s360 = smul.addr %s359, 64
        %s361 = scalar_lea.vmem [#allocation3], %s360
        // Predicated region
        $region57: #{tpu_custom_call.1} parent=55 // pred_check
          %p362 = pneg %p48
        $region58: #{tpu_custom_call.1} parent=55 // pred_check_branch
          %364 = sbr.rel (%p362) target = $region60
        $region59: #{tpu_custom_call.1} parent=55 // pred_region
          %366 = dma.done %s358, 1024
        $region60: #{tpu_custom_call.1} parent=55 // pred_fallthru
          _
        // Predicated region
        $region61: #{tpu_custom_call.1} parent=55 // pred_check
          %p367 = pneg %p69
        $region62: #{tpu_custom_call.1} parent=55 // pred_check_branch
          %369 = sbr.rel (%p367) target = $region64
        $region63: #{tpu_custom_call.1} parent=55 // pred_region
          %371 = dma.done [#allocation6], 32768
        $region64: #{tpu_custom_call.1} parent=55 // pred_fallthru
          _
        // Predicated region
        $region65: #{tpu_custom_call.1} parent=55 // pred_check
          %p372 = pneg %p90
        $region66: #{tpu_custom_call.1} parent=55 // pred_check_branch
          %374 = sbr.rel (%p372) target = $region68
        $region67: #{tpu_custom_call.1} parent=55 // pred_region
          %376 = dma.done [#allocation6], 128
        $region68: #{tpu_custom_call.1} parent=55 // pred_fallthru
          _
        // Predicated region
        $region69: #{tpu_custom_call.1} parent=55 // pred_check
          %p377 = pneg %p111
        $region70: #{tpu_custom_call.1} parent=55 // pred_check_branch
          %379 = sbr.rel (%p377) target = $region72
        $region71: #{tpu_custom_call.1} parent=55 // pred_region
          %381 = dma.done [#allocation9], 32768
        $region72: #{tpu_custom_call.1} parent=55 // pred_fallthru
          _
        // Predicated region
        $region73: #{tpu_custom_call.1} parent=55 // pred_check
          %p382 = pneg %p153
        $region74: #{tpu_custom_call.1} parent=55 // pred_check_branch
          %384 = sbr.rel (%p382) target = $region76
        $region75: #{tpu_custom_call.1} parent=55 // pred_region
          %386 = dma.done [#allocation9], 4096
        $region76: #{tpu_custom_call.1} parent=55 // pred_fallthru
          _
        %s387 = sand.u32 %s35, 1
        %s388 = scalar_lea.sflag [#allocation4], %s387
        %s389 = sand.u32 %s35, 1
        %s390 = smul.addr %s389, 64
        %s391 = scalar_lea.vmem [#allocation3], %s390
        %p392 = pneg %p48
        %p393 = pneg %p45
        %p394 = pneg %p69
        %p395 = pneg %p66
        %p396 = pneg %p90
        %p397 = pneg %p87
        %p398 = pneg %p111
        %p399 = pneg %p108
        %p400 = pneg %p132
        %p401 = pneg %p129
        %p402 = pneg %p153
        %p403 = pneg %p150
        %p404 = pneg %p174
        %p405 = pneg %p171
        %p406 = pneg %p195
        %p407 = pneg %p192
        %p408 = pneg %p216
        %p409 = pneg %p213
        %p410 = pneg %p242
        %p411 = pneg %p239
        %s412 = smul.u32 4, %s27
        %p413 = scmp.lt.s32.totalorder %s412, 7
        %s414 = scalar_select %p413, %s412, 7
        %s415 = smul.addr %s414, 8
        %s416 = scalar_lea.vmem %s9, %s415
        %s417 = smul.u32 4, %s27
        %s418 = smul.u32 4, %s27
        %p419 = scmp.lt.s32.totalorder %s418, 7
        %s420 = scalar_select %p419, %s418, 7
        %s421 = smul.addr %s420, 8
        %s422 = scalar_lea.vmem %s9, %s421
        %s423 = smul.u32 4, %s27
        %v424 = vld [vmem:[%s361] sm:$0xff]
        %v425 = vld [vmem:[%s361 + $0x8] sm:$0xff]
        %v426 = vld [vmem:[%s361 + $0x10] sm:$0xff]
        %v427 = vld [vmem:[%s361 + $0x18] sm:$0xff]
        %v428 = vld [vmem:[%s361 + $0x20] sm:$0xff]
        %v429 = vld [vmem:[%s361 + $0x28] sm:$0xff]
        %v430 = vld [vmem:[%s361 + $0x30] sm:$0xff]
        %v431 = vld [vmem:[%s361 + $0x38] sm:$0xff]
        %v432 = vld [vmem:[#allocation5] sm:$0xff]
        %v433 = vld [vmem:[#allocation5 + $0x8] sm:$0xff]
        %v434 = vld [vmem:[#allocation5 + $0x10] sm:$0xff]
        %v435 = vld [vmem:[#allocation5 + $0x18] sm:$0xff]
        %v436 = vld [vmem:[#allocation5 + $0x20] sm:$0xff]
        %v437 = vld [vmem:[#allocation5 + $0x28] sm:$0xff]
        %v438 = vld [vmem:[#allocation5 + $0x30] sm:$0xff]
        %v439 = vld [vmem:[#allocation5 + $0x38] sm:$0xff]
        %v440 = vld [vmem:[#allocation5 + $0x40] sm:$0xff]
        %v441 = vld [vmem:[#allocation5 + $0x48] sm:$0xff]
        %v442 = vld [vmem:[#allocation5 + $0x50] sm:$0xff]
        %v443 = vld [vmem:[#allocation5 + $0x58] sm:$0xff]
        %v444 = vld [vmem:[#allocation5 + $0x60] sm:$0xff]
        %v445 = vld [vmem:[#allocation5 + $0x68] sm:$0xff]
        %v446 = vld [vmem:[#allocation5 + $0x70] sm:$0xff]
        %v447 = vld [vmem:[#allocation5 + $0x78] sm:$0xff]
        %v448 = vld [vmem:[#allocation5 + $0x80] sm:$0xff]
        %v449 = vld [vmem:[#allocation5 + $0x88] sm:$0xff]
        %v450 = vld [vmem:[#allocation5 + $0x90] sm:$0xff]
        %v451 = vld [vmem:[#allocation5 + $0x98] sm:$0xff]
        %v452 = vld [vmem:[#allocation5 + $0xa0] sm:$0xff]
        %v453 = vld [vmem:[#allocation5 + $0xa8] sm:$0xff]
        %v454 = vld [vmem:[#allocation5 + $0xb0] sm:$0xff]
        %v455 = vld [vmem:[#allocation5 + $0xb8] sm:$0xff]
        %v456 = vld [vmem:[#allocation5 + $0xc0] sm:$0xff]
        %v457 = vld [vmem:[#allocation5 + $0xc8] sm:$0xff]
        %v458 = vld [vmem:[#allocation5 + $0xd0] sm:$0xff]
        %v459 = vld [vmem:[#allocation5 + $0xd8] sm:$0xff]
        %v460 = vld [vmem:[#allocation5 + $0xe0] sm:$0xff]
        %v461 = vld [vmem:[#allocation5 + $0xe8] sm:$0xff]
        %v462 = vld [vmem:[#allocation5 + $0xf0] sm:$0xff]
        %v463 = vld [vmem:[#allocation5 + $0xf8] sm:$0xff]
        %v464 = vld [vmem:[#allocation5 + $0x100] sm:$0xff]
        %v465 = vld [vmem:[#allocation5 + $0x108] sm:$0xff]
        %v466 = vld [vmem:[#allocation5 + $0x110] sm:$0xff]
        %v467 = vld [vmem:[#allocation5 + $0x118] sm:$0xff]
        %v468 = vld [vmem:[#allocation5 + $0x120] sm:$0xff]
        %v469 = vld [vmem:[#allocation5 + $0x128] sm:$0xff]
        %v470 = vld [vmem:[#allocation5 + $0x130] sm:$0xff]
        %v471 = vld [vmem:[#allocation5 + $0x138] sm:$0xff]
        %v472 = vld [vmem:[#allocation5 + $0x140] sm:$0xff]
        %v473 = vld [vmem:[#allocation5 + $0x148] sm:$0xff]
        %v474 = vld [vmem:[#allocation5 + $0x150] sm:$0xff]
        %v475 = vld [vmem:[#allocation5 + $0x158] sm:$0xff]
        %v476 = vld [vmem:[#allocation5 + $0x160] sm:$0xff]
        %v477 = vld [vmem:[#allocation5 + $0x168] sm:$0xff]
        %v478 = vld [vmem:[#allocation5 + $0x170] sm:$0xff]
        %v479 = vld [vmem:[#allocation5 + $0x178] sm:$0xff]
        %v480 = vld [vmem:[#allocation5 + $0x180] sm:$0xff]
        %v481 = vld [vmem:[#allocation5 + $0x188] sm:$0xff]
        %v482 = vld [vmem:[#allocation5 + $0x190] sm:$0xff]
        %v483 = vld [vmem:[#allocation5 + $0x198] sm:$0xff]
        %v484 = vld [vmem:[#allocation5 + $0x1a0] sm:$0xff]
        %v485 = vld [vmem:[#allocation5 + $0x1a8] sm:$0xff]
        %v486 = vld [vmem:[#allocation5 + $0x1b0] sm:$0xff]
        %v487 = vld [vmem:[#allocation5 + $0x1b8] sm:$0xff]
        %v488 = vld [vmem:[#allocation5 + $0x1c0] sm:$0xff]
        %v489 = vld [vmem:[#allocation5 + $0x1c8] sm:$0xff]
        %v490 = vld [vmem:[#allocation5 + $0x1d0] sm:$0xff]
        %v491 = vld [vmem:[#allocation5 + $0x1d8] sm:$0xff]
        %v492 = vld [vmem:[#allocation5 + $0x1e0] sm:$0xff]
        %v493 = vld [vmem:[#allocation5 + $0x1e8] sm:$0xff]
        %v494 = vld [vmem:[#allocation5 + $0x1f0] sm:$0xff]
        %v495 = vld [vmem:[#allocation5 + $0x1f8] sm:$0xff]
        %v496 = vld [vmem:[#allocation5 + $0x200] sm:$0xff]
        %v497 = vld [vmem:[#allocation5 + $0x208] sm:$0xff]
        %v498 = vld [vmem:[#allocation5 + $0x210] sm:$0xff]
        %v499 = vld [vmem:[#allocation5 + $0x218] sm:$0xff]
        %v500 = vld [vmem:[#allocation5 + $0x220] sm:$0xff]
        %v501 = vld [vmem:[#allocation5 + $0x228] sm:$0xff]
        %v502 = vld [vmem:[#allocation5 + $0x230] sm:$0xff]
        %v503 = vld [vmem:[#allocation5 + $0x238] sm:$0xff]
        %v504 = vld [vmem:[#allocation5 + $0x240] sm:$0xff]
        %v505 = vld [vmem:[#allocation5 + $0x248] sm:$0xff]
        %v506 = vld [vmem:[#allocation5 + $0x250] sm:$0xff]
        %v507 = vld [vmem:[#allocation5 + $0x258] sm:$0xff]
        %v508 = vld [vmem:[#allocation5 + $0x260] sm:$0xff]
        %v509 = vld [vmem:[#allocation5 + $0x268] sm:$0xff]
        %v510 = vld [vmem:[#allocation5 + $0x270] sm:$0xff]
        %v511 = vld [vmem:[#allocation5 + $0x278] sm:$0xff]
        %v512 = vld [vmem:[#allocation5 + $0x280] sm:$0xff]
        %v513 = vld [vmem:[#allocation5 + $0x288] sm:$0xff]
        %v514 = vld [vmem:[#allocation5 + $0x290] sm:$0xff]
        %v515 = vld [vmem:[#allocation5 + $0x298] sm:$0xff]
        %v516 = vld [vmem:[#allocation5 + $0x2a0] sm:$0xff]
        %v517 = vld [vmem:[#allocation5 + $0x2a8] sm:$0xff]
        %v518 = vld [vmem:[#allocation5 + $0x2b0] sm:$0xff]
        %v519 = vld [vmem:[#allocation5 + $0x2b8] sm:$0xff]
        %v520 = vld [vmem:[#allocation5 + $0x2c0] sm:$0xff]
        %v521 = vld [vmem:[#allocation5 + $0x2c8] sm:$0xff]
        %v522 = vld [vmem:[#allocation5 + $0x2d0] sm:$0xff]
        %v523 = vld [vmem:[#allocation5 + $0x2d8] sm:$0xff]
        %v524 = vld [vmem:[#allocation5 + $0x2e0] sm:$0xff]
        %v525 = vld [vmem:[#allocation5 + $0x2e8] sm:$0xff]
        %v526 = vld [vmem:[#allocation5 + $0x2f0] sm:$0xff]
        %v527 = vld [vmem:[#allocation5 + $0x2f8] sm:$0xff]
        %v528 = vld [vmem:[#allocation5 + $0x300] sm:$0xff]
        %v529 = vld [vmem:[#allocation5 + $0x308] sm:$0xff]
        %v530 = vld [vmem:[#allocation5 + $0x310] sm:$0xff]
        %v531 = vld [vmem:[#allocation5 + $0x318] sm:$0xff]
        %v532 = vld [vmem:[#allocation5 + $0x320] sm:$0xff]
        %v533 = vld [vmem:[#allocation5 + $0x328] sm:$0xff]
        %v534 = vld [vmem:[#allocation5 + $0x330] sm:$0xff]
        %v535 = vld [vmem:[#allocation5 + $0x338] sm:$0xff]
        %v536 = vld [vmem:[#allocation5 + $0x340] sm:$0xff]
        %v537 = vld [vmem:[#allocation5 + $0x348] sm:$0xff]
        %v538 = vld [vmem:[#allocation5 + $0x350] sm:$0xff]
        %v539 = vld [vmem:[#allocation5 + $0x358] sm:$0xff]
        %v540 = vld [vmem:[#allocation5 + $0x360] sm:$0xff]
        %v541 = vld [vmem:[#allocation5 + $0x368] sm:$0xff]
        %v542 = vld [vmem:[#allocation5 + $0x370] sm:$0xff]
        %v543 = vld [vmem:[#allocation5 + $0x378] sm:$0xff]
        %v544 = vld [vmem:[#allocation5 + $0x380] sm:$0xff]
        %v545 = vld [vmem:[#allocation5 + $0x388] sm:$0xff]
        %v546 = vld [vmem:[#allocation5 + $0x390] sm:$0xff]
        %v547 = vld [vmem:[#allocation5 + $0x398] sm:$0xff]
        %v548 = vld [vmem:[#allocation5 + $0x3a0] sm:$0xff]
        %v549 = vld [vmem:[#allocation5 + $0x3a8] sm:$0xff]
        %v550 = vld [vmem:[#allocation5 + $0x3b0] sm:$0xff]
        %v551 = vld [vmem:[#allocation5 + $0x3b8] sm:$0xff]
        %v552 = vld [vmem:[#allocation5 + $0x3c0] sm:$0xff]
        %v553 = vld [vmem:[#allocation5 + $0x3c8] sm:$0xff]
        %v554 = vld [vmem:[#allocation5 + $0x3d0] sm:$0xff]
        %v555 = vld [vmem:[#allocation5 + $0x3d8] sm:$0xff]
        %v556 = vld [vmem:[#allocation5 + $0x3e0] sm:$0xff]
        %v557 = vld [vmem:[#allocation5 + $0x3e8] sm:$0xff]
        %v558 = vld [vmem:[#allocation5 + $0x3f0] sm:$0xff]
        %v559 = vld [vmem:[#allocation5 + $0x3f8] sm:$0xff]
        %v560 = vld [vmem:[#allocation5 + $0x400] sm:$0xff]
        %v561 = vld [vmem:[#allocation5 + $0x408] sm:$0xff]
        %v562 = vld [vmem:[#allocation5 + $0x410] sm:$0xff]
        %v563 = vld [vmem:[#allocation5 + $0x418] sm:$0xff]
        %v564 = vld [vmem:[#allocation5 + $0x420] sm:$0xff]
        %v565 = vld [vmem:[#allocation5 + $0x428] sm:$0xff]
        %v566 = vld [vmem:[#allocation5 + $0x430] sm:$0xff]
        %v567 = vld [vmem:[#allocation5 + $0x438] sm:$0xff]
        %v568 = vld [vmem:[#allocation5 + $0x440] sm:$0xff]
        %v569 = vld [vmem:[#allocation5 + $0x448] sm:$0xff]
        %v570 = vld [vmem:[#allocation5 + $0x450] sm:$0xff]
        %v571 = vld [vmem:[#allocation5 + $0x458] sm:$0xff]
        %v572 = vld [vmem:[#allocation5 + $0x460] sm:$0xff]
        %v573 = vld [vmem:[#allocation5 + $0x468] sm:$0xff]
        %v574 = vld [vmem:[#allocation5 + $0x470] sm:$0xff]
        %v575 = vld [vmem:[#allocation5 + $0x478] sm:$0xff]
        %v576 = vld [vmem:[#allocation5 + $0x480] sm:$0xff]
        %v577 = vld [vmem:[#allocation5 + $0x488] sm:$0xff]
        %v578 = vld [vmem:[#allocation5 + $0x490] sm:$0xff]
        %v579 = vld [vmem:[#allocation5 + $0x498] sm:$0xff]
        %v580 = vld [vmem:[#allocation5 + $0x4a0] sm:$0xff]
        %v581 = vld [vmem:[#allocation5 + $0x4a8] sm:$0xff]
        %v582 = vld [vmem:[#allocation5 + $0x4b0] sm:$0xff]
        %v583 = vld [vmem:[#allocation5 + $0x4b8] sm:$0xff]
        %v584 = vld [vmem:[#allocation5 + $0x4c0] sm:$0xff]
        %v585 = vld [vmem:[#allocation5 + $0x4c8] sm:$0xff]
        %v586 = vld [vmem:[#allocation5 + $0x4d0] sm:$0xff]
        %v587 = vld [vmem:[#allocation5 + $0x4d8] sm:$0xff]
        %v588 = vld [vmem:[#allocation5 + $0x4e0] sm:$0xff]
        %v589 = vld [vmem:[#allocation5 + $0x4e8] sm:$0xff]
        %v590 = vld [vmem:[#allocation5 + $0x4f0] sm:$0xff]
        %v591 = vld [vmem:[#allocation5 + $0x4f8] sm:$0xff]
        %v592 = vld [vmem:[#allocation5 + $0x500] sm:$0xff]
        %v593 = vld [vmem:[#allocation5 + $0x508] sm:$0xff]
        %v594 = vld [vmem:[#allocation5 + $0x510] sm:$0xff]
        %v595 = vld [vmem:[#allocation5 + $0x518] sm:$0xff]
        %v596 = vld [vmem:[#allocation5 + $0x520] sm:$0xff]
        %v597 = vld [vmem:[#allocation5 + $0x528] sm:$0xff]
        %v598 = vld [vmem:[#allocation5 + $0x530] sm:$0xff]
        %v599 = vld [vmem:[#allocation5 + $0x538] sm:$0xff]
        %v600 = vld [vmem:[#allocation5 + $0x540] sm:$0xff]
        %v601 = vld [vmem:[#allocation5 + $0x548] sm:$0xff]
        %v602 = vld [vmem:[#allocation5 + $0x550] sm:$0xff]
        %v603 = vld [vmem:[#allocation5 + $0x558] sm:$0xff]
        %v604 = vld [vmem:[#allocation5 + $0x560] sm:$0xff]
        %v605 = vld [vmem:[#allocation5 + $0x568] sm:$0xff]
        %v606 = vld [vmem:[#allocation5 + $0x570] sm:$0xff]
        %v607 = vld [vmem:[#allocation5 + $0x578] sm:$0xff]
        %v608 = vld [vmem:[#allocation5 + $0x580] sm:$0xff]
        %v609 = vld [vmem:[#allocation5 + $0x588] sm:$0xff]
        %v610 = vld [vmem:[#allocation5 + $0x590] sm:$0xff]
        %v611 = vld [vmem:[#allocation5 + $0x598] sm:$0xff]
        %v612 = vld [vmem:[#allocation5 + $0x5a0] sm:$0xff]
        %v613 = vld [vmem:[#allocation5 + $0x5a8] sm:$0xff]
        %v614 = vld [vmem:[#allocation5 + $0x5b0] sm:$0xff]
        %v615 = vld [vmem:[#allocation5 + $0x5b8] sm:$0xff]
        %v616 = vld [vmem:[#allocation5 + $0x5c0] sm:$0xff]
        %v617 = vld [vmem:[#allocation5 + $0x5c8] sm:$0xff]
        %v618 = vld [vmem:[#allocation5 + $0x5d0] sm:$0xff]
        %v619 = vld [vmem:[#allocation5 + $0x5d8] sm:$0xff]
        %v620 = vld [vmem:[#allocation5 + $0x5e0] sm:$0xff]
        %v621 = vld [vmem:[#allocation5 + $0x5e8] sm:$0xff]
        %v622 = vld [vmem:[#allocation5 + $0x5f0] sm:$0xff]
        %v623 = vld [vmem:[#allocation5 + $0x5f8] sm:$0xff]
        %v624 = vld [vmem:[#allocation5 + $0x600] sm:$0xff]
        %v625 = vld [vmem:[#allocation5 + $0x608] sm:$0xff]
        %v626 = vld [vmem:[#allocation5 + $0x610] sm:$0xff]
        %v627 = vld [vmem:[#allocation5 + $0x618] sm:$0xff]
        %v628 = vld [vmem:[#allocation5 + $0x620] sm:$0xff]
        %v629 = vld [vmem:[#allocation5 + $0x628] sm:$0xff]
        %v630 = vld [vmem:[#allocation5 + $0x630] sm:$0xff]
        %v631 = vld [vmem:[#allocation5 + $0x638] sm:$0xff]
        %v632 = vld [vmem:[#allocation5 + $0x640] sm:$0xff]
        %v633 = vld [vmem:[#allocation5 + $0x648] sm:$0xff]
        %v634 = vld [vmem:[#allocation5 + $0x650] sm:$0xff]
        %v635 = vld [vmem:[#allocation5 + $0x658] sm:$0xff]
        %v636 = vld [vmem:[#allocation5 + $0x660] sm:$0xff]
        %v637 = vld [vmem:[#allocation5 + $0x668] sm:$0xff]
        %v638 = vld [vmem:[#allocation5 + $0x670] sm:$0xff]
        %v639 = vld [vmem:[#allocation5 + $0x678] sm:$0xff]
        %v640 = vld [vmem:[#allocation5 + $0x680] sm:$0xff]
        %v641 = vld [vmem:[#allocation5 + $0x688] sm:$0xff]
        %v642 = vld [vmem:[#allocation5 + $0x690] sm:$0xff]
        %v643 = vld [vmem:[#allocation5 + $0x698] sm:$0xff]
        %v644 = vld [vmem:[#allocation5 + $0x6a0] sm:$0xff]
        %v645 = vld [vmem:[#allocation5 + $0x6a8] sm:$0xff]
        %v646 = vld [vmem:[#allocation5 + $0x6b0] sm:$0xff]
        %v647 = vld [vmem:[#allocation5 + $0x6b8] sm:$0xff]
        %v648 = vld [vmem:[#allocation5 + $0x6c0] sm:$0xff]
        %v649 = vld [vmem:[#allocation5 + $0x6c8] sm:$0xff]
        %v650 = vld [vmem:[#allocation5 + $0x6d0] sm:$0xff]
        %v651 = vld [vmem:[#allocation5 + $0x6d8] sm:$0xff]
        %v652 = vld [vmem:[#allocation5 + $0x6e0] sm:$0xff]
        %v653 = vld [vmem:[#allocation5 + $0x6e8] sm:$0xff]
        %v654 = vld [vmem:[#allocation5 + $0x6f0] sm:$0xff]
        %v655 = vld [vmem:[#allocation5 + $0x6f8] sm:$0xff]
        %v656 = vld [vmem:[#allocation5 + $0x700] sm:$0xff]
        %v657 = vld [vmem:[#allocation5 + $0x708] sm:$0xff]
        %v658 = vld [vmem:[#allocation5 + $0x710] sm:$0xff]
        %v659 = vld [vmem:[#allocation5 + $0x718] sm:$0xff]
        %v660 = vld [vmem:[#allocation5 + $0x720] sm:$0xff]
        %v661 = vld [vmem:[#allocation5 + $0x728] sm:$0xff]
        %v662 = vld [vmem:[#allocation5 + $0x730] sm:$0xff]
        %v663 = vld [vmem:[#allocation5 + $0x738] sm:$0xff]
        %v664 = vld [vmem:[#allocation5 + $0x740] sm:$0xff]
        %v665 = vld [vmem:[#allocation5 + $0x748] sm:$0xff]
        %v666 = vld [vmem:[#allocation5 + $0x750] sm:$0xff]
        %v667 = vld [vmem:[#allocation5 + $0x758] sm:$0xff]
        %v668 = vld [vmem:[#allocation5 + $0x760] sm:$0xff]
        %v669 = vld [vmem:[#allocation5 + $0x768] sm:$0xff]
        %v670 = vld [vmem:[#allocation5 + $0x770] sm:$0xff]
        %v671 = vld [vmem:[#allocation5 + $0x778] sm:$0xff]
        %v672 = vld [vmem:[#allocation5 + $0x780] sm:$0xff]
        %v673 = vld [vmem:[#allocation5 + $0x788] sm:$0xff]
        %v674 = vld [vmem:[#allocation5 + $0x790] sm:$0xff]
        %v675 = vld [vmem:[#allocation5 + $0x798] sm:$0xff]
        %v676 = vld [vmem:[#allocation5 + $0x7a0] sm:$0xff]
        %v677 = vld [vmem:[#allocation5 + $0x7a8] sm:$0xff]
        %v678 = vld [vmem:[#allocation5 + $0x7b0] sm:$0xff]
        %v679 = vld [vmem:[#allocation5 + $0x7b8] sm:$0xff]
        %v680 = vld [vmem:[#allocation5 + $0x7c0] sm:$0xff]
        %v681 = vld [vmem:[#allocation5 + $0x7c8] sm:$0xff]
        %v682 = vld [vmem:[#allocation5 + $0x7d0] sm:$0xff]
        %v683 = vld [vmem:[#allocation5 + $0x7d8] sm:$0xff]
        %v684 = vld [vmem:[#allocation5 + $0x7e0] sm:$0xff]
        %v685 = vld [vmem:[#allocation5 + $0x7e8] sm:$0xff]
        %v686 = vld [vmem:[#allocation5 + $0x7f0] sm:$0xff]
        %v687 = vld [vmem:[#allocation5 + $0x7f8] sm:$0xff]
        %v688 = vld [vmem:[#allocation7] sm:$0xff]
        %v690 = vperm.slane %v688, 0
        %v691 = vperm.slane %v688, 1
        %v692 = vperm.slane %v688, 2
        %v693 = vperm.slane %v688, 3
        %v694 = vperm.slane %v688, 4
        %v695 = vperm.slane %v688, 5
        %v696 = vperm.slane %v688, 6
        %v697 = vperm.slane %v688, 7
        %v714 = vunpack.c.l.b16 %v424
        %v715 = vunpack.c.h.b16 %v424
        %v716 = vunpack.c.l.b16 %v425
        %v717 = vunpack.c.h.b16 %v425
        %v718 = vunpack.c.l.b16 %v426
        %v719 = vunpack.c.h.b16 %v426
        %v720 = vunpack.c.l.b16 %v427
        %v721 = vunpack.c.h.b16 %v427
        %v722 = vunpack.c.l.b16 %v428
        %v723 = vunpack.c.h.b16 %v428
        %v724 = vunpack.c.l.b16 %v429
        %v725 = vunpack.c.h.b16 %v429
        %v726 = vunpack.c.l.b16 %v430
        %v727 = vunpack.c.h.b16 %v430
        %v728 = vunpack.c.l.b16 %v431
        %v729 = vunpack.c.h.b16 %v431
        %v730 = vpack.c.b16 %v718, %v714
        %v731 = vpack.c.b16 %v719, %v715
        %v732 = vpack.c.b16 %v720, %v716
        %v733 = vpack.c.b16 %v721, %v717
        %v734 = vpack.c.b16 %v726, %v722
        %v735 = vpack.c.b16 %v727, %v723
        %v736 = vpack.c.b16 %v728, %v724
        %v737 = vpack.c.b16 %v729, %v725
        %v1002 = vunpack.c.l.b16 %v432
        %v1003 = vunpack.c.h.b16 %v432
        %v1004 = vunpack.c.l.b16 %v433
        %v1005 = vunpack.c.h.b16 %v433
        %v1006 = vunpack.c.l.b16 %v434
        %v1007 = vunpack.c.h.b16 %v434
        %v1008 = vunpack.c.l.b16 %v435
        %v1009 = vunpack.c.h.b16 %v435
        %v1010 = vunpack.c.l.b16 %v436
        %v1011 = vunpack.c.h.b16 %v436
        %v1012 = vunpack.c.l.b16 %v437
        %v1013 = vunpack.c.h.b16 %v437
        %v1014 = vunpack.c.l.b16 %v438
        %v1015 = vunpack.c.h.b16 %v438
        %v1016 = vunpack.c.l.b16 %v439
        %v1017 = vunpack.c.h.b16 %v439
        %v1018 = vunpack.c.l.b16 %v440
        %v1019 = vunpack.c.h.b16 %v440
        %v1020 = vunpack.c.l.b16 %v441
        %v1021 = vunpack.c.h.b16 %v441
        %v1022 = vunpack.c.l.b16 %v442
        %v1023 = vunpack.c.h.b16 %v442
        %v1024 = vunpack.c.l.b16 %v443
        %v1025 = vunpack.c.h.b16 %v443
        %v1026 = vunpack.c.l.b16 %v444
        %v1027 = vunpack.c.h.b16 %v444
        %v1028 = vunpack.c.l.b16 %v445
        %v1029 = vunpack.c.h.b16 %v445
        %v1030 = vunpack.c.l.b16 %v446
        %v1031 = vunpack.c.h.b16 %v446
        %v1032 = vunpack.c.l.b16 %v447
        %v1033 = vunpack.c.h.b16 %v447
        %v1034 = vunpack.c.l.b16 %v448
        %v1035 = vunpack.c.h.b16 %v448
        %v1036 = vunpack.c.l.b16 %v449
        %v1037 = vunpack.c.h.b16 %v449
        %v1038 = vunpack.c.l.b16 %v450
        %v1039 = vunpack.c.h.b16 %v450
        %v1040 = vunpack.c.l.b16 %v451
        %v1041 = vunpack.c.h.b16 %v451
        %v1042 = vunpack.c.l.b16 %v452
        %v1043 = vunpack.c.h.b16 %v452
        %v1044 = vunpack.c.l.b16 %v453
        %v1045 = vunpack.c.h.b16 %v453
        %v1046 = vunpack.c.l.b16 %v454
        %v1047 = vunpack.c.h.b16 %v454
        %v1048 = vunpack.c.l.b16 %v455
        %v1049 = vunpack.c.h.b16 %v455
        %v1050 = vunpack.c.l.b16 %v456
        %v1051 = vunpack.c.h.b16 %v456
        %v1052 = vunpack.c.l.b16 %v457
        %v1053 = vunpack.c.h.b16 %v457
        %v1054 = vunpack.c.l.b16 %v458
        %v1055 = vunpack.c.h.b16 %v458
        %v1056 = vunpack.c.l.b16 %v459
        %v1057 = vunpack.c.h.b16 %v459
        %v1058 = vunpack.c.l.b16 %v460
        %v1059 = vunpack.c.h.b16 %v460
        %v1060 = vunpack.c.l.b16 %v461
        %v1061 = vunpack.c.h.b16 %v461
        %v1062 = vunpack.c.l.b16 %v462
        %v1063 = vunpack.c.h.b16 %v462
        %v1064 = vunpack.c.l.b16 %v463
        %v1065 = vunpack.c.h.b16 %v463
        %v1066 = vunpack.c.l.b16 %v464
        %v1067 = vunpack.c.h.b16 %v464
        %v1068 = vunpack.c.l.b16 %v465
        %v1069 = vunpack.c.h.b16 %v465
        %v1070 = vunpack.c.l.b16 %v466
        %v1071 = vunpack.c.h.b16 %v466
        %v1072 = vunpack.c.l.b16 %v467
        %v1073 = vunpack.c.h.b16 %v467
        %v1074 = vunpack.c.l.b16 %v468
        %v1075 = vunpack.c.h.b16 %v468
        %v1076 = vunpack.c.l.b16 %v469
        %v1077 = vunpack.c.h.b16 %v469
        %v1078 = vunpack.c.l.b16 %v470
        %v1079 = vunpack.c.h.b16 %v470
        %v1080 = vunpack.c.l.b16 %v471
        %v1081 = vunpack.c.h.b16 %v471
        %v1082 = vunpack.c.l.b16 %v472
        %v1083 = vunpack.c.h.b16 %v472
        %v1084 = vunpack.c.l.b16 %v473
        %v1085 = vunpack.c.h.b16 %v473
        %v1086 = vunpack.c.l.b16 %v474
        %v1087 = vunpack.c.h.b16 %v474
        %v1088 = vunpack.c.l.b16 %v475
        %v1089 = vunpack.c.h.b16 %v475
        %v1090 = vunpack.c.l.b16 %v476
        %v1091 = vunpack.c.h.b16 %v476
        %v1092 = vunpack.c.l.b16 %v477
        %v1093 = vunpack.c.h.b16 %v477
        %v1094 = vunpack.c.l.b16 %v478
        %v1095 = vunpack.c.h.b16 %v478
        %v1096 = vunpack.c.l.b16 %v479
        %v1097 = vunpack.c.h.b16 %v479
        %v1098 = vunpack.c.l.b16 %v480
        %v1099 = vunpack.c.h.b16 %v480
        %v1100 = vunpack.c.l.b16 %v481
        %v1101 = vunpack.c.h.b16 %v481
        %v1102 = vunpack.c.l.b16 %v482
        %v1103 = vunpack.c.h.b16 %v482
        %v1104 = vunpack.c.l.b16 %v483
        %v1105 = vunpack.c.h.b16 %v483
        %v1106 = vunpack.c.l.b16 %v484
        %v1107 = vunpack.c.h.b16 %v484
        %v1108 = vunpack.c.l.b16 %v485
        %v1109 = vunpack.c.h.b16 %v485
        %v1110 = vunpack.c.l.b16 %v486
        %v1111 = vunpack.c.h.b16 %v486
        %v1112 = vunpack.c.l.b16 %v487
        %v1113 = vunpack.c.h.b16 %v487
        %v1114 = vunpack.c.l.b16 %v488
        %v1115 = vunpack.c.h.b16 %v488
        %v1116 = vunpack.c.l.b16 %v489
        %v1117 = vunpack.c.h.b16 %v489
        %v1118 = vunpack.c.l.b16 %v490
        %v1119 = vunpack.c.h.b16 %v490
        %v1120 = vunpack.c.l.b16 %v491
        %v1121 = vunpack.c.h.b16 %v491
        %v1122 = vunpack.c.l.b16 %v492
        %v1123 = vunpack.c.h.b16 %v492
        %v1124 = vunpack.c.l.b16 %v493
        %v1125 = vunpack.c.h.b16 %v493
        %v1126 = vunpack.c.l.b16 %v494
        %v1127 = vunpack.c.h.b16 %v494
        %v1128 = vunpack.c.l.b16 %v495
        %v1129 = vunpack.c.h.b16 %v495
        %v1130 = vunpack.c.l.b16 %v496
        %v1131 = vunpack.c.h.b16 %v496
        %v1132 = vunpack.c.l.b16 %v497
        %v1133 = vunpack.c.h.b16 %v497
        %v1134 = vunpack.c.l.b16 %v498
        %v1135 = vunpack.c.h.b16 %v498
        %v1136 = vunpack.c.l.b16 %v499
        %v1137 = vunpack.c.h.b16 %v499
        %v1138 = vunpack.c.l.b16 %v500
        %v1139 = vunpack.c.h.b16 %v500
        %v1140 = vunpack.c.l.b16 %v501
        %v1141 = vunpack.c.h.b16 %v501
        %v1142 = vunpack.c.l.b16 %v502
        %v1143 = vunpack.c.h.b16 %v502
        %v1144 = vunpack.c.l.b16 %v503
        %v1145 = vunpack.c.h.b16 %v503
        %v1146 = vunpack.c.l.b16 %v504
        %v1147 = vunpack.c.h.b16 %v504
        %v1148 = vunpack.c.l.b16 %v505
        %v1149 = vunpack.c.h.b16 %v505
        %v1150 = vunpack.c.l.b16 %v506
        %v1151 = vunpack.c.h.b16 %v506
        %v1152 = vunpack.c.l.b16 %v507
        %v1153 = vunpack.c.h.b16 %v507
        %v1154 = vunpack.c.l.b16 %v508
        %v1155 = vunpack.c.h.b16 %v508
        %v1156 = vunpack.c.l.b16 %v509
        %v1157 = vunpack.c.h.b16 %v509
        %v1158 = vunpack.c.l.b16 %v510
        %v1159 = vunpack.c.h.b16 %v510
        %v1160 = vunpack.c.l.b16 %v511
        %v1161 = vunpack.c.h.b16 %v511
        %v1162 = vunpack.c.l.b16 %v512
        %v1163 = vunpack.c.h.b16 %v512
        %v1164 = vunpack.c.l.b16 %v513
        %v1165 = vunpack.c.h.b16 %v513
        %v1166 = vunpack.c.l.b16 %v514
        %v1167 = vunpack.c.h.b16 %v514
        %v1168 = vunpack.c.l.b16 %v515
        %v1169 = vunpack.c.h.b16 %v515
        %v1170 = vunpack.c.l.b16 %v516
        %v1171 = vunpack.c.h.b16 %v516
        %v1172 = vunpack.c.l.b16 %v517
        %v1173 = vunpack.c.h.b16 %v517
        %v1174 = vunpack.c.l.b16 %v518
        %v1175 = vunpack.c.h.b16 %v518
        %v1176 = vunpack.c.l.b16 %v519
        %v1177 = vunpack.c.h.b16 %v519
        %v1178 = vunpack.c.l.b16 %v520
        %v1179 = vunpack.c.h.b16 %v520
        %v1180 = vunpack.c.l.b16 %v521
        %v1181 = vunpack.c.h.b16 %v521
        %v1182 = vunpack.c.l.b16 %v522
        %v1183 = vunpack.c.h.b16 %v522
        %v1184 = vunpack.c.l.b16 %v523
        %v1185 = vunpack.c.h.b16 %v523
        %v1186 = vunpack.c.l.b16 %v524
        %v1187 = vunpack.c.h.b16 %v524
        %v1188 = vunpack.c.l.b16 %v525
        %v1189 = vunpack.c.h.b16 %v525
        %v1190 = vunpack.c.l.b16 %v526
        %v1191 = vunpack.c.h.b16 %v526
        %v1192 = vunpack.c.l.b16 %v527
        %v1193 = vunpack.c.h.b16 %v527
        %v1194 = vunpack.c.l.b16 %v528
        %v1195 = vunpack.c.h.b16 %v528
        %v1196 = vunpack.c.l.b16 %v529
        %v1197 = vunpack.c.h.b16 %v529
        %v1198 = vunpack.c.l.b16 %v530
        %v1199 = vunpack.c.h.b16 %v530
        %v1200 = vunpack.c.l.b16 %v531
        %v1201 = vunpack.c.h.b16 %v531
        %v1202 = vunpack.c.l.b16 %v532
        %v1203 = vunpack.c.h.b16 %v532
        %v1204 = vunpack.c.l.b16 %v533
        %v1205 = vunpack.c.h.b16 %v533
        %v1206 = vunpack.c.l.b16 %v534
        %v1207 = vunpack.c.h.b16 %v534
        %v1208 = vunpack.c.l.b16 %v535
        %v1209 = vunpack.c.h.b16 %v535
        %v1210 = vunpack.c.l.b16 %v536
        %v1211 = vunpack.c.h.b16 %v536
        %v1212 = vunpack.c.l.b16 %v537
        %v1213 = vunpack.c.h.b16 %v537
        %v1214 = vunpack.c.l.b16 %v538
        %v1215 = vunpack.c.h.b16 %v538
        %v1216 = vunpack.c.l.b16 %v539
        %v1217 = vunpack.c.h.b16 %v539
        %v1218 = vunpack.c.l.b16 %v540
        %v1219 = vunpack.c.h.b16 %v540
        %v1220 = vunpack.c.l.b16 %v541
        %v1221 = vunpack.c.h.b16 %v541
        %v1222 = vunpack.c.l.b16 %v542
        %v1223 = vunpack.c.h.b16 %v542
        %v1224 = vunpack.c.l.b16 %v543
        %v1225 = vunpack.c.h.b16 %v543
        %v1226 = vunpack.c.l.b16 %v544
        %v1227 = vunpack.c.h.b16 %v544
        %v1228 = vunpack.c.l.b16 %v545
        %v1229 = vunpack.c.h.b16 %v545
        %v1230 = vunpack.c.l.b16 %v546
        %v1231 = vunpack.c.h.b16 %v546
        %v1232 = vunpack.c.l.b16 %v547
        %v1233 = vunpack.c.h.b16 %v547
        %v1234 = vunpack.c.l.b16 %v548
        %v1235 = vunpack.c.h.b16 %v548
        %v1236 = vunpack.c.l.b16 %v549
        %v1237 = vunpack.c.h.b16 %v549
        %v1238 = vunpack.c.l.b16 %v550
        %v1239 = vunpack.c.h.b16 %v550
        %v1240 = vunpack.c.l.b16 %v551
        %v1241 = vunpack.c.h.b16 %v551
        %v1242 = vunpack.c.l.b16 %v552
        %v1243 = vunpack.c.h.b16 %v552
        %v1244 = vunpack.c.l.b16 %v553
        %v1245 = vunpack.c.h.b16 %v553
        %v1246 = vunpack.c.l.b16 %v554
        %v1247 = vunpack.c.h.b16 %v554
        %v1248 = vunpack.c.l.b16 %v555
        %v1249 = vunpack.c.h.b16 %v555
        %v1250 = vunpack.c.l.b16 %v556
        %v1251 = vunpack.c.h.b16 %v556
        %v1252 = vunpack.c.l.b16 %v557
        %v1253 = vunpack.c.h.b16 %v557
        %v1254 = vunpack.c.l.b16 %v558
        %v1255 = vunpack.c.h.b16 %v558
        %v1256 = vunpack.c.l.b16 %v559
        %v1257 = vunpack.c.h.b16 %v559
        %v1258 = vunpack.c.l.b16 %v560
        %v1259 = vunpack.c.h.b16 %v560
        %v1260 = vunpack.c.l.b16 %v561
        %v1261 = vunpack.c.h.b16 %v561
        %v1262 = vunpack.c.l.b16 %v562
        %v1263 = vunpack.c.h.b16 %v562
        %v1264 = vunpack.c.l.b16 %v563
        %v1265 = vunpack.c.h.b16 %v563
        %v1266 = vunpack.c.l.b16 %v564
        %v1267 = vunpack.c.h.b16 %v564
        %v1268 = vunpack.c.l.b16 %v565
        %v1269 = vunpack.c.h.b16 %v565
        %v1270 = vunpack.c.l.b16 %v566
        %v1271 = vunpack.c.h.b16 %v566
        %v1272 = vunpack.c.l.b16 %v567
        %v1273 = vunpack.c.h.b16 %v567
        %v1274 = vunpack.c.l.b16 %v568
        %v1275 = vunpack.c.h.b16 %v568
        %v1276 = vunpack.c.l.b16 %v569
        %v1277 = vunpack.c.h.b16 %v569
        %v1278 = vunpack.c.l.b16 %v570
        %v1279 = vunpack.c.h.b16 %v570
        %v1280 = vunpack.c.l.b16 %v571
        %v1281 = vunpack.c.h.b16 %v571
        %v1282 = vunpack.c.l.b16 %v572
        %v1283 = vunpack.c.h.b16 %v572
        %v1284 = vunpack.c.l.b16 %v573
        %v1285 = vunpack.c.h.b16 %v573
        %v1286 = vunpack.c.l.b16 %v574
        %v1287 = vunpack.c.h.b16 %v574
        %v1288 = vunpack.c.l.b16 %v575
        %v1289 = vunpack.c.h.b16 %v575
        %v1290 = vunpack.c.l.b16 %v576
        %v1291 = vunpack.c.h.b16 %v576
        %v1292 = vunpack.c.l.b16 %v577
        %v1293 = vunpack.c.h.b16 %v577
        %v1294 = vunpack.c.l.b16 %v578
        %v1295 = vunpack.c.h.b16 %v578
        %v1296 = vunpack.c.l.b16 %v579
        %v1297 = vunpack.c.h.b16 %v579
        %v1298 = vunpack.c.l.b16 %v580
        %v1299 = vunpack.c.h.b16 %v580
        %v1300 = vunpack.c.l.b16 %v581
        %v1301 = vunpack.c.h.b16 %v581
        %v1302 = vunpack.c.l.b16 %v582
        %v1303 = vunpack.c.h.b16 %v582
        %v1304 = vunpack.c.l.b16 %v583
        %v1305 = vunpack.c.h.b16 %v583
        %v1306 = vunpack.c.l.b16 %v584
        %v1307 = vunpack.c.h.b16 %v584
        %v1308 = vunpack.c.l.b16 %v585
        %v1309 = vunpack.c.h.b16 %v585
        %v1310 = vunpack.c.l.b16 %v586
        %v1311 = vunpack.c.h.b16 %v586
        %v1312 = vunpack.c.l.b16 %v587
        %v1313 = vunpack.c.h.b16 %v587
        %v1314 = vunpack.c.l.b16 %v588
        %v1315 = vunpack.c.h.b16 %v588
        %v1316 = vunpack.c.l.b16 %v589
        %v1317 = vunpack.c.h.b16 %v589
        %v1318 = vunpack.c.l.b16 %v590
        %v1319 = vunpack.c.h.b16 %v590
        %v1320 = vunpack.c.l.b16 %v591
        %v1321 = vunpack.c.h.b16 %v591
        %v1322 = vunpack.c.l.b16 %v592
        %v1323 = vunpack.c.h.b16 %v592
        %v1324 = vunpack.c.l.b16 %v593
        %v1325 = vunpack.c.h.b16 %v593
        %v1326 = vunpack.c.l.b16 %v594
        %v1327 = vunpack.c.h.b16 %v594
        %v1328 = vunpack.c.l.b16 %v595
        %v1329 = vunpack.c.h.b16 %v595
        %v1330 = vunpack.c.l.b16 %v596
        %v1331 = vunpack.c.h.b16 %v596
        %v1332 = vunpack.c.l.b16 %v597
        %v1333 = vunpack.c.h.b16 %v597
        %v1334 = vunpack.c.l.b16 %v598
        %v1335 = vunpack.c.h.b16 %v598
        %v1336 = vunpack.c.l.b16 %v599
        %v1337 = vunpack.c.h.b16 %v599
        %v1338 = vunpack.c.l.b16 %v600
        %v1339 = vunpack.c.h.b16 %v600
        %v1340 = vunpack.c.l.b16 %v601
        %v1341 = vunpack.c.h.b16 %v601
        %v1342 = vunpack.c.l.b16 %v602
        %v1343 = vunpack.c.h.b16 %v602
        %v1344 = vunpack.c.l.b16 %v603
        %v1345 = vunpack.c.h.b16 %v603
        %v1346 = vunpack.c.l.b16 %v604
        %v1347 = vunpack.c.h.b16 %v604
        %v1348 = vunpack.c.l.b16 %v605
        %v1349 = vunpack.c.h.b16 %v605
        %v1350 = vunpack.c.l.b16 %v606
        %v1351 = vunpack.c.h.b16 %v606
        %v1352 = vunpack.c.l.b16 %v607
        %v1353 = vunpack.c.h.b16 %v607
        %v1354 = vunpack.c.l.b16 %v608
        %v1355 = vunpack.c.h.b16 %v608
        %v1356 = vunpack.c.l.b16 %v609
        %v1357 = vunpack.c.h.b16 %v609
        %v1358 = vunpack.c.l.b16 %v610
        %v1359 = vunpack.c.h.b16 %v610
        %v1360 = vunpack.c.l.b16 %v611
        %v1361 = vunpack.c.h.b16 %v611
        %v1362 = vunpack.c.l.b16 %v612
        %v1363 = vunpack.c.h.b16 %v612
        %v1364 = vunpack.c.l.b16 %v613
        %v1365 = vunpack.c.h.b16 %v613
        %v1366 = vunpack.c.l.b16 %v614
        %v1367 = vunpack.c.h.b16 %v614
        %v1368 = vunpack.c.l.b16 %v615
        %v1369 = vunpack.c.h.b16 %v615
        %v1370 = vunpack.c.l.b16 %v616
        %v1371 = vunpack.c.h.b16 %v616
        %v1372 = vunpack.c.l.b16 %v617
        %v1373 = vunpack.c.h.b16 %v617
        %v1374 = vunpack.c.l.b16 %v618
        %v1375 = vunpack.c.h.b16 %v618
        %v1376 = vunpack.c.l.b16 %v619
        %v1377 = vunpack.c.h.b16 %v619
        %v1378 = vunpack.c.l.b16 %v620
        %v1379 = vunpack.c.h.b16 %v620
        %v1380 = vunpack.c.l.b16 %v621
        %v1381 = vunpack.c.h.b16 %v621
        %v1382 = vunpack.c.l.b16 %v622
        %v1383 = vunpack.c.h.b16 %v622
        %v1384 = vunpack.c.l.b16 %v623
        %v1385 = vunpack.c.h.b16 %v623
        %v1386 = vunpack.c.l.b16 %v624
        %v1387 = vunpack.c.h.b16 %v624
        %v1388 = vunpack.c.l.b16 %v625
        %v1389 = vunpack.c.h.b16 %v625
        %v1390 = vunpack.c.l.b16 %v626
        %v1391 = vunpack.c.h.b16 %v626
        %v1392 = vunpack.c.l.b16 %v627
        %v1393 = vunpack.c.h.b16 %v627
        %v1394 = vunpack.c.l.b16 %v628
        %v1395 = vunpack.c.h.b16 %v628
        %v1396 = vunpack.c.l.b16 %v629
        %v1397 = vunpack.c.h.b16 %v629
        %v1398 = vunpack.c.l.b16 %v630
        %v1399 = vunpack.c.h.b16 %v630
        %v1400 = vunpack.c.l.b16 %v631
        %v1401 = vunpack.c.h.b16 %v631
        %v1402 = vunpack.c.l.b16 %v632
        %v1403 = vunpack.c.h.b16 %v632
        %v1404 = vunpack.c.l.b16 %v633
        %v1405 = vunpack.c.h.b16 %v633
        %v1406 = vunpack.c.l.b16 %v634
        %v1407 = vunpack.c.h.b16 %v634
        %v1408 = vunpack.c.l.b16 %v635
        %v1409 = vunpack.c.h.b16 %v635
        %v1410 = vunpack.c.l.b16 %v636
        %v1411 = vunpack.c.h.b16 %v636
        %v1412 = vunpack.c.l.b16 %v637
        %v1413 = vunpack.c.h.b16 %v637
        %v1414 = vunpack.c.l.b16 %v638
        %v1415 = vunpack.c.h.b16 %v638
        %v1416 = vunpack.c.l.b16 %v639
        %v1417 = vunpack.c.h.b16 %v639
        %v1418 = vunpack.c.l.b16 %v640
        %v1419 = vunpack.c.h.b16 %v640
        %v1420 = vunpack.c.l.b16 %v641
        %v1421 = vunpack.c.h.b16 %v641
        %v1422 = vunpack.c.l.b16 %v642
        %v1423 = vunpack.c.h.b16 %v642
        %v1424 = vunpack.c.l.b16 %v643
        %v1425 = vunpack.c.h.b16 %v643
        %v1426 = vunpack.c.l.b16 %v644
        %v1427 = vunpack.c.h.b16 %v644
        %v1428 = vunpack.c.l.b16 %v645
        %v1429 = vunpack.c.h.b16 %v645
        %v1430 = vunpack.c.l.b16 %v646
        %v1431 = vunpack.c.h.b16 %v646
        %v1432 = vunpack.c.l.b16 %v647
        %v1433 = vunpack.c.h.b16 %v647
        %v1434 = vunpack.c.l.b16 %v648
        %v1435 = vunpack.c.h.b16 %v648
        %v1436 = vunpack.c.l.b16 %v649
        %v1437 = vunpack.c.h.b16 %v649
        %v1438 = vunpack.c.l.b16 %v650
        %v1439 = vunpack.c.h.b16 %v650
        %v1440 = vunpack.c.l.b16 %v651
        %v1441 = vunpack.c.h.b16 %v651
        %v1442 = vunpack.c.l.b16 %v652
        %v1443 = vunpack.c.h.b16 %v652
        %v1444 = vunpack.c.l.b16 %v653
        %v1445 = vunpack.c.h.b16 %v653
        %v1446 = vunpack.c.l.b16 %v654
        %v1447 = vunpack.c.h.b16 %v654
        %v1448 = vunpack.c.l.b16 %v655
        %v1449 = vunpack.c.h.b16 %v655
        %v1450 = vunpack.c.l.b16 %v656
        %v1451 = vunpack.c.h.b16 %v656
        %v1452 = vunpack.c.l.b16 %v657
        %v1453 = vunpack.c.h.b16 %v657
        %v1454 = vunpack.c.l.b16 %v658
        %v1455 = vunpack.c.h.b16 %v658
        %v1456 = vunpack.c.l.b16 %v659
        %v1457 = vunpack.c.h.b16 %v659
        %v1458 = vunpack.c.l.b16 %v660
        %v1459 = vunpack.c.h.b16 %v660
        %v1460 = vunpack.c.l.b16 %v661
        %v1461 = vunpack.c.h.b16 %v661
        %v1462 = vunpack.c.l.b16 %v662
        %v1463 = vunpack.c.h.b16 %v662
        %v1464 = vunpack.c.l.b16 %v663
        %v1465 = vunpack.c.h.b16 %v663
        %v1466 = vunpack.c.l.b16 %v664
        %v1467 = vunpack.c.h.b16 %v664
        %v1468 = vunpack.c.l.b16 %v665
        %v1469 = vunpack.c.h.b16 %v665
        %v1470 = vunpack.c.l.b16 %v666
        %v1471 = vunpack.c.h.b16 %v666
        %v1472 = vunpack.c.l.b16 %v667
        %v1473 = vunpack.c.h.b16 %v667
        %v1474 = vunpack.c.l.b16 %v668
        %v1475 = vunpack.c.h.b16 %v668
        %v1476 = vunpack.c.l.b16 %v669
        %v1477 = vunpack.c.h.b16 %v669
        %v1478 = vunpack.c.l.b16 %v670
        %v1479 = vunpack.c.h.b16 %v670
        %v1480 = vunpack.c.l.b16 %v671
        %v1481 = vunpack.c.h.b16 %v671
        %v1482 = vunpack.c.l.b16 %v672
        %v1483 = vunpack.c.h.b16 %v672
        %v1484 = vunpack.c.l.b16 %v673
        %v1485 = vunpack.c.h.b16 %v673
        %v1486 = vunpack.c.l.b16 %v674
        %v1487 = vunpack.c.h.b16 %v674
        %v1488 = vunpack.c.l.b16 %v675
        %v1489 = vunpack.c.h.b16 %v675
        %v1490 = vunpack.c.l.b16 %v676
        %v1491 = vunpack.c.h.b16 %v676
        %v1492 = vunpack.c.l.b16 %v677
        %v1493 = vunpack.c.h.b16 %v677
        %v1494 = vunpack.c.l.b16 %v678
        %v1495 = vunpack.c.h.b16 %v678
        %v1496 = vunpack.c.l.b16 %v679
        %v1497 = vunpack.c.h.b16 %v679
        %v1498 = vunpack.c.l.b16 %v680
        %v1499 = vunpack.c.h.b16 %v680
        %v1500 = vunpack.c.l.b16 %v681
        %v1501 = vunpack.c.h.b16 %v681
        %v1502 = vunpack.c.l.b16 %v682
        %v1503 = vunpack.c.h.b16 %v682
        %v1504 = vunpack.c.l.b16 %v683
        %v1505 = vunpack.c.h.b16 %v683
        %v1506 = vunpack.c.l.b16 %v684
        %v1507 = vunpack.c.h.b16 %v684
        %v1508 = vunpack.c.l.b16 %v685
        %v1509 = vunpack.c.h.b16 %v685
        %v1510 = vunpack.c.l.b16 %v686
        %v1511 = vunpack.c.h.b16 %v686
        %v1512 = vunpack.c.l.b16 %v687
        %v1513 = vunpack.c.h.b16 %v687
        %v1514 = vpack.c.b16 %v1010, %v1002
        %v1515 = vpack.c.b16 %v1011, %v1003
        %v1516 = vpack.c.b16 %v1012, %v1004
        %v1517 = vpack.c.b16 %v1013, %v1005
        %v1518 = vpack.c.b16 %v1014, %v1006
        %v1519 = vpack.c.b16 %v1015, %v1007
        %v1520 = vpack.c.b16 %v1016, %v1008
        %v1521 = vpack.c.b16 %v1017, %v1009
        %v1522 = vpack.c.b16 %v1026, %v1018
        %v1523 = vpack.c.b16 %v1027, %v1019
        %v1524 = vpack.c.b16 %v1028, %v1020
        %v1525 = vpack.c.b16 %v1029, %v1021
        %v1526 = vpack.c.b16 %v1030, %v1022
        %v1527 = vpack.c.b16 %v1031, %v1023
        %v1528 = vpack.c.b16 %v1032, %v1024
        %v1529 = vpack.c.b16 %v1033, %v1025
        %v1530 = vpack.c.b16 %v1042, %v1034
        %v1531 = vpack.c.b16 %v1043, %v1035
        %v1532 = vpack.c.b16 %v1044, %v1036
        %v1533 = vpack.c.b16 %v1045, %v1037
        %v1534 = vpack.c.b16 %v1046, %v1038
        %v1535 = vpack.c.b16 %v1047, %v1039
        %v1536 = vpack.c.b16 %v1048, %v1040
        %v1537 = vpack.c.b16 %v1049, %v1041
        %v1538 = vpack.c.b16 %v1058, %v1050
        %v1539 = vpack.c.b16 %v1059, %v1051
        %v1540 = vpack.c.b16 %v1060, %v1052
        %v1541 = vpack.c.b16 %v1061, %v1053
        %v1542 = vpack.c.b16 %v1062, %v1054
        %v1543 = vpack.c.b16 %v1063, %v1055
        %v1544 = vpack.c.b16 %v1064, %v1056
        %v1545 = vpack.c.b16 %v1065, %v1057
        %v1546 = vpack.c.b16 %v1074, %v1066
        %v1547 = vpack.c.b16 %v1075, %v1067
        %v1548 = vpack.c.b16 %v1076, %v1068
        %v1549 = vpack.c.b16 %v1077, %v1069
        %v1550 = vpack.c.b16 %v1078, %v1070
        %v1551 = vpack.c.b16 %v1079, %v1071
        %v1552 = vpack.c.b16 %v1080, %v1072
        %v1553 = vpack.c.b16 %v1081, %v1073
        %v1554 = vpack.c.b16 %v1090, %v1082
        %v1555 = vpack.c.b16 %v1091, %v1083
        %v1556 = vpack.c.b16 %v1092, %v1084
        %v1557 = vpack.c.b16 %v1093, %v1085
        %v1558 = vpack.c.b16 %v1094, %v1086
        %v1559 = vpack.c.b16 %v1095, %v1087
        %v1560 = vpack.c.b16 %v1096, %v1088
        %v1561 = vpack.c.b16 %v1097, %v1089
        %v1562 = vpack.c.b16 %v1106, %v1098
        %v1563 = vpack.c.b16 %v1107, %v1099
        %v1564 = vpack.c.b16 %v1108, %v1100
        %v1565 = vpack.c.b16 %v1109, %v1101
        %v1566 = vpack.c.b16 %v1110, %v1102
        %v1567 = vpack.c.b16 %v1111, %v1103
        %v1568 = vpack.c.b16 %v1112, %v1104
        %v1569 = vpack.c.b16 %v1113, %v1105
        %v1570 = vpack.c.b16 %v1122, %v1114
        %v1571 = vpack.c.b16 %v1123, %v1115
        %v1572 = vpack.c.b16 %v1124, %v1116
        %v1573 = vpack.c.b16 %v1125, %v1117
        %v1574 = vpack.c.b16 %v1126, %v1118
        %v1575 = vpack.c.b16 %v1127, %v1119
        %v1576 = vpack.c.b16 %v1128, %v1120
        %v1577 = vpack.c.b16 %v1129, %v1121
        %v1578 = vpack.c.b16 %v1138, %v1130
        %v1579 = vpack.c.b16 %v1139, %v1131
        %v1580 = vpack.c.b16 %v1140, %v1132
        %v1581 = vpack.c.b16 %v1141, %v1133
        %v1582 = vpack.c.b16 %v1142, %v1134
        %v1583 = vpack.c.b16 %v1143, %v1135
        %v1584 = vpack.c.b16 %v1144, %v1136
        %v1585 = vpack.c.b16 %v1145, %v1137
        %v1586 = vpack.c.b16 %v1154, %v1146
        %v1587 = vpack.c.b16 %v1155, %v1147
        %v1588 = vpack.c.b16 %v1156, %v1148
        %v1589 = vpack.c.b16 %v1157, %v1149
        %v1590 = vpack.c.b16 %v1158, %v1150
        %v1591 = vpack.c.b16 %v1159, %v1151
        %v1592 = vpack.c.b16 %v1160, %v1152
        %v1593 = vpack.c.b16 %v1161, %v1153
        %v1594 = vpack.c.b16 %v1170, %v1162
        %v1595 = vpack.c.b16 %v1171, %v1163
        %v1596 = vpack.c.b16 %v1172, %v1164
        %v1597 = vpack.c.b16 %v1173, %v1165
        %v1598 = vpack.c.b16 %v1174, %v1166
        %v1599 = vpack.c.b16 %v1175, %v1167
        %v1600 = vpack.c.b16 %v1176, %v1168
        %v1601 = vpack.c.b16 %v1177, %v1169
        %v1602 = vpack.c.b16 %v1186, %v1178
        %v1603 = vpack.c.b16 %v1187, %v1179
        %v1604 = vpack.c.b16 %v1188, %v1180
        %v1605 = vpack.c.b16 %v1189, %v1181
        %v1606 = vpack.c.b16 %v1190, %v1182
        %v1607 = vpack.c.b16 %v1191, %v1183
        %v1608 = vpack.c.b16 %v1192, %v1184
        %v1609 = vpack.c.b16 %v1193, %v1185
        %v1610 = vpack.c.b16 %v1202, %v1194
        %v1611 = vpack.c.b16 %v1203, %v1195
        %v1612 = vpack.c.b16 %v1204, %v1196
        %v1613 = vpack.c.b16 %v1205, %v1197
        %v1614 = vpack.c.b16 %v1206, %v1198
        %v1615 = vpack.c.b16 %v1207, %v1199
        %v1616 = vpack.c.b16 %v1208, %v1200
        %v1617 = vpack.c.b16 %v1209, %v1201
        %v1618 = vpack.c.b16 %v1218, %v1210
        %v1619 = vpack.c.b16 %v1219, %v1211
        %v1620 = vpack.c.b16 %v1220, %v1212
        %v1621 = vpack.c.b16 %v1221, %v1213
        %v1622 = vpack.c.b16 %v1222, %v1214
        %v1623 = vpack.c.b16 %v1223, %v1215
        %v1624 = vpack.c.b16 %v1224, %v1216
        %v1625 = vpack.c.b16 %v1225, %v1217
        %v1626 = vpack.c.b16 %v1234, %v1226
        %v1627 = vpack.c.b16 %v1235, %v1227
        %v1628 = vpack.c.b16 %v1236, %v1228
        %v1629 = vpack.c.b16 %v1237, %v1229
        %v1630 = vpack.c.b16 %v1238, %v1230
        %v1631 = vpack.c.b16 %v1239, %v1231
        %v1632 = vpack.c.b16 %v1240, %v1232
        %v1633 = vpack.c.b16 %v1241, %v1233
        %v1634 = vpack.c.b16 %v1250, %v1242
        %v1635 = vpack.c.b16 %v1251, %v1243
        %v1636 = vpack.c.b16 %v1252, %v1244
        %v1637 = vpack.c.b16 %v1253, %v1245
        %v1638 = vpack.c.b16 %v1254, %v1246
        %v1639 = vpack.c.b16 %v1255, %v1247
        %v1640 = vpack.c.b16 %v1256, %v1248
        %v1641 = vpack.c.b16 %v1257, %v1249
        %v1642 = vpack.c.b16 %v1266, %v1258
        %v1643 = vpack.c.b16 %v1267, %v1259
        %v1644 = vpack.c.b16 %v1268, %v1260
        %v1645 = vpack.c.b16 %v1269, %v1261
        %v1646 = vpack.c.b16 %v1270, %v1262
        %v1647 = vpack.c.b16 %v1271, %v1263
        %v1648 = vpack.c.b16 %v1272, %v1264
        %v1649 = vpack.c.b16 %v1273, %v1265
        %v1650 = vpack.c.b16 %v1282, %v1274
        %v1651 = vpack.c.b16 %v1283, %v1275
        %v1652 = vpack.c.b16 %v1284, %v1276
        %v1653 = vpack.c.b16 %v1285, %v1277
        %v1654 = vpack.c.b16 %v1286, %v1278
        %v1655 = vpack.c.b16 %v1287, %v1279
        %v1656 = vpack.c.b16 %v1288, %v1280
        %v1657 = vpack.c.b16 %v1289, %v1281
        %v1658 = vpack.c.b16 %v1298, %v1290
        %v1659 = vpack.c.b16 %v1299, %v1291
        %v1660 = vpack.c.b16 %v1300, %v1292
        %v1661 = vpack.c.b16 %v1301, %v1293
        %v1662 = vpack.c.b16 %v1302, %v1294
        %v1663 = vpack.c.b16 %v1303, %v1295
        %v1664 = vpack.c.b16 %v1304, %v1296
        %v1665 = vpack.c.b16 %v1305, %v1297
        %v1666 = vpack.c.b16 %v1314, %v1306
        %v1667 = vpack.c.b16 %v1315, %v1307
        %v1668 = vpack.c.b16 %v1316, %v1308
        %v1669 = vpack.c.b16 %v1317, %v1309
        %v1670 = vpack.c.b16 %v1318, %v1310
        %v1671 = vpack.c.b16 %v1319, %v1311
        %v1672 = vpack.c.b16 %v1320, %v1312
        %v1673 = vpack.c.b16 %v1321, %v1313
        %v1674 = vpack.c.b16 %v1330, %v1322
        %v1675 = vpack.c.b16 %v1331, %v1323
        %v1676 = vpack.c.b16 %v1332, %v1324
        %v1677 = vpack.c.b16 %v1333, %v1325
        %v1678 = vpack.c.b16 %v1334, %v1326
        %v1679 = vpack.c.b16 %v1335, %v1327
        %v1680 = vpack.c.b16 %v1336, %v1328
        %v1681 = vpack.c.b16 %v1337, %v1329
        %v1682 = vpack.c.b16 %v1346, %v1338
        %v1683 = vpack.c.b16 %v1347, %v1339
        %v1684 = vpack.c.b16 %v1348, %v1340
        %v1685 = vpack.c.b16 %v1349, %v1341
        %v1686 = vpack.c.b16 %v1350, %v1342
        %v1687 = vpack.c.b16 %v1351, %v1343
        %v1688 = vpack.c.b16 %v1352, %v1344
        %v1689 = vpack.c.b16 %v1353, %v1345
        %v1690 = vpack.c.b16 %v1362, %v1354
        %v1691 = vpack.c.b16 %v1363, %v1355
        %v1692 = vpack.c.b16 %v1364, %v1356
        %v1693 = vpack.c.b16 %v1365, %v1357
        %v1694 = vpack.c.b16 %v1366, %v1358
        %v1695 = vpack.c.b16 %v1367, %v1359
        %v1696 = vpack.c.b16 %v1368, %v1360
        %v1697 = vpack.c.b16 %v1369, %v1361
        %v1698 = vpack.c.b16 %v1378, %v1370
        %v1699 = vpack.c.b16 %v1379, %v1371
        %v1700 = vpack.c.b16 %v1380, %v1372
        %v1701 = vpack.c.b16 %v1381, %v1373
        %v1702 = vpack.c.b16 %v1382, %v1374
        %v1703 = vpack.c.b16 %v1383, %v1375
        %v1704 = vpack.c.b16 %v1384, %v1376
        %v1705 = vpack.c.b16 %v1385, %v1377
        %v1706 = vpack.c.b16 %v1394, %v1386
        %v1707 = vpack.c.b16 %v1395, %v1387
        %v1708 = vpack.c.b16 %v1396, %v1388
        %v1709 = vpack.c.b16 %v1397, %v1389
        %v1710 = vpack.c.b16 %v1398, %v1390
        %v1711 = vpack.c.b16 %v1399, %v1391
        %v1712 = vpack.c.b16 %v1400, %v1392
        %v1713 = vpack.c.b16 %v1401, %v1393
        %v1714 = vpack.c.b16 %v1410, %v1402
        %v1715 = vpack.c.b16 %v1411, %v1403
        %v1716 = vpack.c.b16 %v1412, %v1404
        %v1717 = vpack.c.b16 %v1413, %v1405
        %v1718 = vpack.c.b16 %v1414, %v1406
        %v1719 = vpack.c.b16 %v1415, %v1407
        %v1720 = vpack.c.b16 %v1416, %v1408
        %v1721 = vpack.c.b16 %v1417, %v1409
        %v1722 = vpack.c.b16 %v1426, %v1418
        %v1723 = vpack.c.b16 %v1427, %v1419
        %v1724 = vpack.c.b16 %v1428, %v1420
        %v1725 = vpack.c.b16 %v1429, %v1421
        %v1726 = vpack.c.b16 %v1430, %v1422
        %v1727 = vpack.c.b16 %v1431, %v1423
        %v1728 = vpack.c.b16 %v1432, %v1424
        %v1729 = vpack.c.b16 %v1433, %v1425
        %v1730 = vpack.c.b16 %v1442, %v1434
        %v1731 = vpack.c.b16 %v1443, %v1435
        %v1732 = vpack.c.b16 %v1444, %v1436
        %v1733 = vpack.c.b16 %v1445, %v1437
        %v1734 = vpack.c.b16 %v1446, %v1438
        %v1735 = vpack.c.b16 %v1447, %v1439
        %v1736 = vpack.c.b16 %v1448, %v1440
        %v1737 = vpack.c.b16 %v1449, %v1441
        %v1738 = vpack.c.b16 %v1458, %v1450
        %v1739 = vpack.c.b16 %v1459, %v1451
        %v1740 = vpack.c.b16 %v1460, %v1452
        %v1741 = vpack.c.b16 %v1461, %v1453
        %v1742 = vpack.c.b16 %v1462, %v1454
        %v1743 = vpack.c.b16 %v1463, %v1455
        %v1744 = vpack.c.b16 %v1464, %v1456
        %v1745 = vpack.c.b16 %v1465, %v1457
        %v1746 = vpack.c.b16 %v1474, %v1466
        %v1747 = vpack.c.b16 %v1475, %v1467
        %v1748 = vpack.c.b16 %v1476, %v1468
        %v1749 = vpack.c.b16 %v1477, %v1469
        %v1750 = vpack.c.b16 %v1478, %v1470
        %v1751 = vpack.c.b16 %v1479, %v1471
        %v1752 = vpack.c.b16 %v1480, %v1472
        %v1753 = vpack.c.b16 %v1481, %v1473
        %v1754 = vpack.c.b16 %v1490, %v1482
        %v1755 = vpack.c.b16 %v1491, %v1483
        %v1756 = vpack.c.b16 %v1492, %v1484
        %v1757 = vpack.c.b16 %v1493, %v1485
        %v1758 = vpack.c.b16 %v1494, %v1486
        %v1759 = vpack.c.b16 %v1495, %v1487
        %v1760 = vpack.c.b16 %v1496, %v1488
        %v1761 = vpack.c.b16 %v1497, %v1489
        %v1762 = vpack.c.b16 %v1506, %v1498
        %v1763 = vpack.c.b16 %v1507, %v1499
        %v1764 = vpack.c.b16 %v1508, %v1500
        %v1765 = vpack.c.b16 %v1509, %v1501
        %v1766 = vpack.c.b16 %v1510, %v1502
        %v1767 = vpack.c.b16 %v1511, %v1503
        %v1768 = vpack.c.b16 %v1512, %v1504
        %v1769 = vpack.c.b16 %v1513, %v1505
        %2026 = vmatpush.bf16.msra.mxu0 %v1570
        %2027 = vmatpush.bf16.msra.mxu0 %v1562
        %2028 = vmatpush.bf16.msra.mxu0 %v1554
        %2029 = vmatpush.bf16.msra.mxu0 %v1546
        %2030 = vmatpush.bf16.msra.mxu0 %v1538
        %2031 = vmatpush.bf16.msra.mxu0 %v1530
        %2032 = vmatpush.bf16.msra.mxu0 %v1522
        %2033 = vmatpush.bf16.msra.mxu0 %v1514
        %2034 = vmatmul.bf16.gmra.mxu0 %v730
        %v2035 = vpop.f32.mrf.mxu0
        %v2036 = vadd.f32 %v690, %v2035
        %v2037 = vpop.f32.mrf.mxu0
        %v2038 = vadd.f32 %v690, %v2037
        %2039 = vmatmul.bf16.gmra.mxu0 %v734
        %v2040 = vpop.f32.mrf.mxu0
        %v2041 = vadd.f32 %v690, %v2040
        %v2042 = vpop.f32.mrf.mxu0
        %v2043 = vadd.f32 %v690, %v2042
        %2044 = vdwg.mxu0
        %2045 = vmatpush.bf16.msra.mxu0 %v1634
        %2046 = vmatpush.bf16.msra.mxu0 %v1626
        %2047 = vmatpush.bf16.msra.mxu0 %v1618
        %2048 = vmatpush.bf16.msra.mxu0 %v1610
        %2049 = vmatpush.bf16.msra.mxu0 %v1602
        %2050 = vmatpush.bf16.msra.mxu0 %v1594
        %2051 = vmatpush.bf16.msra.mxu0 %v1586
        %2052 = vmatpush.bf16.msra.mxu0 %v1578
        %2053 = vmatmul.bf16.gmra.mxu0 %v731
        %v2054 = vpop.f32.mrf.mxu0
        %v2055 = vadd.f32 %v2036, %v2054
        %v2056 = vpop.f32.mrf.mxu0
        %v2057 = vadd.f32 %v2038, %v2056
        %2058 = vmatmul.bf16.gmra.mxu0 %v735
        %v2059 = vpop.f32.mrf.mxu0
        %v2060 = vadd.f32 %v2041, %v2059
        %v2061 = vpop.f32.mrf.mxu0
        %v2062 = vadd.f32 %v2043, %v2061
        %2063 = vdwg.mxu0
        %2064 = vmatpush.bf16.msra.mxu0 %v1698
        %2065 = vmatpush.bf16.msra.mxu0 %v1690
        %2066 = vmatpush.bf16.msra.mxu0 %v1682
        %2067 = vmatpush.bf16.msra.mxu0 %v1674
        %2068 = vmatpush.bf16.msra.mxu0 %v1666
        %2069 = vmatpush.bf16.msra.mxu0 %v1658
        %2070 = vmatpush.bf16.msra.mxu0 %v1650
        %2071 = vmatpush.bf16.msra.mxu0 %v1642
        %2072 = vmatmul.bf16.gmra.mxu0 %v732
        %v2073 = vpop.f32.mrf.mxu0
        %v2074 = vadd.f32 %v2055, %v2073
        %v2075 = vpop.f32.mrf.mxu0
        %v2076 = vadd.f32 %v2057, %v2075
        %2077 = vmatmul.bf16.gmra.mxu0 %v736
        %v2078 = vpop.f32.mrf.mxu0
        %v2079 = vadd.f32 %v2060, %v2078
        %v2080 = vpop.f32.mrf.mxu0
        %v2081 = vadd.f32 %v2062, %v2080
        %2082 = vdwg.mxu0
        %2083 = vmatpush.bf16.msra.mxu0 %v1762
        %2084 = vmatpush.bf16.msra.mxu0 %v1754
        %2085 = vmatpush.bf16.msra.mxu0 %v1746
        %2086 = vmatpush.bf16.msra.mxu0 %v1738
        %2087 = vmatpush.bf16.msra.mxu0 %v1730
        %2088 = vmatpush.bf16.msra.mxu0 %v1722
        %2089 = vmatpush.bf16.msra.mxu0 %v1714
        %2090 = vmatpush.bf16.msra.mxu0 %v1706
        %2091 = vmatmul.bf16.gmra.mxu0 %v733
        %v2092 = vpop.f32.mrf.mxu0
        %v2093 = vadd.f32 %v2074, %v2092
        %v2094 = vpop.f32.mrf.mxu0
        %v2095 = vadd.f32 %v2076, %v2094
        %2096 = vmatmul.bf16.gmra.mxu0 %v737
        %v2097 = vpop.f32.mrf.mxu0
        %v2098 = vadd.f32 %v2079, %v2097
        %v2099 = vpop.f32.mrf.mxu0
        %v2100 = vadd.f32 %v2081, %v2099
        %2101 = vdwg.mxu0
        %2102 = vmatpush.bf16.msra.mxu0 %v1571
        %2103 = vmatpush.bf16.msra.mxu0 %v1563
        %2104 = vmatpush.bf16.msra.mxu0 %v1555
        %2105 = vmatpush.bf16.msra.mxu0 %v1547
        %2106 = vmatpush.bf16.msra.mxu0 %v1539
        %2107 = vmatpush.bf16.msra.mxu0 %v1531
        %2108 = vmatpush.bf16.msra.mxu0 %v1523
        %2109 = vmatpush.bf16.msra.mxu0 %v1515
        %2110 = vmatmul.bf16.gmra.mxu0 %v730
        %v2111 = vpop.f32.mrf.mxu0
        %v2112 = vadd.f32 %v691, %v2111
        %v2113 = vpop.f32.mrf.mxu0
        %v2114 = vadd.f32 %v691, %v2113
        %2115 = vmatmul.bf16.gmra.mxu0 %v734
        %v2116 = vpop.f32.mrf.mxu0
        %v2117 = vadd.f32 %v691, %v2116
        %v2118 = vpop.f32.mrf.mxu0
        %v2119 = vadd.f32 %v691, %v2118
        %2120 = vdwg.mxu0
        %2121 = vmatpush.bf16.msra.mxu0 %v1635
        %2122 = vmatpush.bf16.msra.mxu0 %v1627
        %2123 = vmatpush.bf16.msra.mxu0 %v1619
        %2124 = vmatpush.bf16.msra.mxu0 %v1611
        %2125 = vmatpush.bf16.msra.mxu0 %v1603
        %2126 = vmatpush.bf16.msra.mxu0 %v1595
        %2127 = vmatpush.bf16.msra.mxu0 %v1587
        %2128 = vmatpush.bf16.msra.mxu0 %v1579
        %2129 = vmatmul.bf16.gmra.mxu0 %v731
        %v2130 = vpop.f32.mrf.mxu0
        %v2131 = vadd.f32 %v2112, %v2130
        %v2132 = vpop.f32.mrf.mxu0
        %v2133 = vadd.f32 %v2114, %v2132
        %2134 = vmatmul.bf16.gmra.mxu0 %v735
        %v2135 = vpop.f32.mrf.mxu0
        %v2136 = vadd.f32 %v2117, %v2135
        %v2137 = vpop.f32.mrf.mxu0
        %v2138 = vadd.f32 %v2119, %v2137
        %2139 = vdwg.mxu0
        %2140 = vmatpush.bf16.msra.mxu0 %v1699
        %2141 = vmatpush.bf16.msra.mxu0 %v1691
        %2142 = vmatpush.bf16.msra.mxu0 %v1683
        %2143 = vmatpush.bf16.msra.mxu0 %v1675
        %2144 = vmatpush.bf16.msra.mxu0 %v1667
        %2145 = vmatpush.bf16.msra.mxu0 %v1659
        %2146 = vmatpush.bf16.msra.mxu0 %v1651
        %2147 = vmatpush.bf16.msra.mxu0 %v1643
        %2148 = vmatmul.bf16.gmra.mxu0 %v732
        %v2149 = vpop.f32.mrf.mxu0
        %v2150 = vadd.f32 %v2131, %v2149
        %v2151 = vpop.f32.mrf.mxu0
        %v2152 = vadd.f32 %v2133, %v2151
        %2153 = vmatmul.bf16.gmra.mxu0 %v736
        %v2154 = vpop.f32.mrf.mxu0
        %v2155 = vadd.f32 %v2136, %v2154
        %v2156 = vpop.f32.mrf.mxu0
        %v2157 = vadd.f32 %v2138, %v2156
        %2158 = vdwg.mxu0
        %2159 = vmatpush.bf16.msra.mxu0 %v1763
        %2160 = vmatpush.bf16.msra.mxu0 %v1755
        %2161 = vmatpush.bf16.msra.mxu0 %v1747
        %2162 = vmatpush.bf16.msra.mxu0 %v1739
        %2163 = vmatpush.bf16.msra.mxu0 %v1731
        %2164 = vmatpush.bf16.msra.mxu0 %v1723
        %2165 = vmatpush.bf16.msra.mxu0 %v1715
        %2166 = vmatpush.bf16.msra.mxu0 %v1707
        %2167 = vmatmul.bf16.gmra.mxu0 %v733
        %v2168 = vpop.f32.mrf.mxu0
        %v2169 = vadd.f32 %v2150, %v2168
        %v2170 = vpop.f32.mrf.mxu0
        %v2171 = vadd.f32 %v2152, %v2170
        %2172 = vmatmul.bf16.gmra.mxu0 %v737
        %v2173 = vpop.f32.mrf.mxu0
        %v2174 = vadd.f32 %v2155, %v2173
        %v2175 = vpop.f32.mrf.mxu0
        %v2176 = vadd.f32 %v2157, %v2175
        %2177 = vdwg.mxu0
        %2178 = vmatpush.bf16.msra.mxu0 %v1572
        %2179 = vmatpush.bf16.msra.mxu0 %v1564
        %2180 = vmatpush.bf16.msra.mxu0 %v1556
        %2181 = vmatpush.bf16.msra.mxu0 %v1548
        %2182 = vmatpush.bf16.msra.mxu0 %v1540
        %2183 = vmatpush.bf16.msra.mxu0 %v1532
        %2184 = vmatpush.bf16.msra.mxu0 %v1524
        %2185 = vmatpush.bf16.msra.mxu0 %v1516
        %2186 = vmatmul.bf16.gmra.mxu0 %v730
        %v2187 = vpop.f32.mrf.mxu0
        %v2188 = vadd.f32 %v692, %v2187
        %v2189 = vpop.f32.mrf.mxu0
        %v2190 = vadd.f32 %v692, %v2189
        %2191 = vmatmul.bf16.gmra.mxu0 %v734
        %v2192 = vpop.f32.mrf.mxu0
        %v2193 = vadd.f32 %v692, %v2192
        %v2194 = vpop.f32.mrf.mxu0
        %v2195 = vadd.f32 %v692, %v2194
        %2196 = vdwg.mxu0
        %2197 = vmatpush.bf16.msra.mxu0 %v1636
        %2198 = vmatpush.bf16.msra.mxu0 %v1628
        %2199 = vmatpush.bf16.msra.mxu0 %v1620
        %2200 = vmatpush.bf16.msra.mxu0 %v1612
        %2201 = vmatpush.bf16.msra.mxu0 %v1604
        %2202 = vmatpush.bf16.msra.mxu0 %v1596
        %2203 = vmatpush.bf16.msra.mxu0 %v1588
        %2204 = vmatpush.bf16.msra.mxu0 %v1580
        %2205 = vmatmul.bf16.gmra.mxu0 %v731
        %v2206 = vpop.f32.mrf.mxu0
        %v2207 = vadd.f32 %v2188, %v2206
        %v2208 = vpop.f32.mrf.mxu0
        %v2209 = vadd.f32 %v2190, %v2208
        %2210 = vmatmul.bf16.gmra.mxu0 %v735
        %v2211 = vpop.f32.mrf.mxu0
        %v2212 = vadd.f32 %v2193, %v2211
        %v2213 = vpop.f32.mrf.mxu0
        %v2214 = vadd.f32 %v2195, %v2213
        %2215 = vdwg.mxu0
        %2216 = vmatpush.bf16.msra.mxu0 %v1700
        %2217 = vmatpush.bf16.msra.mxu0 %v1692
        %2218 = vmatpush.bf16.msra.mxu0 %v1684
        %2219 = vmatpush.bf16.msra.mxu0 %v1676
        %2220 = vmatpush.bf16.msra.mxu0 %v1668
        %2221 = vmatpush.bf16.msra.mxu0 %v1660
        %2222 = vmatpush.bf16.msra.mxu0 %v1652
        %2223 = vmatpush.bf16.msra.mxu0 %v1644
        %2224 = vmatmul.bf16.gmra.mxu0 %v732
        %v2225 = vpop.f32.mrf.mxu0
        %v2226 = vadd.f32 %v2207, %v2225
        %v2227 = vpop.f32.mrf.mxu0
        %v2228 = vadd.f32 %v2209, %v2227
        %2229 = vmatmul.bf16.gmra.mxu0 %v736
        %v2230 = vpop.f32.mrf.mxu0
        %v2231 = vadd.f32 %v2212, %v2230
        %v2232 = vpop.f32.mrf.mxu0
        %v2233 = vadd.f32 %v2214, %v2232
        %2234 = vdwg.mxu0
        %2235 = vmatpush.bf16.msra.mxu0 %v1764
        %2236 = vmatpush.bf16.msra.mxu0 %v1756
        %2237 = vmatpush.bf16.msra.mxu0 %v1748
        %2238 = vmatpush.bf16.msra.mxu0 %v1740
        %2239 = vmatpush.bf16.msra.mxu0 %v1732
        %2240 = vmatpush.bf16.msra.mxu0 %v1724
        %2241 = vmatpush.bf16.msra.mxu0 %v1716
        %2242 = vmatpush.bf16.msra.mxu0 %v1708
        %2243 = vmatmul.bf16.gmra.mxu0 %v733
        %v2244 = vpop.f32.mrf.mxu0
        %v2245 = vadd.f32 %v2226, %v2244
        %v2246 = vpop.f32.mrf.mxu0
        %v2247 = vadd.f32 %v2228, %v2246
        %2248 = vmatmul.bf16.gmra.mxu0 %v737
        %v2249 = vpop.f32.mrf.mxu0
        %v2250 = vadd.f32 %v2231, %v2249
        %v2251 = vpop.f32.mrf.mxu0
        %v2252 = vadd.f32 %v2233, %v2251
        %2253 = vdwg.mxu0
        %2254 = vmatpush.bf16.msra.mxu0 %v1573
        %2255 = vmatpush.bf16.msra.mxu0 %v1565
        %2256 = vmatpush.bf16.msra.mxu0 %v1557
        %2257 = vmatpush.bf16.msra.mxu0 %v1549
        %2258 = vmatpush.bf16.msra.mxu0 %v1541
        %2259 = vmatpush.bf16.msra.mxu0 %v1533
        %2260 = vmatpush.bf16.msra.mxu0 %v1525
        %2261 = vmatpush.bf16.msra.mxu0 %v1517
        %2262 = vmatmul.bf16.gmra.mxu0 %v730
        %v2263 = vpop.f32.mrf.mxu0
        %v2264 = vadd.f32 %v693, %v2263
        %v2265 = vpop.f32.mrf.mxu0
        %v2266 = vadd.f32 %v693, %v2265
        %2267 = vmatmul.bf16.gmra.mxu0 %v734
        %v2268 = vpop.f32.mrf.mxu0
        %v2269 = vadd.f32 %v693, %v2268
        %v2270 = vpop.f32.mrf.mxu0
        %v2271 = vadd.f32 %v693, %v2270
        %2272 = vdwg.mxu0
        %2273 = vmatpush.bf16.msra.mxu0 %v1637
        %2274 = vmatpush.bf16.msra.mxu0 %v1629
        %2275 = vmatpush.bf16.msra.mxu0 %v1621
        %2276 = vmatpush.bf16.msra.mxu0 %v1613
        %2277 = vmatpush.bf16.msra.mxu0 %v1605
        %2278 = vmatpush.bf16.msra.mxu0 %v1597
        %2279 = vmatpush.bf16.msra.mxu0 %v1589
        %2280 = vmatpush.bf16.msra.mxu0 %v1581
        %2281 = vmatmul.bf16.gmra.mxu0 %v731
        %v2282 = vpop.f32.mrf.mxu0
        %v2283 = vadd.f32 %v2264, %v2282
        %v2284 = vpop.f32.mrf.mxu0
        %v2285 = vadd.f32 %v2266, %v2284
        %2286 = vmatmul.bf16.gmra.mxu0 %v735
        %v2287 = vpop.f32.mrf.mxu0
        %v2288 = vadd.f32 %v2269, %v2287
        %v2289 = vpop.f32.mrf.mxu0
        %v2290 = vadd.f32 %v2271, %v2289
        %2291 = vdwg.mxu0
        %2292 = vmatpush.bf16.msra.mxu0 %v1701
        %2293 = vmatpush.bf16.msra.mxu0 %v1693
        %2294 = vmatpush.bf16.msra.mxu0 %v1685
        %2295 = vmatpush.bf16.msra.mxu0 %v1677
        %2296 = vmatpush.bf16.msra.mxu0 %v1669
        %2297 = vmatpush.bf16.msra.mxu0 %v1661
        %2298 = vmatpush.bf16.msra.mxu0 %v1653
        %2299 = vmatpush.bf16.msra.mxu0 %v1645
        %2300 = vmatmul.bf16.gmra.mxu0 %v732
        %v2301 = vpop.f32.mrf.mxu0
        %v2302 = vadd.f32 %v2283, %v2301
        %v2303 = vpop.f32.mrf.mxu0
        %v2304 = vadd.f32 %v2285, %v2303
        %2305 = vmatmul.bf16.gmra.mxu0 %v736
        %v2306 = vpop.f32.mrf.mxu0
        %v2307 = vadd.f32 %v2288, %v2306
        %v2308 = vpop.f32.mrf.mxu0
        %v2309 = vadd.f32 %v2290, %v2308
        %2310 = vdwg.mxu0
        %2311 = vmatpush.bf16.msra.mxu0 %v1765
        %2312 = vmatpush.bf16.msra.mxu0 %v1757
        %2313 = vmatpush.bf16.msra.mxu0 %v1749
        %2314 = vmatpush.bf16.msra.mxu0 %v1741
        %2315 = vmatpush.bf16.msra.mxu0 %v1733
        %2316 = vmatpush.bf16.msra.mxu0 %v1725
        %2317 = vmatpush.bf16.msra.mxu0 %v1717
        %2318 = vmatpush.bf16.msra.mxu0 %v1709
        %2319 = vmatmul.bf16.gmra.mxu0 %v733
        %v2320 = vpop.f32.mrf.mxu0
        %v2321 = vadd.f32 %v2302, %v2320
        %v2322 = vpop.f32.mrf.mxu0
        %v2323 = vadd.f32 %v2304, %v2322
        %2324 = vmatmul.bf16.gmra.mxu0 %v737
        %v2325 = vpop.f32.mrf.mxu0
        %v2326 = vadd.f32 %v2307, %v2325
        %v2327 = vpop.f32.mrf.mxu0
        %v2328 = vadd.f32 %v2309, %v2327
        %2329 = vdwg.mxu0
        %2330 = vmatpush.bf16.msra.mxu0 %v1574
        %2331 = vmatpush.bf16.msra.mxu0 %v1566
        %2332 = vmatpush.bf16.msra.mxu0 %v1558
        %2333 = vmatpush.bf16.msra.mxu0 %v1550
        %2334 = vmatpush.bf16.msra.mxu0 %v1542
        %2335 = vmatpush.bf16.msra.mxu0 %v1534
        %2336 = vmatpush.bf16.msra.mxu0 %v1526
        %2337 = vmatpush.bf16.msra.mxu0 %v1518
        %2338 = vmatmul.bf16.gmra.mxu0 %v730
        %v2339 = vpop.f32.mrf.mxu0
        %v2340 = vadd.f32 %v694, %v2339
        %v2341 = vpop.f32.mrf.mxu0
        %v2342 = vadd.f32 %v694, %v2341
        %2343 = vmatmul.bf16.gmra.mxu0 %v734
        %v2344 = vpop.f32.mrf.mxu0
        %v2345 = vadd.f32 %v694, %v2344
        %v2346 = vpop.f32.mrf.mxu0
        %v2347 = vadd.f32 %v694, %v2346
        %2348 = vdwg.mxu0
        %2349 = vmatpush.bf16.msra.mxu0 %v1638
        %2350 = vmatpush.bf16.msra.mxu0 %v1630
        %2351 = vmatpush.bf16.msra.mxu0 %v1622
        %2352 = vmatpush.bf16.msra.mxu0 %v1614
        %2353 = vmatpush.bf16.msra.mxu0 %v1606
        %2354 = vmatpush.bf16.msra.mxu0 %v1598
        %2355 = vmatpush.bf16.msra.mxu0 %v1590
        %2356 = vmatpush.bf16.msra.mxu0 %v1582
        %2357 = vmatmul.bf16.gmra.mxu0 %v731
        %v2358 = vpop.f32.mrf.mxu0
        %v2359 = vadd.f32 %v2340, %v2358
        %v2360 = vpop.f32.mrf.mxu0
        %v2361 = vadd.f32 %v2342, %v2360
        %2362 = vmatmul.bf16.gmra.mxu0 %v735
        %v2363 = vpop.f32.mrf.mxu0
        %v2364 = vadd.f32 %v2345, %v2363
        %v2365 = vpop.f32.mrf.mxu0
        %v2366 = vadd.f32 %v2347, %v2365
        %2367 = vdwg.mxu0
        %2368 = vmatpush.bf16.msra.mxu0 %v1702
        %2369 = vmatpush.bf16.msra.mxu0 %v1694
        %2370 = vmatpush.bf16.msra.mxu0 %v1686
        %2371 = vmatpush.bf16.msra.mxu0 %v1678
        %2372 = vmatpush.bf16.msra.mxu0 %v1670
        %2373 = vmatpush.bf16.msra.mxu0 %v1662
        %2374 = vmatpush.bf16.msra.mxu0 %v1654
        %2375 = vmatpush.bf16.msra.mxu0 %v1646
        %2376 = vmatmul.bf16.gmra.mxu0 %v732
        %v2377 = vpop.f32.mrf.mxu0
        %v2378 = vadd.f32 %v2359, %v2377
        %v2379 = vpop.f32.mrf.mxu0
        %v2380 = vadd.f32 %v2361, %v2379
        %2381 = vmatmul.bf16.gmra.mxu0 %v736
        %v2382 = vpop.f32.mrf.mxu0
        %v2383 = vadd.f32 %v2364, %v2382
        %v2384 = vpop.f32.mrf.mxu0
        %v2385 = vadd.f32 %v2366, %v2384
        %2386 = vdwg.mxu0
        %2387 = vmatpush.bf16.msra.mxu0 %v1766
        %2388 = vmatpush.bf16.msra.mxu0 %v1758
        %2389 = vmatpush.bf16.msra.mxu0 %v1750
        %2390 = vmatpush.bf16.msra.mxu0 %v1742
        %2391 = vmatpush.bf16.msra.mxu0 %v1734
        %2392 = vmatpush.bf16.msra.mxu0 %v1726
        %2393 = vmatpush.bf16.msra.mxu0 %v1718
        %2394 = vmatpush.bf16.msra.mxu0 %v1710
        %2395 = vmatmul.bf16.gmra.mxu0 %v733
        %v2396 = vpop.f32.mrf.mxu0
        %v2397 = vadd.f32 %v2378, %v2396
        %v2398 = vpop.f32.mrf.mxu0
        %v2399 = vadd.f32 %v2380, %v2398
        %2400 = vmatmul.bf16.gmra.mxu0 %v737
        %v2401 = vpop.f32.mrf.mxu0
        %v2402 = vadd.f32 %v2383, %v2401
        %v2403 = vpop.f32.mrf.mxu0
        %v2404 = vadd.f32 %v2385, %v2403
        %2405 = vdwg.mxu0
        %2406 = vmatpush.bf16.msra.mxu0 %v1575
        %2407 = vmatpush.bf16.msra.mxu0 %v1567
        %2408 = vmatpush.bf16.msra.mxu0 %v1559
        %2409 = vmatpush.bf16.msra.mxu0 %v1551
        %2410 = vmatpush.bf16.msra.mxu0 %v1543
        %2411 = vmatpush.bf16.msra.mxu0 %v1535
        %2412 = vmatpush.bf16.msra.mxu0 %v1527
        %2413 = vmatpush.bf16.msra.mxu0 %v1519
        %2414 = vmatmul.bf16.gmra.mxu0 %v730
        %v2415 = vpop.f32.mrf.mxu0
        %v2416 = vadd.f32 %v695, %v2415
        %v2417 = vpop.f32.mrf.mxu0
        %v2418 = vadd.f32 %v695, %v2417
        %2419 = vmatmul.bf16.gmra.mxu0 %v734
        %v2420 = vpop.f32.mrf.mxu0
        %v2421 = vadd.f32 %v695, %v2420
        %v2422 = vpop.f32.mrf.mxu0
        %v2423 = vadd.f32 %v695, %v2422
        %2424 = vdwg.mxu0
        %2425 = vmatpush.bf16.msra.mxu0 %v1639
        %2426 = vmatpush.bf16.msra.mxu0 %v1631
        %2427 = vmatpush.bf16.msra.mxu0 %v1623
        %2428 = vmatpush.bf16.msra.mxu0 %v1615
        %2429 = vmatpush.bf16.msra.mxu0 %v1607
        %2430 = vmatpush.bf16.msra.mxu0 %v1599
        %2431 = vmatpush.bf16.msra.mxu0 %v1591
        %2432 = vmatpush.bf16.msra.mxu0 %v1583
        %2433 = vmatmul.bf16.gmra.mxu0 %v731
        %v2434 = vpop.f32.mrf.mxu0
        %v2435 = vadd.f32 %v2416, %v2434
        %v2436 = vpop.f32.mrf.mxu0
        %v2437 = vadd.f32 %v2418, %v2436
        %2438 = vmatmul.bf16.gmra.mxu0 %v735
        %v2439 = vpop.f32.mrf.mxu0
        %v2440 = vadd.f32 %v2421, %v2439
        %v2441 = vpop.f32.mrf.mxu0
        %v2442 = vadd.f32 %v2423, %v2441
        %2443 = vdwg.mxu0
        %2444 = vmatpush.bf16.msra.mxu0 %v1703
        %2445 = vmatpush.bf16.msra.mxu0 %v1695
        %2446 = vmatpush.bf16.msra.mxu0 %v1687
        %2447 = vmatpush.bf16.msra.mxu0 %v1679
        %2448 = vmatpush.bf16.msra.mxu0 %v1671
        %2449 = vmatpush.bf16.msra.mxu0 %v1663
        %2450 = vmatpush.bf16.msra.mxu0 %v1655
        %2451 = vmatpush.bf16.msra.mxu0 %v1647
        %2452 = vmatmul.bf16.gmra.mxu0 %v732
        %v2453 = vpop.f32.mrf.mxu0
        %v2454 = vadd.f32 %v2435, %v2453
        %v2455 = vpop.f32.mrf.mxu0
        %v2456 = vadd.f32 %v2437, %v2455
        %2457 = vmatmul.bf16.gmra.mxu0 %v736
        %v2458 = vpop.f32.mrf.mxu0
        %v2459 = vadd.f32 %v2440, %v2458
        %v2460 = vpop.f32.mrf.mxu0
        %v2461 = vadd.f32 %v2442, %v2460
        %2462 = vdwg.mxu0
        %2463 = vmatpush.bf16.msra.mxu0 %v1767
        %2464 = vmatpush.bf16.msra.mxu0 %v1759
        %2465 = vmatpush.bf16.msra.mxu0 %v1751
        %2466 = vmatpush.bf16.msra.mxu0 %v1743
        %2467 = vmatpush.bf16.msra.mxu0 %v1735
        %2468 = vmatpush.bf16.msra.mxu0 %v1727
        %2469 = vmatpush.bf16.msra.mxu0 %v1719
        %2470 = vmatpush.bf16.msra.mxu0 %v1711
        %2471 = vmatmul.bf16.gmra.mxu0 %v733
        %v2472 = vpop.f32.mrf.mxu0
        %v2473 = vadd.f32 %v2454, %v2472
        %v2474 = vpop.f32.mrf.mxu0
        %v2475 = vadd.f32 %v2456, %v2474
        %2476 = vmatmul.bf16.gmra.mxu0 %v737
        %v2477 = vpop.f32.mrf.mxu0
        %v2478 = vadd.f32 %v2459, %v2477
        %v2479 = vpop.f32.mrf.mxu0
        %v2480 = vadd.f32 %v2461, %v2479
        %2481 = vdwg.mxu0
        %2482 = vmatpush.bf16.msra.mxu0 %v1576
        %2483 = vmatpush.bf16.msra.mxu0 %v1568
        %2484 = vmatpush.bf16.msra.mxu0 %v1560
        %2485 = vmatpush.bf16.msra.mxu0 %v1552
        %2486 = vmatpush.bf16.msra.mxu0 %v1544
        %2487 = vmatpush.bf16.msra.mxu0 %v1536
        %2488 = vmatpush.bf16.msra.mxu0 %v1528
        %2489 = vmatpush.bf16.msra.mxu0 %v1520
        %2490 = vmatmul.bf16.gmra.mxu0 %v730
        %v2491 = vpop.f32.mrf.mxu0
        %v2492 = vadd.f32 %v696, %v2491
        %v2493 = vpop.f32.mrf.mxu0
        %v2494 = vadd.f32 %v696, %v2493
        %2495 = vmatmul.bf16.gmra.mxu0 %v734
        %v2496 = vpop.f32.mrf.mxu0
        %v2497 = vadd.f32 %v696, %v2496
        %v2498 = vpop.f32.mrf.mxu0
        %v2499 = vadd.f32 %v696, %v2498
        %2500 = vdwg.mxu0
        %2501 = vmatpush.bf16.msra.mxu0 %v1640
        %2502 = vmatpush.bf16.msra.mxu0 %v1632
        %2503 = vmatpush.bf16.msra.mxu0 %v1624
        %2504 = vmatpush.bf16.msra.mxu0 %v1616
        %2505 = vmatpush.bf16.msra.mxu0 %v1608
        %2506 = vmatpush.bf16.msra.mxu0 %v1600
        %2507 = vmatpush.bf16.msra.mxu0 %v1592
        %2508 = vmatpush.bf16.msra.mxu0 %v1584
        %2509 = vmatmul.bf16.gmra.mxu0 %v731
        %v2510 = vpop.f32.mrf.mxu0
        %v2511 = vadd.f32 %v2492, %v2510
        %v2512 = vpop.f32.mrf.mxu0
        %v2513 = vadd.f32 %v2494, %v2512
        %2514 = vmatmul.bf16.gmra.mxu0 %v735
        %v2515 = vpop.f32.mrf.mxu0
        %v2516 = vadd.f32 %v2497, %v2515
        %v2517 = vpop.f32.mrf.mxu0
        %v2518 = vadd.f32 %v2499, %v2517
        %2519 = vdwg.mxu0
        %2520 = vmatpush.bf16.msra.mxu0 %v1704
        %2521 = vmatpush.bf16.msra.mxu0 %v1696
        %2522 = vmatpush.bf16.msra.mxu0 %v1688
        %2523 = vmatpush.bf16.msra.mxu0 %v1680
        %2524 = vmatpush.bf16.msra.mxu0 %v1672
        %2525 = vmatpush.bf16.msra.mxu0 %v1664
        %2526 = vmatpush.bf16.msra.mxu0 %v1656
        %2527 = vmatpush.bf16.msra.mxu0 %v1648
        %2528 = vmatmul.bf16.gmra.mxu0 %v732
        %v2529 = vpop.f32.mrf.mxu0
        %v2530 = vadd.f32 %v2511, %v2529
        %v2531 = vpop.f32.mrf.mxu0
        %v2532 = vadd.f32 %v2513, %v2531
        %2533 = vmatmul.bf16.gmra.mxu0 %v736
        %v2534 = vpop.f32.mrf.mxu0
        %v2535 = vadd.f32 %v2516, %v2534
        %v2536 = vpop.f32.mrf.mxu0
        %v2537 = vadd.f32 %v2518, %v2536
        %2538 = vdwg.mxu0
        %2539 = vmatpush.bf16.msra.mxu0 %v1768
        %2540 = vmatpush.bf16.msra.mxu0 %v1760
        %2541 = vmatpush.bf16.msra.mxu0 %v1752
        %2542 = vmatpush.bf16.msra.mxu0 %v1744
        %2543 = vmatpush.bf16.msra.mxu0 %v1736
        %2544 = vmatpush.bf16.msra.mxu0 %v1728
        %2545 = vmatpush.bf16.msra.mxu0 %v1720
        %2546 = vmatpush.bf16.msra.mxu0 %v1712
        %2547 = vmatmul.bf16.gmra.mxu0 %v733
        %v2548 = vpop.f32.mrf.mxu0
        %v2549 = vadd.f32 %v2530, %v2548
        %v2550 = vpop.f32.mrf.mxu0
        %v2551 = vadd.f32 %v2532, %v2550
        %2552 = vmatmul.bf16.gmra.mxu0 %v737
        %v2553 = vpop.f32.mrf.mxu0
        %v2554 = vadd.f32 %v2535, %v2553
        %v2555 = vpop.f32.mrf.mxu0
        %v2556 = vadd.f32 %v2537, %v2555
        %2557 = vdwg.mxu0
        %2558 = vmatpush.bf16.msra.mxu0 %v1577
        %2559 = vmatpush.bf16.msra.mxu0 %v1569
        %2560 = vmatpush.bf16.msra.mxu0 %v1561
        %2561 = vmatpush.bf16.msra.mxu0 %v1553
        %2562 = vmatpush.bf16.msra.mxu0 %v1545
        %2563 = vmatpush.bf16.msra.mxu0 %v1537
        %2564 = vmatpush.bf16.msra.mxu0 %v1529
        %2565 = vmatpush.bf16.msra.mxu0 %v1521
        %2566 = vmatmul.bf16.gmra.mxu0 %v730
        %v2567 = vpop.f32.mrf.mxu0
        %v2568 = vadd.f32 %v697, %v2567
        %v2569 = vpop.f32.mrf.mxu0
        %v2570 = vadd.f32 %v697, %v2569
        %2571 = vmatmul.bf16.gmra.mxu0 %v734
        %v2572 = vpop.f32.mrf.mxu0
        %v2573 = vadd.f32 %v697, %v2572
        %v2574 = vpop.f32.mrf.mxu0
        %v2575 = vadd.f32 %v697, %v2574
        %2576 = vdwg.mxu0
        %2577 = vmatpush.bf16.msra.mxu0 %v1641
        %2578 = vmatpush.bf16.msra.mxu0 %v1633
        %2579 = vmatpush.bf16.msra.mxu0 %v1625
        %2580 = vmatpush.bf16.msra.mxu0 %v1617
        %2581 = vmatpush.bf16.msra.mxu0 %v1609
        %2582 = vmatpush.bf16.msra.mxu0 %v1601
        %2583 = vmatpush.bf16.msra.mxu0 %v1593
        %2584 = vmatpush.bf16.msra.mxu0 %v1585
        %2585 = vmatmul.bf16.gmra.mxu0 %v731
        %v2586 = vpop.f32.mrf.mxu0
        %v2587 = vadd.f32 %v2568, %v2586
        %v2588 = vpop.f32.mrf.mxu0
        %v2589 = vadd.f32 %v2570, %v2588
        %2590 = vmatmul.bf16.gmra.mxu0 %v735
        %v2591 = vpop.f32.mrf.mxu0
        %v2592 = vadd.f32 %v2573, %v2591
        %v2593 = vpop.f32.mrf.mxu0
        %v2594 = vadd.f32 %v2575, %v2593
        %2595 = vdwg.mxu0
        %2596 = vmatpush.bf16.msra.mxu0 %v1705
        %2597 = vmatpush.bf16.msra.mxu0 %v1697
        %2598 = vmatpush.bf16.msra.mxu0 %v1689
        %2599 = vmatpush.bf16.msra.mxu0 %v1681
        %2600 = vmatpush.bf16.msra.mxu0 %v1673
        %2601 = vmatpush.bf16.msra.mxu0 %v1665
        %2602 = vmatpush.bf16.msra.mxu0 %v1657
        %2603 = vmatpush.bf16.msra.mxu0 %v1649
        %2604 = vmatmul.bf16.gmra.mxu0 %v732
        %v2605 = vpop.f32.mrf.mxu0
        %v2606 = vadd.f32 %v2587, %v2605
        %v2607 = vpop.f32.mrf.mxu0
        %v2608 = vadd.f32 %v2589, %v2607
        %2609 = vmatmul.bf16.gmra.mxu0 %v736
        %v2610 = vpop.f32.mrf.mxu0
        %v2611 = vadd.f32 %v2592, %v2610
        %v2612 = vpop.f32.mrf.mxu0
        %v2613 = vadd.f32 %v2594, %v2612
        %2614 = vdwg.mxu0
        %2615 = vmatpush.bf16.msra.mxu0 %v1769
        %2616 = vmatpush.bf16.msra.mxu0 %v1761
        %2617 = vmatpush.bf16.msra.mxu0 %v1753
        %2618 = vmatpush.bf16.msra.mxu0 %v1745
        %2619 = vmatpush.bf16.msra.mxu0 %v1737
        %2620 = vmatpush.bf16.msra.mxu0 %v1729
        %2621 = vmatpush.bf16.msra.mxu0 %v1721
        %2622 = vmatpush.bf16.msra.mxu0 %v1713
        %2623 = vmatmul.bf16.gmra.mxu0 %v733
        %v2624 = vpop.f32.mrf.mxu0
        %v2625 = vadd.f32 %v2606, %v2624
        %v2626 = vpop.f32.mrf.mxu0
        %v2627 = vadd.f32 %v2608, %v2626
        %2628 = vmatmul.bf16.gmra.mxu0 %v737
        %v2629 = vpop.f32.mrf.mxu0
        %v2630 = vadd.f32 %v2611, %v2629
        %v2631 = vpop.f32.mrf.mxu0
        %v2632 = vadd.f32 %v2613, %v2631
        %2633 = vdwg.mxu0
        %v2634 = vxor.u32 %v2093, 2147483648
        %v2635 = vxor.u32 %v2169, 2147483648
        %v2636 = vxor.u32 %v2245, 2147483648
        %v2637 = vxor.u32 %v2321, 2147483648
        %v2638 = vxor.u32 %v2397, 2147483648
        %v2639 = vxor.u32 %v2473, 2147483648
        %v2640 = vxor.u32 %v2549, 2147483648
        %v2641 = vxor.u32 %v2625, 2147483648
        %v2642 = vxor.u32 %v2095, 2147483648
        %v2643 = vxor.u32 %v2171, 2147483648
        %v2644 = vxor.u32 %v2247, 2147483648
        %v2645 = vxor.u32 %v2323, 2147483648
        %v2646 = vxor.u32 %v2399, 2147483648
        %v2647 = vxor.u32 %v2475, 2147483648
        %v2648 = vxor.u32 %v2551, 2147483648
        %v2649 = vxor.u32 %v2627, 2147483648
        %v2650 = vxor.u32 %v2098, 2147483648
        %v2651 = vxor.u32 %v2174, 2147483648
        %v2652 = vxor.u32 %v2250, 2147483648
        %v2653 = vxor.u32 %v2326, 2147483648
        %v2654 = vxor.u32 %v2402, 2147483648
        %v2655 = vxor.u32 %v2478, 2147483648
        %v2656 = vxor.u32 %v2554, 2147483648
        %v2657 = vxor.u32 %v2630, 2147483648
        %v2658 = vxor.u32 %v2100, 2147483648
        %v2659 = vxor.u32 %v2176, 2147483648
        %v2660 = vxor.u32 %v2252, 2147483648
        %v2661 = vxor.u32 %v2328, 2147483648
        %v2662 = vxor.u32 %v2404, 2147483648
        %v2663 = vxor.u32 %v2480, 2147483648
        %v2664 = vxor.u32 %v2556, 2147483648
        %v2665 = vxor.u32 %v2632, 2147483648
        %v2666 = vmul.f32 %v2634, 1.442695
        %v2667 = vpow.pop %v2666
        %v2668 = vmul.f32 %v2635, 1.442695
        %v2669 = vpow.pop %v2668
        %v2670 = vmul.f32 %v2636, 1.442695
        %v2671 = vpow.pop %v2670
        %v2672 = vmul.f32 %v2637, 1.442695
        %v2673 = vpow.pop %v2672
        %v2674 = vmul.f32 %v2638, 1.442695
        %v2675 = vpow.pop %v2674
        %v2676 = vmul.f32 %v2639, 1.442695
        %v2677 = vpow.pop %v2676
        %v2678 = vmul.f32 %v2640, 1.442695
        %v2679 = vpow.pop %v2678
        %v2680 = vmul.f32 %v2641, 1.442695
        %v2681 = vpow.pop %v2680
        %v2682 = vmul.f32 %v2642, 1.442695
        %v2683 = vpow.pop %v2682
        %v2684 = vmul.f32 %v2643, 1.442695
        %v2685 = vpow.pop %v2684
        %v2686 = vmul.f32 %v2644, 1.442695
        %v2687 = vpow.pop %v2686
        %v2688 = vmul.f32 %v2645, 1.442695
        %v2689 = vpow.pop %v2688
        %v2690 = vmul.f32 %v2646, 1.442695
        %v2691 = vpow.pop %v2690
        %v2692 = vmul.f32 %v2647, 1.442695
        %v2693 = vpow.pop %v2692
        %v2694 = vmul.f32 %v2648, 1.442695
        %v2695 = vpow.pop %v2694
        %v2696 = vmul.f32 %v2649, 1.442695
        %v2697 = vpow.pop %v2696
        %v2698 = vmul.f32 %v2650, 1.442695
        %v2699 = vpow.pop %v2698
        %v2700 = vmul.f32 %v2651, 1.442695
        %v2701 = vpow.pop %v2700
        %v2702 = vmul.f32 %v2652, 1.442695
        %v2703 = vpow.pop %v2702
        %v2704 = vmul.f32 %v2653, 1.442695
        %v2705 = vpow.pop %v2704
        %v2706 = vmul.f32 %v2654, 1.442695
        %v2707 = vpow.pop %v2706
        %v2708 = vmul.f32 %v2655, 1.442695
        %v2709 = vpow.pop %v2708
        %v2710 = vmul.f32 %v2656, 1.442695
        %v2711 = vpow.pop %v2710
        %v2712 = vmul.f32 %v2657, 1.442695
        %v2713 = vpow.pop %v2712
        %v2714 = vmul.f32 %v2658, 1.442695
        %v2715 = vpow.pop %v2714
        %v2716 = vmul.f32 %v2659, 1.442695
        %v2717 = vpow.pop %v2716
        %v2718 = vmul.f32 %v2660, 1.442695
        %v2719 = vpow.pop %v2718
        %v2720 = vmul.f32 %v2661, 1.442695
        %v2721 = vpow.pop %v2720
        %v2722 = vmul.f32 %v2662, 1.442695
        %v2723 = vpow.pop %v2722
        %v2724 = vmul.f32 %v2663, 1.442695
        %v2725 = vpow.pop %v2724
        %v2726 = vmul.f32 %v2664, 1.442695
        %v2727 = vpow.pop %v2726
        %v2728 = vmul.f32 %v2665, 1.442695
        %v2729 = vpow.pop %v2728
        %v2730 = vadd.f32 %v2667, 1.0
        %v2731 = vadd.f32 %v2669, 1.0
        %v2732 = vadd.f32 %v2671, 1.0
        %v2733 = vadd.f32 %v2673, 1.0
        %v2734 = vadd.f32 %v2675, 1.0
        %v2735 = vadd.f32 %v2677, 1.0
        %v2736 = vadd.f32 %v2679, 1.0
        %v2737 = vadd.f32 %v2681, 1.0
        %v2738 = vadd.f32 %v2683, 1.0
        %v2739 = vadd.f32 %v2685, 1.0
        %v2740 = vadd.f32 %v2687, 1.0
        %v2741 = vadd.f32 %v2689, 1.0
        %v2742 = vadd.f32 %v2691, 1.0
        %v2743 = vadd.f32 %v2693, 1.0
        %v2744 = vadd.f32 %v2695, 1.0
        %v2745 = vadd.f32 %v2697, 1.0
        %v2746 = vadd.f32 %v2699, 1.0
        %v2747 = vadd.f32 %v2701, 1.0
        %v2748 = vadd.f32 %v2703, 1.0
        %v2749 = vadd.f32 %v2705, 1.0
        %v2750 = vadd.f32 %v2707, 1.0
        %v2751 = vadd.f32 %v2709, 1.0
        %v2752 = vadd.f32 %v2711, 1.0
        %v2753 = vadd.f32 %v2713, 1.0
        %v2754 = vadd.f32 %v2715, 1.0
        %v2755 = vadd.f32 %v2717, 1.0
        %v2756 = vadd.f32 %v2719, 1.0
        %v2757 = vadd.f32 %v2721, 1.0
        %v2758 = vadd.f32 %v2723, 1.0
        %v2759 = vadd.f32 %v2725, 1.0
        %v2760 = vadd.f32 %v2727, 1.0
        %v2761 = vadd.f32 %v2729, 1.0
        %v2762 = vrcp.pop %v2730
        %v2763 = vmul.f32 %v2730, %v2762
        %v2764 = vsub.f32 1.0, %v2763
        %v2765 = vmul.f32 %v2762, %v2764
        %v2766 = vadd.f32 %v2762, %v2765
        %vm2767 = vweird.f32 %v2730
        %vm2768 = vweird.f32 %v2762
        %vm2769 = vmor %vm2767, %vm2768
        %v2770 = vsel %vm2769, %v2762, %v2766
        %v2771 = vand.u32 2147483647, %v2730
        %vm2772 = vcmp.eq.f32.partialorder %v2771, 8.507059e+37
        %v2773 = vand.u32 %v2730, 2147483648
        %v2774 = vor.u32 1.1754944e-38, %v2773
        %v2775 = vsel %vm2772, %v2774, %v2770
        %v2776 = vmul.f32 1.0, %v2775
        %v2777 = vrcp.pop %v2731
        %v2778 = vmul.f32 %v2731, %v2777
        %v2779 = vsub.f32 1.0, %v2778
        %v2780 = vmul.f32 %v2777, %v2779
        %v2781 = vadd.f32 %v2777, %v2780
        %vm2782 = vweird.f32 %v2731
        %vm2783 = vweird.f32 %v2777
        %vm2784 = vmor %vm2782, %vm2783
        %v2785 = vsel %vm2784, %v2777, %v2781
        %v2786 = vand.u32 2147483647, %v2731
        %vm2787 = vcmp.eq.f32.partialorder %v2786, 8.507059e+37
        %v2788 = vand.u32 %v2731, 2147483648
        %v2789 = vor.u32 1.1754944e-38, %v2788
        %v2790 = vsel %vm2787, %v2789, %v2785
        %v2791 = vmul.f32 1.0, %v2790
        %v2792 = vrcp.pop %v2732
        %v2793 = vmul.f32 %v2732, %v2792
        %v2794 = vsub.f32 1.0, %v2793
        %v2795 = vmul.f32 %v2792, %v2794
        %v2796 = vadd.f32 %v2792, %v2795
        %vm2797 = vweird.f32 %v2732
        %vm2798 = vweird.f32 %v2792
        %vm2799 = vmor %vm2797, %vm2798
        %v2800 = vsel %vm2799, %v2792, %v2796
        %v2801 = vand.u32 2147483647, %v2732
        %vm2802 = vcmp.eq.f32.partialorder %v2801, 8.507059e+37
        %v2803 = vand.u32 %v2732, 2147483648
        %v2804 = vor.u32 1.1754944e-38, %v2803
        %v2805 = vsel %vm2802, %v2804, %v2800
        %v2806 = vmul.f32 1.0, %v2805
        %v2807 = vrcp.pop %v2733
        %v2808 = vmul.f32 %v2733, %v2807
        %v2809 = vsub.f32 1.0, %v2808
        %v2810 = vmul.f32 %v2807, %v2809
        %v2811 = vadd.f32 %v2807, %v2810
        %vm2812 = vweird.f32 %v2733
        %vm2813 = vweird.f32 %v2807
        %vm2814 = vmor %vm2812, %vm2813
        %v2815 = vsel %vm2814, %v2807, %v2811
        %v2816 = vand.u32 2147483647, %v2733
        %vm2817 = vcmp.eq.f32.partialorder %v2816, 8.507059e+37
        %v2818 = vand.u32 %v2733, 2147483648
        %v2819 = vor.u32 1.1754944e-38, %v2818
        %v2820 = vsel %vm2817, %v2819, %v2815
        %v2821 = vmul.f32 1.0, %v2820
        %v2822 = vrcp.pop %v2734
        %v2823 = vmul.f32 %v2734, %v2822
        %v2824 = vsub.f32 1.0, %v2823
        %v2825 = vmul.f32 %v2822, %v2824
        %v2826 = vadd.f32 %v2822, %v2825
        %vm2827 = vweird.f32 %v2734
        %vm2828 = vweird.f32 %v2822
        %vm2829 = vmor %vm2827, %vm2828
        %v2830 = vsel %vm2829, %v2822, %v2826
        %v2831 = vand.u32 2147483647, %v2734
        %vm2832 = vcmp.eq.f32.partialorder %v2831, 8.507059e+37
        %v2833 = vand.u32 %v2734, 2147483648
        %v2834 = vor.u32 1.1754944e-38, %v2833
        %v2835 = vsel %vm2832, %v2834, %v2830
        %v2836 = vmul.f32 1.0, %v2835
        %v2837 = vrcp.pop %v2735
        %v2838 = vmul.f32 %v2735, %v2837
        %v2839 = vsub.f32 1.0, %v2838
        %v2840 = vmul.f32 %v2837, %v2839
        %v2841 = vadd.f32 %v2837, %v2840
        %vm2842 = vweird.f32 %v2735
        %vm2843 = vweird.f32 %v2837
        %vm2844 = vmor %vm2842, %vm2843
        %v2845 = vsel %vm2844, %v2837, %v2841
        %v2846 = vand.u32 2147483647, %v2735
        %vm2847 = vcmp.eq.f32.partialorder %v2846, 8.507059e+37
        %v2848 = vand.u32 %v2735, 2147483648
        %v2849 = vor.u32 1.1754944e-38, %v2848
        %v2850 = vsel %vm2847, %v2849, %v2845
        %v2851 = vmul.f32 1.0, %v2850
        %v2852 = vrcp.pop %v2736
        %v2853 = vmul.f32 %v2736, %v2852
        %v2854 = vsub.f32 1.0, %v2853
        %v2855 = vmul.f32 %v2852, %v2854
        %v2856 = vadd.f32 %v2852, %v2855
        %vm2857 = vweird.f32 %v2736
        %vm2858 = vweird.f32 %v2852
        %vm2859 = vmor %vm2857, %vm2858
        %v2860 = vsel %vm2859, %v2852, %v2856
        %v2861 = vand.u32 2147483647, %v2736
        %vm2862 = vcmp.eq.f32.partialorder %v2861, 8.507059e+37
        %v2863 = vand.u32 %v2736, 2147483648
        %v2864 = vor.u32 1.1754944e-38, %v2863
        %v2865 = vsel %vm2862, %v2864, %v2860
        %v2866 = vmul.f32 1.0, %v2865
        %v2867 = vrcp.pop %v2737
        %v2868 = vmul.f32 %v2737, %v2867
        %v2869 = vsub.f32 1.0, %v2868
        %v2870 = vmul.f32 %v2867, %v2869
        %v2871 = vadd.f32 %v2867, %v2870
        %vm2872 = vweird.f32 %v2737
        %vm2873 = vweird.f32 %v2867
        %vm2874 = vmor %vm2872, %vm2873
        %v2875 = vsel %vm2874, %v2867, %v2871
        %v2876 = vand.u32 2147483647, %v2737
        %vm2877 = vcmp.eq.f32.partialorder %v2876, 8.507059e+37
        %v2878 = vand.u32 %v2737, 2147483648
        %v2879 = vor.u32 1.1754944e-38, %v2878
        %v2880 = vsel %vm2877, %v2879, %v2875
        %v2881 = vmul.f32 1.0, %v2880
        %v2882 = vrcp.pop %v2738
        %v2883 = vmul.f32 %v2738, %v2882
        %v2884 = vsub.f32 1.0, %v2883
        %v2885 = vmul.f32 %v2882, %v2884
        %v2886 = vadd.f32 %v2882, %v2885
        %vm2887 = vweird.f32 %v2738
        %vm2888 = vweird.f32 %v2882
        %vm2889 = vmor %vm2887, %vm2888
        %v2890 = vsel %vm2889, %v2882, %v2886
        %v2891 = vand.u32 2147483647, %v2738
        %vm2892 = vcmp.eq.f32.partialorder %v2891, 8.507059e+37
        %v2893 = vand.u32 %v2738, 2147483648
        %v2894 = vor.u32 1.1754944e-38, %v2893
        %v2895 = vsel %vm2892, %v2894, %v2890
        %v2896 = vmul.f32 1.0, %v2895
        %v2897 = vrcp.pop %v2739
        %v2898 = vmul.f32 %v2739, %v2897
        %v2899 = vsub.f32 1.0, %v2898
        %v2900 = vmul.f32 %v2897, %v2899
        %v2901 = vadd.f32 %v2897, %v2900
        %vm2902 = vweird.f32 %v2739
        %vm2903 = vweird.f32 %v2897
        %vm2904 = vmor %vm2902, %vm2903
        %v2905 = vsel %vm2904, %v2897, %v2901
        %v2906 = vand.u32 2147483647, %v2739
        %vm2907 = vcmp.eq.f32.partialorder %v2906, 8.507059e+37
        %v2908 = vand.u32 %v2739, 2147483648
        %v2909 = vor.u32 1.1754944e-38, %v2908
        %v2910 = vsel %vm2907, %v2909, %v2905
        %v2911 = vmul.f32 1.0, %v2910
        %v2912 = vrcp.pop %v2740
        %v2913 = vmul.f32 %v2740, %v2912
        %v2914 = vsub.f32 1.0, %v2913
        %v2915 = vmul.f32 %v2912, %v2914
        %v2916 = vadd.f32 %v2912, %v2915
        %vm2917 = vweird.f32 %v2740
        %vm2918 = vweird.f32 %v2912
        %vm2919 = vmor %vm2917, %vm2918
        %v2920 = vsel %vm2919, %v2912, %v2916
        %v2921 = vand.u32 2147483647, %v2740
        %vm2922 = vcmp.eq.f32.partialorder %v2921, 8.507059e+37
        %v2923 = vand.u32 %v2740, 2147483648
        %v2924 = vor.u32 1.1754944e-38, %v2923
        %v2925 = vsel %vm2922, %v2924, %v2920
        %v2926 = vmul.f32 1.0, %v2925
        %v2927 = vrcp.pop %v2741
        %v2928 = vmul.f32 %v2741, %v2927
        %v2929 = vsub.f32 1.0, %v2928
        %v2930 = vmul.f32 %v2927, %v2929
        %v2931 = vadd.f32 %v2927, %v2930
        %vm2932 = vweird.f32 %v2741
        %vm2933 = vweird.f32 %v2927
        %vm2934 = vmor %vm2932, %vm2933
        %v2935 = vsel %vm2934, %v2927, %v2931
        %v2936 = vand.u32 2147483647, %v2741
        %vm2937 = vcmp.eq.f32.partialorder %v2936, 8.507059e+37
        %v2938 = vand.u32 %v2741, 2147483648
        %v2939 = vor.u32 1.1754944e-38, %v2938
        %v2940 = vsel %vm2937, %v2939, %v2935
        %v2941 = vmul.f32 1.0, %v2940
        %v2942 = vrcp.pop %v2742
        %v2943 = vmul.f32 %v2742, %v2942
        %v2944 = vsub.f32 1.0, %v2943
        %v2945 = vmul.f32 %v2942, %v2944
        %v2946 = vadd.f32 %v2942, %v2945
        %vm2947 = vweird.f32 %v2742
        %vm2948 = vweird.f32 %v2942
        %vm2949 = vmor %vm2947, %vm2948
        %v2950 = vsel %vm2949, %v2942, %v2946
        %v2951 = vand.u32 2147483647, %v2742
        %vm2952 = vcmp.eq.f32.partialorder %v2951, 8.507059e+37
        %v2953 = vand.u32 %v2742, 2147483648
        %v2954 = vor.u32 1.1754944e-38, %v2953
        %v2955 = vsel %vm2952, %v2954, %v2950
        %v2956 = vmul.f32 1.0, %v2955
        %v2957 = vrcp.pop %v2743
        %v2958 = vmul.f32 %v2743, %v2957
        %v2959 = vsub.f32 1.0, %v2958
        %v2960 = vmul.f32 %v2957, %v2959
        %v2961 = vadd.f32 %v2957, %v2960
        %vm2962 = vweird.f32 %v2743
        %vm2963 = vweird.f32 %v2957
        %vm2964 = vmor %vm2962, %vm2963
        %v2965 = vsel %vm2964, %v2957, %v2961
        %v2966 = vand.u32 2147483647, %v2743
        %vm2967 = vcmp.eq.f32.partialorder %v2966, 8.507059e+37
        %v2968 = vand.u32 %v2743, 2147483648
        %v2969 = vor.u32 1.1754944e-38, %v2968
        %v2970 = vsel %vm2967, %v2969, %v2965
        %v2971 = vmul.f32 1.0, %v2970
        %v2972 = vrcp.pop %v2744
        %v2973 = vmul.f32 %v2744, %v2972
        %v2974 = vsub.f32 1.0, %v2973
        %v2975 = vmul.f32 %v2972, %v2974
        %v2976 = vadd.f32 %v2972, %v2975
        %vm2977 = vweird.f32 %v2744
        %vm2978 = vweird.f32 %v2972
        %vm2979 = vmor %vm2977, %vm2978
        %v2980 = vsel %vm2979, %v2972, %v2976
        %v2981 = vand.u32 2147483647, %v2744
        %vm2982 = vcmp.eq.f32.partialorder %v2981, 8.507059e+37
        %v2983 = vand.u32 %v2744, 2147483648
        %v2984 = vor.u32 1.1754944e-38, %v2983
        %v2985 = vsel %vm2982, %v2984, %v2980
        %v2986 = vmul.f32 1.0, %v2985
        %v2987 = vrcp.pop %v2745
        %v2988 = vmul.f32 %v2745, %v2987
        %v2989 = vsub.f32 1.0, %v2988
        %v2990 = vmul.f32 %v2987, %v2989
        %v2991 = vadd.f32 %v2987, %v2990
        %vm2992 = vweird.f32 %v2745
        %vm2993 = vweird.f32 %v2987
        %vm2994 = vmor %vm2992, %vm2993
        %v2995 = vsel %vm2994, %v2987, %v2991
        %v2996 = vand.u32 2147483647, %v2745
        %vm2997 = vcmp.eq.f32.partialorder %v2996, 8.507059e+37
        %v2998 = vand.u32 %v2745, 2147483648
        %v2999 = vor.u32 1.1754944e-38, %v2998
        %v3000 = vsel %vm2997, %v2999, %v2995
        %v3001 = vmul.f32 1.0, %v3000
        %v3002 = vrcp.pop %v2746
        %v3003 = vmul.f32 %v2746, %v3002
        %v3004 = vsub.f32 1.0, %v3003
        %v3005 = vmul.f32 %v3002, %v3004
        %v3006 = vadd.f32 %v3002, %v3005
        %vm3007 = vweird.f32 %v2746
        %vm3008 = vweird.f32 %v3002
        %vm3009 = vmor %vm3007, %vm3008
        %v3010 = vsel %vm3009, %v3002, %v3006
        %v3011 = vand.u32 2147483647, %v2746
        %vm3012 = vcmp.eq.f32.partialorder %v3011, 8.507059e+37
        %v3013 = vand.u32 %v2746, 2147483648
        %v3014 = vor.u32 1.1754944e-38, %v3013
        %v3015 = vsel %vm3012, %v3014, %v3010
        %v3016 = vmul.f32 1.0, %v3015
        %v3017 = vrcp.pop %v2747
        %v3018 = vmul.f32 %v2747, %v3017
        %v3019 = vsub.f32 1.0, %v3018
        %v3020 = vmul.f32 %v3017, %v3019
        %v3021 = vadd.f32 %v3017, %v3020
        %vm3022 = vweird.f32 %v2747
        %vm3023 = vweird.f32 %v3017
        %vm3024 = vmor %vm3022, %vm3023
        %v3025 = vsel %vm3024, %v3017, %v3021
        %v3026 = vand.u32 2147483647, %v2747
        %vm3027 = vcmp.eq.f32.partialorder %v3026, 8.507059e+37
        %v3028 = vand.u32 %v2747, 2147483648
        %v3029 = vor.u32 1.1754944e-38, %v3028
        %v3030 = vsel %vm3027, %v3029, %v3025
        %v3031 = vmul.f32 1.0, %v3030
        %v3032 = vrcp.pop %v2748
        %v3033 = vmul.f32 %v2748, %v3032
        %v3034 = vsub.f32 1.0, %v3033
        %v3035 = vmul.f32 %v3032, %v3034
        %v3036 = vadd.f32 %v3032, %v3035
        %vm3037 = vweird.f32 %v2748
        %vm3038 = vweird.f32 %v3032
        %vm3039 = vmor %vm3037, %vm3038
        %v3040 = vsel %vm3039, %v3032, %v3036
        %v3041 = vand.u32 2147483647, %v2748
        %vm3042 = vcmp.eq.f32.partialorder %v3041, 8.507059e+37
        %v3043 = vand.u32 %v2748, 2147483648
        %v3044 = vor.u32 1.1754944e-38, %v3043
        %v3045 = vsel %vm3042, %v3044, %v3040
        %v3046 = vmul.f32 1.0, %v3045
        %v3047 = vrcp.pop %v2749
        %v3048 = vmul.f32 %v2749, %v3047
        %v3049 = vsub.f32 1.0, %v3048
        %v3050 = vmul.f32 %v3047, %v3049
        %v3051 = vadd.f32 %v3047, %v3050
        %vm3052 = vweird.f32 %v2749
        %vm3053 = vweird.f32 %v3047
        %vm3054 = vmor %vm3052, %vm3053
        %v3055 = vsel %vm3054, %v3047, %v3051
        %v3056 = vand.u32 2147483647, %v2749
        %vm3057 = vcmp.eq.f32.partialorder %v3056, 8.507059e+37
        %v3058 = vand.u32 %v2749, 2147483648
        %v3059 = vor.u32 1.1754944e-38, %v3058
        %v3060 = vsel %vm3057, %v3059, %v3055
        %v3061 = vmul.f32 1.0, %v3060
        %v3062 = vrcp.pop %v2750
        %v3063 = vmul.f32 %v2750, %v3062
        %v3064 = vsub.f32 1.0, %v3063
        %v3065 = vmul.f32 %v3062, %v3064
        %v3066 = vadd.f32 %v3062, %v3065
        %vm3067 = vweird.f32 %v2750
        %vm3068 = vweird.f32 %v3062
        %vm3069 = vmor %vm3067, %vm3068
        %v3070 = vsel %vm3069, %v3062, %v3066
        %v3071 = vand.u32 2147483647, %v2750
        %vm3072 = vcmp.eq.f32.partialorder %v3071, 8.507059e+37
        %v3073 = vand.u32 %v2750, 2147483648
        %v3074 = vor.u32 1.1754944e-38, %v3073
        %v3075 = vsel %vm3072, %v3074, %v3070
        %v3076 = vmul.f32 1.0, %v3075
        %v3077 = vrcp.pop %v2751
        %v3078 = vmul.f32 %v2751, %v3077
        %v3079 = vsub.f32 1.0, %v3078
        %v3080 = vmul.f32 %v3077, %v3079
        %v3081 = vadd.f32 %v3077, %v3080
        %vm3082 = vweird.f32 %v2751
        %vm3083 = vweird.f32 %v3077
        %vm3084 = vmor %vm3082, %vm3083
        %v3085 = vsel %vm3084, %v3077, %v3081
        %v3086 = vand.u32 2147483647, %v2751
        %vm3087 = vcmp.eq.f32.partialorder %v3086, 8.507059e+37
        %v3088 = vand.u32 %v2751, 2147483648
        %v3089 = vor.u32 1.1754944e-38, %v3088
        %v3090 = vsel %vm3087, %v3089, %v3085
        %v3091 = vmul.f32 1.0, %v3090
        %v3092 = vrcp.pop %v2752
        %v3093 = vmul.f32 %v2752, %v3092
        %v3094 = vsub.f32 1.0, %v3093
        %v3095 = vmul.f32 %v3092, %v3094
        %v3096 = vadd.f32 %v3092, %v3095
        %vm3097 = vweird.f32 %v2752
        %vm3098 = vweird.f32 %v3092
        %vm3099 = vmor %vm3097, %vm3098
        %v3100 = vsel %vm3099, %v3092, %v3096
        %v3101 = vand.u32 2147483647, %v2752
        %vm3102 = vcmp.eq.f32.partialorder %v3101, 8.507059e+37
        %v3103 = vand.u32 %v2752, 2147483648
        %v3104 = vor.u32 1.1754944e-38, %v3103
        %v3105 = vsel %vm3102, %v3104, %v3100
        %v3106 = vmul.f32 1.0, %v3105
        %v3107 = vrcp.pop %v2753
        %v3108 = vmul.f32 %v2753, %v3107
        %v3109 = vsub.f32 1.0, %v3108
        %v3110 = vmul.f32 %v3107, %v3109
        %v3111 = vadd.f32 %v3107, %v3110
        %vm3112 = vweird.f32 %v2753
        %vm3113 = vweird.f32 %v3107
        %vm3114 = vmor %vm3112, %vm3113
        %v3115 = vsel %vm3114, %v3107, %v3111
        %v3116 = vand.u32 2147483647, %v2753
        %vm3117 = vcmp.eq.f32.partialorder %v3116, 8.507059e+37
        %v3118 = vand.u32 %v2753, 2147483648
        %v3119 = vor.u32 1.1754944e-38, %v3118
        %v3120 = vsel %vm3117, %v3119, %v3115
        %v3121 = vmul.f32 1.0, %v3120
        %v3122 = vrcp.pop %v2754
        %v3123 = vmul.f32 %v2754, %v3122
        %v3124 = vsub.f32 1.0, %v3123
        %v3125 = vmul.f32 %v3122, %v3124
        %v3126 = vadd.f32 %v3122, %v3125
        %vm3127 = vweird.f32 %v2754
        %vm3128 = vweird.f32 %v3122
        %vm3129 = vmor %vm3127, %vm3128
        %v3130 = vsel %vm3129, %v3122, %v3126
        %v3131 = vand.u32 2147483647, %v2754
        %vm3132 = vcmp.eq.f32.partialorder %v3131, 8.507059e+37
        %v3133 = vand.u32 %v2754, 2147483648
        %v3134 = vor.u32 1.1754944e-38, %v3133
        %v3135 = vsel %vm3132, %v3134, %v3130
        %v3136 = vmul.f32 1.0, %v3135
        %v3137 = vrcp.pop %v2755
        %v3138 = vmul.f32 %v2755, %v3137
        %v3139 = vsub.f32 1.0, %v3138
        %v3140 = vmul.f32 %v3137, %v3139
        %v3141 = vadd.f32 %v3137, %v3140
        %vm3142 = vweird.f32 %v2755
        %vm3143 = vweird.f32 %v3137
        %vm3144 = vmor %vm3142, %vm3143
        %v3145 = vsel %vm3144, %v3137, %v3141
        %v3146 = vand.u32 2147483647, %v2755
        %vm3147 = vcmp.eq.f32.partialorder %v3146, 8.507059e+37
        %v3148 = vand.u32 %v2755, 2147483648
        %v3149 = vor.u32 1.1754944e-38, %v3148
        %v3150 = vsel %vm3147, %v3149, %v3145
        %v3151 = vmul.f32 1.0, %v3150
        %v3152 = vrcp.pop %v2756
        %v3153 = vmul.f32 %v2756, %v3152
        %v3154 = vsub.f32 1.0, %v3153
        %v3155 = vmul.f32 %v3152, %v3154
        %v3156 = vadd.f32 %v3152, %v3155
        %vm3157 = vweird.f32 %v2756
        %vm3158 = vweird.f32 %v3152
        %vm3159 = vmor %vm3157, %vm3158
        %v3160 = vsel %vm3159, %v3152, %v3156
        %v3161 = vand.u32 2147483647, %v2756
        %vm3162 = vcmp.eq.f32.partialorder %v3161, 8.507059e+37
        %v3163 = vand.u32 %v2756, 2147483648
        %v3164 = vor.u32 1.1754944e-38, %v3163
        %v3165 = vsel %vm3162, %v3164, %v3160
        %v3166 = vmul.f32 1.0, %v3165
        %v3167 = vrcp.pop %v2757
        %v3168 = vmul.f32 %v2757, %v3167
        %v3169 = vsub.f32 1.0, %v3168
        %v3170 = vmul.f32 %v3167, %v3169
        %v3171 = vadd.f32 %v3167, %v3170
        %vm3172 = vweird.f32 %v2757
        %vm3173 = vweird.f32 %v3167
        %vm3174 = vmor %vm3172, %vm3173
        %v3175 = vsel %vm3174, %v3167, %v3171
        %v3176 = vand.u32 2147483647, %v2757
        %vm3177 = vcmp.eq.f32.partialorder %v3176, 8.507059e+37
        %v3178 = vand.u32 %v2757, 2147483648
        %v3179 = vor.u32 1.1754944e-38, %v3178
        %v3180 = vsel %vm3177, %v3179, %v3175
        %v3181 = vmul.f32 1.0, %v3180
        %v3182 = vrcp.pop %v2758
        %v3183 = vmul.f32 %v2758, %v3182
        %v3184 = vsub.f32 1.0, %v3183
        %v3185 = vmul.f32 %v3182, %v3184
        %v3186 = vadd.f32 %v3182, %v3185
        %vm3187 = vweird.f32 %v2758
        %vm3188 = vweird.f32 %v3182
        %vm3189 = vmor %vm3187, %vm3188
        %v3190 = vsel %vm3189, %v3182, %v3186
        %v3191 = vand.u32 2147483647, %v2758
        %vm3192 = vcmp.eq.f32.partialorder %v3191, 8.507059e+37
        %v3193 = vand.u32 %v2758, 2147483648
        %v3194 = vor.u32 1.1754944e-38, %v3193
        %v3195 = vsel %vm3192, %v3194, %v3190
        %v3196 = vmul.f32 1.0, %v3195
        %v3197 = vrcp.pop %v2759
        %v3198 = vmul.f32 %v2759, %v3197
        %v3199 = vsub.f32 1.0, %v3198
        %v3200 = vmul.f32 %v3197, %v3199
        %v3201 = vadd.f32 %v3197, %v3200
        %vm3202 = vweird.f32 %v2759
        %vm3203 = vweird.f32 %v3197
        %vm3204 = vmor %vm3202, %vm3203
        %v3205 = vsel %vm3204, %v3197, %v3201
        %v3206 = vand.u32 2147483647, %v2759
        %vm3207 = vcmp.eq.f32.partialorder %v3206, 8.507059e+37
        %v3208 = vand.u32 %v2759, 2147483648
        %v3209 = vor.u32 1.1754944e-38, %v3208
        %v3210 = vsel %vm3207, %v3209, %v3205
        %v3211 = vmul.f32 1.0, %v3210
        %v3212 = vrcp.pop %v2760
        %v3213 = vmul.f32 %v2760, %v3212
        %v3214 = vsub.f32 1.0, %v3213
        %v3215 = vmul.f32 %v3212, %v3214
        %v3216 = vadd.f32 %v3212, %v3215
        %vm3217 = vweird.f32 %v2760
        %vm3218 = vweird.f32 %v3212
        %vm3219 = vmor %vm3217, %vm3218
        %v3220 = vsel %vm3219, %v3212, %v3216
        %v3221 = vand.u32 2147483647, %v2760
        %vm3222 = vcmp.eq.f32.partialorder %v3221, 8.507059e+37
        %v3223 = vand.u32 %v2760, 2147483648
        %v3224 = vor.u32 1.1754944e-38, %v3223
        %v3225 = vsel %vm3222, %v3224, %v3220
        %v3226 = vmul.f32 1.0, %v3225
        %v3227 = vrcp.pop %v2761
        %v3228 = vmul.f32 %v2761, %v3227
        %v3229 = vsub.f32 1.0, %v3228
        %v3230 = vmul.f32 %v3227, %v3229
        %v3231 = vadd.f32 %v3227, %v3230
        %vm3232 = vweird.f32 %v2761
        %vm3233 = vweird.f32 %v3227
        %vm3234 = vmor %vm3232, %vm3233
        %v3235 = vsel %vm3234, %v3227, %v3231
        %v3236 = vand.u32 2147483647, %v2761
        %vm3237 = vcmp.eq.f32.partialorder %v3236, 8.507059e+37
        %v3238 = vand.u32 %v2761, 2147483648
        %v3239 = vor.u32 1.1754944e-38, %v3238
        %v3240 = vsel %vm3237, %v3239, %v3235
        %v3241 = vmul.f32 1.0, %v3240
        %v3242 = vpack.c.bf16 %v2896, %v2776
        %v3243 = vpack.c.bf16 %v2911, %v2791
        %v3244 = vpack.c.bf16 %v2926, %v2806
        %v3245 = vpack.c.bf16 %v2941, %v2821
        %v3246 = vpack.c.bf16 %v2956, %v2836
        %v3247 = vpack.c.bf16 %v2971, %v2851
        %v3248 = vpack.c.bf16 %v2986, %v2866
        %v3249 = vpack.c.bf16 %v3001, %v2881
        %v3250 = vpack.c.bf16 %v3136, %v3016
        %v3251 = vpack.c.bf16 %v3151, %v3031
        %v3252 = vpack.c.bf16 %v3166, %v3046
        %v3253 = vpack.c.bf16 %v3181, %v3061
        %v3254 = vpack.c.bf16 %v3196, %v3076
        %v3255 = vpack.c.bf16 %v3211, %v3091
        %v3256 = vpack.c.bf16 %v3226, %v3106
        %v3257 = vpack.c.bf16 %v3241, %v3121
        %v3258 = vld [vmem:[#allocation8] sm:$0xff]
        %v3259 = vld [vmem:[#allocation8 + $0x8] sm:$0xff]
        %v3260 = vld [vmem:[#allocation8 + $0x10] sm:$0xff]
        %v3261 = vld [vmem:[#allocation8 + $0x18] sm:$0xff]
        %v3262 = vld [vmem:[#allocation8 + $0x20] sm:$0xff]
        %v3263 = vld [vmem:[#allocation8 + $0x28] sm:$0xff]
        %v3264 = vld [vmem:[#allocation8 + $0x30] sm:$0xff]
        %v3265 = vld [vmem:[#allocation8 + $0x38] sm:$0xff]
        %v3266 = vld [vmem:[#allocation8 + $0x40] sm:$0xff]
        %v3267 = vld [vmem:[#allocation8 + $0x48] sm:$0xff]
        %v3268 = vld [vmem:[#allocation8 + $0x50] sm:$0xff]
        %v3269 = vld [vmem:[#allocation8 + $0x58] sm:$0xff]
        %v3270 = vld [vmem:[#allocation8 + $0x60] sm:$0xff]
        %v3271 = vld [vmem:[#allocation8 + $0x68] sm:$0xff]
        %v3272 = vld [vmem:[#allocation8 + $0x70] sm:$0xff]
        %v3273 = vld [vmem:[#allocation8 + $0x78] sm:$0xff]
        %v3274 = vld [vmem:[#allocation8 + $0x80] sm:$0xff]
        %v3275 = vld [vmem:[#allocation8 + $0x88] sm:$0xff]
        %v3276 = vld [vmem:[#allocation8 + $0x90] sm:$0xff]
        %v3277 = vld [vmem:[#allocation8 + $0x98] sm:$0xff]
        %v3278 = vld [vmem:[#allocation8 + $0xa0] sm:$0xff]
        %v3279 = vld [vmem:[#allocation8 + $0xa8] sm:$0xff]
        %v3280 = vld [vmem:[#allocation8 + $0xb0] sm:$0xff]
        %v3281 = vld [vmem:[#allocation8 + $0xb8] sm:$0xff]
        %v3282 = vld [vmem:[#allocation8 + $0xc0] sm:$0xff]
        %v3283 = vld [vmem:[#allocation8 + $0xc8] sm:$0xff]
        %v3284 = vld [vmem:[#allocation8 + $0xd0] sm:$0xff]
        %v3285 = vld [vmem:[#allocation8 + $0xd8] sm:$0xff]
        %v3286 = vld [vmem:[#allocation8 + $0xe0] sm:$0xff]
        %v3287 = vld [vmem:[#allocation8 + $0xe8] sm:$0xff]
        %v3288 = vld [vmem:[#allocation8 + $0xf0] sm:$0xff]
        %v3289 = vld [vmem:[#allocation8 + $0xf8] sm:$0xff]
        %v3290 = vld [vmem:[#allocation8 + $0x100] sm:$0xff]
        %v3291 = vld [vmem:[#allocation8 + $0x108] sm:$0xff]
        %v3292 = vld [vmem:[#allocation8 + $0x110] sm:$0xff]
        %v3293 = vld [vmem:[#allocation8 + $0x118] sm:$0xff]
        %v3294 = vld [vmem:[#allocation8 + $0x120] sm:$0xff]
        %v3295 = vld [vmem:[#allocation8 + $0x128] sm:$0xff]
        %v3296 = vld [vmem:[#allocation8 + $0x130] sm:$0xff]
        %v3297 = vld [vmem:[#allocation8 + $0x138] sm:$0xff]
        %v3298 = vld [vmem:[#allocation8 + $0x140] sm:$0xff]
        %v3299 = vld [vmem:[#allocation8 + $0x148] sm:$0xff]
        %v3300 = vld [vmem:[#allocation8 + $0x150] sm:$0xff]
        %v3301 = vld [vmem:[#allocation8 + $0x158] sm:$0xff]
        %v3302 = vld [vmem:[#allocation8 + $0x160] sm:$0xff]
        %v3303 = vld [vmem:[#allocation8 + $0x168] sm:$0xff]
        %v3304 = vld [vmem:[#allocation8 + $0x170] sm:$0xff]
        %v3305 = vld [vmem:[#allocation8 + $0x178] sm:$0xff]
        %v3306 = vld [vmem:[#allocation8 + $0x180] sm:$0xff]
        %v3307 = vld [vmem:[#allocation8 + $0x188] sm:$0xff]
        %v3308 = vld [vmem:[#allocation8 + $0x190] sm:$0xff]
        %v3309 = vld [vmem:[#allocation8 + $0x198] sm:$0xff]
        %v3310 = vld [vmem:[#allocation8 + $0x1a0] sm:$0xff]
        %v3311 = vld [vmem:[#allocation8 + $0x1a8] sm:$0xff]
        %v3312 = vld [vmem:[#allocation8 + $0x1b0] sm:$0xff]
        %v3313 = vld [vmem:[#allocation8 + $0x1b8] sm:$0xff]
        %v3314 = vld [vmem:[#allocation8 + $0x1c0] sm:$0xff]
        %v3315 = vld [vmem:[#allocation8 + $0x1c8] sm:$0xff]
        %v3316 = vld [vmem:[#allocation8 + $0x1d0] sm:$0xff]
        %v3317 = vld [vmem:[#allocation8 + $0x1d8] sm:$0xff]
        %v3318 = vld [vmem:[#allocation8 + $0x1e0] sm:$0xff]
        %v3319 = vld [vmem:[#allocation8 + $0x1e8] sm:$0xff]
        %v3320 = vld [vmem:[#allocation8 + $0x1f0] sm:$0xff]
        %v3321 = vld [vmem:[#allocation8 + $0x1f8] sm:$0xff]
        %v3322 = vld [vmem:[#allocation8 + $0x200] sm:$0xff]
        %v3323 = vld [vmem:[#allocation8 + $0x208] sm:$0xff]
        %v3324 = vld [vmem:[#allocation8 + $0x210] sm:$0xff]
        %v3325 = vld [vmem:[#allocation8 + $0x218] sm:$0xff]
        %v3326 = vld [vmem:[#allocation8 + $0x220] sm:$0xff]
        %v3327 = vld [vmem:[#allocation8 + $0x228] sm:$0xff]
        %v3328 = vld [vmem:[#allocation8 + $0x230] sm:$0xff]
        %v3329 = vld [vmem:[#allocation8 + $0x238] sm:$0xff]
        %v3330 = vld [vmem:[#allocation8 + $0x240] sm:$0xff]
        %v3331 = vld [vmem:[#allocation8 + $0x248] sm:$0xff]
        %v3332 = vld [vmem:[#allocation8 + $0x250] sm:$0xff]
        %v3333 = vld [vmem:[#allocation8 + $0x258] sm:$0xff]
        %v3334 = vld [vmem:[#allocation8 + $0x260] sm:$0xff]
        %v3335 = vld [vmem:[#allocation8 + $0x268] sm:$0xff]
        %v3336 = vld [vmem:[#allocation8 + $0x270] sm:$0xff]
        %v3337 = vld [vmem:[#allocation8 + $0x278] sm:$0xff]
        %v3338 = vld [vmem:[#allocation8 + $0x280] sm:$0xff]
        %v3339 = vld [vmem:[#allocation8 + $0x288] sm:$0xff]
        %v3340 = vld [vmem:[#allocation8 + $0x290] sm:$0xff]
        %v3341 = vld [vmem:[#allocation8 + $0x298] sm:$0xff]
        %v3342 = vld [vmem:[#allocation8 + $0x2a0] sm:$0xff]
        %v3343 = vld [vmem:[#allocation8 + $0x2a8] sm:$0xff]
        %v3344 = vld [vmem:[#allocation8 + $0x2b0] sm:$0xff]
        %v3345 = vld [vmem:[#allocation8 + $0x2b8] sm:$0xff]
        %v3346 = vld [vmem:[#allocation8 + $0x2c0] sm:$0xff]
        %v3347 = vld [vmem:[#allocation8 + $0x2c8] sm:$0xff]
        %v3348 = vld [vmem:[#allocation8 + $0x2d0] sm:$0xff]
        %v3349 = vld [vmem:[#allocation8 + $0x2d8] sm:$0xff]
        %v3350 = vld [vmem:[#allocation8 + $0x2e0] sm:$0xff]
        %v3351 = vld [vmem:[#allocation8 + $0x2e8] sm:$0xff]
        %v3352 = vld [vmem:[#allocation8 + $0x2f0] sm:$0xff]
        %v3353 = vld [vmem:[#allocation8 + $0x2f8] sm:$0xff]
        %v3354 = vld [vmem:[#allocation8 + $0x300] sm:$0xff]
        %v3355 = vld [vmem:[#allocation8 + $0x308] sm:$0xff]
        %v3356 = vld [vmem:[#allocation8 + $0x310] sm:$0xff]
        %v3357 = vld [vmem:[#allocation8 + $0x318] sm:$0xff]
        %v3358 = vld [vmem:[#allocation8 + $0x320] sm:$0xff]
        %v3359 = vld [vmem:[#allocation8 + $0x328] sm:$0xff]
        %v3360 = vld [vmem:[#allocation8 + $0x330] sm:$0xff]
        %v3361 = vld [vmem:[#allocation8 + $0x338] sm:$0xff]
        %v3362 = vld [vmem:[#allocation8 + $0x340] sm:$0xff]
        %v3363 = vld [vmem:[#allocation8 + $0x348] sm:$0xff]
        %v3364 = vld [vmem:[#allocation8 + $0x350] sm:$0xff]
        %v3365 = vld [vmem:[#allocation8 + $0x358] sm:$0xff]
        %v3366 = vld [vmem:[#allocation8 + $0x360] sm:$0xff]
        %v3367 = vld [vmem:[#allocation8 + $0x368] sm:$0xff]
        %v3368 = vld [vmem:[#allocation8 + $0x370] sm:$0xff]
        %v3369 = vld [vmem:[#allocation8 + $0x378] sm:$0xff]
        %v3370 = vld [vmem:[#allocation8 + $0x380] sm:$0xff]
        %v3371 = vld [vmem:[#allocation8 + $0x388] sm:$0xff]
        %v3372 = vld [vmem:[#allocation8 + $0x390] sm:$0xff]
        %v3373 = vld [vmem:[#allocation8 + $0x398] sm:$0xff]
        %v3374 = vld [vmem:[#allocation8 + $0x3a0] sm:$0xff]
        %v3375 = vld [vmem:[#allocation8 + $0x3a8] sm:$0xff]
        %v3376 = vld [vmem:[#allocation8 + $0x3b0] sm:$0xff]
        %v3377 = vld [vmem:[#allocation8 + $0x3b8] sm:$0xff]
        %v3378 = vld [vmem:[#allocation8 + $0x3c0] sm:$0xff]
        %v3379 = vld [vmem:[#allocation8 + $0x3c8] sm:$0xff]
        %v3380 = vld [vmem:[#allocation8 + $0x3d0] sm:$0xff]
        %v3381 = vld [vmem:[#allocation8 + $0x3d8] sm:$0xff]
        %v3382 = vld [vmem:[#allocation8 + $0x3e0] sm:$0xff]
        %v3383 = vld [vmem:[#allocation8 + $0x3e8] sm:$0xff]
        %v3384 = vld [vmem:[#allocation8 + $0x3f0] sm:$0xff]
        %v3385 = vld [vmem:[#allocation8 + $0x3f8] sm:$0xff]
        %v3386 = vld [vmem:[#allocation8 + $0x400] sm:$0xff]
        %v3387 = vld [vmem:[#allocation8 + $0x408] sm:$0xff]
        %v3388 = vld [vmem:[#allocation8 + $0x410] sm:$0xff]
        %v3389 = vld [vmem:[#allocation8 + $0x418] sm:$0xff]
        %v3390 = vld [vmem:[#allocation8 + $0x420] sm:$0xff]
        %v3391 = vld [vmem:[#allocation8 + $0x428] sm:$0xff]
        %v3392 = vld [vmem:[#allocation8 + $0x430] sm:$0xff]
        %v3393 = vld [vmem:[#allocation8 + $0x438] sm:$0xff]
        %v3394 = vld [vmem:[#allocation8 + $0x440] sm:$0xff]
        %v3395 = vld [vmem:[#allocation8 + $0x448] sm:$0xff]
        %v3396 = vld [vmem:[#allocation8 + $0x450] sm:$0xff]
        %v3397 = vld [vmem:[#allocation8 + $0x458] sm:$0xff]
        %v3398 = vld [vmem:[#allocation8 + $0x460] sm:$0xff]
        %v3399 = vld [vmem:[#allocation8 + $0x468] sm:$0xff]
        %v3400 = vld [vmem:[#allocation8 + $0x470] sm:$0xff]
        %v3401 = vld [vmem:[#allocation8 + $0x478] sm:$0xff]
        %v3402 = vld [vmem:[#allocation8 + $0x480] sm:$0xff]
        %v3403 = vld [vmem:[#allocation8 + $0x488] sm:$0xff]
        %v3404 = vld [vmem:[#allocation8 + $0x490] sm:$0xff]
        %v3405 = vld [vmem:[#allocation8 + $0x498] sm:$0xff]
        %v3406 = vld [vmem:[#allocation8 + $0x4a0] sm:$0xff]
        %v3407 = vld [vmem:[#allocation8 + $0x4a8] sm:$0xff]
        %v3408 = vld [vmem:[#allocation8 + $0x4b0] sm:$0xff]
        %v3409 = vld [vmem:[#allocation8 + $0x4b8] sm:$0xff]
        %v3410 = vld [vmem:[#allocation8 + $0x4c0] sm:$0xff]
        %v3411 = vld [vmem:[#allocation8 + $0x4c8] sm:$0xff]
        %v3412 = vld [vmem:[#allocation8 + $0x4d0] sm:$0xff]
        %v3413 = vld [vmem:[#allocation8 + $0x4d8] sm:$0xff]
        %v3414 = vld [vmem:[#allocation8 + $0x4e0] sm:$0xff]
        %v3415 = vld [vmem:[#allocation8 + $0x4e8] sm:$0xff]
        %v3416 = vld [vmem:[#allocation8 + $0x4f0] sm:$0xff]
        %v3417 = vld [vmem:[#allocation8 + $0x4f8] sm:$0xff]
        %v3418 = vld [vmem:[#allocation8 + $0x500] sm:$0xff]
        %v3419 = vld [vmem:[#allocation8 + $0x508] sm:$0xff]
        %v3420 = vld [vmem:[#allocation8 + $0x510] sm:$0xff]
        %v3421 = vld [vmem:[#allocation8 + $0x518] sm:$0xff]
        %v3422 = vld [vmem:[#allocation8 + $0x520] sm:$0xff]
        %v3423 = vld [vmem:[#allocation8 + $0x528] sm:$0xff]
        %v3424 = vld [vmem:[#allocation8 + $0x530] sm:$0xff]
        %v3425 = vld [vmem:[#allocation8 + $0x538] sm:$0xff]
        %v3426 = vld [vmem:[#allocation8 + $0x540] sm:$0xff]
        %v3427 = vld [vmem:[#allocation8 + $0x548] sm:$0xff]
        %v3428 = vld [vmem:[#allocation8 + $0x550] sm:$0xff]
        %v3429 = vld [vmem:[#allocation8 + $0x558] sm:$0xff]
        %v3430 = vld [vmem:[#allocation8 + $0x560] sm:$0xff]
        %v3431 = vld [vmem:[#allocation8 + $0x568] sm:$0xff]
        %v3432 = vld [vmem:[#allocation8 + $0x570] sm:$0xff]
        %v3433 = vld [vmem:[#allocation8 + $0x578] sm:$0xff]
        %v3434 = vld [vmem:[#allocation8 + $0x580] sm:$0xff]
        %v3435 = vld [vmem:[#allocation8 + $0x588] sm:$0xff]
        %v3436 = vld [vmem:[#allocation8 + $0x590] sm:$0xff]
        %v3437 = vld [vmem:[#allocation8 + $0x598] sm:$0xff]
        %v3438 = vld [vmem:[#allocation8 + $0x5a0] sm:$0xff]
        %v3439 = vld [vmem:[#allocation8 + $0x5a8] sm:$0xff]
        %v3440 = vld [vmem:[#allocation8 + $0x5b0] sm:$0xff]
        %v3441 = vld [vmem:[#allocation8 + $0x5b8] sm:$0xff]
        %v3442 = vld [vmem:[#allocation8 + $0x5c0] sm:$0xff]
        %v3443 = vld [vmem:[#allocation8 + $0x5c8] sm:$0xff]
        %v3444 = vld [vmem:[#allocation8 + $0x5d0] sm:$0xff]
        %v3445 = vld [vmem:[#allocation8 + $0x5d8] sm:$0xff]
        %v3446 = vld [vmem:[#allocation8 + $0x5e0] sm:$0xff]
        %v3447 = vld [vmem:[#allocation8 + $0x5e8] sm:$0xff]
        %v3448 = vld [vmem:[#allocation8 + $0x5f0] sm:$0xff]
        %v3449 = vld [vmem:[#allocation8 + $0x5f8] sm:$0xff]
        %v3450 = vld [vmem:[#allocation8 + $0x600] sm:$0xff]
        %v3451 = vld [vmem:[#allocation8 + $0x608] sm:$0xff]
        %v3452 = vld [vmem:[#allocation8 + $0x610] sm:$0xff]
        %v3453 = vld [vmem:[#allocation8 + $0x618] sm:$0xff]
        %v3454 = vld [vmem:[#allocation8 + $0x620] sm:$0xff]
        %v3455 = vld [vmem:[#allocation8 + $0x628] sm:$0xff]
        %v3456 = vld [vmem:[#allocation8 + $0x630] sm:$0xff]
        %v3457 = vld [vmem:[#allocation8 + $0x638] sm:$0xff]
        %v3458 = vld [vmem:[#allocation8 + $0x640] sm:$0xff]
        %v3459 = vld [vmem:[#allocation8 + $0x648] sm:$0xff]
        %v3460 = vld [vmem:[#allocation8 + $0x650] sm:$0xff]
        %v3461 = vld [vmem:[#allocation8 + $0x658] sm:$0xff]
        %v3462 = vld [vmem:[#allocation8 + $0x660] sm:$0xff]
        %v3463 = vld [vmem:[#allocation8 + $0x668] sm:$0xff]
        %v3464 = vld [vmem:[#allocation8 + $0x670] sm:$0xff]
        %v3465 = vld [vmem:[#allocation8 + $0x678] sm:$0xff]
        %v3466 = vld [vmem:[#allocation8 + $0x680] sm:$0xff]
        %v3467 = vld [vmem:[#allocation8 + $0x688] sm:$0xff]
        %v3468 = vld [vmem:[#allocation8 + $0x690] sm:$0xff]
        %v3469 = vld [vmem:[#allocation8 + $0x698] sm:$0xff]
        %v3470 = vld [vmem:[#allocation8 + $0x6a0] sm:$0xff]
        %v3471 = vld [vmem:[#allocation8 + $0x6a8] sm:$0xff]
        %v3472 = vld [vmem:[#allocation8 + $0x6b0] sm:$0xff]
        %v3473 = vld [vmem:[#allocation8 + $0x6b8] sm:$0xff]
        %v3474 = vld [vmem:[#allocation8 + $0x6c0] sm:$0xff]
        %v3475 = vld [vmem:[#allocation8 + $0x6c8] sm:$0xff]
        %v3476 = vld [vmem:[#allocation8 + $0x6d0] sm:$0xff]
        %v3477 = vld [vmem:[#allocation8 + $0x6d8] sm:$0xff]
        %v3478 = vld [vmem:[#allocation8 + $0x6e0] sm:$0xff]
        %v3479 = vld [vmem:[#allocation8 + $0x6e8] sm:$0xff]
        %v3480 = vld [vmem:[#allocation8 + $0x6f0] sm:$0xff]
        %v3481 = vld [vmem:[#allocation8 + $0x6f8] sm:$0xff]
        %v3482 = vld [vmem:[#allocation8 + $0x700] sm:$0xff]
        %v3483 = vld [vmem:[#allocation8 + $0x708] sm:$0xff]
        %v3484 = vld [vmem:[#allocation8 + $0x710] sm:$0xff]
        %v3485 = vld [vmem:[#allocation8 + $0x718] sm:$0xff]
        %v3486 = vld [vmem:[#allocation8 + $0x720] sm:$0xff]
        %v3487 = vld [vmem:[#allocation8 + $0x728] sm:$0xff]
        %v3488 = vld [vmem:[#allocation8 + $0x730] sm:$0xff]
        %v3489 = vld [vmem:[#allocation8 + $0x738] sm:$0xff]
        %v3490 = vld [vmem:[#allocation8 + $0x740] sm:$0xff]
        %v3491 = vld [vmem:[#allocation8 + $0x748] sm:$0xff]
        %v3492 = vld [vmem:[#allocation8 + $0x750] sm:$0xff]
        %v3493 = vld [vmem:[#allocation8 + $0x758] sm:$0xff]
        %v3494 = vld [vmem:[#allocation8 + $0x760] sm:$0xff]
        %v3495 = vld [vmem:[#allocation8 + $0x768] sm:$0xff]
        %v3496 = vld [vmem:[#allocation8 + $0x770] sm:$0xff]
        %v3497 = vld [vmem:[#allocation8 + $0x778] sm:$0xff]
        %v3498 = vld [vmem:[#allocation8 + $0x780] sm:$0xff]
        %v3499 = vld [vmem:[#allocation8 + $0x788] sm:$0xff]
        %v3500 = vld [vmem:[#allocation8 + $0x790] sm:$0xff]
        %v3501 = vld [vmem:[#allocation8 + $0x798] sm:$0xff]
        %v3502 = vld [vmem:[#allocation8 + $0x7a0] sm:$0xff]
        %v3503 = vld [vmem:[#allocation8 + $0x7a8] sm:$0xff]
        %v3504 = vld [vmem:[#allocation8 + $0x7b0] sm:$0xff]
        %v3505 = vld [vmem:[#allocation8 + $0x7b8] sm:$0xff]
        %v3506 = vld [vmem:[#allocation8 + $0x7c0] sm:$0xff]
        %v3507 = vld [vmem:[#allocation8 + $0x7c8] sm:$0xff]
        %v3508 = vld [vmem:[#allocation8 + $0x7d0] sm:$0xff]
        %v3509 = vld [vmem:[#allocation8 + $0x7d8] sm:$0xff]
        %v3510 = vld [vmem:[#allocation8 + $0x7e0] sm:$0xff]
        %v3511 = vld [vmem:[#allocation8 + $0x7e8] sm:$0xff]
        %v3512 = vld [vmem:[#allocation8 + $0x7f0] sm:$0xff]
        %v3513 = vld [vmem:[#allocation8 + $0x7f8] sm:$0xff]
        %v3514 = vld [vmem:[%s4] sm:$0xf]
        %v3516 = vperm.slane %v3514, 0
        %v3517 = vperm.slane %v3514, 1
        %v3518 = vperm.slane %v3514, 2
        %v3519 = vperm.slane %v3514, 3
        %v3780 = vunpack.c.l.b16 %v3258
        %v3781 = vunpack.c.h.b16 %v3258
        %v3782 = vunpack.c.l.b16 %v3259
        %v3783 = vunpack.c.h.b16 %v3259
        %v3784 = vunpack.c.l.b16 %v3260
        %v3785 = vunpack.c.h.b16 %v3260
        %v3786 = vunpack.c.l.b16 %v3261
        %v3787 = vunpack.c.h.b16 %v3261
        %v3788 = vunpack.c.l.b16 %v3262
        %v3789 = vunpack.c.h.b16 %v3262
        %v3790 = vunpack.c.l.b16 %v3263
        %v3791 = vunpack.c.h.b16 %v3263
        %v3792 = vunpack.c.l.b16 %v3264
        %v3793 = vunpack.c.h.b16 %v3264
        %v3794 = vunpack.c.l.b16 %v3265
        %v3795 = vunpack.c.h.b16 %v3265
        %v3796 = vunpack.c.l.b16 %v3266
        %v3797 = vunpack.c.h.b16 %v3266
        %v3798 = vunpack.c.l.b16 %v3267
        %v3799 = vunpack.c.h.b16 %v3267
        %v3800 = vunpack.c.l.b16 %v3268
        %v3801 = vunpack.c.h.b16 %v3268
        %v3802 = vunpack.c.l.b16 %v3269
        %v3803 = vunpack.c.h.b16 %v3269
        %v3804 = vunpack.c.l.b16 %v3270
        %v3805 = vunpack.c.h.b16 %v3270
        %v3806 = vunpack.c.l.b16 %v3271
        %v3807 = vunpack.c.h.b16 %v3271
        %v3808 = vunpack.c.l.b16 %v3272
        %v3809 = vunpack.c.h.b16 %v3272
        %v3810 = vunpack.c.l.b16 %v3273
        %v3811 = vunpack.c.h.b16 %v3273
        %v3812 = vunpack.c.l.b16 %v3274
        %v3813 = vunpack.c.h.b16 %v3274
        %v3814 = vunpack.c.l.b16 %v3275
        %v3815 = vunpack.c.h.b16 %v3275
        %v3816 = vunpack.c.l.b16 %v3276
        %v3817 = vunpack.c.h.b16 %v3276
        %v3818 = vunpack.c.l.b16 %v3277
        %v3819 = vunpack.c.h.b16 %v3277
        %v3820 = vunpack.c.l.b16 %v3278
        %v3821 = vunpack.c.h.b16 %v3278
        %v3822 = vunpack.c.l.b16 %v3279
        %v3823 = vunpack.c.h.b16 %v3279
        %v3824 = vunpack.c.l.b16 %v3280
        %v3825 = vunpack.c.h.b16 %v3280
        %v3826 = vunpack.c.l.b16 %v3281
        %v3827 = vunpack.c.h.b16 %v3281
        %v3828 = vunpack.c.l.b16 %v3282
        %v3829 = vunpack.c.h.b16 %v3282
        %v3830 = vunpack.c.l.b16 %v3283
        %v3831 = vunpack.c.h.b16 %v3283
        %v3832 = vunpack.c.l.b16 %v3284
        %v3833 = vunpack.c.h.b16 %v3284
        %v3834 = vunpack.c.l.b16 %v3285
        %v3835 = vunpack.c.h.b16 %v3285
        %v3836 = vunpack.c.l.b16 %v3286
        %v3837 = vunpack.c.h.b16 %v3286
        %v3838 = vunpack.c.l.b16 %v3287
        %v3839 = vunpack.c.h.b16 %v3287
        %v3840 = vunpack.c.l.b16 %v3288
        %v3841 = vunpack.c.h.b16 %v3288
        %v3842 = vunpack.c.l.b16 %v3289
        %v3843 = vunpack.c.h.b16 %v3289
        %v3844 = vunpack.c.l.b16 %v3290
        %v3845 = vunpack.c.h.b16 %v3290
        %v3846 = vunpack.c.l.b16 %v3291
        %v3847 = vunpack.c.h.b16 %v3291
        %v3848 = vunpack.c.l.b16 %v3292
        %v3849 = vunpack.c.h.b16 %v3292
        %v3850 = vunpack.c.l.b16 %v3293
        %v3851 = vunpack.c.h.b16 %v3293
        %v3852 = vunpack.c.l.b16 %v3294
        %v3853 = vunpack.c.h.b16 %v3294
        %v3854 = vunpack.c.l.b16 %v3295
        %v3855 = vunpack.c.h.b16 %v3295
        %v3856 = vunpack.c.l.b16 %v3296
        %v3857 = vunpack.c.h.b16 %v3296
        %v3858 = vunpack.c.l.b16 %v3297
        %v3859 = vunpack.c.h.b16 %v3297
        %v3860 = vunpack.c.l.b16 %v3298
        %v3861 = vunpack.c.h.b16 %v3298
        %v3862 = vunpack.c.l.b16 %v3299
        %v3863 = vunpack.c.h.b16 %v3299
        %v3864 = vunpack.c.l.b16 %v3300
        %v3865 = vunpack.c.h.b16 %v3300
        %v3866 = vunpack.c.l.b16 %v3301
        %v3867 = vunpack.c.h.b16 %v3301
        %v3868 = vunpack.c.l.b16 %v3302
        %v3869 = vunpack.c.h.b16 %v3302
        %v3870 = vunpack.c.l.b16 %v3303
        %v3871 = vunpack.c.h.b16 %v3303
        %v3872 = vunpack.c.l.b16 %v3304
        %v3873 = vunpack.c.h.b16 %v3304
        %v3874 = vunpack.c.l.b16 %v3305
        %v3875 = vunpack.c.h.b16 %v3305
        %v3876 = vunpack.c.l.b16 %v3306
        %v3877 = vunpack.c.h.b16 %v3306
        %v3878 = vunpack.c.l.b16 %v3307
        %v3879 = vunpack.c.h.b16 %v3307
        %v3880 = vunpack.c.l.b16 %v3308
        %v3881 = vunpack.c.h.b16 %v3308
        %v3882 = vunpack.c.l.b16 %v3309
        %v3883 = vunpack.c.h.b16 %v3309
        %v3884 = vunpack.c.l.b16 %v3310
        %v3885 = vunpack.c.h.b16 %v3310
        %v3886 = vunpack.c.l.b16 %v3311
        %v3887 = vunpack.c.h.b16 %v3311
        %v3888 = vunpack.c.l.b16 %v3312
        %v3889 = vunpack.c.h.b16 %v3312
        %v3890 = vunpack.c.l.b16 %v3313
        %v3891 = vunpack.c.h.b16 %v3313
        %v3892 = vunpack.c.l.b16 %v3314
        %v3893 = vunpack.c.h.b16 %v3314
        %v3894 = vunpack.c.l.b16 %v3315
        %v3895 = vunpack.c.h.b16 %v3315
        %v3896 = vunpack.c.l.b16 %v3316
        %v3897 = vunpack.c.h.b16 %v3316
        %v3898 = vunpack.c.l.b16 %v3317
        %v3899 = vunpack.c.h.b16 %v3317
        %v3900 = vunpack.c.l.b16 %v3318
        %v3901 = vunpack.c.h.b16 %v3318
        %v3902 = vunpack.c.l.b16 %v3319
        %v3903 = vunpack.c.h.b16 %v3319
        %v3904 = vunpack.c.l.b16 %v3320
        %v3905 = vunpack.c.h.b16 %v3320
        %v3906 = vunpack.c.l.b16 %v3321
        %v3907 = vunpack.c.h.b16 %v3321
        %v3908 = vunpack.c.l.b16 %v3322
        %v3909 = vunpack.c.h.b16 %v3322
        %v3910 = vunpack.c.l.b16 %v3323
        %v3911 = vunpack.c.h.b16 %v3323
        %v3912 = vunpack.c.l.b16 %v3324
        %v3913 = vunpack.c.h.b16 %v3324
        %v3914 = vunpack.c.l.b16 %v3325
        %v3915 = vunpack.c.h.b16 %v3325
        %v3916 = vunpack.c.l.b16 %v3326
        %v3917 = vunpack.c.h.b16 %v3326
        %v3918 = vunpack.c.l.b16 %v3327
        %v3919 = vunpack.c.h.b16 %v3327
        %v3920 = vunpack.c.l.b16 %v3328
        %v3921 = vunpack.c.h.b16 %v3328
        %v3922 = vunpack.c.l.b16 %v3329
        %v3923 = vunpack.c.h.b16 %v3329
        %v3924 = vunpack.c.l.b16 %v3330
        %v3925 = vunpack.c.h.b16 %v3330
        %v3926 = vunpack.c.l.b16 %v3331
        %v3927 = vunpack.c.h.b16 %v3331
        %v3928 = vunpack.c.l.b16 %v3332
        %v3929 = vunpack.c.h.b16 %v3332
        %v3930 = vunpack.c.l.b16 %v3333
        %v3931 = vunpack.c.h.b16 %v3333
        %v3932 = vunpack.c.l.b16 %v3334
        %v3933 = vunpack.c.h.b16 %v3334
        %v3934 = vunpack.c.l.b16 %v3335
        %v3935 = vunpack.c.h.b16 %v3335
        %v3936 = vunpack.c.l.b16 %v3336
        %v3937 = vunpack.c.h.b16 %v3336
        %v3938 = vunpack.c.l.b16 %v3337
        %v3939 = vunpack.c.h.b16 %v3337
        %v3940 = vunpack.c.l.b16 %v3338
        %v3941 = vunpack.c.h.b16 %v3338
        %v3942 = vunpack.c.l.b16 %v3339
        %v3943 = vunpack.c.h.b16 %v3339
        %v3944 = vunpack.c.l.b16 %v3340
        %v3945 = vunpack.c.h.b16 %v3340
        %v3946 = vunpack.c.l.b16 %v3341
        %v3947 = vunpack.c.h.b16 %v3341
        %v3948 = vunpack.c.l.b16 %v3342
        %v3949 = vunpack.c.h.b16 %v3342
        %v3950 = vunpack.c.l.b16 %v3343
        %v3951 = vunpack.c.h.b16 %v3343
        %v3952 = vunpack.c.l.b16 %v3344
        %v3953 = vunpack.c.h.b16 %v3344
        %v3954 = vunpack.c.l.b16 %v3345
        %v3955 = vunpack.c.h.b16 %v3345
        %v3956 = vunpack.c.l.b16 %v3346
        %v3957 = vunpack.c.h.b16 %v3346
        %v3958 = vunpack.c.l.b16 %v3347
        %v3959 = vunpack.c.h.b16 %v3347
        %v3960 = vunpack.c.l.b16 %v3348
        %v3961 = vunpack.c.h.b16 %v3348
        %v3962 = vunpack.c.l.b16 %v3349
        %v3963 = vunpack.c.h.b16 %v3349
        %v3964 = vunpack.c.l.b16 %v3350
        %v3965 = vunpack.c.h.b16 %v3350
        %v3966 = vunpack.c.l.b16 %v3351
        %v3967 = vunpack.c.h.b16 %v3351
        %v3968 = vunpack.c.l.b16 %v3352
        %v3969 = vunpack.c.h.b16 %v3352
        %v3970 = vunpack.c.l.b16 %v3353
        %v3971 = vunpack.c.h.b16 %v3353
        %v3972 = vunpack.c.l.b16 %v3354
        %v3973 = vunpack.c.h.b16 %v3354
        %v3974 = vunpack.c.l.b16 %v3355
        %v3975 = vunpack.c.h.b16 %v3355
        %v3976 = vunpack.c.l.b16 %v3356
        %v3977 = vunpack.c.h.b16 %v3356
        %v3978 = vunpack.c.l.b16 %v3357
        %v3979 = vunpack.c.h.b16 %v3357
        %v3980 = vunpack.c.l.b16 %v3358
        %v3981 = vunpack.c.h.b16 %v3358
        %v3982 = vunpack.c.l.b16 %v3359
        %v3983 = vunpack.c.h.b16 %v3359
        %v3984 = vunpack.c.l.b16 %v3360
        %v3985 = vunpack.c.h.b16 %v3360
        %v3986 = vunpack.c.l.b16 %v3361
        %v3987 = vunpack.c.h.b16 %v3361
        %v3988 = vunpack.c.l.b16 %v3362
        %v3989 = vunpack.c.h.b16 %v3362
        %v3990 = vunpack.c.l.b16 %v3363
        %v3991 = vunpack.c.h.b16 %v3363
        %v3992 = vunpack.c.l.b16 %v3364
        %v3993 = vunpack.c.h.b16 %v3364
        %v3994 = vunpack.c.l.b16 %v3365
        %v3995 = vunpack.c.h.b16 %v3365
        %v3996 = vunpack.c.l.b16 %v3366
        %v3997 = vunpack.c.h.b16 %v3366
        %v3998 = vunpack.c.l.b16 %v3367
        %v3999 = vunpack.c.h.b16 %v3367
        %v4000 = vunpack.c.l.b16 %v3368
        %v4001 = vunpack.c.h.b16 %v3368
        %v4002 = vunpack.c.l.b16 %v3369
        %v4003 = vunpack.c.h.b16 %v3369
        %v4004 = vunpack.c.l.b16 %v3370
        %v4005 = vunpack.c.h.b16 %v3370
        %v4006 = vunpack.c.l.b16 %v3371
        %v4007 = vunpack.c.h.b16 %v3371
        %v4008 = vunpack.c.l.b16 %v3372
        %v4009 = vunpack.c.h.b16 %v3372
        %v4010 = vunpack.c.l.b16 %v3373
        %v4011 = vunpack.c.h.b16 %v3373
        %v4012 = vunpack.c.l.b16 %v3374
        %v4013 = vunpack.c.h.b16 %v3374
        %v4014 = vunpack.c.l.b16 %v3375
        %v4015 = vunpack.c.h.b16 %v3375
        %v4016 = vunpack.c.l.b16 %v3376
        %v4017 = vunpack.c.h.b16 %v3376
        %v4018 = vunpack.c.l.b16 %v3377
        %v4019 = vunpack.c.h.b16 %v3377
        %v4020 = vunpack.c.l.b16 %v3378
        %v4021 = vunpack.c.h.b16 %v3378
        %v4022 = vunpack.c.l.b16 %v3379
        %v4023 = vunpack.c.h.b16 %v3379
        %v4024 = vunpack.c.l.b16 %v3380
        %v4025 = vunpack.c.h.b16 %v3380
        %v4026 = vunpack.c.l.b16 %v3381
        %v4027 = vunpack.c.h.b16 %v3381
        %v4028 = vunpack.c.l.b16 %v3382
        %v4029 = vunpack.c.h.b16 %v3382
        %v4030 = vunpack.c.l.b16 %v3383
        %v4031 = vunpack.c.h.b16 %v3383
        %v4032 = vunpack.c.l.b16 %v3384
        %v4033 = vunpack.c.h.b16 %v3384
        %v4034 = vunpack.c.l.b16 %v3385
        %v4035 = vunpack.c.h.b16 %v3385
        %v4036 = vunpack.c.l.b16 %v3386
        %v4037 = vunpack.c.h.b16 %v3386
        %v4038 = vunpack.c.l.b16 %v3387
        %v4039 = vunpack.c.h.b16 %v3387
        %v4040 = vunpack.c.l.b16 %v3388
        %v4041 = vunpack.c.h.b16 %v3388
        %v4042 = vunpack.c.l.b16 %v3389
        %v4043 = vunpack.c.h.b16 %v3389
        %v4044 = vunpack.c.l.b16 %v3390
        %v4045 = vunpack.c.h.b16 %v3390
        %v4046 = vunpack.c.l.b16 %v3391
        %v4047 = vunpack.c.h.b16 %v3391
        %v4048 = vunpack.c.l.b16 %v3392
        %v4049 = vunpack.c.h.b16 %v3392
        %v4050 = vunpack.c.l.b16 %v3393
        %v4051 = vunpack.c.h.b16 %v3393
        %v4052 = vunpack.c.l.b16 %v3394
        %v4053 = vunpack.c.h.b16 %v3394
        %v4054 = vunpack.c.l.b16 %v3395
        %v4055 = vunpack.c.h.b16 %v3395
        %v4056 = vunpack.c.l.b16 %v3396
        %v4057 = vunpack.c.h.b16 %v3396
        %v4058 = vunpack.c.l.b16 %v3397
        %v4059 = vunpack.c.h.b16 %v3397
        %v4060 = vunpack.c.l.b16 %v3398
        %v4061 = vunpack.c.h.b16 %v3398
        %v4062 = vunpack.c.l.b16 %v3399
        %v4063 = vunpack.c.h.b16 %v3399
        %v4064 = vunpack.c.l.b16 %v3400
        %v4065 = vunpack.c.h.b16 %v3400
        %v4066 = vunpack.c.l.b16 %v3401
        %v4067 = vunpack.c.h.b16 %v3401
        %v4068 = vunpack.c.l.b16 %v3402
        %v4069 = vunpack.c.h.b16 %v3402
        %v4070 = vunpack.c.l.b16 %v3403
        %v4071 = vunpack.c.h.b16 %v3403
        %v4072 = vunpack.c.l.b16 %v3404
        %v4073 = vunpack.c.h.b16 %v3404
        %v4074 = vunpack.c.l.b16 %v3405
        %v4075 = vunpack.c.h.b16 %v3405
        %v4076 = vunpack.c.l.b16 %v3406
        %v4077 = vunpack.c.h.b16 %v3406
        %v4078 = vunpack.c.l.b16 %v3407
        %v4079 = vunpack.c.h.b16 %v3407
        %v4080 = vunpack.c.l.b16 %v3408
        %v4081 = vunpack.c.h.b16 %v3408
        %v4082 = vunpack.c.l.b16 %v3409
        %v4083 = vunpack.c.h.b16 %v3409
        %v4084 = vunpack.c.l.b16 %v3410
        %v4085 = vunpack.c.h.b16 %v3410
        %v4086 = vunpack.c.l.b16 %v3411
        %v4087 = vunpack.c.h.b16 %v3411
        %v4088 = vunpack.c.l.b16 %v3412
        %v4089 = vunpack.c.h.b16 %v3412
        %v4090 = vunpack.c.l.b16 %v3413
        %v4091 = vunpack.c.h.b16 %v3413
        %v4092 = vunpack.c.l.b16 %v3414
        %v4093 = vunpack.c.h.b16 %v3414
        %v4094 = vunpack.c.l.b16 %v3415
        %v4095 = vunpack.c.h.b16 %v3415
        %v4096 = vunpack.c.l.b16 %v3416
        %v4097 = vunpack.c.h.b16 %v3416
        %v4098 = vunpack.c.l.b16 %v3417
        %v4099 = vunpack.c.h.b16 %v3417
        %v4100 = vunpack.c.l.b16 %v3418
        %v4101 = vunpack.c.h.b16 %v3418
        %v4102 = vunpack.c.l.b16 %v3419
        %v4103 = vunpack.c.h.b16 %v3419
        %v4104 = vunpack.c.l.b16 %v3420
        %v4105 = vunpack.c.h.b16 %v3420
        %v4106 = vunpack.c.l.b16 %v3421
        %v4107 = vunpack.c.h.b16 %v3421
        %v4108 = vunpack.c.l.b16 %v3422
        %v4109 = vunpack.c.h.b16 %v3422
        %v4110 = vunpack.c.l.b16 %v3423
        %v4111 = vunpack.c.h.b16 %v3423
        %v4112 = vunpack.c.l.b16 %v3424
        %v4113 = vunpack.c.h.b16 %v3424
        %v4114 = vunpack.c.l.b16 %v3425
        %v4115 = vunpack.c.h.b16 %v3425
        %v4116 = vunpack.c.l.b16 %v3426
        %v4117 = vunpack.c.h.b16 %v3426
        %v4118 = vunpack.c.l.b16 %v3427
        %v4119 = vunpack.c.h.b16 %v3427
        %v4120 = vunpack.c.l.b16 %v3428
        %v4121 = vunpack.c.h.b16 %v3428
        %v4122 = vunpack.c.l.b16 %v3429
        %v4123 = vunpack.c.h.b16 %v3429
        %v4124 = vunpack.c.l.b16 %v3430
        %v4125 = vunpack.c.h.b16 %v3430
        %v4126 = vunpack.c.l.b16 %v3431
        %v4127 = vunpack.c.h.b16 %v3431
        %v4128 = vunpack.c.l.b16 %v3432
        %v4129 = vunpack.c.h.b16 %v3432
        %v4130 = vunpack.c.l.b16 %v3433
        %v4131 = vunpack.c.h.b16 %v3433
        %v4132 = vunpack.c.l.b16 %v3434
        %v4133 = vunpack.c.h.b16 %v3434
        %v4134 = vunpack.c.l.b16 %v3435
        %v4135 = vunpack.c.h.b16 %v3435
        %v4136 = vunpack.c.l.b16 %v3436
        %v4137 = vunpack.c.h.b16 %v3436
        %v4138 = vunpack.c.l.b16 %v3437
        %v4139 = vunpack.c.h.b16 %v3437
        %v4140 = vunpack.c.l.b16 %v3438
        %v4141 = vunpack.c.h.b16 %v3438
        %v4142 = vunpack.c.l.b16 %v3439
        %v4143 = vunpack.c.h.b16 %v3439
        %v4144 = vunpack.c.l.b16 %v3440
        %v4145 = vunpack.c.h.b16 %v3440
        %v4146 = vunpack.c.l.b16 %v3441
        %v4147 = vunpack.c.h.b16 %v3441
        %v4148 = vunpack.c.l.b16 %v3442
        %v4149 = vunpack.c.h.b16 %v3442
        %v4150 = vunpack.c.l.b16 %v3443
        %v4151 = vunpack.c.h.b16 %v3443
        %v4152 = vunpack.c.l.b16 %v3444
        %v4153 = vunpack.c.h.b16 %v3444
        %v4154 = vunpack.c.l.b16 %v3445
        %v4155 = vunpack.c.h.b16 %v3445
        %v4156 = vunpack.c.l.b16 %v3446
        %v4157 = vunpack.c.h.b16 %v3446
        %v4158 = vunpack.c.l.b16 %v3447
        %v4159 = vunpack.c.h.b16 %v3447
        %v4160 = vunpack.c.l.b16 %v3448
        %v4161 = vunpack.c.h.b16 %v3448
        %v4162 = vunpack.c.l.b16 %v3449
        %v4163 = vunpack.c.h.b16 %v3449
        %v4164 = vunpack.c.l.b16 %v3450
        %v4165 = vunpack.c.h.b16 %v3450
        %v4166 = vunpack.c.l.b16 %v3451
        %v4167 = vunpack.c.h.b16 %v3451
        %v4168 = vunpack.c.l.b16 %v3452
        %v4169 = vunpack.c.h.b16 %v3452
        %v4170 = vunpack.c.l.b16 %v3453
        %v4171 = vunpack.c.h.b16 %v3453
        %v4172 = vunpack.c.l.b16 %v3454
        %v4173 = vunpack.c.h.b16 %v3454
        %v4174 = vunpack.c.l.b16 %v3455
        %v4175 = vunpack.c.h.b16 %v3455
        %v4176 = vunpack.c.l.b16 %v3456
        %v4177 = vunpack.c.h.b16 %v3456
        %v4178 = vunpack.c.l.b16 %v3457
        %v4179 = vunpack.c.h.b16 %v3457
        %v4180 = vunpack.c.l.b16 %v3458
        %v4181 = vunpack.c.h.b16 %v3458
        %v4182 = vunpack.c.l.b16 %v3459
        %v4183 = vunpack.c.h.b16 %v3459
        %v4184 = vunpack.c.l.b16 %v3460
        %v4185 = vunpack.c.h.b16 %v3460
        %v4186 = vunpack.c.l.b16 %v3461
        %v4187 = vunpack.c.h.b16 %v3461
        %v4188 = vunpack.c.l.b16 %v3462
        %v4189 = vunpack.c.h.b16 %v3462
        %v4190 = vunpack.c.l.b16 %v3463
        %v4191 = vunpack.c.h.b16 %v3463
        %v4192 = vunpack.c.l.b16 %v3464
        %v4193 = vunpack.c.h.b16 %v3464
        %v4194 = vunpack.c.l.b16 %v3465
        %v4195 = vunpack.c.h.b16 %v3465
        %v4196 = vunpack.c.l.b16 %v3466
        %v4197 = vunpack.c.h.b16 %v3466
        %v4198 = vunpack.c.l.b16 %v3467
        %v4199 = vunpack.c.h.b16 %v3467
        %v4200 = vunpack.c.l.b16 %v3468
        %v4201 = vunpack.c.h.b16 %v3468
        %v4202 = vunpack.c.l.b16 %v3469
        %v4203 = vunpack.c.h.b16 %v3469
        %v4204 = vunpack.c.l.b16 %v3470
        %v4205 = vunpack.c.h.b16 %v3470
        %v4206 = vunpack.c.l.b16 %v3471
        %v4207 = vunpack.c.h.b16 %v3471
        %v4208 = vunpack.c.l.b16 %v3472
        %v4209 = vunpack.c.h.b16 %v3472
        %v4210 = vunpack.c.l.b16 %v3473
        %v4211 = vunpack.c.h.b16 %v3473
        %v4212 = vunpack.c.l.b16 %v3474
        %v4213 = vunpack.c.h.b16 %v3474
        %v4214 = vunpack.c.l.b16 %v3475
        %v4215 = vunpack.c.h.b16 %v3475
        %v4216 = vunpack.c.l.b16 %v3476
        %v4217 = vunpack.c.h.b16 %v3476
        %v4218 = vunpack.c.l.b16 %v3477
        %v4219 = vunpack.c.h.b16 %v3477
        %v4220 = vunpack.c.l.b16 %v3478
        %v4221 = vunpack.c.h.b16 %v3478
        %v4222 = vunpack.c.l.b16 %v3479
        %v4223 = vunpack.c.h.b16 %v3479
        %v4224 = vunpack.c.l.b16 %v3480
        %v4225 = vunpack.c.h.b16 %v3480
        %v4226 = vunpack.c.l.b16 %v3481
        %v4227 = vunpack.c.h.b16 %v3481
        %v4228 = vunpack.c.l.b16 %v3482
        %v4229 = vunpack.c.h.b16 %v3482
        %v4230 = vunpack.c.l.b16 %v3483
        %v4231 = vunpack.c.h.b16 %v3483
        %v4232 = vunpack.c.l.b16 %v3484
        %v4233 = vunpack.c.h.b16 %v3484
        %v4234 = vunpack.c.l.b16 %v3485
        %v4235 = vunpack.c.h.b16 %v3485
        %v4236 = vunpack.c.l.b16 %v3486
        %v4237 = vunpack.c.h.b16 %v3486
        %v4238 = vunpack.c.l.b16 %v3487
        %v4239 = vunpack.c.h.b16 %v3487
        %v4240 = vunpack.c.l.b16 %v3488
        %v4241 = vunpack.c.h.b16 %v3488
        %v4242 = vunpack.c.l.b16 %v3489
        %v4243 = vunpack.c.h.b16 %v3489
        %v4244 = vunpack.c.l.b16 %v3490
        %v4245 = vunpack.c.h.b16 %v3490
        %v4246 = vunpack.c.l.b16 %v3491
        %v4247 = vunpack.c.h.b16 %v3491
        %v4248 = vunpack.c.l.b16 %v3492
        %v4249 = vunpack.c.h.b16 %v3492
        %v4250 = vunpack.c.l.b16 %v3493
        %v4251 = vunpack.c.h.b16 %v3493
        %v4252 = vunpack.c.l.b16 %v3494
        %v4253 = vunpack.c.h.b16 %v3494
        %v4254 = vunpack.c.l.b16 %v3495
        %v4255 = vunpack.c.h.b16 %v3495
        %v4256 = vunpack.c.l.b16 %v3496
        %v4257 = vunpack.c.h.b16 %v3496
        %v4258 = vunpack.c.l.b16 %v3497
        %v4259 = vunpack.c.h.b16 %v3497
        %v4260 = vunpack.c.l.b16 %v3498
        %v4261 = vunpack.c.h.b16 %v3498
        %v4262 = vunpack.c.l.b16 %v3499
        %v4263 = vunpack.c.h.b16 %v3499
        %v4264 = vunpack.c.l.b16 %v3500
        %v4265 = vunpack.c.h.b16 %v3500
        %v4266 = vunpack.c.l.b16 %v3501
        %v4267 = vunpack.c.h.b16 %v3501
        %v4268 = vunpack.c.l.b16 %v3502
        %v4269 = vunpack.c.h.b16 %v3502
        %v4270 = vunpack.c.l.b16 %v3503
        %v4271 = vunpack.c.h.b16 %v3503
        %v4272 = vunpack.c.l.b16 %v3504
        %v4273 = vunpack.c.h.b16 %v3504
        %v4274 = vunpack.c.l.b16 %v3505
        %v4275 = vunpack.c.h.b16 %v3505
        %v4276 = vunpack.c.l.b16 %v3506
        %v4277 = vunpack.c.h.b16 %v3506
        %v4278 = vunpack.c.l.b16 %v3507
        %v4279 = vunpack.c.h.b16 %v3507
        %v4280 = vunpack.c.l.b16 %v3508
        %v4281 = vunpack.c.h.b16 %v3508
        %v4282 = vunpack.c.l.b16 %v3509
        %v4283 = vunpack.c.h.b16 %v3509
        %v4284 = vunpack.c.l.b16 %v3510
        %v4285 = vunpack.c.h.b16 %v3510
        %v4286 = vunpack.c.l.b16 %v3511
        %v4287 = vunpack.c.h.b16 %v3511
        %v4288 = vunpack.c.l.b16 %v3512
        %v4289 = vunpack.c.h.b16 %v3512
        %v4290 = vunpack.c.l.b16 %v3513
        %v4291 = vunpack.c.h.b16 %v3513
        %v4292 = vpack.c.b16 %v3784, %v3780
        %v4293 = vpack.c.b16 %v3785, %v3781
        %v4294 = vpack.c.b16 %v3786, %v3782
        %v4295 = vpack.c.b16 %v3787, %v3783
        %v4296 = vpack.c.b16 %v3792, %v3788
        %v4297 = vpack.c.b16 %v3793, %v3789
        %v4298 = vpack.c.b16 %v3794, %v3790
        %v4299 = vpack.c.b16 %v3795, %v3791
        %v4300 = vpack.c.b16 %v3800, %v3796
        %v4301 = vpack.c.b16 %v3801, %v3797
        %v4302 = vpack.c.b16 %v3802, %v3798
        %v4303 = vpack.c.b16 %v3803, %v3799
        %v4304 = vpack.c.b16 %v3808, %v3804
        %v4305 = vpack.c.b16 %v3809, %v3805
        %v4306 = vpack.c.b16 %v3810, %v3806
        %v4307 = vpack.c.b16 %v3811, %v3807
        %v4308 = vpack.c.b16 %v3816, %v3812
        %v4309 = vpack.c.b16 %v3817, %v3813
        %v4310 = vpack.c.b16 %v3818, %v3814
        %v4311 = vpack.c.b16 %v3819, %v3815
        %v4312 = vpack.c.b16 %v3824, %v3820
        %v4313 = vpack.c.b16 %v3825, %v3821
        %v4314 = vpack.c.b16 %v3826, %v3822
        %v4315 = vpack.c.b16 %v3827, %v3823
        %v4316 = vpack.c.b16 %v3832, %v3828
        %v4317 = vpack.c.b16 %v3833, %v3829
        %v4318 = vpack.c.b16 %v3834, %v3830
        %v4319 = vpack.c.b16 %v3835, %v3831
        %v4320 = vpack.c.b16 %v3840, %v3836
        %v4321 = vpack.c.b16 %v3841, %v3837
        %v4322 = vpack.c.b16 %v3842, %v3838
        %v4323 = vpack.c.b16 %v3843, %v3839
        %v4324 = vpack.c.b16 %v3848, %v3844
        %v4325 = vpack.c.b16 %v3849, %v3845
        %v4326 = vpack.c.b16 %v3850, %v3846
        %v4327 = vpack.c.b16 %v3851, %v3847
        %v4328 = vpack.c.b16 %v3856, %v3852
        %v4329 = vpack.c.b16 %v3857, %v3853
        %v4330 = vpack.c.b16 %v3858, %v3854
        %v4331 = vpack.c.b16 %v3859, %v3855
        %v4332 = vpack.c.b16 %v3864, %v3860
        %v4333 = vpack.c.b16 %v3865, %v3861
        %v4334 = vpack.c.b16 %v3866, %v3862
        %v4335 = vpack.c.b16 %v3867, %v3863
        %v4336 = vpack.c.b16 %v3872, %v3868
        %v4337 = vpack.c.b16 %v3873, %v3869
        %v4338 = vpack.c.b16 %v3874, %v3870
        %v4339 = vpack.c.b16 %v3875, %v3871
        %v4340 = vpack.c.b16 %v3880, %v3876
        %v4341 = vpack.c.b16 %v3881, %v3877
        %v4342 = vpack.c.b16 %v3882, %v3878
        %v4343 = vpack.c.b16 %v3883, %v3879
        %v4344 = vpack.c.b16 %v3888, %v3884
        %v4345 = vpack.c.b16 %v3889, %v3885
        %v4346 = vpack.c.b16 %v3890, %v3886
        %v4347 = vpack.c.b16 %v3891, %v3887
        %v4348 = vpack.c.b16 %v3896, %v3892
        %v4349 = vpack.c.b16 %v3897, %v3893
        %v4350 = vpack.c.b16 %v3898, %v3894
        %v4351 = vpack.c.b16 %v3899, %v3895
        %v4352 = vpack.c.b16 %v3904, %v3900
        %v4353 = vpack.c.b16 %v3905, %v3901
        %v4354 = vpack.c.b16 %v3906, %v3902
        %v4355 = vpack.c.b16 %v3907, %v3903
        %v4356 = vpack.c.b16 %v3912, %v3908
        %v4357 = vpack.c.b16 %v3913, %v3909
        %v4358 = vpack.c.b16 %v3914, %v3910
        %v4359 = vpack.c.b16 %v3915, %v3911
        %v4360 = vpack.c.b16 %v3920, %v3916
        %v4361 = vpack.c.b16 %v3921, %v3917
        %v4362 = vpack.c.b16 %v3922, %v3918
        %v4363 = vpack.c.b16 %v3923, %v3919
        %v4364 = vpack.c.b16 %v3928, %v3924
        %v4365 = vpack.c.b16 %v3929, %v3925
        %v4366 = vpack.c.b16 %v3930, %v3926
        %v4367 = vpack.c.b16 %v3931, %v3927
        %v4368 = vpack.c.b16 %v3936, %v3932
        %v4369 = vpack.c.b16 %v3937, %v3933
        %v4370 = vpack.c.b16 %v3938, %v3934
        %v4371 = vpack.c.b16 %v3939, %v3935
        %v4372 = vpack.c.b16 %v3944, %v3940
        %v4373 = vpack.c.b16 %v3945, %v3941
        %v4374 = vpack.c.b16 %v3946, %v3942
        %v4375 = vpack.c.b16 %v3947, %v3943
        %v4376 = vpack.c.b16 %v3952, %v3948
        %v4377 = vpack.c.b16 %v3953, %v3949
        %v4378 = vpack.c.b16 %v3954, %v3950
        %v4379 = vpack.c.b16 %v3955, %v3951
        %v4380 = vpack.c.b16 %v3960, %v3956
        %v4381 = vpack.c.b16 %v3961, %v3957
        %v4382 = vpack.c.b16 %v3962, %v3958
        %v4383 = vpack.c.b16 %v3963, %v3959
        %v4384 = vpack.c.b16 %v3968, %v3964
        %v4385 = vpack.c.b16 %v3969, %v3965
        %v4386 = vpack.c.b16 %v3970, %v3966
        %v4387 = vpack.c.b16 %v3971, %v3967
        %v4388 = vpack.c.b16 %v3976, %v3972
        %v4389 = vpack.c.b16 %v3977, %v3973
        %v4390 = vpack.c.b16 %v3978, %v3974
        %v4391 = vpack.c.b16 %v3979, %v3975
        %v4392 = vpack.c.b16 %v3984, %v3980
        %v4393 = vpack.c.b16 %v3985, %v3981
        %v4394 = vpack.c.b16 %v3986, %v3982
        %v4395 = vpack.c.b16 %v3987, %v3983
        %v4396 = vpack.c.b16 %v3992, %v3988
        %v4397 = vpack.c.b16 %v3993, %v3989
        %v4398 = vpack.c.b16 %v3994, %v3990
        %v4399 = vpack.c.b16 %v3995, %v3991
        %v4400 = vpack.c.b16 %v4000, %v3996
        %v4401 = vpack.c.b16 %v4001, %v3997
        %v4402 = vpack.c.b16 %v4002, %v3998
        %v4403 = vpack.c.b16 %v4003, %v3999
        %v4404 = vpack.c.b16 %v4008, %v4004
        %v4405 = vpack.c.b16 %v4009, %v4005
        %v4406 = vpack.c.b16 %v4010, %v4006
        %v4407 = vpack.c.b16 %v4011, %v4007
        %v4408 = vpack.c.b16 %v4016, %v4012
        %v4409 = vpack.c.b16 %v4017, %v4013
        %v4410 = vpack.c.b16 %v4018, %v4014
        %v4411 = vpack.c.b16 %v4019, %v4015
        %v4412 = vpack.c.b16 %v4024, %v4020
        %v4413 = vpack.c.b16 %v4025, %v4021
        %v4414 = vpack.c.b16 %v4026, %v4022
        %v4415 = vpack.c.b16 %v4027, %v4023
        %v4416 = vpack.c.b16 %v4032, %v4028
        %v4417 = vpack.c.b16 %v4033, %v4029
        %v4418 = vpack.c.b16 %v4034, %v4030
        %v4419 = vpack.c.b16 %v4035, %v4031
        %v4420 = vpack.c.b16 %v4040, %v4036
        %v4421 = vpack.c.b16 %v4041, %v4037
        %v4422 = vpack.c.b16 %v4042, %v4038
        %v4423 = vpack.c.b16 %v4043, %v4039
        %v4424 = vpack.c.b16 %v4048, %v4044
        %v4425 = vpack.c.b16 %v4049, %v4045
        %v4426 = vpack.c.b16 %v4050, %v4046
        %v4427 = vpack.c.b16 %v4051, %v4047
        %v4428 = vpack.c.b16 %v4056, %v4052
        %v4429 = vpack.c.b16 %v4057, %v4053
        %v4430 = vpack.c.b16 %v4058, %v4054
        %v4431 = vpack.c.b16 %v4059, %v4055
        %v4432 = vpack.c.b16 %v4064, %v4060
        %v4433 = vpack.c.b16 %v4065, %v4061
        %v4434 = vpack.c.b16 %v4066, %v4062
        %v4435 = vpack.c.b16 %v4067, %v4063
        %v4436 = vpack.c.b16 %v4072, %v4068
        %v4437 = vpack.c.b16 %v4073, %v4069
        %v4438 = vpack.c.b16 %v4074, %v4070
        %v4439 = vpack.c.b16 %v4075, %v4071
        %v4440 = vpack.c.b16 %v4080, %v4076
        %v4441 = vpack.c.b16 %v4081, %v4077
        %v4442 = vpack.c.b16 %v4082, %v4078
        %v4443 = vpack.c.b16 %v4083, %v4079
        %v4444 = vpack.c.b16 %v4088, %v4084
        %v4445 = vpack.c.b16 %v4089, %v4085
        %v4446 = vpack.c.b16 %v4090, %v4086
        %v4447 = vpack.c.b16 %v4091, %v4087
        %v4448 = vpack.c.b16 %v4096, %v4092
        %v4449 = vpack.c.b16 %v4097, %v4093
        %v4450 = vpack.c.b16 %v4098, %v4094
        %v4451 = vpack.c.b16 %v4099, %v4095
        %v4452 = vpack.c.b16 %v4104, %v4100
        %v4453 = vpack.c.b16 %v4105, %v4101
        %v4454 = vpack.c.b16 %v4106, %v4102
        %v4455 = vpack.c.b16 %v4107, %v4103
        %v4456 = vpack.c.b16 %v4112, %v4108
        %v4457 = vpack.c.b16 %v4113, %v4109
        %v4458 = vpack.c.b16 %v4114, %v4110
        %v4459 = vpack.c.b16 %v4115, %v4111
        %v4460 = vpack.c.b16 %v4120, %v4116
        %v4461 = vpack.c.b16 %v4121, %v4117
        %v4462 = vpack.c.b16 %v4122, %v4118
        %v4463 = vpack.c.b16 %v4123, %v4119
        %v4464 = vpack.c.b16 %v4128, %v4124
        %v4465 = vpack.c.b16 %v4129, %v4125
        %v4466 = vpack.c.b16 %v4130, %v4126
        %v4467 = vpack.c.b16 %v4131, %v4127
        %v4468 = vpack.c.b16 %v4136, %v4132
        %v4469 = vpack.c.b16 %v4137, %v4133
        %v4470 = vpack.c.b16 %v4138, %v4134
        %v4471 = vpack.c.b16 %v4139, %v4135
        %v4472 = vpack.c.b16 %v4144, %v4140
        %v4473 = vpack.c.b16 %v4145, %v4141
        %v4474 = vpack.c.b16 %v4146, %v4142
        %v4475 = vpack.c.b16 %v4147, %v4143
        %v4476 = vpack.c.b16 %v4152, %v4148
        %v4477 = vpack.c.b16 %v4153, %v4149
        %v4478 = vpack.c.b16 %v4154, %v4150
        %v4479 = vpack.c.b16 %v4155, %v4151
        %v4480 = vpack.c.b16 %v4160, %v4156
        %v4481 = vpack.c.b16 %v4161, %v4157
        %v4482 = vpack.c.b16 %v4162, %v4158
        %v4483 = vpack.c.b16 %v4163, %v4159
        %v4484 = vpack.c.b16 %v4168, %v4164
        %v4485 = vpack.c.b16 %v4169, %v4165
        %v4486 = vpack.c.b16 %v4170, %v4166
        %v4487 = vpack.c.b16 %v4171, %v4167
        %v4488 = vpack.c.b16 %v4176, %v4172
        %v4489 = vpack.c.b16 %v4177, %v4173
        %v4490 = vpack.c.b16 %v4178, %v4174
        %v4491 = vpack.c.b16 %v4179, %v4175
        %v4492 = vpack.c.b16 %v4184, %v4180
        %v4493 = vpack.c.b16 %v4185, %v4181
        %v4494 = vpack.c.b16 %v4186, %v4182
        %v4495 = vpack.c.b16 %v4187, %v4183
        %v4496 = vpack.c.b16 %v4192, %v4188
        %v4497 = vpack.c.b16 %v4193, %v4189
        %v4498 = vpack.c.b16 %v4194, %v4190
        %v4499 = vpack.c.b16 %v4195, %v4191
        %v4500 = vpack.c.b16 %v4200, %v4196
        %v4501 = vpack.c.b16 %v4201, %v4197
        %v4502 = vpack.c.b16 %v4202, %v4198
        %v4503 = vpack.c.b16 %v4203, %v4199
        %v4504 = vpack.c.b16 %v4208, %v4204
        %v4505 = vpack.c.b16 %v4209, %v4205
        %v4506 = vpack.c.b16 %v4210, %v4206
        %v4507 = vpack.c.b16 %v4211, %v4207
        %v4508 = vpack.c.b16 %v4216, %v4212
        %v4509 = vpack.c.b16 %v4217, %v4213
        %v4510 = vpack.c.b16 %v4218, %v4214
        %v4511 = vpack.c.b16 %v4219, %v4215
        %v4512 = vpack.c.b16 %v4224, %v4220
        %v4513 = vpack.c.b16 %v4225, %v4221
        %v4514 = vpack.c.b16 %v4226, %v4222
        %v4515 = vpack.c.b16 %v4227, %v4223
        %v4516 = vpack.c.b16 %v4232, %v4228
        %v4517 = vpack.c.b16 %v4233, %v4229
        %v4518 = vpack.c.b16 %v4234, %v4230
        %v4519 = vpack.c.b16 %v4235, %v4231
        %v4520 = vpack.c.b16 %v4240, %v4236
        %v4521 = vpack.c.b16 %v4241, %v4237
        %v4522 = vpack.c.b16 %v4242, %v4238
        %v4523 = vpack.c.b16 %v4243, %v4239
        %v4524 = vpack.c.b16 %v4248, %v4244
        %v4525 = vpack.c.b16 %v4249, %v4245
        %v4526 = vpack.c.b16 %v4250, %v4246
        %v4527 = vpack.c.b16 %v4251, %v4247
        %v4528 = vpack.c.b16 %v4256, %v4252
        %v4529 = vpack.c.b16 %v4257, %v4253
        %v4530 = vpack.c.b16 %v4258, %v4254
        %v4531 = vpack.c.b16 %v4259, %v4255
        %v4532 = vpack.c.b16 %v4264, %v4260
        %v4533 = vpack.c.b16 %v4265, %v4261
        %v4534 = vpack.c.b16 %v4266, %v4262
        %v4535 = vpack.c.b16 %v4267, %v4263
        %v4536 = vpack.c.b16 %v4272, %v4268
        %v4537 = vpack.c.b16 %v4273, %v4269
        %v4538 = vpack.c.b16 %v4274, %v4270
        %v4539 = vpack.c.b16 %v4275, %v4271
        %v4540 = vpack.c.b16 %v4280, %v4276
        %v4541 = vpack.c.b16 %v4281, %v4277
        %v4542 = vpack.c.b16 %v4282, %v4278
        %v4543 = vpack.c.b16 %v4283, %v4279
        %v4544 = vpack.c.b16 %v4288, %v4284
        %v4545 = vpack.c.b16 %v4289, %v4285
        %v4546 = vpack.c.b16 %v4290, %v4286
        %v4547 = vpack.c.b16 %v4291, %v4287
        %4804 = vmatpush.bf16.msra.mxu0 %v4320
        %4805 = vmatpush.bf16.msra.mxu0 %v4316
        %4806 = vmatpush.bf16.msra.mxu0 %v4312
        %4807 = vmatpush.bf16.msra.mxu0 %v4308
        %4808 = vmatpush.bf16.msra.mxu0 %v4304
        %4809 = vmatpush.bf16.msra.mxu0 %v4300
        %4810 = vmatpush.bf16.msra.mxu0 %v4296
        %4811 = vmatpush.bf16.msra.mxu0 %v4292
        %4812 = vmatmul.bf16.gmra.mxu0 %v3242
        %v4813 = vpop.f32.mrf.mxu0
        %v4814 = vadd.f32 %v3516, %v4813
        %v4815 = vpop.f32.mrf.mxu0
        %v4816 = vadd.f32 %v3516, %v4815
        %4817 = vmatmul.bf16.gmra.mxu0 %v3250
        %v4818 = vpop.f32.mrf.mxu0
        %v4819 = vadd.f32 %v3516, %v4818
        %v4820 = vpop.f32.mrf.mxu0
        %v4821 = vadd.f32 %v3516, %v4820
        %4822 = vdwg.mxu0
        %4823 = vmatpush.bf16.msra.mxu0 %v4352
        %4824 = vmatpush.bf16.msra.mxu0 %v4348
        %4825 = vmatpush.bf16.msra.mxu0 %v4344
        %4826 = vmatpush.bf16.msra.mxu0 %v4340
        %4827 = vmatpush.bf16.msra.mxu0 %v4336
        %4828 = vmatpush.bf16.msra.mxu0 %v4332
        %4829 = vmatpush.bf16.msra.mxu0 %v4328
        %4830 = vmatpush.bf16.msra.mxu0 %v4324
        %4831 = vmatmul.bf16.gmra.mxu0 %v3243
        %v4832 = vpop.f32.mrf.mxu0
        %v4833 = vadd.f32 %v4814, %v4832
        %v4834 = vpop.f32.mrf.mxu0
        %v4835 = vadd.f32 %v4816, %v4834
        %4836 = vmatmul.bf16.gmra.mxu0 %v3251
        %v4837 = vpop.f32.mrf.mxu0
        %v4838 = vadd.f32 %v4819, %v4837
        %v4839 = vpop.f32.mrf.mxu0
        %v4840 = vadd.f32 %v4821, %v4839
        %4841 = vdwg.mxu0
        %4842 = vmatpush.bf16.msra.mxu0 %v4384
        %4843 = vmatpush.bf16.msra.mxu0 %v4380
        %4844 = vmatpush.bf16.msra.mxu0 %v4376
        %4845 = vmatpush.bf16.msra.mxu0 %v4372
        %4846 = vmatpush.bf16.msra.mxu0 %v4368
        %4847 = vmatpush.bf16.msra.mxu0 %v4364
        %4848 = vmatpush.bf16.msra.mxu0 %v4360
        %4849 = vmatpush.bf16.msra.mxu0 %v4356
        %4850 = vmatmul.bf16.gmra.mxu0 %v3244
        %v4851 = vpop.f32.mrf.mxu0
        %v4852 = vadd.f32 %v4833, %v4851
        %v4853 = vpop.f32.mrf.mxu0
        %v4854 = vadd.f32 %v4835, %v4853
        %4855 = vmatmul.bf16.gmra.mxu0 %v3252
        %v4856 = vpop.f32.mrf.mxu0
        %v4857 = vadd.f32 %v4838, %v4856
        %v4858 = vpop.f32.mrf.mxu0
        %v4859 = vadd.f32 %v4840, %v4858
        %4860 = vdwg.mxu0
        %4861 = vmatpush.bf16.msra.mxu0 %v4416
        %4862 = vmatpush.bf16.msra.mxu0 %v4412
        %4863 = vmatpush.bf16.msra.mxu0 %v4408
        %4864 = vmatpush.bf16.msra.mxu0 %v4404
        %4865 = vmatpush.bf16.msra.mxu0 %v4400
        %4866 = vmatpush.bf16.msra.mxu0 %v4396
        %4867 = vmatpush.bf16.msra.mxu0 %v4392
        %4868 = vmatpush.bf16.msra.mxu0 %v4388
        %4869 = vmatmul.bf16.gmra.mxu0 %v3245
        %v4870 = vpop.f32.mrf.mxu0
        %v4871 = vadd.f32 %v4852, %v4870
        %v4872 = vpop.f32.mrf.mxu0
        %v4873 = vadd.f32 %v4854, %v4872
        %4874 = vmatmul.bf16.gmra.mxu0 %v3253
        %v4875 = vpop.f32.mrf.mxu0
        %v4876 = vadd.f32 %v4857, %v4875
        %v4877 = vpop.f32.mrf.mxu0
        %v4878 = vadd.f32 %v4859, %v4877
        %4879 = vdwg.mxu0
        %4880 = vmatpush.bf16.msra.mxu0 %v4448
        %4881 = vmatpush.bf16.msra.mxu0 %v4444
        %4882 = vmatpush.bf16.msra.mxu0 %v4440
        %4883 = vmatpush.bf16.msra.mxu0 %v4436
        %4884 = vmatpush.bf16.msra.mxu0 %v4432
        %4885 = vmatpush.bf16.msra.mxu0 %v4428
        %4886 = vmatpush.bf16.msra.mxu0 %v4424
        %4887 = vmatpush.bf16.msra.mxu0 %v4420
        %4888 = vmatmul.bf16.gmra.mxu0 %v3246
        %v4889 = vpop.f32.mrf.mxu0
        %v4890 = vadd.f32 %v4871, %v4889
        %v4891 = vpop.f32.mrf.mxu0
        %v4892 = vadd.f32 %v4873, %v4891
        %4893 = vmatmul.bf16.gmra.mxu0 %v3254
        %v4894 = vpop.f32.mrf.mxu0
        %v4895 = vadd.f32 %v4876, %v4894
        %v4896 = vpop.f32.mrf.mxu0
        %v4897 = vadd.f32 %v4878, %v4896
        %4898 = vdwg.mxu0
        %4899 = vmatpush.bf16.msra.mxu0 %v4480
        %4900 = vmatpush.bf16.msra.mxu0 %v4476
        %4901 = vmatpush.bf16.msra.mxu0 %v4472
        %4902 = vmatpush.bf16.msra.mxu0 %v4468
        %4903 = vmatpush.bf16.msra.mxu0 %v4464
        %4904 = vmatpush.bf16.msra.mxu0 %v4460
        %4905 = vmatpush.bf16.msra.mxu0 %v4456
        %4906 = vmatpush.bf16.msra.mxu0 %v4452
        %4907 = vmatmul.bf16.gmra.mxu0 %v3247
        %v4908 = vpop.f32.mrf.mxu0
        %v4909 = vadd.f32 %v4890, %v4908
        %v4910 = vpop.f32.mrf.mxu0
        %v4911 = vadd.f32 %v4892, %v4910
        %4912 = vmatmul.bf16.gmra.mxu0 %v3255
        %v4913 = vpop.f32.mrf.mxu0
        %v4914 = vadd.f32 %v4895, %v4913
        %v4915 = vpop.f32.mrf.mxu0
        %v4916 = vadd.f32 %v4897, %v4915
        %4917 = vdwg.mxu0
        %4918 = vmatpush.bf16.msra.mxu0 %v4512
        %4919 = vmatpush.bf16.msra.mxu0 %v4508
        %4920 = vmatpush.bf16.msra.mxu0 %v4504
        %4921 = vmatpush.bf16.msra.mxu0 %v4500
        %4922 = vmatpush.bf16.msra.mxu0 %v4496
        %4923 = vmatpush.bf16.msra.mxu0 %v4492
        %4924 = vmatpush.bf16.msra.mxu0 %v4488
        %4925 = vmatpush.bf16.msra.mxu0 %v4484
        %4926 = vmatmul.bf16.gmra.mxu0 %v3248
        %v4927 = vpop.f32.mrf.mxu0
        %v4928 = vadd.f32 %v4909, %v4927
        %v4929 = vpop.f32.mrf.mxu0
        %v4930 = vadd.f32 %v4911, %v4929
        %4931 = vmatmul.bf16.gmra.mxu0 %v3256
        %v4932 = vpop.f32.mrf.mxu0
        %v4933 = vadd.f32 %v4914, %v4932
        %v4934 = vpop.f32.mrf.mxu0
        %v4935 = vadd.f32 %v4916, %v4934
        %4936 = vdwg.mxu0
        %4937 = vmatpush.bf16.msra.mxu0 %v4544
        %4938 = vmatpush.bf16.msra.mxu0 %v4540
        %4939 = vmatpush.bf16.msra.mxu0 %v4536
        %4940 = vmatpush.bf16.msra.mxu0 %v4532
        %4941 = vmatpush.bf16.msra.mxu0 %v4528
        %4942 = vmatpush.bf16.msra.mxu0 %v4524
        %4943 = vmatpush.bf16.msra.mxu0 %v4520
        %4944 = vmatpush.bf16.msra.mxu0 %v4516
        %4945 = vmatmul.bf16.gmra.mxu0 %v3249
        %v4946 = vpop.f32.mrf.mxu0
        %v4947 = vadd.f32 %v4928, %v4946
        %v4948 = vpop.f32.mrf.mxu0
        %v4949 = vadd.f32 %v4930, %v4948
        %4950 = vmatmul.bf16.gmra.mxu0 %v3257
        %v4951 = vpop.f32.mrf.mxu0
        %v4952 = vadd.f32 %v4933, %v4951
        %v4953 = vpop.f32.mrf.mxu0
        %v4954 = vadd.f32 %v4935, %v4953
        %4955 = vdwg.mxu0
        %4956 = vmatpush.bf16.msra.mxu0 %v4321
        %4957 = vmatpush.bf16.msra.mxu0 %v4317
        %4958 = vmatpush.bf16.msra.mxu0 %v4313
        %4959 = vmatpush.bf16.msra.mxu0 %v4309
        %4960 = vmatpush.bf16.msra.mxu0 %v4305
        %4961 = vmatpush.bf16.msra.mxu0 %v4301
        %4962 = vmatpush.bf16.msra.mxu0 %v4297
        %4963 = vmatpush.bf16.msra.mxu0 %v4293
        %4964 = vmatmul.bf16.gmra.mxu0 %v3242
        %v4965 = vpop.f32.mrf.mxu0
        %v4966 = vadd.f32 %v3517, %v4965
        %v4967 = vpop.f32.mrf.mxu0
        %v4968 = vadd.f32 %v3517, %v4967
        %4969 = vmatmul.bf16.gmra.mxu0 %v3250
        %v4970 = vpop.f32.mrf.mxu0
        %v4971 = vadd.f32 %v3517, %v4970
        %v4972 = vpop.f32.mrf.mxu0
        %v4973 = vadd.f32 %v3517, %v4972
        %4974 = vdwg.mxu0
        %4975 = vmatpush.bf16.msra.mxu0 %v4353
        %4976 = vmatpush.bf16.msra.mxu0 %v4349
        %4977 = vmatpush.bf16.msra.mxu0 %v4345
        %4978 = vmatpush.bf16.msra.mxu0 %v4341
        %4979 = vmatpush.bf16.msra.mxu0 %v4337
        %4980 = vmatpush.bf16.msra.mxu0 %v4333
        %4981 = vmatpush.bf16.msra.mxu0 %v4329
        %4982 = vmatpush.bf16.msra.mxu0 %v4325
        %4983 = vmatmul.bf16.gmra.mxu0 %v3243
        %v4984 = vpop.f32.mrf.mxu0
        %v4985 = vadd.f32 %v4966, %v4984
        %v4986 = vpop.f32.mrf.mxu0
        %v4987 = vadd.f32 %v4968, %v4986
        %4988 = vmatmul.bf16.gmra.mxu0 %v3251
        %v4989 = vpop.f32.mrf.mxu0
        %v4990 = vadd.f32 %v4971, %v4989
        %v4991 = vpop.f32.mrf.mxu0
        %v4992 = vadd.f32 %v4973, %v4991
        %4993 = vdwg.mxu0
        %4994 = vmatpush.bf16.msra.mxu0 %v4385
        %4995 = vmatpush.bf16.msra.mxu0 %v4381
        %4996 = vmatpush.bf16.msra.mxu0 %v4377
        %4997 = vmatpush.bf16.msra.mxu0 %v4373
        %4998 = vmatpush.bf16.msra.mxu0 %v4369
        %4999 = vmatpush.bf16.msra.mxu0 %v4365
        %5000 = vmatpush.bf16.msra.mxu0 %v4361
        %5001 = vmatpush.bf16.msra.mxu0 %v4357
        %5002 = vmatmul.bf16.gmra.mxu0 %v3244
        %v5003 = vpop.f32.mrf.mxu0
        %v5004 = vadd.f32 %v4985, %v5003
        %v5005 = vpop.f32.mrf.mxu0
        %v5006 = vadd.f32 %v4987, %v5005
        %5007 = vmatmul.bf16.gmra.mxu0 %v3252
        %v5008 = vpop.f32.mrf.mxu0
        %v5009 = vadd.f32 %v4990, %v5008
        %v5010 = vpop.f32.mrf.mxu0
        %v5011 = vadd.f32 %v4992, %v5010
        %5012 = vdwg.mxu0
        %5013 = vmatpush.bf16.msra.mxu0 %v4417
        %5014 = vmatpush.bf16.msra.mxu0 %v4413
        %5015 = vmatpush.bf16.msra.mxu0 %v4409
        %5016 = vmatpush.bf16.msra.mxu0 %v4405
        %5017 = vmatpush.bf16.msra.mxu0 %v4401
        %5018 = vmatpush.bf16.msra.mxu0 %v4397
        %5019 = vmatpush.bf16.msra.mxu0 %v4393
        %5020 = vmatpush.bf16.msra.mxu0 %v4389
        %5021 = vmatmul.bf16.gmra.mxu0 %v3245
        %v5022 = vpop.f32.mrf.mxu0
        %v5023 = vadd.f32 %v5004, %v5022
        %v5024 = vpop.f32.mrf.mxu0
        %v5025 = vadd.f32 %v5006, %v5024
        %5026 = vmatmul.bf16.gmra.mxu0 %v3253
        %v5027 = vpop.f32.mrf.mxu0
        %v5028 = vadd.f32 %v5009, %v5027
        %v5029 = vpop.f32.mrf.mxu0
        %v5030 = vadd.f32 %v5011, %v5029
        %5031 = vdwg.mxu0
        %5032 = vmatpush.bf16.msra.mxu0 %v4449
        %5033 = vmatpush.bf16.msra.mxu0 %v4445
        %5034 = vmatpush.bf16.msra.mxu0 %v4441
        %5035 = vmatpush.bf16.msra.mxu0 %v4437
        %5036 = vmatpush.bf16.msra.mxu0 %v4433
        %5037 = vmatpush.bf16.msra.mxu0 %v4429
        %5038 = vmatpush.bf16.msra.mxu0 %v4425
        %5039 = vmatpush.bf16.msra.mxu0 %v4421
        %5040 = vmatmul.bf16.gmra.mxu0 %v3246
        %v5041 = vpop.f32.mrf.mxu0
        %v5042 = vadd.f32 %v5023, %v5041
        %v5043 = vpop.f32.mrf.mxu0
        %v5044 = vadd.f32 %v5025, %v5043
        %5045 = vmatmul.bf16.gmra.mxu0 %v3254
        %v5046 = vpop.f32.mrf.mxu0
        %v5047 = vadd.f32 %v5028, %v5046
        %v5048 = vpop.f32.mrf.mxu0
        %v5049 = vadd.f32 %v5030, %v5048
        %5050 = vdwg.mxu0
        %5051 = vmatpush.bf16.msra.mxu0 %v4481
        %5052 = vmatpush.bf16.msra.mxu0 %v4477
        %5053 = vmatpush.bf16.msra.mxu0 %v4473
        %5054 = vmatpush.bf16.msra.mxu0 %v4469
        %5055 = vmatpush.bf16.msra.mxu0 %v4465
        %5056 = vmatpush.bf16.msra.mxu0 %v4461
        %5057 = vmatpush.bf16.msra.mxu0 %v4457
        %5058 = vmatpush.bf16.msra.mxu0 %v4453
        %5059 = vmatmul.bf16.gmra.mxu0 %v3247
        %v5060 = vpop.f32.mrf.mxu0
        %v5061 = vadd.f32 %v5042, %v5060
        %v5062 = vpop.f32.mrf.mxu0
        %v5063 = vadd.f32 %v5044, %v5062
        %5064 = vmatmul.bf16.gmra.mxu0 %v3255
        %v5065 = vpop.f32.mrf.mxu0
        %v5066 = vadd.f32 %v5047, %v5065
        %v5067 = vpop.f32.mrf.mxu0
        %v5068 = vadd.f32 %v5049, %v5067
        %5069 = vdwg.mxu0
        %5070 = vmatpush.bf16.msra.mxu0 %v4513
        %5071 = vmatpush.bf16.msra.mxu0 %v4509
        %5072 = vmatpush.bf16.msra.mxu0 %v4505
        %5073 = vmatpush.bf16.msra.mxu0 %v4501
        %5074 = vmatpush.bf16.msra.mxu0 %v4497
        %5075 = vmatpush.bf16.msra.mxu0 %v4493
        %5076 = vmatpush.bf16.msra.mxu0 %v4489
        %5077 = vmatpush.bf16.msra.mxu0 %v4485
        %5078 = vmatmul.bf16.gmra.mxu0 %v3248
        %v5079 = vpop.f32.mrf.mxu0
        %v5080 = vadd.f32 %v5061, %v5079
        %v5081 = vpop.f32.mrf.mxu0
        %v5082 = vadd.f32 %v5063, %v5081
        %5083 = vmatmul.bf16.gmra.mxu0 %v3256
        %v5084 = vpop.f32.mrf.mxu0
        %v5085 = vadd.f32 %v5066, %v5084
        %v5086 = vpop.f32.mrf.mxu0
        %v5087 = vadd.f32 %v5068, %v5086
        %5088 = vdwg.mxu0
        %5089 = vmatpush.bf16.msra.mxu0 %v4545
        %5090 = vmatpush.bf16.msra.mxu0 %v4541
        %5091 = vmatpush.bf16.msra.mxu0 %v4537
        %5092 = vmatpush.bf16.msra.mxu0 %v4533
        %5093 = vmatpush.bf16.msra.mxu0 %v4529
        %5094 = vmatpush.bf16.msra.mxu0 %v4525
        %5095 = vmatpush.bf16.msra.mxu0 %v4521
        %5096 = vmatpush.bf16.msra.mxu0 %v4517
        %5097 = vmatmul.bf16.gmra.mxu0 %v3249
        %v5098 = vpop.f32.mrf.mxu0
        %v5099 = vadd.f32 %v5080, %v5098
        %v5100 = vpop.f32.mrf.mxu0
        %v5101 = vadd.f32 %v5082, %v5100
        %5102 = vmatmul.bf16.gmra.mxu0 %v3257
        %v5103 = vpop.f32.mrf.mxu0
        %v5104 = vadd.f32 %v5085, %v5103
        %v5105 = vpop.f32.mrf.mxu0
        %v5106 = vadd.f32 %v5087, %v5105
        %5107 = vdwg.mxu0
        %5108 = vmatpush.bf16.msra.mxu0 %v4322
        %5109 = vmatpush.bf16.msra.mxu0 %v4318
        %5110 = vmatpush.bf16.msra.mxu0 %v4314
        %5111 = vmatpush.bf16.msra.mxu0 %v4310
        %5112 = vmatpush.bf16.msra.mxu0 %v4306
        %5113 = vmatpush.bf16.msra.mxu0 %v4302
        %5114 = vmatpush.bf16.msra.mxu0 %v4298
        %5115 = vmatpush.bf16.msra.mxu0 %v4294
        %5116 = vmatmul.bf16.gmra.mxu0 %v3242
        %v5117 = vpop.f32.mrf.mxu0
        %v5118 = vadd.f32 %v3518, %v5117
        %v5119 = vpop.f32.mrf.mxu0
        %v5120 = vadd.f32 %v3518, %v5119
        %5121 = vmatmul.bf16.gmra.mxu0 %v3250
        %v5122 = vpop.f32.mrf.mxu0
        %v5123 = vadd.f32 %v3518, %v5122
        %v5124 = vpop.f32.mrf.mxu0
        %v5125 = vadd.f32 %v3518, %v5124
        %5126 = vdwg.mxu0
        %5127 = vmatpush.bf16.msra.mxu0 %v4354
        %5128 = vmatpush.bf16.msra.mxu0 %v4350
        %5129 = vmatpush.bf16.msra.mxu0 %v4346
        %5130 = vmatpush.bf16.msra.mxu0 %v4342
        %5131 = vmatpush.bf16.msra.mxu0 %v4338
        %5132 = vmatpush.bf16.msra.mxu0 %v4334
        %5133 = vmatpush.bf16.msra.mxu0 %v4330
        %5134 = vmatpush.bf16.msra.mxu0 %v4326
        %5135 = vmatmul.bf16.gmra.mxu0 %v3243
        %v5136 = vpop.f32.mrf.mxu0
        %v5137 = vadd.f32 %v5118, %v5136
        %v5138 = vpop.f32.mrf.mxu0
        %v5139 = vadd.f32 %v5120, %v5138
        %5140 = vmatmul.bf16.gmra.mxu0 %v3251
        %v5141 = vpop.f32.mrf.mxu0
        %v5142 = vadd.f32 %v5123, %v5141
        %v5143 = vpop.f32.mrf.mxu0
        %v5144 = vadd.f32 %v5125, %v5143
        %5145 = vdwg.mxu0
        %5146 = vmatpush.bf16.msra.mxu0 %v4386
        %5147 = vmatpush.bf16.msra.mxu0 %v4382
        %5148 = vmatpush.bf16.msra.mxu0 %v4378
        %5149 = vmatpush.bf16.msra.mxu0 %v4374
        %5150 = vmatpush.bf16.msra.mxu0 %v4370
        %5151 = vmatpush.bf16.msra.mxu0 %v4366
        %5152 = vmatpush.bf16.msra.mxu0 %v4362
        %5153 = vmatpush.bf16.msra.mxu0 %v4358
        %5154 = vmatmul.bf16.gmra.mxu0 %v3244
        %v5155 = vpop.f32.mrf.mxu0
        %v5156 = vadd.f32 %v5137, %v5155
        %v5157 = vpop.f32.mrf.mxu0
        %v5158 = vadd.f32 %v5139, %v5157
        %5159 = vmatmul.bf16.gmra.mxu0 %v3252
        %v5160 = vpop.f32.mrf.mxu0
        %v5161 = vadd.f32 %v5142, %v5160
        %v5162 = vpop.f32.mrf.mxu0
        %v5163 = vadd.f32 %v5144, %v5162
        %5164 = vdwg.mxu0
        %5165 = vmatpush.bf16.msra.mxu0 %v4418
        %5166 = vmatpush.bf16.msra.mxu0 %v4414
        %5167 = vmatpush.bf16.msra.mxu0 %v4410
        %5168 = vmatpush.bf16.msra.mxu0 %v4406
        %5169 = vmatpush.bf16.msra.mxu0 %v4402
        %5170 = vmatpush.bf16.msra.mxu0 %v4398
        %5171 = vmatpush.bf16.msra.mxu0 %v4394
        %5172 = vmatpush.bf16.msra.mxu0 %v4390
        %5173 = vmatmul.bf16.gmra.mxu0 %v3245
        %v5174 = vpop.f32.mrf.mxu0
        %v5175 = vadd.f32 %v5156, %v5174
        %v5176 = vpop.f32.mrf.mxu0
        %v5177 = vadd.f32 %v5158, %v5176
        %5178 = vmatmul.bf16.gmra.mxu0 %v3253
        %v5179 = vpop.f32.mrf.mxu0
        %v5180 = vadd.f32 %v5161, %v5179
        %v5181 = vpop.f32.mrf.mxu0
        %v5182 = vadd.f32 %v5163, %v5181
        %5183 = vdwg.mxu0
        %5184 = vmatpush.bf16.msra.mxu0 %v4450
        %5185 = vmatpush.bf16.msra.mxu0 %v4446
        %5186 = vmatpush.bf16.msra.mxu0 %v4442
        %5187 = vmatpush.bf16.msra.mxu0 %v4438
        %5188 = vmatpush.bf16.msra.mxu0 %v4434
        %5189 = vmatpush.bf16.msra.mxu0 %v4430
        %5190 = vmatpush.bf16.msra.mxu0 %v4426
        %5191 = vmatpush.bf16.msra.mxu0 %v4422
        %5192 = vmatmul.bf16.gmra.mxu0 %v3246
        %v5193 = vpop.f32.mrf.mxu0
        %v5194 = vadd.f32 %v5175, %v5193
        %v5195 = vpop.f32.mrf.mxu0
        %v5196 = vadd.f32 %v5177, %v5195
        %5197 = vmatmul.bf16.gmra.mxu0 %v3254
        %v5198 = vpop.f32.mrf.mxu0
        %v5199 = vadd.f32 %v5180, %v5198
        %v5200 = vpop.f32.mrf.mxu0
        %v5201 = vadd.f32 %v5182, %v5200
        %5202 = vdwg.mxu0
        %5203 = vmatpush.bf16.msra.mxu0 %v4482
        %5204 = vmatpush.bf16.msra.mxu0 %v4478
        %5205 = vmatpush.bf16.msra.mxu0 %v4474
        %5206 = vmatpush.bf16.msra.mxu0 %v4470
        %5207 = vmatpush.bf16.msra.mxu0 %v4466
        %5208 = vmatpush.bf16.msra.mxu0 %v4462
        %5209 = vmatpush.bf16.msra.mxu0 %v4458
        %5210 = vmatpush.bf16.msra.mxu0 %v4454
        %5211 = vmatmul.bf16.gmra.mxu0 %v3247
        %v5212 = vpop.f32.mrf.mxu0
        %v5213 = vadd.f32 %v5194, %v5212
        %v5214 = vpop.f32.mrf.mxu0
        %v5215 = vadd.f32 %v5196, %v5214
        %5216 = vmatmul.bf16.gmra.mxu0 %v3255
        %v5217 = vpop.f32.mrf.mxu0
        %v5218 = vadd.f32 %v5199, %v5217
        %v5219 = vpop.f32.mrf.mxu0
        %v5220 = vadd.f32 %v5201, %v5219
        %5221 = vdwg.mxu0
        %5222 = vmatpush.bf16.msra.mxu0 %v4514
        %5223 = vmatpush.bf16.msra.mxu0 %v4510
        %5224 = vmatpush.bf16.msra.mxu0 %v4506
        %5225 = vmatpush.bf16.msra.mxu0 %v4502
        %5226 = vmatpush.bf16.msra.mxu0 %v4498
        %5227 = vmatpush.bf16.msra.mxu0 %v4494
        %5228 = vmatpush.bf16.msra.mxu0 %v4490
        %5229 = vmatpush.bf16.msra.mxu0 %v4486
        %5230 = vmatmul.bf16.gmra.mxu0 %v3248
        %v5231 = vpop.f32.mrf.mxu0
        %v5232 = vadd.f32 %v5213, %v5231
        %v5233 = vpop.f32.mrf.mxu0
        %v5234 = vadd.f32 %v5215, %v5233
        %5235 = vmatmul.bf16.gmra.mxu0 %v3256
        %v5236 = vpop.f32.mrf.mxu0
        %v5237 = vadd.f32 %v5218, %v5236
        %v5238 = vpop.f32.mrf.mxu0
        %v5239 = vadd.f32 %v5220, %v5238
        %5240 = vdwg.mxu0
        %5241 = vmatpush.bf16.msra.mxu0 %v4546
        %5242 = vmatpush.bf16.msra.mxu0 %v4542
        %5243 = vmatpush.bf16.msra.mxu0 %v4538
        %5244 = vmatpush.bf16.msra.mxu0 %v4534
        %5245 = vmatpush.bf16.msra.mxu0 %v4530
        %5246 = vmatpush.bf16.msra.mxu0 %v4526
        %5247 = vmatpush.bf16.msra.mxu0 %v4522
        %5248 = vmatpush.bf16.msra.mxu0 %v4518
        %5249 = vmatmul.bf16.gmra.mxu0 %v3249
        %v5250 = vpop.f32.mrf.mxu0
        %v5251 = vadd.f32 %v5232, %v5250
        %v5252 = vpop.f32.mrf.mxu0
        %v5253 = vadd.f32 %v5234, %v5252
        %5254 = vmatmul.bf16.gmra.mxu0 %v3257
        %v5255 = vpop.f32.mrf.mxu0
        %v5256 = vadd.f32 %v5237, %v5255
        %v5257 = vpop.f32.mrf.mxu0
        %v5258 = vadd.f32 %v5239, %v5257
        %5259 = vdwg.mxu0
        %5260 = vmatpush.bf16.msra.mxu0 %v4323
        %5261 = vmatpush.bf16.msra.mxu0 %v4319
        %5262 = vmatpush.bf16.msra.mxu0 %v4315
        %5263 = vmatpush.bf16.msra.mxu0 %v4311
        %5264 = vmatpush.bf16.msra.mxu0 %v4307
        %5265 = vmatpush.bf16.msra.mxu0 %v4303
        %5266 = vmatpush.bf16.msra.mxu0 %v4299
        %5267 = vmatpush.bf16.msra.mxu0 %v4295
        %5268 = vmatmul.bf16.gmra.mxu0 %v3242
        %v5269 = vpop.f32.mrf.mxu0
        %v5270 = vadd.f32 %v3519, %v5269
        %v5271 = vpop.f32.mrf.mxu0
        %v5272 = vadd.f32 %v3519, %v5271
        %5273 = vmatmul.bf16.gmra.mxu0 %v3250
        %v5274 = vpop.f32.mrf.mxu0
        %v5275 = vadd.f32 %v3519, %v5274
        %v5276 = vpop.f32.mrf.mxu0
        %v5277 = vadd.f32 %v3519, %v5276
        %5278 = vdwg.mxu0
        %5279 = vmatpush.bf16.msra.mxu0 %v4355
        %5280 = vmatpush.bf16.msra.mxu0 %v4351
        %5281 = vmatpush.bf16.msra.mxu0 %v4347
        %5282 = vmatpush.bf16.msra.mxu0 %v4343
        %5283 = vmatpush.bf16.msra.mxu0 %v4339
        %5284 = vmatpush.bf16.msra.mxu0 %v4335
        %5285 = vmatpush.bf16.msra.mxu0 %v4331
        %5286 = vmatpush.bf16.msra.mxu0 %v4327
        %5287 = vmatmul.bf16.gmra.mxu0 %v3243
        %v5288 = vpop.f32.mrf.mxu0
        %v5289 = vadd.f32 %v5270, %v5288
        %v5290 = vpop.f32.mrf.mxu0
        %v5291 = vadd.f32 %v5272, %v5290
        %5292 = vmatmul.bf16.gmra.mxu0 %v3251
        %v5293 = vpop.f32.mrf.mxu0
        %v5294 = vadd.f32 %v5275, %v5293
        %v5295 = vpop.f32.mrf.mxu0
        %v5296 = vadd.f32 %v5277, %v5295
        %5297 = vdwg.mxu0
        %5298 = vmatpush.bf16.msra.mxu0 %v4387
        %5299 = vmatpush.bf16.msra.mxu0 %v4383
        %5300 = vmatpush.bf16.msra.mxu0 %v4379
        %5301 = vmatpush.bf16.msra.mxu0 %v4375
        %5302 = vmatpush.bf16.msra.mxu0 %v4371
        %5303 = vmatpush.bf16.msra.mxu0 %v4367
        %5304 = vmatpush.bf16.msra.mxu0 %v4363
        %5305 = vmatpush.bf16.msra.mxu0 %v4359
        %5306 = vmatmul.bf16.gmra.mxu0 %v3244
        %v5307 = vpop.f32.mrf.mxu0
        %v5308 = vadd.f32 %v5289, %v5307
        %v5309 = vpop.f32.mrf.mxu0
        %v5310 = vadd.f32 %v5291, %v5309
        %5311 = vmatmul.bf16.gmra.mxu0 %v3252
        %v5312 = vpop.f32.mrf.mxu0
        %v5313 = vadd.f32 %v5294, %v5312
        %v5314 = vpop.f32.mrf.mxu0
        %v5315 = vadd.f32 %v5296, %v5314
        %5316 = vdwg.mxu0
        %5317 = vmatpush.bf16.msra.mxu0 %v4419
        %5318 = vmatpush.bf16.msra.mxu0 %v4415
        %5319 = vmatpush.bf16.msra.mxu0 %v4411
        %5320 = vmatpush.bf16.msra.mxu0 %v4407
        %5321 = vmatpush.bf16.msra.mxu0 %v4403
        %5322 = vmatpush.bf16.msra.mxu0 %v4399
        %5323 = vmatpush.bf16.msra.mxu0 %v4395
        %5324 = vmatpush.bf16.msra.mxu0 %v4391
        %5325 = vmatmul.bf16.gmra.mxu0 %v3245
        %v5326 = vpop.f32.mrf.mxu0
        %v5327 = vadd.f32 %v5308, %v5326
        %v5328 = vpop.f32.mrf.mxu0
        %v5329 = vadd.f32 %v5310, %v5328
        %5330 = vmatmul.bf16.gmra.mxu0 %v3253
        %v5331 = vpop.f32.mrf.mxu0
        %v5332 = vadd.f32 %v5313, %v5331
        %v5333 = vpop.f32.mrf.mxu0
        %v5334 = vadd.f32 %v5315, %v5333
        %5335 = vdwg.mxu0
        %5336 = vmatpush.bf16.msra.mxu0 %v4451
        %5337 = vmatpush.bf16.msra.mxu0 %v4447
        %5338 = vmatpush.bf16.msra.mxu0 %v4443
        %5339 = vmatpush.bf16.msra.mxu0 %v4439
        %5340 = vmatpush.bf16.msra.mxu0 %v4435
        %5341 = vmatpush.bf16.msra.mxu0 %v4431
        %5342 = vmatpush.bf16.msra.mxu0 %v4427
        %5343 = vmatpush.bf16.msra.mxu0 %v4423
        %5344 = vmatmul.bf16.gmra.mxu0 %v3246
        %v5345 = vpop.f32.mrf.mxu0
        %v5346 = vadd.f32 %v5327, %v5345
        %v5347 = vpop.f32.mrf.mxu0
        %v5348 = vadd.f32 %v5329, %v5347
        %5349 = vmatmul.bf16.gmra.mxu0 %v3254
        %v5350 = vpop.f32.mrf.mxu0
        %v5351 = vadd.f32 %v5332, %v5350
        %v5352 = vpop.f32.mrf.mxu0
        %v5353 = vadd.f32 %v5334, %v5352
        %5354 = vdwg.mxu0
        %5355 = vmatpush.bf16.msra.mxu0 %v4483
        %5356 = vmatpush.bf16.msra.mxu0 %v4479
        %5357 = vmatpush.bf16.msra.mxu0 %v4475
        %5358 = vmatpush.bf16.msra.mxu0 %v4471
        %5359 = vmatpush.bf16.msra.mxu0 %v4467
        %5360 = vmatpush.bf16.msra.mxu0 %v4463
        %5361 = vmatpush.bf16.msra.mxu0 %v4459
        %5362 = vmatpush.bf16.msra.mxu0 %v4455
        %5363 = vmatmul.bf16.gmra.mxu0 %v3247
        %v5364 = vpop.f32.mrf.mxu0
        %v5365 = vadd.f32 %v5346, %v5364
        %v5366 = vpop.f32.mrf.mxu0
        %v5367 = vadd.f32 %v5348, %v5366
        %5368 = vmatmul.bf16.gmra.mxu0 %v3255
        %v5369 = vpop.f32.mrf.mxu0
        %v5370 = vadd.f32 %v5351, %v5369
        %v5371 = vpop.f32.mrf.mxu0
        %v5372 = vadd.f32 %v5353, %v5371
        %5373 = vdwg.mxu0
        %5374 = vmatpush.bf16.msra.mxu0 %v4515
        %5375 = vmatpush.bf16.msra.mxu0 %v4511
        %5376 = vmatpush.bf16.msra.mxu0 %v4507
        %5377 = vmatpush.bf16.msra.mxu0 %v4503
        %5378 = vmatpush.bf16.msra.mxu0 %v4499
        %5379 = vmatpush.bf16.msra.mxu0 %v4495
        %5380 = vmatpush.bf16.msra.mxu0 %v4491
        %5381 = vmatpush.bf16.msra.mxu0 %v4487
        %5382 = vmatmul.bf16.gmra.mxu0 %v3248
        %v5383 = vpop.f32.mrf.mxu0
        %v5384 = vadd.f32 %v5365, %v5383
        %v5385 = vpop.f32.mrf.mxu0
        %v5386 = vadd.f32 %v5367, %v5385
        %5387 = vmatmul.bf16.gmra.mxu0 %v3256
        %v5388 = vpop.f32.mrf.mxu0
        %v5389 = vadd.f32 %v5370, %v5388
        %v5390 = vpop.f32.mrf.mxu0
        %v5391 = vadd.f32 %v5372, %v5390
        %5392 = vdwg.mxu0
        %5393 = vmatpush.bf16.msra.mxu0 %v4547
        %5394 = vmatpush.bf16.msra.mxu0 %v4543
        %5395 = vmatpush.bf16.msra.mxu0 %v4539
        %5396 = vmatpush.bf16.msra.mxu0 %v4535
        %5397 = vmatpush.bf16.msra.mxu0 %v4531
        %5398 = vmatpush.bf16.msra.mxu0 %v4527
        %5399 = vmatpush.bf16.msra.mxu0 %v4523
        %5400 = vmatpush.bf16.msra.mxu0 %v4519
        %5401 = vmatmul.bf16.gmra.mxu0 %v3249
        %v5402 = vpop.f32.mrf.mxu0
        %v5403 = vadd.f32 %v5384, %v5402
        %v5404 = vpop.f32.mrf.mxu0
        %v5405 = vadd.f32 %v5386, %v5404
        %5406 = vmatmul.bf16.gmra.mxu0 %v3257
        %v5407 = vpop.f32.mrf.mxu0
        %v5408 = vadd.f32 %v5389, %v5407
        %v5409 = vpop.f32.mrf.mxu0
        %v5410 = vadd.f32 %v5391, %v5409
        %5411 = vdwg.mxu0
        %v5412 = vxor.u32 %v4947, 2147483648
        %v5413 = vxor.u32 %v5099, 2147483648
        %v5414 = vxor.u32 %v5251, 2147483648
        %v5415 = vxor.u32 %v5403, 2147483648
        %v5416 = vxor.u32 %v4949, 2147483648
        %v5417 = vxor.u32 %v5101, 2147483648
        %v5418 = vxor.u32 %v5253, 2147483648
        %v5419 = vxor.u32 %v5405, 2147483648
        %v5420 = vxor.u32 %v4952, 2147483648
        %v5421 = vxor.u32 %v5104, 2147483648
        %v5422 = vxor.u32 %v5256, 2147483648
        %v5423 = vxor.u32 %v5408, 2147483648
        %v5424 = vxor.u32 %v4954, 2147483648
        %v5425 = vxor.u32 %v5106, 2147483648
        %v5426 = vxor.u32 %v5258, 2147483648
        %v5427 = vxor.u32 %v5410, 2147483648
        %v5428 = vmul.f32 %v5412, 1.442695
        %v5429 = vpow.pop %v5428
        %v5430 = vmul.f32 %v5413, 1.442695
        %v5431 = vpow.pop %v5430
        %v5432 = vmul.f32 %v5414, 1.442695
        %v5433 = vpow.pop %v5432
        %v5434 = vmul.f32 %v5415, 1.442695
        %v5435 = vpow.pop %v5434
        %v5436 = vmul.f32 %v5416, 1.442695
        %v5437 = vpow.pop %v5436
        %v5438 = vmul.f32 %v5417, 1.442695
        %v5439 = vpow.pop %v5438
        %v5440 = vmul.f32 %v5418, 1.442695
        %v5441 = vpow.pop %v5440
        %v5442 = vmul.f32 %v5419, 1.442695
        %v5443 = vpow.pop %v5442
        %v5444 = vmul.f32 %v5420, 1.442695
        %v5445 = vpow.pop %v5444
        %v5446 = vmul.f32 %v5421, 1.442695
        %v5447 = vpow.pop %v5446
        %v5448 = vmul.f32 %v5422, 1.442695
        %v5449 = vpow.pop %v5448
        %v5450 = vmul.f32 %v5423, 1.442695
        %v5451 = vpow.pop %v5450
        %v5452 = vmul.f32 %v5424, 1.442695
        %v5453 = vpow.pop %v5452
        %v5454 = vmul.f32 %v5425, 1.442695
        %v5455 = vpow.pop %v5454
        %v5456 = vmul.f32 %v5426, 1.442695
        %v5457 = vpow.pop %v5456
        %v5458 = vmul.f32 %v5427, 1.442695
        %v5459 = vpow.pop %v5458
        %v5460 = vadd.f32 %v5429, 1.0
        %v5461 = vadd.f32 %v5431, 1.0
        %v5462 = vadd.f32 %v5433, 1.0
        %v5463 = vadd.f32 %v5435, 1.0
        %v5464 = vadd.f32 %v5437, 1.0
        %v5465 = vadd.f32 %v5439, 1.0
        %v5466 = vadd.f32 %v5441, 1.0
        %v5467 = vadd.f32 %v5443, 1.0
        %v5468 = vadd.f32 %v5445, 1.0
        %v5469 = vadd.f32 %v5447, 1.0
        %v5470 = vadd.f32 %v5449, 1.0
        %v5471 = vadd.f32 %v5451, 1.0
        %v5472 = vadd.f32 %v5453, 1.0
        %v5473 = vadd.f32 %v5455, 1.0
        %v5474 = vadd.f32 %v5457, 1.0
        %v5475 = vadd.f32 %v5459, 1.0
        %v5476 = vrcp.pop %v5460
        %v5477 = vmul.f32 %v5460, %v5476
        %v5478 = vsub.f32 1.0, %v5477
        %v5479 = vmul.f32 %v5476, %v5478
        %v5480 = vadd.f32 %v5476, %v5479
        %vm5481 = vweird.f32 %v5460
        %vm5482 = vweird.f32 %v5476
        %vm5483 = vmor %vm5481, %vm5482
        %v5484 = vsel %vm5483, %v5476, %v5480
        %v5485 = vand.u32 2147483647, %v5460
        %vm5486 = vcmp.eq.f32.partialorder %v5485, 8.507059e+37
        %v5487 = vand.u32 %v5460, 2147483648
        %v5488 = vor.u32 1.1754944e-38, %v5487
        %v5489 = vsel %vm5486, %v5488, %v5484
        %v5490 = vmul.f32 1.0, %v5489
        %v5491 = vrcp.pop %v5461
        %v5492 = vmul.f32 %v5461, %v5491
        %v5493 = vsub.f32 1.0, %v5492
        %v5494 = vmul.f32 %v5491, %v5493
        %v5495 = vadd.f32 %v5491, %v5494
        %vm5496 = vweird.f32 %v5461
        %vm5497 = vweird.f32 %v5491
        %vm5498 = vmor %vm5496, %vm5497
        %v5499 = vsel %vm5498, %v5491, %v5495
        %v5500 = vand.u32 2147483647, %v5461
        %vm5501 = vcmp.eq.f32.partialorder %v5500, 8.507059e+37
        %v5502 = vand.u32 %v5461, 2147483648
        %v5503 = vor.u32 1.1754944e-38, %v5502
        %v5504 = vsel %vm5501, %v5503, %v5499
        %v5505 = vmul.f32 1.0, %v5504
        %v5506 = vrcp.pop %v5462
        %v5507 = vmul.f32 %v5462, %v5506
        %v5508 = vsub.f32 1.0, %v5507
        %v5509 = vmul.f32 %v5506, %v5508
        %v5510 = vadd.f32 %v5506, %v5509
        %vm5511 = vweird.f32 %v5462
        %vm5512 = vweird.f32 %v5506
        %vm5513 = vmor %vm5511, %vm5512
        %v5514 = vsel %vm5513, %v5506, %v5510
        %v5515 = vand.u32 2147483647, %v5462
        %vm5516 = vcmp.eq.f32.partialorder %v5515, 8.507059e+37
        %v5517 = vand.u32 %v5462, 2147483648
        %v5518 = vor.u32 1.1754944e-38, %v5517
        %v5519 = vsel %vm5516, %v5518, %v5514
        %v5520 = vmul.f32 1.0, %v5519
        %v5521 = vrcp.pop %v5463
        %v5522 = vmul.f32 %v5463, %v5521
        %v5523 = vsub.f32 1.0, %v5522
        %v5524 = vmul.f32 %v5521, %v5523
        %v5525 = vadd.f32 %v5521, %v5524
        %vm5526 = vweird.f32 %v5463
        %vm5527 = vweird.f32 %v5521
        %vm5528 = vmor %vm5526, %vm5527
        %v5529 = vsel %vm5528, %v5521, %v5525
        %v5530 = vand.u32 2147483647, %v5463
        %vm5531 = vcmp.eq.f32.partialorder %v5530, 8.507059e+37
        %v5532 = vand.u32 %v5463, 2147483648
        %v5533 = vor.u32 1.1754944e-38, %v5532
        %v5534 = vsel %vm5531, %v5533, %v5529
        %v5535 = vmul.f32 1.0, %v5534
        %v5536 = vrcp.pop %v5464
        %v5537 = vmul.f32 %v5464, %v5536
        %v5538 = vsub.f32 1.0, %v5537
        %v5539 = vmul.f32 %v5536, %v5538
        %v5540 = vadd.f32 %v5536, %v5539
        %vm5541 = vweird.f32 %v5464
        %vm5542 = vweird.f32 %v5536
        %vm5543 = vmor %vm5541, %vm5542
        %v5544 = vsel %vm5543, %v5536, %v5540
        %v5545 = vand.u32 2147483647, %v5464
        %vm5546 = vcmp.eq.f32.partialorder %v5545, 8.507059e+37
        %v5547 = vand.u32 %v5464, 2147483648
        %v5548 = vor.u32 1.1754944e-38, %v5547
        %v5549 = vsel %vm5546, %v5548, %v5544
        %v5550 = vmul.f32 1.0, %v5549
        %v5551 = vrcp.pop %v5465
        %v5552 = vmul.f32 %v5465, %v5551
        %v5553 = vsub.f32 1.0, %v5552
        %v5554 = vmul.f32 %v5551, %v5553
        %v5555 = vadd.f32 %v5551, %v5554
        %vm5556 = vweird.f32 %v5465
        %vm5557 = vweird.f32 %v5551
        %vm5558 = vmor %vm5556, %vm5557
        %v5559 = vsel %vm5558, %v5551, %v5555
        %v5560 = vand.u32 2147483647, %v5465
        %vm5561 = vcmp.eq.f32.partialorder %v5560, 8.507059e+37
        %v5562 = vand.u32 %v5465, 2147483648
        %v5563 = vor.u32 1.1754944e-38, %v5562
        %v5564 = vsel %vm5561, %v5563, %v5559
        %v5565 = vmul.f32 1.0, %v5564
        %v5566 = vrcp.pop %v5466
        %v5567 = vmul.f32 %v5466, %v5566
        %v5568 = vsub.f32 1.0, %v5567
        %v5569 = vmul.f32 %v5566, %v5568
        %v5570 = vadd.f32 %v5566, %v5569
        %vm5571 = vweird.f32 %v5466
        %vm5572 = vweird.f32 %v5566
        %vm5573 = vmor %vm5571, %vm5572
        %v5574 = vsel %vm5573, %v5566, %v5570
        %v5575 = vand.u32 2147483647, %v5466
        %vm5576 = vcmp.eq.f32.partialorder %v5575, 8.507059e+37
        %v5577 = vand.u32 %v5466, 2147483648
        %v5578 = vor.u32 1.1754944e-38, %v5577
        %v5579 = vsel %vm5576, %v5578, %v5574
        %v5580 = vmul.f32 1.0, %v5579
        %v5581 = vrcp.pop %v5467
        %v5582 = vmul.f32 %v5467, %v5581
        %v5583 = vsub.f32 1.0, %v5582
        %v5584 = vmul.f32 %v5581, %v5583
        %v5585 = vadd.f32 %v5581, %v5584
        %vm5586 = vweird.f32 %v5467
        %vm5587 = vweird.f32 %v5581
        %vm5588 = vmor %vm5586, %vm5587
        %v5589 = vsel %vm5588, %v5581, %v5585
        %v5590 = vand.u32 2147483647, %v5467
        %vm5591 = vcmp.eq.f32.partialorder %v5590, 8.507059e+37
        %v5592 = vand.u32 %v5467, 2147483648
        %v5593 = vor.u32 1.1754944e-38, %v5592
        %v5594 = vsel %vm5591, %v5593, %v5589
        %v5595 = vmul.f32 1.0, %v5594
        %v5596 = vrcp.pop %v5468
        %v5597 = vmul.f32 %v5468, %v5596
        %v5598 = vsub.f32 1.0, %v5597
        %v5599 = vmul.f32 %v5596, %v5598
        %v5600 = vadd.f32 %v5596, %v5599
        %vm5601 = vweird.f32 %v5468
        %vm5602 = vweird.f32 %v5596
        %vm5603 = vmor %vm5601, %vm5602
        %v5604 = vsel %vm5603, %v5596, %v5600
        %v5605 = vand.u32 2147483647, %v5468
        %vm5606 = vcmp.eq.f32.partialorder %v5605, 8.507059e+37
        %v5607 = vand.u32 %v5468, 2147483648
        %v5608 = vor.u32 1.1754944e-38, %v5607
        %v5609 = vsel %vm5606, %v5608, %v5604
        %v5610 = vmul.f32 1.0, %v5609
        %v5611 = vrcp.pop %v5469
        %v5612 = vmul.f32 %v5469, %v5611
        %v5613 = vsub.f32 1.0, %v5612
        %v5614 = vmul.f32 %v5611, %v5613
        %v5615 = vadd.f32 %v5611, %v5614
        %vm5616 = vweird.f32 %v5469
        %vm5617 = vweird.f32 %v5611
        %vm5618 = vmor %vm5616, %vm5617
        %v5619 = vsel %vm5618, %v5611, %v5615
        %v5620 = vand.u32 2147483647, %v5469
        %vm5621 = vcmp.eq.f32.partialorder %v5620, 8.507059e+37
        %v5622 = vand.u32 %v5469, 2147483648
        %v5623 = vor.u32 1.1754944e-38, %v5622
        %v5624 = vsel %vm5621, %v5623, %v5619
        %v5625 = vmul.f32 1.0, %v5624
        %v5626 = vrcp.pop %v5470
        %v5627 = vmul.f32 %v5470, %v5626
        %v5628 = vsub.f32 1.0, %v5627
        %v5629 = vmul.f32 %v5626, %v5628
        %v5630 = vadd.f32 %v5626, %v5629
        %vm5631 = vweird.f32 %v5470
        %vm5632 = vweird.f32 %v5626
        %vm5633 = vmor %vm5631, %vm5632
        %v5634 = vsel %vm5633, %v5626, %v5630
        %v5635 = vand.u32 2147483647, %v5470
        %vm5636 = vcmp.eq.f32.partialorder %v5635, 8.507059e+37
        %v5637 = vand.u32 %v5470, 2147483648
        %v5638 = vor.u32 1.1754944e-38, %v5637
        %v5639 = vsel %vm5636, %v5638, %v5634
        %v5640 = vmul.f32 1.0, %v5639
        %v5641 = vrcp.pop %v5471
        %v5642 = vmul.f32 %v5471, %v5641
        %v5643 = vsub.f32 1.0, %v5642
        %v5644 = vmul.f32 %v5641, %v5643
        %v5645 = vadd.f32 %v5641, %v5644
        %vm5646 = vweird.f32 %v5471
        %vm5647 = vweird.f32 %v5641
        %vm5648 = vmor %vm5646, %vm5647
        %v5649 = vsel %vm5648, %v5641, %v5645
        %v5650 = vand.u32 2147483647, %v5471
        %vm5651 = vcmp.eq.f32.partialorder %v5650, 8.507059e+37
        %v5652 = vand.u32 %v5471, 2147483648
        %v5653 = vor.u32 1.1754944e-38, %v5652
        %v5654 = vsel %vm5651, %v5653, %v5649
        %v5655 = vmul.f32 1.0, %v5654
        %v5656 = vrcp.pop %v5472
        %v5657 = vmul.f32 %v5472, %v5656
        %v5658 = vsub.f32 1.0, %v5657
        %v5659 = vmul.f32 %v5656, %v5658
        %v5660 = vadd.f32 %v5656, %v5659
        %vm5661 = vweird.f32 %v5472
        %vm5662 = vweird.f32 %v5656
        %vm5663 = vmor %vm5661, %vm5662
        %v5664 = vsel %vm5663, %v5656, %v5660
        %v5665 = vand.u32 2147483647, %v5472
        %vm5666 = vcmp.eq.f32.partialorder %v5665, 8.507059e+37
        %v5667 = vand.u32 %v5472, 2147483648
        %v5668 = vor.u32 1.1754944e-38, %v5667
        %v5669 = vsel %vm5666, %v5668, %v5664
        %v5670 = vmul.f32 1.0, %v5669
        %v5671 = vrcp.pop %v5473
        %v5672 = vmul.f32 %v5473, %v5671
        %v5673 = vsub.f32 1.0, %v5672
        %v5674 = vmul.f32 %v5671, %v5673
        %v5675 = vadd.f32 %v5671, %v5674
        %vm5676 = vweird.f32 %v5473
        %vm5677 = vweird.f32 %v5671
        %vm5678 = vmor %vm5676, %vm5677
        %v5679 = vsel %vm5678, %v5671, %v5675
        %v5680 = vand.u32 2147483647, %v5473
        %vm5681 = vcmp.eq.f32.partialorder %v5680, 8.507059e+37
        %v5682 = vand.u32 %v5473, 2147483648
        %v5683 = vor.u32 1.1754944e-38, %v5682
        %v5684 = vsel %vm5681, %v5683, %v5679
        %v5685 = vmul.f32 1.0, %v5684
        %v5686 = vrcp.pop %v5474
        %v5687 = vmul.f32 %v5474, %v5686
        %v5688 = vsub.f32 1.0, %v5687
        %v5689 = vmul.f32 %v5686, %v5688
        %v5690 = vadd.f32 %v5686, %v5689
        %vm5691 = vweird.f32 %v5474
        %vm5692 = vweird.f32 %v5686
        %vm5693 = vmor %vm5691, %vm5692
        %v5694 = vsel %vm5693, %v5686, %v5690
        %v5695 = vand.u32 2147483647, %v5474
        %vm5696 = vcmp.eq.f32.partialorder %v5695, 8.507059e+37
        %v5697 = vand.u32 %v5474, 2147483648
        %v5698 = vor.u32 1.1754944e-38, %v5697
        %v5699 = vsel %vm5696, %v5698, %v5694
        %v5700 = vmul.f32 1.0, %v5699
        %v5701 = vrcp.pop %v5475
        %v5702 = vmul.f32 %v5475, %v5701
        %v5703 = vsub.f32 1.0, %v5702
        %v5704 = vmul.f32 %v5701, %v5703
        %v5705 = vadd.f32 %v5701, %v5704
        %vm5706 = vweird.f32 %v5475
        %vm5707 = vweird.f32 %v5701
        %vm5708 = vmor %vm5706, %vm5707
        %v5709 = vsel %vm5708, %v5701, %v5705
        %v5710 = vand.u32 2147483647, %v5475
        %vm5711 = vcmp.eq.f32.partialorder %v5710, 8.507059e+37
        %v5712 = vand.u32 %v5475, 2147483648
        %v5713 = vor.u32 1.1754944e-38, %v5712
        %v5714 = vsel %vm5711, %v5713, %v5709
        %v5715 = vmul.f32 1.0, %v5714
        %v5716 = vpack.c.bf16 %v5550, %v5490
        %v5717 = vpack.c.bf16 %v5565, %v5505
        %v5718 = vpack.c.bf16 %v5580, %v5520
        %v5719 = vpack.c.bf16 %v5595, %v5535
        %v5720 = vpack.c.bf16 %v5670, %v5610
        %v5721 = vpack.c.bf16 %v5685, %v5625
        %v5722 = vpack.c.bf16 %v5700, %v5640
        %v5723 = vpack.c.bf16 %v5715, %v5655
        %v5724 = vld [vmem:[#allocation10] sm:$0xf]
        %v5725 = vld [vmem:[#allocation10 + $0x4] sm:$0xf]
        %v5726 = vld [vmem:[#allocation10 + $0x8] sm:$0xf]
        %v5727 = vld [vmem:[#allocation10 + $0xc] sm:$0xf]
        %v5728 = vld [vmem:[#allocation10 + $0x10] sm:$0xf]
        %v5729 = vld [vmem:[#allocation10 + $0x14] sm:$0xf]
        %v5730 = vld [vmem:[#allocation10 + $0x18] sm:$0xf]
        %v5731 = vld [vmem:[#allocation10 + $0x1c] sm:$0xf]
        %v5732 = vld [vmem:[#allocation10 + $0x20] sm:$0xf]
        %v5733 = vld [vmem:[#allocation10 + $0x24] sm:$0xf]
        %v5734 = vld [vmem:[#allocation10 + $0x28] sm:$0xf]
        %v5735 = vld [vmem:[#allocation10 + $0x2c] sm:$0xf]
        %v5736 = vld [vmem:[#allocation10 + $0x30] sm:$0xf]
        %v5737 = vld [vmem:[#allocation10 + $0x34] sm:$0xf]
        %v5738 = vld [vmem:[#allocation10 + $0x38] sm:$0xf]
        %v5739 = vld [vmem:[#allocation10 + $0x3c] sm:$0xf]
        %v5740 = vld [vmem:[#allocation10 + $0x40] sm:$0xf]
        %v5741 = vld [vmem:[#allocation10 + $0x44] sm:$0xf]
        %v5742 = vld [vmem:[#allocation10 + $0x48] sm:$0xf]
        %v5743 = vld [vmem:[#allocation10 + $0x4c] sm:$0xf]
        %v5744 = vld [vmem:[#allocation10 + $0x50] sm:$0xf]
        %v5745 = vld [vmem:[#allocation10 + $0x54] sm:$0xf]
        %v5746 = vld [vmem:[#allocation10 + $0x58] sm:$0xf]
        %v5747 = vld [vmem:[#allocation10 + $0x5c] sm:$0xf]
        %v5748 = vld [vmem:[#allocation10 + $0x60] sm:$0xf]
        %v5749 = vld [vmem:[#allocation10 + $0x64] sm:$0xf]
        %v5750 = vld [vmem:[#allocation10 + $0x68] sm:$0xf]
        %v5751 = vld [vmem:[#allocation10 + $0x6c] sm:$0xf]
        %v5752 = vld [vmem:[#allocation10 + $0x70] sm:$0xf]
        %v5753 = vld [vmem:[#allocation10 + $0x74] sm:$0xf]
        %v5754 = vld [vmem:[#allocation10 + $0x78] sm:$0xf]
        %v5755 = vld [vmem:[#allocation10 + $0x7c] sm:$0xf]
        %v5756 = vld [vmem:[#allocation10 + $0x80] sm:$0xf]
        %v5757 = vld [vmem:[#allocation10 + $0x84] sm:$0xf]
        %v5758 = vld [vmem:[#allocation10 + $0x88] sm:$0xf]
        %v5759 = vld [vmem:[#allocation10 + $0x8c] sm:$0xf]
        %v5760 = vld [vmem:[#allocation10 + $0x90] sm:$0xf]
        %v5761 = vld [vmem:[#allocation10 + $0x94] sm:$0xf]
        %v5762 = vld [vmem:[#allocation10 + $0x98] sm:$0xf]
        %v5763 = vld [vmem:[#allocation10 + $0x9c] sm:$0xf]
        %v5764 = vld [vmem:[#allocation10 + $0xa0] sm:$0xf]
        %v5765 = vld [vmem:[#allocation10 + $0xa4] sm:$0xf]
        %v5766 = vld [vmem:[#allocation10 + $0xa8] sm:$0xf]
        %v5767 = vld [vmem:[#allocation10 + $0xac] sm:$0xf]
        %v5768 = vld [vmem:[#allocation10 + $0xb0] sm:$0xf]
        %v5769 = vld [vmem:[#allocation10 + $0xb4] sm:$0xf]
        %v5770 = vld [vmem:[#allocation10 + $0xb8] sm:$0xf]
        %v5771 = vld [vmem:[#allocation10 + $0xbc] sm:$0xf]
        %v5772 = vld [vmem:[#allocation10 + $0xc0] sm:$0xf]
        %v5773 = vld [vmem:[#allocation10 + $0xc4] sm:$0xf]
        %v5774 = vld [vmem:[#allocation10 + $0xc8] sm:$0xf]
        %v5775 = vld [vmem:[#allocation10 + $0xcc] sm:$0xf]
        %v5776 = vld [vmem:[#allocation10 + $0xd0] sm:$0xf]
        %v5777 = vld [vmem:[#allocation10 + $0xd4] sm:$0xf]
        %v5778 = vld [vmem:[#allocation10 + $0xd8] sm:$0xf]
        %v5779 = vld [vmem:[#allocation10 + $0xdc] sm:$0xf]
        %v5780 = vld [vmem:[#allocation10 + $0xe0] sm:$0xf]
        %v5781 = vld [vmem:[#allocation10 + $0xe4] sm:$0xf]
        %v5782 = vld [vmem:[#allocation10 + $0xe8] sm:$0xf]
        %v5783 = vld [vmem:[#allocation10 + $0xec] sm:$0xf]
        %v5784 = vld [vmem:[#allocation10 + $0xf0] sm:$0xf]
        %v5785 = vld [vmem:[#allocation10 + $0xf4] sm:$0xf]
        %v5786 = vld [vmem:[#allocation10 + $0xf8] sm:$0xf]
        %v5787 = vld [vmem:[#allocation10 + $0xfc] sm:$0xf]
        %v5788 = vld [vmem:[%s6] sm:$0x1]
        %v5790 = vperm.slane %v5788, 0
        %v5856 = vunpack.c.l.b16 %v5724
        %v5857 = vunpack.c.l.b16 %v5725
        %v5858 = vunpack.c.l.b16 %v5726
        %v5859 = vunpack.c.l.b16 %v5727
        %v5860 = vunpack.c.l.b16 %v5728
        %v5861 = vunpack.c.l.b16 %v5729
        %v5862 = vunpack.c.l.b16 %v5730
        %v5863 = vunpack.c.l.b16 %v5731
        %v5864 = vunpack.c.l.b16 %v5732
        %v5865 = vunpack.c.l.b16 %v5733
        %v5866 = vunpack.c.l.b16 %v5734
        %v5867 = vunpack.c.l.b16 %v5735
        %v5868 = vunpack.c.l.b16 %v5736
        %v5869 = vunpack.c.l.b16 %v5737
        %v5870 = vunpack.c.l.b16 %v5738
        %v5871 = vunpack.c.l.b16 %v5739
        %v5872 = vunpack.c.l.b16 %v5740
        %v5873 = vunpack.c.l.b16 %v5741
        %v5874 = vunpack.c.l.b16 %v5742
        %v5875 = vunpack.c.l.b16 %v5743
        %v5876 = vunpack.c.l.b16 %v5744
        %v5877 = vunpack.c.l.b16 %v5745
        %v5878 = vunpack.c.l.b16 %v5746
        %v5879 = vunpack.c.l.b16 %v5747
        %v5880 = vunpack.c.l.b16 %v5748
        %v5881 = vunpack.c.l.b16 %v5749
        %v5882 = vunpack.c.l.b16 %v5750
        %v5883 = vunpack.c.l.b16 %v5751
        %v5884 = vunpack.c.l.b16 %v5752
        %v5885 = vunpack.c.l.b16 %v5753
        %v5886 = vunpack.c.l.b16 %v5754
        %v5887 = vunpack.c.l.b16 %v5755
        %v5888 = vunpack.c.l.b16 %v5756
        %v5889 = vunpack.c.l.b16 %v5757
        %v5890 = vunpack.c.l.b16 %v5758
        %v5891 = vunpack.c.l.b16 %v5759
        %v5892 = vunpack.c.l.b16 %v5760
        %v5893 = vunpack.c.l.b16 %v5761
        %v5894 = vunpack.c.l.b16 %v5762
        %v5895 = vunpack.c.l.b16 %v5763
        %v5896 = vunpack.c.l.b16 %v5764
        %v5897 = vunpack.c.l.b16 %v5765
        %v5898 = vunpack.c.l.b16 %v5766
        %v5899 = vunpack.c.l.b16 %v5767
        %v5900 = vunpack.c.l.b16 %v5768
        %v5901 = vunpack.c.l.b16 %v5769
        %v5902 = vunpack.c.l.b16 %v5770
        %v5903 = vunpack.c.l.b16 %v5771
        %v5904 = vunpack.c.l.b16 %v5772
        %v5905 = vunpack.c.l.b16 %v5773
        %v5906 = vunpack.c.l.b16 %v5774
        %v5907 = vunpack.c.l.b16 %v5775
        %v5908 = vunpack.c.l.b16 %v5776
        %v5909 = vunpack.c.l.b16 %v5777
        %v5910 = vunpack.c.l.b16 %v5778
        %v5911 = vunpack.c.l.b16 %v5779
        %v5912 = vunpack.c.l.b16 %v5780
        %v5913 = vunpack.c.l.b16 %v5781
        %v5914 = vunpack.c.l.b16 %v5782
        %v5915 = vunpack.c.l.b16 %v5783
        %v5916 = vunpack.c.l.b16 %v5784
        %v5917 = vunpack.c.l.b16 %v5785
        %v5918 = vunpack.c.l.b16 %v5786
        %v5919 = vunpack.c.l.b16 %v5787
        %v5920 = vpack.c.b16 %v5857, %v5856
        %v5921 = vpack.c.b16 %v5859, %v5858
        %v5922 = vpack.c.b16 %v5861, %v5860
        %v5923 = vpack.c.b16 %v5863, %v5862
        %v5924 = vpack.c.b16 %v5865, %v5864
        %v5925 = vpack.c.b16 %v5867, %v5866
        %v5926 = vpack.c.b16 %v5869, %v5868
        %v5927 = vpack.c.b16 %v5871, %v5870
        %v5928 = vpack.c.b16 %v5873, %v5872
        %v5929 = vpack.c.b16 %v5875, %v5874
        %v5930 = vpack.c.b16 %v5877, %v5876
        %v5931 = vpack.c.b16 %v5879, %v5878
        %v5932 = vpack.c.b16 %v5881, %v5880
        %v5933 = vpack.c.b16 %v5883, %v5882
        %v5934 = vpack.c.b16 %v5885, %v5884
        %v5935 = vpack.c.b16 %v5887, %v5886
        %v5936 = vpack.c.b16 %v5889, %v5888
        %v5937 = vpack.c.b16 %v5891, %v5890
        %v5938 = vpack.c.b16 %v5893, %v5892
        %v5939 = vpack.c.b16 %v5895, %v5894
        %v5940 = vpack.c.b16 %v5897, %v5896
        %v5941 = vpack.c.b16 %v5899, %v5898
        %v5942 = vpack.c.b16 %v5901, %v5900
        %v5943 = vpack.c.b16 %v5903, %v5902
        %v5944 = vpack.c.b16 %v5905, %v5904
        %v5945 = vpack.c.b16 %v5907, %v5906
        %v5946 = vpack.c.b16 %v5909, %v5908
        %v5947 = vpack.c.b16 %v5911, %v5910
        %v5948 = vpack.c.b16 %v5913, %v5912
        %v5949 = vpack.c.b16 %v5915, %v5914
        %v5950 = vpack.c.b16 %v5917, %v5916
        %v5951 = vpack.c.b16 %v5919, %v5918
        %5984 = vmatpush.bf16.msra.mxu0 %v5927
        %5985 = vmatpush.bf16.msra.mxu0 %v5926
        %5986 = vmatpush.bf16.msra.mxu0 %v5925
        %5987 = vmatpush.bf16.msra.mxu0 %v5924
        %5988 = vmatpush.bf16.msra.mxu0 %v5923
        %5989 = vmatpush.bf16.msra.mxu0 %v5922
        %5990 = vmatpush.bf16.msra.mxu0 %v5921
        %5991 = vmatpush.bf16.msra.mxu0 %v5920
        %5992 = vmatmul.bf16.gmra.mxu0 %v5716
        %v5993 = vpop.f32.mrf.mxu0
        %v5994 = vadd.f32 %v5790, %v5993
        %v5995 = vpop.f32.mrf.mxu0
        %v5996 = vadd.f32 %v5790, %v5995
        %5997 = vmatmul.bf16.gmra.mxu0 %v5720
        %v5998 = vpop.f32.mrf.mxu0
        %v5999 = vadd.f32 %v5790, %v5998
        %v6000 = vpop.f32.mrf.mxu0
        %v6001 = vadd.f32 %v5790, %v6000
        %6002 = vdwg.mxu0
        %6003 = vmatpush.bf16.msra.mxu0 %v5935
        %6004 = vmatpush.bf16.msra.mxu0 %v5934
        %6005 = vmatpush.bf16.msra.mxu0 %v5933
        %6006 = vmatpush.bf16.msra.mxu0 %v5932
        %6007 = vmatpush.bf16.msra.mxu0 %v5931
        %6008 = vmatpush.bf16.msra.mxu0 %v5930
        %6009 = vmatpush.bf16.msra.mxu0 %v5929
        %6010 = vmatpush.bf16.msra.mxu0 %v5928
        %6011 = vmatmul.bf16.gmra.mxu0 %v5717
        %v6012 = vpop.f32.mrf.mxu0
        %v6013 = vadd.f32 %v5994, %v6012
        %v6014 = vpop.f32.mrf.mxu0
        %v6015 = vadd.f32 %v5996, %v6014
        %6016 = vmatmul.bf16.gmra.mxu0 %v5721
        %v6017 = vpop.f32.mrf.mxu0
        %v6018 = vadd.f32 %v5999, %v6017
        %v6019 = vpop.f32.mrf.mxu0
        %v6020 = vadd.f32 %v6001, %v6019
        %6021 = vdwg.mxu0
        %6022 = vmatpush.bf16.msra.mxu0 %v5943
        %6023 = vmatpush.bf16.msra.mxu0 %v5942
        %6024 = vmatpush.bf16.msra.mxu0 %v5941
        %6025 = vmatpush.bf16.msra.mxu0 %v5940
        %6026 = vmatpush.bf16.msra.mxu0 %v5939
        %6027 = vmatpush.bf16.msra.mxu0 %v5938
        %6028 = vmatpush.bf16.msra.mxu0 %v5937
        %6029 = vmatpush.bf16.msra.mxu0 %v5936
        %6030 = vmatmul.bf16.gmra.mxu0 %v5718
        %v6031 = vpop.f32.mrf.mxu0
        %v6032 = vadd.f32 %v6013, %v6031
        %v6033 = vpop.f32.mrf.mxu0
        %v6034 = vadd.f32 %v6015, %v6033
        %6035 = vmatmul.bf16.gmra.mxu0 %v5722
        %v6036 = vpop.f32.mrf.mxu0
        %v6037 = vadd.f32 %v6018, %v6036
        %v6038 = vpop.f32.mrf.mxu0
        %v6039 = vadd.f32 %v6020, %v6038
        %6040 = vdwg.mxu0
        %6041 = vmatpush.bf16.msra.mxu0 %v5951
        %6042 = vmatpush.bf16.msra.mxu0 %v5950
        %6043 = vmatpush.bf16.msra.mxu0 %v5949
        %6044 = vmatpush.bf16.msra.mxu0 %v5948
        %6045 = vmatpush.bf16.msra.mxu0 %v5947
        %6046 = vmatpush.bf16.msra.mxu0 %v5946
        %6047 = vmatpush.bf16.msra.mxu0 %v5945
        %6048 = vmatpush.bf16.msra.mxu0 %v5944
        %6049 = vmatmul.bf16.gmra.mxu0 %v5719
        %v6050 = vpop.f32.mrf.mxu0
        %v6051 = vadd.f32 %v6032, %v6050
        %v6052 = vpop.f32.mrf.mxu0
        %v6053 = vadd.f32 %v6034, %v6052
        %6054 = vmatmul.bf16.gmra.mxu0 %v5723
        %v6055 = vpop.f32.mrf.mxu0
        %v6056 = vadd.f32 %v6037, %v6055
        %v6057 = vpop.f32.mrf.mxu0
        %v6058 = vadd.f32 %v6039, %v6057
        %6059 = vdwg.mxu0
        %v6060 = vxor.u32 %v6051, 2147483648
        %v6061 = vxor.u32 %v6053, 2147483648
        %v6062 = vxor.u32 %v6056, 2147483648
        %v6063 = vxor.u32 %v6058, 2147483648
        %v6064 = vmul.f32 %v6060, 1.442695
        %v6065 = vpow.pop %v6064
        %v6066 = vmul.f32 %v6061, 1.442695
        %v6067 = vpow.pop %v6066
        %v6068 = vmul.f32 %v6062, 1.442695
        %v6069 = vpow.pop %v6068
        %v6070 = vmul.f32 %v6063, 1.442695
        %v6071 = vpow.pop %v6070
        %v6072 = vadd.f32 %v6065, 1.0
        %v6073 = vadd.f32 %v6067, 1.0
        %v6074 = vadd.f32 %v6069, 1.0
        %v6075 = vadd.f32 %v6071, 1.0
        %v6076 = vrcp.pop %v6072
        %v6077 = vmul.f32 %v6072, %v6076
        %v6078 = vsub.f32 1.0, %v6077
        %v6079 = vmul.f32 %v6076, %v6078
        %v6080 = vadd.f32 %v6076, %v6079
        %vm6081 = vweird.f32 %v6072
        %vm6082 = vweird.f32 %v6076
        %vm6083 = vmor %vm6081, %vm6082
        %v6084 = vsel %vm6083, %v6076, %v6080
        %v6085 = vand.u32 2147483647, %v6072
        %vm6086 = vcmp.eq.f32.partialorder %v6085, 8.507059e+37
        %v6087 = vand.u32 %v6072, 2147483648
        %v6088 = vor.u32 1.1754944e-38, %v6087
        %v6089 = vsel %vm6086, %v6088, %v6084
        %v6090 = vmul.f32 1.0, %v6089
        %v6091 = vrcp.pop %v6073
        %v6092 = vmul.f32 %v6073, %v6091
        %v6093 = vsub.f32 1.0, %v6092
        %v6094 = vmul.f32 %v6091, %v6093
        %v6095 = vadd.f32 %v6091, %v6094
        %vm6096 = vweird.f32 %v6073
        %vm6097 = vweird.f32 %v6091
        %vm6098 = vmor %vm6096, %vm6097
        %v6099 = vsel %vm6098, %v6091, %v6095
        %v6100 = vand.u32 2147483647, %v6073
        %vm6101 = vcmp.eq.f32.partialorder %v6100, 8.507059e+37
        %v6102 = vand.u32 %v6073, 2147483648
        %v6103 = vor.u32 1.1754944e-38, %v6102
        %v6104 = vsel %vm6101, %v6103, %v6099
        %v6105 = vmul.f32 1.0, %v6104
        %v6106 = vrcp.pop %v6074
        %v6107 = vmul.f32 %v6074, %v6106
        %v6108 = vsub.f32 1.0, %v6107
        %v6109 = vmul.f32 %v6106, %v6108
        %v6110 = vadd.f32 %v6106, %v6109
        %vm6111 = vweird.f32 %v6074
        %vm6112 = vweird.f32 %v6106
        %vm6113 = vmor %vm6111, %vm6112
        %v6114 = vsel %vm6113, %v6106, %v6110
        %v6115 = vand.u32 2147483647, %v6074
        %vm6116 = vcmp.eq.f32.partialorder %v6115, 8.507059e+37
        %v6117 = vand.u32 %v6074, 2147483648
        %v6118 = vor.u32 1.1754944e-38, %v6117
        %v6119 = vsel %vm6116, %v6118, %v6114
        %v6120 = vmul.f32 1.0, %v6119
        %v6121 = vrcp.pop %v6075
        %v6122 = vmul.f32 %v6075, %v6121
        %v6123 = vsub.f32 1.0, %v6122
        %v6124 = vmul.f32 %v6121, %v6123
        %v6125 = vadd.f32 %v6121, %v6124
        %vm6126 = vweird.f32 %v6075
        %vm6127 = vweird.f32 %v6121
        %vm6128 = vmor %vm6126, %vm6127
        %v6129 = vsel %vm6128, %v6121, %v6125
        %v6130 = vand.u32 2147483647, %v6075
        %vm6131 = vcmp.eq.f32.partialorder %v6130, 8.507059e+37
        %v6132 = vand.u32 %v6075, 2147483648
        %v6133 = vor.u32 1.1754944e-38, %v6132
        %v6134 = vsel %vm6131, %v6133, %v6129
        %v6135 = vmul.f32 1.0, %v6134
        %v6136 = vld [vmem:[%s7] sm:$0x1]
        %v6138 = vperm.slane %v6136, 0
        %v6140 = vmul.f32 %v6090, %v6138
        %v6141 = vmul.f32 %v6105, %v6138
        %v6142 = vmul.f32 %v6120, %v6138
        %v6143 = vmul.f32 %v6135, %v6138
        %6144 = vadd.xlane.f32.xlu0 %v6140
        %v6145 = vpop.xlane.xlu0 %6144
        %6146 = vadd.xlane.f32.xlu0 %v6141
        %v6147 = vpop.xlane.xlu0 %6146
        %6148 = vadd.xlane.f32.xlu0 %v6142
        %v6149 = vpop.xlane.xlu0 %6148
        %6150 = vadd.xlane.f32.xlu0 %v6143
        %v6151 = vpop.xlane.xlu0 %6150
        %v6152 = vld [vmem:[#allocation2] sm:$0x1]
        %v6154 = vperm.slane %v6152, 0
        %v6156 = vadd.f32 %v6145, %v6154
        %v6157 = vadd.f32 %v6147, %v6154
        %v6158 = vadd.f32 %v6149, %v6154
        %v6159 = vadd.f32 %v6151, %v6154
        %vm6160 = vcmask 7168
        %6161 = vst.msk [vmem:[%s422] sm:$0xff] %vm6160, %v6156
        %6162 = vst.msk [vmem:[%s422 + $0x8] sm:$0xff] %vm6160, %v6157
        %6163 = vst.msk [vmem:[%s422 + $0x10] sm:$0xff] %vm6160, %v6158
        %6164 = vst.msk [vmem:[%s422 + $0x18] sm:$0xff] %vm6160, %v6159
        %s6165 = smul.u32 4, %s27
        %p6166 = scmp.lt.s32.totalorder %s6165, 7
        %s6167 = scalar_select %p6166, %s6165, 7
        %s6168 = smul.addr %s6167, 8
        %s6169 = scalar_lea.vmem %s9, %s6168
        // Predicated region
        $region77: #{tpu_custom_call.1} parent=55 // pred_check
          %p6170 = pneg %p239
        $region78: #{tpu_custom_call.1} parent=55 // pred_check_branch
          %6172 = sbr.rel (%p6170) target = $region80
        $region79: #{tpu_custom_call.1} parent=55 // pred_region
          %s6173 = smul.u32 4, %s27
        $region80: #{tpu_custom_call.1} parent=55 // pred_fallthru
          _
      $region56: #{tpu_custom_call.1} parent=5 // pred_fallthru
        _
      %p6174 = scmp.le.s32.totalorder 2, %s22
      // Predicated region
      $region81: #{tpu_custom_call.1} parent=5 // pred_check
        %p6175 = pneg %p6174
      $region82: #{tpu_custom_call.1} parent=5 // pred_check_branch
        %6177 = sbr.rel (%p6175) target = $region84
      $region83: #{tpu_custom_call.1} parent=5 // pred_region
        %s6178 = ssub.s32 %s22, 2
        // Predicated region
        $region85: #{tpu_custom_call.1} parent=83 // pred_check
          %p6179 = pneg %p245
        $region86: #{tpu_custom_call.1} parent=83 // pred_check_branch
          %6181 = sbr.rel (%p6179) target = $region88
        $region87: #{tpu_custom_call.1} parent=83 // pred_region
          %s6182 = smul.u32 4, %s28
          %p6183 = scmp.lt.s32.totalorder %s6182, 7
          %s6184 = scalar_select %p6183, %s6182, 7
          %s6185 = smul.addr %s6184, 8
          %s6186 = scalar_lea.vmem %s9, %s6185
        $region88: #{tpu_custom_call.1} parent=83 // pred_fallthru
          _
      $region84: #{tpu_custom_call.1} parent=5 // pred_fallthru
        _
    $region6: #{tpu_custom_call.1} parent=1 // loop_footer
      %s26 = sadd.s32 1, %s22
    $region7: #{tpu_custom_call.1} parent=1 // loop_footer_branch
      %21 = sbr.rel target = $region3
    $region8: #{tpu_custom_call.1} parent=1 // loop_exit
      _
    %6187 = vsyncpa [#allocation4], 1
    %s6188 = scalar_lea.sflag [#allocation4], 1
    %6189 = vsyncpa %s6188, 1
    %6190 = vsyncpa [#allocation6], 1
    %6191 = vsyncpa [#allocation9], 1

</llo_original>
